<compile_context>
chip_gen: v6e
topology: v6e:2x2x1
jax: 0.10.0
libtpu: 0.0.40
codegen_flags: <defaults>
</compile_context>

<pallas_src>
import math
import numpy as np

import jax
import jax.numpy as jnp
from jax.experimental import pallas as pl
from jax.experimental.pallas import tpu as pltpu


_VMEM_SPEC = pl.BlockSpec(memory_space=pltpu.MemorySpace.VMEM)
# Mosaic's dot lowering supports only DEFAULT / HIGHEST; HIGHEST keeps the field
# exactly f32-accurate through the chained frames (the dots are tiny anyway).
_DOT_PREC = jax.lax.Precision.HIGHEST


# ---------------------------------------------------------------------------
# Host-side (numpy) construction of the tiny linear operators the kernel uses.
# ---------------------------------------------------------------------------
def _shift_row_op(n, dy, mode):
    """(n, n): (M @ x)[i, :] == x[i+dy, :], 'clamp' (replicate) or 'zero' fill."""
    M = np.zeros((n, n), np.float32)
    for i in range(n):
        s = i + dy
        if mode == "clamp":
            M[i, min(max(s, 0), n - 1)] = 1.0
        elif 0 <= s < n:
            M[i, s] = 1.0
    return M


def _shift_col_op(n, dx, mode):
    """(n, n): (x @ M)[:, j] == x[:, j+dx], 'clamp' or 'zero' fill."""
    M = np.zeros((n, n), np.float32)
    for j in range(n):
        s = j + dx
        if mode == "clamp":
            M[min(max(s, 0), n - 1), j] = 1.0
        elif 0 <= s < n:
            M[s, j] = 1.0
    return M


def _restrict_row_op(n):
    """(n//2, n): row half of the 2x2 stride-2 average-pool conv."""
    M = np.zeros((n // 2, n), np.float32)
    for i in range(n // 2):
        M[i, 2 * i] = 0.5
        M[i, 2 * i + 1] = 0.5
    return M


def _restrict_col_op(n):
    M = np.zeros((n, n // 2), np.float32)
    for j in range(n // 2):
        M[2 * j, j] = 0.5
        M[2 * j + 1, j] = 0.5
    return M


def _prolong_row_op(n):
    """(2n, n): nearest-neighbour 2x upsample along rows."""
    M = np.zeros((2 * n, n), np.float32)
    for i in range(2 * n):
        M[i, i // 2] = 1.0
    return M


def _prolong_col_op(n):
    M = np.zeros((n, 2 * n), np.float32)
    for j in range(2 * n):
        M[j // 2, j] = 1.0
    return M


def _build_smooth_plan(add, w3, h, wd, mode):
    """Operators for one 3x3 'smooth' conv (centre weight 0) at size (h, wd).

    mode 'clamp': replicate-edge padding with zero corners (boundary_condition).
    mode 'zero' : F.pad(..., value=0).

    smooth(x) = Mrow @ x + x @ Mcol + sum_dx Krow_dx @ (x @ C_dx) - cmask * x
    (row taps and column taps pre-summed; corner taps grouped per column shift).
    """
    w3 = np.asarray(w3, np.float32)

    Mrow = None                                    # taps (dy, 0)
    for dy in (-1, 1):
        wt = float(w3[dy + 1, 1])
        if wt != 0.0:
            t = wt * _shift_row_op(h, dy, mode)
            Mrow = t if Mrow is None else Mrow + t

    Mcol = None                                    # taps (0, dx)
    for dx in (-1, 1):
        wt = float(w3[1, dx + 1])
        if wt != 0.0:
            t = wt * _shift_col_op(wd, dx, mode)
            Mcol = t if Mcol is None else Mcol + t

    corners = []                                   # taps with dy != 0 and dx != 0
    corner_weights_present = False
    for dx in (-1, 1):
        Krow = None
        for dy in (-1, 1):
            wt = float(w3[dy + 1, dx + 1])
            if wt != 0.0:
                corner_weights_present = True
                t = wt * _shift_row_op(h, dy, mode)
                Krow = t if Krow is None else Krow + t
        if Krow is not None:
            corners.append((add(Krow), add(_shift_col_op(wd, dx, mode))))

    cmask = None
    if mode == "clamp" and corner_weights_present:
        # The padded array's 4 corners are 0 (not replicated); the clamped shift
        # operators place x[corner] there instead, so subtract it back out.
        cm = np.zeros((h, wd), np.float32)
        cm[0, 0] = float(w3[0, 0])
        cm[0, -1] = float(w3[0, 2])
        cm[-1, 0] = float(w3[2, 0])
        cm[-1, -1] = float(w3[2, 2])
        if np.any(cm != 0.0):
            cmask = add(cm)

    return dict(
        mrow=None if Mrow is None else add(Mrow),
        mcol=None if Mcol is None else add(Mcol),
        corners=corners,
        cmask=cmask,
    )


# ---------------------------------------------------------------------------
# The fused forward kernel: all frames x all sweeps x all multigrid levels.
# ---------------------------------------------------------------------------
def _make_forward_kernel(plan, n_ops, *, inv_diag, omega, iteration, n_coarse, H, W):
    inv_diag = float(inv_diag)
    omega = float(omega)
    iteration = int(iteration)

    def dot(a, b):
        return jnp.dot(a, b, precision=_DOT_PREC, preferred_element_type=jnp.float32)

    def kernel(*refs):
        u0_ref = refs[0]
        op_refs = refs[1:1 + n_ops]
        out_ref = refs[1 + n_ops]          # (1, H, W) block of the frame slab
        u_sc = refs[2 + n_ops]             # (H, W) carry across frames (VMEM)

        def op(idx):
            return op_refs[idx][...]

        def smooth(x, sp):
            acc = None
            if sp["mrow"] is not None:
                acc = dot(op(sp["mrow"]), x)
            if sp["mcol"] is not None:
                t = dot(x, op(sp["mcol"]))
                acc = t if acc is None else acc + t
            for kr, cc in sp["corners"]:
                t = dot(op(kr), dot(x, op(cc)))
                acc = t if acc is None else acc + t
            if acc is None:
                acc = jnp.zeros_like(x)
            if sp["cmask"] is not None:
                acc = acc - op(sp["cmask"]) * x
            return acc

        frame = pl.program_id(0)

        @pl.when(frame == 0)
        def _():
            u_sc[...] = u0_ref[...]

        u = u_sc[...]
        for _ in range(iteration):
            su = smooth(u, plan["smooth_bc"])            # r = smooth(bc(u)), b == 0
            r_s = {0: su}
            r = su
            for i in range(1, n_coarse):                  # explicit residual levels
                rl, rc = plan["restrict"][i]
                r = dot(dot(op(rl), r), op(rc))
                r_s[i] = r
            if n_coarse == 0:
                e = jnp.zeros((H, W), jnp.float32)        # degenerate hierarchy
            else:
                # Deepest restrict -> (e = r/diag, since e==0 and smooth(pad(0))==0)
                # -> prolong, fused into one pair of block-average operators.
                bl, bc = plan["coarse"]
                e = dot(dot(op(bl), r_s[n_coarse - 1]), op(bc)) * inv_diag
                for j in range(n_coarse - 1, 0, -1):
                    se = smooth(e, plan["smooth_zero"][j])
                    e = e + (r_s[j] - se) * inv_diag
                    prl, prc = plan["prolong"][j]
                    e = dot(dot(op(prl), e), op(prc))     # nearest 2x upsample
            # (1-w)*u + w*(u - e - su/diag)  ==  u - w*(e + su/diag)   (b == 0)
            u = u - omega * (e + su * inv_diag)

        # Final min/max normalisation (no guard for constant fields, as in the
        # reference).  Exact scalar reciprocal -- NOT approx.
        umin = jnp.min(u)
        umax = jnp.max(u)
        u = (u - umin) * (1.0 / (umax - umin))
        u_sc[...] = u                                     # carry to next frame
        out_ref[0] = u

    return kernel


# ---------------------------------------------------------------------------
# Synthetic stand-ins for the solver / field objects used by __init__
# ---------------------------------------------------------------------------
class FakeU:
    """Mimics the `u` field object: .data is a list of 2-D (ny, nx) frames."""
    def __init__(self, frames):
        self.data = list(frames)


def fake_solver(eq, u, dt, dx, dy):
    """Deterministic 3x3 advection-diffusion stencil (shape matches solver())."""
    ax = dt / dx ** 2
    ay = dt / dy ** 2
    return np.array([[0.0, -ay, 0.0],
                     [-ax, 1.0 + 2.0 * ax + 2.0 * ay, -ax],
                     [0.0, -ay, 0.0]], dtype=np.float32)


# ---------------------------------------------------------------------------
# The solver (mirrors PDE_Solver forward semantics; fields kept as 2-D (ny,nx))
# ---------------------------------------------------------------------------
class PDESolverPallas:
    def __init__(self, eq, u, dx, dy, dt, nx, ny, solver, omega=1, s=0):
        self.s = s
        A = np.asarray(solver(eq, u, dt, dx, dy), dtype=np.float32)   # (3, 3)
        self.diag = float(A[1, 1])
        A_sm = A.copy()
        A_sm[1, 1] = 0.0                          # centre zeroed, as in __init__
        self.A = A_sm
        self.nx, self.ny = int(nx), int(ny)
        self.u = u
        self.omega = float(omega)
        self.nlevel = int(math.log(min(nx, ny), 2)) + 1
        self.n_coarse = max(self.nlevel - 4, 0)
        self.init_condition = jnp.asarray(np.asarray(u.data[0], dtype=np.float32))

        # ---- precompute every tiny linear operator once, on the host ---------
        H, W = self.ny, self.nx
        ops = []

        def add(arr):
            ops.append(np.ascontiguousarray(np.asarray(arr, np.float32)))
            return len(ops) - 1

        nc = self.n_coarse
        plan = {
            "smooth_bc": _build_smooth_plan(add, A_sm, H, W, "clamp"),
            "smooth_zero": {j: _build_smooth_plan(add, A_sm, H >> j, W >> j, "zero")
                            for j in range(1, nc)},
            "restrict": {i: (add(_restrict_row_op(H >> (i - 1))),
                             add(_restrict_col_op(W >> (i - 1))))
                         for i in range(1, nc)},
            "prolong": {j: (add(_prolong_row_op(H >> j)),
                            add(_prolong_col_op(W >> j)))
                        for j in range(1, nc)},
        }
        if nc >= 1:
            # Fused deepest restrict->prolong: 2x2 block-average operators.
            BL = _prolong_row_op(H >> nc) @ _restrict_row_op(H >> (nc - 1))
            BC = _restrict_col_op(W >> (nc - 1)) @ _prolong_col_op(W >> nc)
            plan["coarse"] = (add(BL), add(BC))
        else:
            plan["coarse"] = None

        self._plan = plan
        self._op_consts = tuple(jnp.asarray(o) for o in ops)
        self._n_ops = len(ops)
        self._compiled = {}

    # One fused pallas_call over all frames: u carried in a VMEM scratch.
    def _forward_fn(self, iteration, num_steps):
        key = (int(iteration), int(num_steps))
        fn = self._compiled.get(key)
        if fn is not None:
            return fn

        H, W = self.ny, self.nx
        kernel = _make_forward_kernel(
            self._plan, self._n_ops,
            inv_diag=1.0 / self.diag, omega=self.omega,
            iteration=int(iteration), n_coarse=self.n_coarse, H=H, W=W)

        call = pl.pallas_call(
            kernel,
            out_shape=jax.ShapeDtypeStruct((num_steps, H, W), jnp.float32),
            grid=(num_steps,),
            in_specs=[_VMEM_SPEC] * (1 + self._n_ops),
            out_specs=pl.BlockSpec((1, H, W), lambda f: (f, 0, 0)),
            scratch_shapes=[pltpu.VMEM((H, W), jnp.float32)],
            compiler_params=pltpu.CompilerParams(
                dimension_semantics=("arbitrary",)),   # frames form a serial chain
        )
        op_consts = self._op_consts

        def run(u0):
            return call(u0.astype(jnp.float32), *op_consts)

        fn = jax.jit(run)
        self._compiled[key] = fn
        return fn

    def F_cycle(self, iteration):
        frames = self._forward_fn(iteration, 1)(self.init_condition)
        return frames[0]

    def forward(self, t=4):
        num_steps = len(self.u.data) - 1
        if num_steps <= 0:
            return self.u
        frames = self._forward_fn(t, num_steps)(self.init_condition)   # (F, H, W)
        self.init_condition = frames[-1]                # stays on device
        frames_np = np.asarray(jax.device_get(frames))  # single D2H transfer
        for i in range(1, len(self.u.data)):
            self.u.data[i] = frames_np[i - 1]           # stored as (ny, nx)
        return self.u


# ---------------------------------------------------------------------------
# NumPy reference (mirrors the PyTorch module op-for-op) -- used for testing
# ---------------------------------------------------------------------------
def reference_f_cycle(u0, A_raw, omega, nlevel, iteration):
    A = np.asarray(A_raw, dtype=np.float32)
    diag = float(A[1, 1])
    A_sm = A.copy()
    A_sm[1, 1] = 0.0

    def bc(u):
        h, w = u.shape
        up = np.zeros((h + 2, w + 2), np.float32)
        up[1:-1, 1:-1] = u
        up[0, 1:-1] = u[0, :]
        up[-1, 1:-1] = u[-1, :]
        up[1:-1, 0] = u[:, 0]
        up[1:-1, -1] = u[:, -1]
        return up

    def smooth(up):
        h, w = up.shape[0] - 2, up.shape[1] - 2
        out = np.zeros((h, w), np.float32)
        for ky in range(3):
            for kx in range(3):
                out += A_sm[ky, kx] * up[ky:ky + h, kx:kx + w]
        return out

    def res(r):
        return 0.25 * (r[0::2, 0::2] + r[1::2, 0::2] + r[0::2, 1::2] + r[1::2, 1::2])

    def prol(e):
        return np.repeat(np.repeat(e, 2, axis=0), 2, axis=1)

    b = 0.0
    u = np.asarray(u0, dtype=np.float32).copy()
    for _ in range(iteration):
        r = smooth(bc(u)) - b
        r_s = [r]
        e = np.zeros((1, 1), np.float32)
        for _i in range(1, nlevel - 3):
            r = res(r)
            r_s.append(r)
        for j in reversed(range(1, nlevel - 3)):
            e = e - smooth(np.pad(e, ((1, 1), (1, 1)))) / diag + r_s[j] / diag
            e = prol(e)
        u_update = u - e - smooth(bc(u)) / diag + b / diag
        u = (1.0 - omega) * u + omega * u_update
    return ((u - u.min()) / (u.max() - u.min())).astype(np.float32)


# ---------------------------------------------------------------------------
if __name__ == "__main__":
    # -------- primary problem: 16x16 advection-diffusion stencil, 3 frames -----
    nx = ny = 16                      # nlevel = log2(16) + 1 = 5
    dx = dy = 1.0 / nx
    dt = 1e-4
    num_frames = 3

    key = jax.random.PRNGKey(0)
    init = np.asarray(jax.random.normal(key, (ny, nx), dtype=jnp.float32))
    frames = [init] + [np.zeros((ny, nx), np.float32) for _ in range(num_frames - 1)]
    u_field = FakeU(frames)

    solver = PDESolverPallas(eq=None, u=u_field, dx=dx, dy=dy, dt=dt,
                             nx=nx, ny=ny, solver=fake_solver, omega=1, s=0)
    out = solver.forward(t=4)

    final = jax.block_until_ready(jnp.asarray(out.data[-1]))
    assert final.shape == (ny, nx)
    assert bool(jnp.all(jnp.isfinite(final)))
    assert abs(float(jnp.min(final)) - 0.0) < 1e-5     # min/max normalised output
    assert abs(float(jnp.max(final)) - 1.0) < 1e-5

    # chained NumPy reference check (mirrors the PyTorch module)
    A_raw = fake_solver(None, None, dt, dx, dy)
    want = init
    for _ in range(num_frames - 1):
        want = reference_f_cycle(want, A_raw, omega=1.0,
                                 nlevel=solver.nlevel, iteration=4)
    err = float(np.max(np.abs(np.asarray(out.data[-1]) - want)))
    assert err < 2e-3, f"primary mismatch vs reference: {err}"

    # -------- secondary check: 32x32 (deeper hierarchy), dense 3x3, omega=0.8 --
    def dense_solver(eq, u, dt_, dx_, dy_):
        return np.array([[0.030, -0.080, 0.020],
                         [-0.070, 1.100, -0.060],
                         [0.010, -0.090, 0.025]], dtype=np.float32)

    nx2 = ny2 = 32                    # nlevel = 6 -> two coarse levels
    init2 = np.asarray(jax.random.normal(jax.random.PRNGKey(1), (ny2, nx2),
                                         dtype=jnp.float32))
    u2 = FakeU([init2, np.zeros((ny2, nx2), np.float32)])
    solver2 = PDESolverPallas(eq=None, u=u2, dx=1.0 / nx2, dy=1.0 / ny2, dt=dt,
                              nx=nx2, ny=ny2, solver=dense_solver, omega=0.8, s=0)
    out2 = solver2.forward(t=3)
    want2 = reference_f_cycle(init2, dense_solver(None, None, None, None, None),
                              omega=0.8, nlevel=solver2.nlevel, iteration=3)
    err2 = float(np.max(np.abs(np.asarray(out2.data[1]) - want2)))
    assert err2 < 2e-3, f"secondary mismatch vs reference: {err2}"

    print("KERNEL_OK")
</pallas_src>

<mosaic_0001>
module attributes {stable_mosaic.version = 11 : i64} {
  func.func @kernel(%arg0: i32, %arg1: memref<16x16xf32, #tpu.memory_space<vmem>>, %arg2: memref<16x16xf32, #tpu.memory_space<vmem>>, %arg3: memref<16x16xf32, #tpu.memory_space<vmem>>, %arg4: memref<16x16xf32, #tpu.memory_space<vmem>>, %arg5: memref<16x16xf32, #tpu.memory_space<vmem>>, %arg6: memref<1x16x16xf32, #tpu.memory_space<vmem>>, %arg7: memref<16x16xf32, #tpu.memory_space<vmem>>) attributes {dimension_semantics = [#tpu.dimension_semantics<arbitrary>], iteration_bounds = array<i64: 2>, scalar_prefetch = 0 : i64, scratch_operands = 1 : i64, tpu.core_type = #tpu.core_type<tc>, window_params = [{pipeline_mode = #tpu.pipeline_mode<synchronous>, transform_indices = @transform_0, window_bounds = array<i64: 16, 16>}, {pipeline_mode = #tpu.pipeline_mode<synchronous>, transform_indices = @transform_1, window_bounds = array<i64: 16, 16>}, {pipeline_mode = #tpu.pipeline_mode<synchronous>, transform_indices = @transform_2, window_bounds = array<i64: 16, 16>}, {pipeline_mode = #tpu.pipeline_mode<synchronous>, transform_indices = @transform_3, window_bounds = array<i64: 16, 16>}, {pipeline_mode = #tpu.pipeline_mode<synchronous>, transform_indices = @transform_4, window_bounds = array<i64: 16, 16>}, {transform_indices = @transform_5, window_bounds = array<i64: 1, 16, 16>}]} {
    %c0_i32 = arith.constant 0 : i32
    %0 = arith.cmpi eq, %arg0, %c0_i32 : i32
    %1 = arith.extui %0 : i1 to i32
    %c0_i32_0 = arith.constant 0 : i32
    %2 = arith.cmpi ne, %1, %c0_i32_0 : i32
    scf.if %2 {
      %c0_69 = arith.constant 0 : index
      %c0_70 = arith.constant 0 : index
      %90 = vector.load %arg1[%c0_69, %c0_70] : memref<16x16xf32, #tpu.memory_space<vmem>>, vector<16x16xf32>
      %c0_71 = arith.constant 0 : index
      %c0_72 = arith.constant 0 : index
      %91 = vector.load %arg7[%c0_71, %c0_72] : memref<16x16xf32, #tpu.memory_space<vmem>>, vector<16x16xf32>
      tpu.vector_store %arg7[%c0_71, %c0_72], %90 {strides = array<i32>} : memref<16x16xf32, #tpu.memory_space<vmem>>, vector<16x16xf32>,
    } else {
    }
    %c0 = arith.constant 0 : index
    %c0_1 = arith.constant 0 : index
    %3 = vector.load %arg7[%c0, %c0_1] : memref<16x16xf32, #tpu.memory_space<vmem>>, vector<16x16xf32>
    %c0_2 = arith.constant 0 : index
    %c0_3 = arith.constant 0 : index
    %4 = vector.load %arg2[%c0_2, %c0_3] : memref<16x16xf32, #tpu.memory_space<vmem>>, vector<16x16xf32>
    %cst = arith.constant dense<0.000000e+00> : vector<16x16xf32>
    %5 = tpu.matmul %4, %3, %cst {dimension_numbers = #tpu.dot_dimension_numbers<[1], [0], [0], [1], [0, 0, 1, 1], [], []>, precision = #tpu.contract_precision<fp32>} : vector<16x16xf32>, vector<16x16xf32>, vector<16x16xf32> -> vector<16x16xf32>
    %c0_4 = arith.constant 0 : index
    %c0_5 = arith.constant 0 : index
    %6 = vector.load %arg3[%c0_4, %c0_5] : memref<16x16xf32, #tpu.memory_space<vmem>>, vector<16x16xf32>
    %cst_6 = arith.constant dense<0.000000e+00> : vector<16x16xf32>
    %7 = tpu.matmul %3, %6, %cst_6 {dimension_numbers = #tpu.dot_dimension_numbers<[1], [0], [0], [1], [0, 0, 1, 1], [], []>, precision = #tpu.contract_precision<fp32>} : vector<16x16xf32>, vector<16x16xf32>, vector<16x16xf32> -> vector<16x16xf32>
    %8 = arith.addf %5, %7 : vector<16x16xf32>
    %c0_7 = arith.constant 0 : index
    %c0_8 = arith.constant 0 : index
    %9 = vector.load %arg4[%c0_7, %c0_8] : memref<16x16xf32, #tpu.memory_space<vmem>>, vector<16x16xf32>
    %cst_9 = arith.constant dense<0.000000e+00> : vector<16x16xf32>
    %10 = tpu.matmul %9, %8, %cst_9 {dimension_numbers = #tpu.dot_dimension_numbers<[1], [0], [0], [1], [0, 0, 1, 1], [], []>, precision = #tpu.contract_precision<fp32>} : vector<16x16xf32>, vector<16x16xf32>, vector<16x16xf32> -> vector<16x16xf32>
    %c0_10 = arith.constant 0 : index
    %c0_11 = arith.constant 0 : index
    %11 = vector.load %arg5[%c0_10, %c0_11] : memref<16x16xf32, #tpu.memory_space<vmem>>, vector<16x16xf32>
    %cst_12 = arith.constant dense<0.000000e+00> : vector<16x16xf32>
    %12 = tpu.matmul %10, %11, %cst_12 {dimension_numbers = #tpu.dot_dimension_numbers<[1], [0], [0], [1], [0, 0, 1, 1], [], []>, precision = #tpu.contract_precision<fp32>} : vector<16x16xf32>, vector<16x16xf32>, vector<16x16xf32> -> vector<16x16xf32>
    %cst_13 = arith.constant 0.907111823 : f32
    %13 = vector.broadcast %cst_13 : f32 to vector<16x16xf32>
    %14 = arith.mulf %12, %13 : vector<16x16xf32>
    %cst_14 = arith.constant 0.907111823 : f32
    %15 = vector.broadcast %cst_14 : f32 to vector<16x16xf32>
    %16 = arith.mulf %8, %15 : vector<16x16xf32>
    %17 = arith.addf %14, %16 : vector<16x16xf32>
    %cst_15 = arith.constant 1.000000e+00 : f32
    %18 = vector.broadcast %cst_15 : f32 to vector<16x16xf32>
    %19 = arith.mulf %18, %17 : vector<16x16xf32>
    %20 = arith.subf %3, %19 : vector<16x16xf32>
    %c0_16 = arith.constant 0 : index
    %c0_17 = arith.constant 0 : index
    %21 = vector.load %arg2[%c0_16, %c0_17] : memref<16x16xf32, #tpu.memory_space<vmem>>, vector<16x16xf32>
    %cst_18 = arith.constant dense<0.000000e+00> : vector<16x16xf32>
    %22 = tpu.matmul %21, %20, %cst_18 {dimension_numbers = #tpu.dot_dimension_numbers<[1], [0], [0], [1], [0, 0, 1, 1], [], []>, precision = #tpu.contract_precision<fp32>} : vector<16x16xf32>, vector<16x16xf32>, vector<16x16xf32> -> vector<16x16xf32>
    %c0_19 = arith.constant 0 : index
    %c0_20 = arith.constant 0 : index
    %23 = vector.load %arg3[%c0_19, %c0_20] : memref<16x16xf32, #tpu.memory_space<vmem>>, vector<16x16xf32>
    %cst_21 = arith.constant dense<0.000000e+00> : vector<16x16xf32>
    %24 = tpu.matmul %20, %23, %cst_21 {dimension_numbers = #tpu.dot_dimension_numbers<[1], [0], [0], [1], [0, 0, 1, 1], [], []>, precision = #tpu.contract_precision<fp32>} : vector<16x16xf32>, vector<16x16xf32>, vector<16x16xf32> -> vector<16x16xf32>
    %25 = arith.addf %22, %24 : vector<16x16xf32>
    %c0_22 = arith.constant 0 : index
    %c0_23 = arith.constant 0 : index
    %26 = vector.load %arg4[%c0_22, %c0_23] : memref<16x16xf32, #tpu.memory_space<vmem>>, vector<16x16xf32>
    %cst_24 = arith.constant dense<0.000000e+00> : vector<16x16xf32>
    %27 = tpu.matmul %26, %25, %cst_24 {dimension_numbers = #tpu.dot_dimension_numbers<[1], [0], [0], [1], [0, 0, 1, 1], [], []>, precision = #tpu.contract_precision<fp32>} : vector<16x16xf32>, vector<16x16xf32>, vector<16x16xf32> -> vector<16x16xf32>
    %c0_25 = arith.constant 0 : index
    %c0_26 = arith.constant 0 : index
    %28 = vector.load %arg5[%c0_25, %c0_26] : memref<16x16xf32, #tpu.memory_space<vmem>>, vector<16x16xf32>
    %cst_27 = arith.constant dense<0.000000e+00> : vector<16x16xf32>
    %29 = tpu.matmul %27, %28, %cst_27 {dimension_numbers = #tpu.dot_dimension_numbers<[1], [0], [0], [1], [0, 0, 1, 1], [], []>, precision = #tpu.contract_precision<fp32>} : vector<16x16xf32>, vector<16x16xf32>, vector<16x16xf32> -> vector<16x16xf32>
    %cst_28 = arith.constant 0.907111823 : f32
    %30 = vector.broadcast %cst_28 : f32 to vector<16x16xf32>
    %31 = arith.mulf %29, %30 : vector<16x16xf32>
    %cst_29 = arith.constant 0.907111823 : f32
    %32 = vector.broadcast %cst_29 : f32 to vector<16x16xf32>
    %33 = arith.mulf %25, %32 : vector<16x16xf32>
    %34 = arith.addf %31, %33 : vector<16x16xf32>
    %cst_30 = arith.constant 1.000000e+00 : f32
    %35 = vector.broadcast %cst_30 : f32 to vector<16x16xf32>
    %36 = arith.mulf %35, %34 : vector<16x16xf32>
    %37 = arith.subf %20, %36 : vector<16x16xf32>
    %c0_31 = arith.constant 0 : index
    %c0_32 = arith.constant 0 : index
    %38 = vector.load %arg2[%c0_31, %c0_32] : memref<16x16xf32, #tpu.memory_space<vmem>>, vector<16x16xf32>
    %cst_33 = arith.constant dense<0.000000e+00> : vector<16x16xf32>
    %39 = tpu.matmul %38, %37, %cst_33 {dimension_numbers = #tpu.dot_dimension_numbers<[1], [0], [0], [1], [0, 0, 1, 1], [], []>, precision = #tpu.contract_precision<fp32>} : vector<16x16xf32>, vector<16x16xf32>, vector<16x16xf32> -> vector<16x16xf32>
    %c0_34 = arith.constant 0 : index
    %c0_35 = arith.constant 0 : index
    %40 = vector.load %arg3[%c0_34, %c0_35] : memref<16x16xf32, #tpu.memory_space<vmem>>, vector<16x16xf32>
    %cst_36 = arith.constant dense<0.000000e+00> : vector<16x16xf32>
    %41 = tpu.matmul %37, %40, %cst_36 {dimension_numbers = #tpu.dot_dimension_numbers<[1], [0], [0], [1], [0, 0, 1, 1], [], []>, precision = #tpu.contract_precision<fp32>} : vector<16x16xf32>, vector<16x16xf32>, vector<16x16xf32> -> vector<16x16xf32>
    %42 = arith.addf %39, %41 : vector<16x16xf32>
    %c0_37 = arith.constant 0 : index
    %c0_38 = arith.constant 0 : index
    %43 = vector.load %arg4[%c0_37, %c0_38] : memref<16x16xf32, #tpu.memory_space<vmem>>, vector<16x16xf32>
    %cst_39 = arith.constant dense<0.000000e+00> : vector<16x16xf32>
    %44 = tpu.matmul %43, %42, %cst_39 {dimension_numbers = #tpu.dot_dimension_numbers<[1], [0], [0], [1], [0, 0, 1, 1], [], []>, precision = #tpu.contract_precision<fp32>} : vector<16x16xf32>, vector<16x16xf32>, vector<16x16xf32> -> vector<16x16xf32>
    %c0_40 = arith.constant 0 : index
    %c0_41 = arith.constant 0 : index
    %45 = vector.load %arg5[%c0_40, %c0_41] : memref<16x16xf32, #tpu.memory_space<vmem>>, vector<16x16xf32>
    %cst_42 = arith.constant dense<0.000000e+00> : vector<16x16xf32>
    %46 = tpu.matmul %44, %45, %cst_42 {dimension_numbers = #tpu.dot_dimension_numbers<[1], [0], [0], [1], [0, 0, 1, 1], [], []>, precision = #tpu.contract_precision<fp32>} : vector<16x16xf32>, vector<16x16xf32>, vector<16x16xf32> -> vector<16x16xf32>
    %cst_43 = arith.constant 0.907111823 : f32
    %47 = vector.broadcast %cst_43 : f32 to vector<16x16xf32>
    %48 = arith.mulf %46, %47 : vector<16x16xf32>
    %cst_44 = arith.constant 0.907111823 : f32
    %49 = vector.broadcast %cst_44 : f32 to vector<16x16xf32>
    %50 = arith.mulf %42, %49 : vector<16x16xf32>
    %51 = arith.addf %48, %50 : vector<16x16xf32>
    %cst_45 = arith.constant 1.000000e+00 : f32
    %52 = vector.broadcast %cst_45 : f32 to vector<16x16xf32>
    %53 = arith.mulf %52, %51 : vector<16x16xf32>
    %54 = arith.subf %37, %53 : vector<16x16xf32>
    %c0_46 = arith.constant 0 : index
    %c0_47 = arith.constant 0 : index
    %55 = vector.load %arg2[%c0_46, %c0_47] : memref<16x16xf32, #tpu.memory_space<vmem>>, vector<16x16xf32>
    %cst_48 = arith.constant dense<0.000000e+00> : vector<16x16xf32>
    %56 = tpu.matmul %55, %54, %cst_48 {dimension_numbers = #tpu.dot_dimension_numbers<[1], [0], [0], [1], [0, 0, 1, 1], [], []>, precision = #tpu.contract_precision<fp32>} : vector<16x16xf32>, vector<16x16xf32>, vector<16x16xf32> -> vector<16x16xf32>
    %c0_49 = arith.constant 0 : index
    %c0_50 = arith.constant 0 : index
    %57 = vector.load %arg3[%c0_49, %c0_50] : memref<16x16xf32, #tpu.memory_space<vmem>>, vector<16x16xf32>
    %cst_51 = arith.constant dense<0.000000e+00> : vector<16x16xf32>
    %58 = tpu.matmul %54, %57, %cst_51 {dimension_numbers = #tpu.dot_dimension_numbers<[1], [0], [0], [1], [0, 0, 1, 1], [], []>, precision = #tpu.contract_precision<fp32>} : vector<16x16xf32>, vector<16x16xf32>, vector<16x16xf32> -> vector<16x16xf32>
    %59 = arith.addf %56, %58 : vector<16x16xf32>
    %c0_52 = arith.constant 0 : index
    %c0_53 = arith.constant 0 : index
    %60 = vector.load %arg4[%c0_52, %c0_53] : memref<16x16xf32, #tpu.memory_space<vmem>>, vector<16x16xf32>
    %cst_54 = arith.constant dense<0.000000e+00> : vector<16x16xf32>
    %61 = tpu.matmul %60, %59, %cst_54 {dimension_numbers = #tpu.dot_dimension_numbers<[1], [0], [0], [1], [0, 0, 1, 1], [], []>, precision = #tpu.contract_precision<fp32>} : vector<16x16xf32>, vector<16x16xf32>, vector<16x16xf32> -> vector<16x16xf32>
    %c0_55 = arith.constant 0 : index
    %c0_56 = arith.constant 0 : index
    %62 = vector.load %arg5[%c0_55, %c0_56] : memref<16x16xf32, #tpu.memory_space<vmem>>, vector<16x16xf32>
    %cst_57 = arith.constant dense<0.000000e+00> : vector<16x16xf32>
    %63 = tpu.matmul %61, %62, %cst_57 {dimension_numbers = #tpu.dot_dimension_numbers<[1], [0], [0], [1], [0, 0, 1, 1], [], []>, precision = #tpu.contract_precision<fp32>} : vector<16x16xf32>, vector<16x16xf32>, vector<16x16xf32> -> vector<16x16xf32>
    %cst_58 = arith.constant 0.907111823 : f32
    %64 = vector.broadcast %cst_58 : f32 to vector<16x16xf32>
    %65 = arith.mulf %63, %64 : vector<16x16xf32>
    %cst_59 = arith.constant 0.907111823 : f32
    %66 = vector.broadcast %cst_59 : f32 to vector<16x16xf32>
    %67 = arith.mulf %59, %66 : vector<16x16xf32>
    %68 = arith.addf %65, %67 : vector<16x16xf32>
    %cst_60 = arith.constant 1.000000e+00 : f32
    %69 = vector.broadcast %cst_60 : f32 to vector<16x16xf32>
    %70 = arith.mulf %69, %68 : vector<16x16xf32>
    %71 = arith.subf %54, %70 : vector<16x16xf32>
    %72 = vector.shape_cast %71 : vector<16x16xf32> to vector<1x16x16xf32>
    %cst_61 = arith.constant dense<0x7F800000> : vector<1xf32>
    %73 = vector.multi_reduction <minimumf>, %72, %cst_61 [1, 2] : vector<1x16x16xf32> to vector<1xf32>
    %74 = vector.shape_cast %73 : vector<1xf32> to vector<1x1x1xf32>
    %75 = vector.extract %74[0, 0, 0] : f32 from vector<1x1x1xf32>
    %76 = vector.shape_cast %71 : vector<16x16xf32> to vector<1x16x16xf32>
    %cst_62 = arith.constant dense<0xFF800000> : vector<1xf32>
    %77 = vector.multi_reduction <maximumf>, %76, %cst_62 [1, 2] : vector<1x16x16xf32> to vector<1xf32>
    %78 = vector.shape_cast %77 : vector<1xf32> to vector<1x1x1xf32>
    %79 = vector.extract %78[0, 0, 0] : f32 from vector<1x1x1xf32>
    %80 = vector.broadcast %75 : f32 to vector<16x16xf32>
    %81 = arith.subf %71, %80 : vector<16x16xf32>
    %82 = arith.subf %79, %75 : f32
    %cst_63 = arith.constant 1.000000e+00 : f32
    %83 = arith.divf %cst_63, %82 : f32
    %84 = vector.broadcast %83 : f32 to vector<16x16xf32>
    %85 = arith.mulf %81, %84 : vector<16x16xf32>
    %c0_64 = arith.constant 0 : index
    %c0_65 = arith.constant 0 : index
    %86 = vector.load %arg7[%c0_64, %c0_65] : memref<16x16xf32, #tpu.memory_space<vmem>>, vector<16x16xf32>
    tpu.vector_store %arg7[%c0_64, %c0_65], %85 {strides = array<i32>} : memref<16x16xf32, #tpu.memory_space<vmem>>, vector<16x16xf32>,
    %c0_66 = arith.constant 0 : index
    %c0_67 = arith.constant 0 : index
    %c0_68 = arith.constant 0 : index
    %87 = vector.load %arg6[%c0_66, %c0_67, %c0_68] : memref<1x16x16xf32, #tpu.memory_space<vmem>>, vector<1x16x16xf32>
    %88 = vector.shape_cast %87 : vector<1x16x16xf32> to vector<16x16xf32>
    %89 = vector.shape_cast %85 : vector<16x16xf32> to vector<1x16x16xf32>
    tpu.vector_store %arg6[%c0_66, %c0_67, %c0_68], %89 {strides = array<i32>} : memref<1x16x16xf32, #tpu.memory_space<vmem>>, vector<1x16x16xf32>,
    return
  }
  func.func @transform_0(%arg0: i32) -> (i32, i32) {
    %c0_i32 = arith.constant 0 : i32
    %c0_i32_0 = arith.constant 0 : i32
    %c0_i32_1 = arith.constant 0 : i32
    return %c0_i32, %c0_i32_0 : i32, i32
  }
  func.func @transform_1(%arg0: i32) -> (i32, i32) {
    %c0_i32 = arith.constant 0 : i32
    %c0_i32_0 = arith.constant 0 : i32
    %c0_i32_1 = arith.constant 0 : i32
    return %c0_i32, %c0_i32_0 : i32, i32
  }
  func.func @transform_2(%arg0: i32) -> (i32, i32) {
    %c0_i32 = arith.constant 0 : i32
    %c0_i32_0 = arith.constant 0 : i32
    %c0_i32_1 = arith.constant 0 : i32
    return %c0_i32, %c0_i32_0 : i32, i32
  }
  func.func @transform_3(%arg0: i32) -> (i32, i32) {
    %c0_i32 = arith.constant 0 : i32
    %c0_i32_0 = arith.constant 0 : i32
    %c0_i32_1 = arith.constant 0 : i32
    return %c0_i32, %c0_i32_0 : i32, i32
  }
  func.func @transform_4(%arg0: i32) -> (i32, i32) {
    %c0_i32 = arith.constant 0 : i32
    %c0_i32_0 = arith.constant 0 : i32
    %c0_i32_1 = arith.constant 0 : i32
    return %c0_i32, %c0_i32_0 : i32, i32
  }
  func.func @transform_5(%arg0: i32) -> (i32, i32, i32) {
    %c0_i32 = arith.constant 0 : i32
    %c0_i32_0 = arith.constant 0 : i32
    %c0_i32_1 = arith.constant 0 : i32
    return %arg0, %c0_i32, %c0_i32_0 : i32, i32, i32
  }
}

</mosaic_0001>

<llo_original>
// kernel: run.1
$region0: #{run.1}
  #allocation0 [shape = 'u32[]', space=smem, size = 0x4, offset = 0x4, fixed_abs, tag = 'smem constant byte address 0x4 - core index']
  #allocation1 [shape = 'u32[144,128]{1,0:T(1,128)}', space=vmem, size = 0x12000, scoped, tag = 'internal scratch']
  #allocation2 [shape = 'f32[16,16]{1,0:T(8,128)}', space=vmem, size = 0x2000, scoped, tag = 'scratch operand']
  %s0 = inlined_call_operand.hbm [shape: f32[16,16], index: 0, kind: input, shape index: {}]
  %s1 = inlined_call_operand.hbm [shape: f32[16,16], index: 1, kind: input, shape index: {}, may-alias: {1,2}]
  %s2 = inlined_call_operand.hbm [shape: f32[16,16], index: 2, kind: input, shape index: {}, may-alias: {1,2}]
  %s3 = inlined_call_operand.hbm [shape: f32[16,16], index: 3, kind: input, shape index: {}, may-alias: {3,4}]
  %s4 = inlined_call_operand.hbm [shape: f32[16,16], index: 4, kind: input, shape index: {}, may-alias: {3,4}]
  %s5 = inlined_call_operand.hbm [shape: f32[2,16,16], index: 5, kind: output, shape index: {}]
  %s6 = sld [smem:[#allocation0]]
  $region77: #{run.1} parent=0
    _
  %s8 = ssub.s32 1, %s6
  %s9 = scalar_select 0, %s8, %s6
  $region1: #{run.1} parent=0
    #allocation3 [shape = 'u8[8192]{0}', space=vmem, size = 0x2000, scoped, tag = 'input window, operand 0, single buffered']
    #allocation4 [shape = 's32[2]{0}', space=sflag, size = 0x8, scoped, tag = 'scoped memory for run.1']
    #allocation5 [shape = 's32[2]{0}', space=sflag, size = 0x8, scoped, tag = 'scoped memory for run.1']
    #allocation6 [shape = 'u8[8192]{0}', space=vmem, size = 0x2000, scoped, tag = 'input window, operand 1, single buffered']
    #allocation7 [shape = 's32[1]{0}', space=sflag, size = 0x4, scoped, tag = 'scoped memory for run.1']
    #allocation8 [shape = 'u8[8192]{0}', space=vmem, size = 0x2000, scoped, tag = 'input window, operand 2, single buffered']
    #allocation9 [shape = 'u8[8192]{0}', space=vmem, size = 0x2000, scoped, tag = 'input window, operand 3, single buffered']
    #allocation10 [shape = 's32[1]{0}', space=sflag, size = 0x4, scoped, tag = 'scoped memory for run.1']
    #allocation11 [shape = 'u8[8192]{0}', space=vmem, size = 0x2000, scoped, tag = 'input window, operand 4, single buffered']
    #allocation12 [shape = 'u8[16384]{0}', space=vmem, size = 0x4000, scoped, tag = 'output window, operand 0']
    %10 = vsyncpa [#allocation4], 0
    %11 = vsyncpa [#allocation7], 0
    %12 = vsyncpa [#allocation10], 0
    %13 = vsyncpa [#allocation5], 0
    %s14 = scalar_lea.sflag [#allocation5], 1
    %15 = vsyncpa %s14, 0
    loop: start=0, step=1, limit=4
    $region2: #{run.1} parent=1 // loop_pre_header
      _
    $region3: #{run.1} parent=1 // loop_header
      %s17 = sphi 0, %s21
      %p18 = scmp.ge.s32.totalorder %s17, 4
      %s25 = sphi 0, %s25
      %s27 = sphi 0, %s25
      %s28 = sphi 0, %s27
      %s42 = sphi 0, %s28
      %s46 = sphi 0, %s46
      %s48 = sphi 0, %s46
      %s49 = sphi 0, %s48
      %s63 = sphi 0, %s49
      %s67 = sphi 0, %s67
      %s69 = sphi 0, %s67
      %s70 = sphi 0, %s69
      %s84 = sphi 0, %s70
      %s88 = sphi 0, %s88
      %s90 = sphi 0, %s88
      %s91 = sphi 0, %s90
      %s105 = sphi 0, %s91
      %s109 = sphi 0, %s109
      %s111 = sphi 0, %s109
      %s112 = sphi 0, %s111
      %s126 = sphi 0, %s112
      %s132 = sphi 0, %s134
      %s135 = sphi 0, %s132
      %s136 = sphi 0, %s135
      %s152 = sphi 0, %s136
    $region4: #{run.1} parent=1 // loop_header_branch
      %20 = sbr.rel (%p18) target = $region8
    $region5: #{run.1} parent=1 // loop_body
      %s22 = ssub.s32 %s17, 1
      %s23 = ssub.s32 %s17, 2
      %s24 = sadd.s32 %s17, 1
      %s26 = sadd.s32 %s25, 1
      %p29 = scmp.eq.s32.totalorder %s17, 1
      %p30 = scmp.ne.s32.totalorder %s25, %s27
      %p31 = scmp.eq.s32.totalorder %s17, 0
      %p32 = por %p30, %p31
      %p33 = scmp.ne.s32.totalorder %s25, %s27
      %p34 = scmp.eq.s32.totalorder %s22, 1
      %p35 = por %p33, %p34
      %p36 = scmp.ne.s32.totalorder %s27, %s28
      %p37 = scmp.eq.s32.totalorder %s22, 0
      %p38 = por %p36, %p37
      %p39 = scmp.ne.s32.totalorder %s27, %s28
      %p40 = scmp.eq.s32.totalorder %s23, 1
      %p41 = por %p39, %p40
      %p43 = scmp.ne.s32.totalorder %s28, %s42
      %p44 = scmp.eq.s32.totalorder %s23, 0
      %p45 = por %p43, %p44
      %s47 = sadd.s32 %s46, 1
      %p50 = scmp.eq.s32.totalorder %s17, 1
      %p51 = scmp.ne.s32.totalorder %s46, %s48
      %p52 = scmp.eq.s32.totalorder %s17, 0
      %p53 = por %p51, %p52
      %p54 = scmp.ne.s32.totalorder %s46, %s48
      %p55 = scmp.eq.s32.totalorder %s22, 1
      %p56 = por %p54, %p55
      %p57 = scmp.ne.s32.totalorder %s48, %s49
      %p58 = scmp.eq.s32.totalorder %s22, 0
      %p59 = por %p57, %p58
      %p60 = scmp.ne.s32.totalorder %s48, %s49
      %p61 = scmp.eq.s32.totalorder %s23, 1
      %p62 = por %p60, %p61
      %p64 = scmp.ne.s32.totalorder %s49, %s63
      %p65 = scmp.eq.s32.totalorder %s23, 0
      %p66 = por %p64, %p65
      %s68 = sadd.s32 %s67, 1
      %p71 = scmp.eq.s32.totalorder %s17, 1
      %p72 = scmp.ne.s32.totalorder %s67, %s69
      %p73 = scmp.eq.s32.totalorder %s17, 0
      %p74 = por %p72, %p73
      %p75 = scmp.ne.s32.totalorder %s67, %s69
      %p76 = scmp.eq.s32.totalorder %s22, 1
      %p77 = por %p75, %p76
      %p78 = scmp.ne.s32.totalorder %s69, %s70
      %p79 = scmp.eq.s32.totalorder %s22, 0
      %p80 = por %p78, %p79
      %p81 = scmp.ne.s32.totalorder %s69, %s70
      %p82 = scmp.eq.s32.totalorder %s23, 1
      %p83 = por %p81, %p82
      %p85 = scmp.ne.s32.totalorder %s70, %s84
      %p86 = scmp.eq.s32.totalorder %s23, 0
      %p87 = por %p85, %p86
      %s89 = sadd.s32 %s88, 1
      %p92 = scmp.eq.s32.totalorder %s17, 1
      %p93 = scmp.ne.s32.totalorder %s88, %s90
      %p94 = scmp.eq.s32.totalorder %s17, 0
      %p95 = por %p93, %p94
      %p96 = scmp.ne.s32.totalorder %s88, %s90
      %p97 = scmp.eq.s32.totalorder %s22, 1
      %p98 = por %p96, %p97
      %p99 = scmp.ne.s32.totalorder %s90, %s91
      %p100 = scmp.eq.s32.totalorder %s22, 0
      %p101 = por %p99, %p100
      %p102 = scmp.ne.s32.totalorder %s90, %s91
      %p103 = scmp.eq.s32.totalorder %s23, 1
      %p104 = por %p102, %p103
      %p106 = scmp.ne.s32.totalorder %s91, %s105
      %p107 = scmp.eq.s32.totalorder %s23, 0
      %p108 = por %p106, %p107
      %s110 = sadd.s32 %s109, 1
      %p113 = scmp.eq.s32.totalorder %s17, 1
      %p114 = scmp.ne.s32.totalorder %s109, %s111
      %p115 = scmp.eq.s32.totalorder %s17, 0
      %p116 = por %p114, %p115
      %p117 = scmp.ne.s32.totalorder %s109, %s111
      %p118 = scmp.eq.s32.totalorder %s22, 1
      %p119 = por %p117, %p118
      %p120 = scmp.ne.s32.totalorder %s111, %s112
      %p121 = scmp.eq.s32.totalorder %s22, 0
      %p122 = por %p120, %p121
      %p123 = scmp.ne.s32.totalorder %s111, %s112
      %p124 = scmp.eq.s32.totalorder %s23, 1
      %p125 = por %p123, %p124
      %p127 = scmp.ne.s32.totalorder %s112, %s126
      %p128 = scmp.eq.s32.totalorder %s23, 0
      %p129 = por %p127, %p128
      %s130 = ssub.s32 %s17, %s24
      %p131 = scmp.eq.s32.totalorder %s130, 0
      %s133 = sadd.s32 %s132, 1
      %s134 = scalar_select %p131, %s132, %s133
      %p137 = pneg %p131
      %p138 = scmp.eq.s32.totalorder %s17, 1
      %p139 = por %p137, %p138
      %p140 = scmp.ne.s32.totalorder %s132, %s135
      %p141 = scmp.eq.s32.totalorder %s17, 0
      %p142 = por %p140, %p141
      %p143 = scmp.ne.s32.totalorder %s132, %s135
      %p144 = scmp.eq.s32.totalorder %s22, 1
      %p145 = por %p143, %p144
      %p146 = scmp.ne.s32.totalorder %s135, %s136
      %p147 = scmp.eq.s32.totalorder %s22, 0
      %p148 = por %p146, %p147
      %p149 = scmp.ne.s32.totalorder %s135, %s136
      %p150 = scmp.eq.s32.totalorder %s23, 1
      %p151 = por %p149, %p150
      %p153 = scmp.ne.s32.totalorder %s136, %s152
      %p154 = scmp.eq.s32.totalorder %s23, 0
      %p155 = por %p153, %p154
      %p156 = scmp.le.s32.totalorder 1, %s17
      %p157 = scmp.lt.s32.totalorder %s17, 3
      %p158 = pnand %p156, %p157
      %p159 = pneg %p158
      // Predicated region
      $region9: #{run.1} parent=5 // pred_check
        _
      $region10: #{run.1} parent=5 // pred_check_branch
        %161 = sbr.rel (%p158) target = $region12
      $region11: #{run.1} parent=5 // pred_region
        %s162 = ssub.s32 %s17, 1
        // Predicated region
        $region13: #{run.1} parent=11 // pred_check
          %p163 = pneg %p38
        $region14: #{run.1} parent=11 // pred_check_branch
          %165 = sbr.rel (%p163) target = $region16
        $region15: #{run.1} parent=11 // pred_region
          %s167 = ssub.s32 256, 256
          %168 = vsyncadd [#allocation4], %s167
          %s169 = sshll.u32 [#allocation3], 4
          %s170 = int_to_ptr.vmem [resolvable:$true] %s169
          %175 = dma.hbm_to_vmem [thread:$0]  %s0, 256, %s170, [#allocation4], 128, 128, 8
        $region16: #{run.1} parent=11 // pred_fallthru
          _
        // Predicated region
        $region17: #{run.1} parent=11 // pred_check
          %p176 = pneg %p59
        $region18: #{run.1} parent=11 // pred_check_branch
          %178 = sbr.rel (%p176) target = $region20
        $region19: #{run.1} parent=11 // pred_region
          %s180 = ssub.s32 256, 256
          %181 = vsyncadd [#allocation7], %s180
          %s182 = sshll.u32 [#allocation6], 4
          %s183 = int_to_ptr.vmem [resolvable:$true] %s182
          %188 = dma.hbm_to_vmem [thread:$0]  %s1, 256, %s183, [#allocation7], 128, 128, 8
        $region20: #{run.1} parent=11 // pred_fallthru
          _
        // Predicated region
        $region21: #{run.1} parent=11 // pred_check
          %p189 = pneg %p80
        $region22: #{run.1} parent=11 // pred_check_branch
          %191 = sbr.rel (%p189) target = $region24
        $region23: #{run.1} parent=11 // pred_region
          %s193 = ssub.s32 256, 256
          %194 = vsyncadd [#allocation7], %s193
          %s195 = sshll.u32 [#allocation8], 4
          %s196 = int_to_ptr.vmem [resolvable:$true] %s195
          %201 = dma.hbm_to_vmem [thread:$0]  %s2, 256, %s196, [#allocation7], 128, 128, 8
        $region24: #{run.1} parent=11 // pred_fallthru
          _
        // Predicated region
        $region25: #{run.1} parent=11 // pred_check
          %p202 = pneg %p101
        $region26: #{run.1} parent=11 // pred_check_branch
          %204 = sbr.rel (%p202) target = $region28
        $region27: #{run.1} parent=11 // pred_region
          %s206 = ssub.s32 256, 256
          %207 = vsyncadd [#allocation10], %s206
          %s208 = sshll.u32 [#allocation9], 4
          %s209 = int_to_ptr.vmem [resolvable:$true] %s208
          %214 = dma.hbm_to_vmem [thread:$0]  %s3, 256, %s209, [#allocation10], 128, 128, 8
        $region28: #{run.1} parent=11 // pred_fallthru
          _
        // Predicated region
        $region29: #{run.1} parent=11 // pred_check
          %p215 = pneg %p122
        $region30: #{run.1} parent=11 // pred_check_branch
          %217 = sbr.rel (%p215) target = $region32
        $region31: #{run.1} parent=11 // pred_region
          %s219 = ssub.s32 256, 256
          %220 = vsyncadd [#allocation10], %s219
          %s221 = sshll.u32 [#allocation11], 4
          %s222 = int_to_ptr.vmem [resolvable:$true] %s221
          %227 = dma.hbm_to_vmem [thread:$0]  %s4, 256, %s222, [#allocation10], 128, 128, 8
        $region32: #{run.1} parent=11 // pred_fallthru
          _
      $region12: #{run.1} parent=5 // pred_fallthru
        _
      %p228 = scmp.lt.s32.totalorder %s17, 2
      // Predicated region
      $region33: #{run.1} parent=5 // pred_check
        %p229 = pneg %p228
      $region34: #{run.1} parent=5 // pred_check_branch
        %231 = sbr.rel (%p229) target = $region36
      $region35: #{run.1} parent=5 // pred_region
        _
      $region36: #{run.1} parent=5 // pred_fallthru
        _
      %p232 = scmp.le.s32.totalorder 1, %s17
      %p233 = scmp.lt.s32.totalorder %s17, 3
      %p234 = pnand %p232, %p233
      %p235 = pneg %p234
      // Predicated region
      $region37: #{run.1} parent=5 // pred_check
        _
      $region38: #{run.1} parent=5 // pred_check_branch
        %237 = sbr.rel (%p234) target = $region40
      $region39: #{run.1} parent=5 // pred_region
        %s238 = ssub.s32 %s17, 1
        // Predicated region
        $region41: #{run.1} parent=39 // pred_check
          %p239 = pneg %p38
        $region42: #{run.1} parent=39 // pred_check_branch
          %241 = sbr.rel (%p239) target = $region44
        $region43: #{run.1} parent=39 // pred_region
          %242 = dma.done [#allocation4], 256
        $region44: #{run.1} parent=39 // pred_fallthru
          _
        // Predicated region
        $region45: #{run.1} parent=39 // pred_check
          %p243 = pneg %p59
        $region46: #{run.1} parent=39 // pred_check_branch
          %245 = sbr.rel (%p243) target = $region48
        $region47: #{run.1} parent=39 // pred_region
          %246 = dma.done [#allocation7], 256
        $region48: #{run.1} parent=39 // pred_fallthru
          _
        // Predicated region
        $region49: #{run.1} parent=39 // pred_check
          %p247 = pneg %p80
        $region50: #{run.1} parent=39 // pred_check_branch
          %249 = sbr.rel (%p247) target = $region52
        $region51: #{run.1} parent=39 // pred_region
          %250 = dma.done [#allocation7], 256
        $region52: #{run.1} parent=39 // pred_fallthru
          _
        // Predicated region
        $region53: #{run.1} parent=39 // pred_check
          %p251 = pneg %p101
        $region54: #{run.1} parent=39 // pred_check_branch
          %253 = sbr.rel (%p251) target = $region56
        $region55: #{run.1} parent=39 // pred_region
          %254 = dma.done [#allocation10], 256
        $region56: #{run.1} parent=39 // pred_fallthru
          _
        // Predicated region
        $region57: #{run.1} parent=39 // pred_check
          %p255 = pneg %p122
        $region58: #{run.1} parent=39 // pred_check_branch
          %257 = sbr.rel (%p255) target = $region60
        $region59: #{run.1} parent=39 // pred_region
          %258 = dma.done [#allocation10], 256
        $region60: #{run.1} parent=39 // pred_fallthru
          _
        %p259 = pneg %p38
        %p260 = pneg %p35
        %p261 = pneg %p59
        %p262 = pneg %p56
        %p263 = pneg %p80
        %p264 = pneg %p77
        %p265 = pneg %p101
        %p266 = pneg %p98
        %p267 = pneg %p122
        %p268 = pneg %p119
        %p269 = pneg %p148
        %p270 = pneg %p145
        %s271 = sand.u32 %s135, 1
        %s272 = scalar_lea.sflag [#allocation5], %s271
        %s273 = sand.u32 %s135, 1
        %s274 = smul.addr %s273, 16
        %s275 = scalar_lea.vmem [#allocation12], %s274
        %p276 = scmp.eq.s32.totalorder %s22, 0
        // Predicated region
        $region61: #{run.1} parent=39 // pred_check
          %p277 = pneg %p276
        $region62: #{run.1} parent=39 // pred_check_branch
          %279 = sbr.rel (%p277) target = $region64
        $region63: #{run.1} parent=39 // pred_region
          %v280 = vld [vmem:[#allocation3] sm:$0xff]
          %v281 = vld [vmem:[#allocation3 + $0x8] sm:$0xff]
          %vm282 = vcmask 130048
          %283 = vst.msk [vmem:[#allocation2] sm:$0xff] %vm282, %v280
          %284 = vst.msk [vmem:[#allocation2 + $0x8] sm:$0xff] %vm282, %v281
        $region64: #{run.1} parent=39 // pred_fallthru
          _
        %v285 = vld [vmem:[#allocation2] sm:$0xff]
        %v286 = vld [vmem:[#allocation2 + $0x8] sm:$0xff]
        %v287 = vld [vmem:[#allocation6] sm:$0xff]
        %v288 = vld [vmem:[#allocation6 + $0x8] sm:$0xff]
        %v289 = vld [vmem:[#allocation8] sm:$0xff]
        %v290 = vld [vmem:[#allocation8 + $0x8] sm:$0xff]
        %vm291 = vcmask 130048
        %v293 = vsel %vm291, %v285, 0
        %v296 = vsel %vm291, %v286, 0
        %298 = vmatprep.subr.mxu0 0.0
        %299 = vmatpush1.msra.mxu0 0.0
        %300 = vmatprep.subr.mxu0 0.0
        %301 = vmatpush1.msra.mxu0 0.0
        %302 = vmatprep.subr.mxu0 0.0
        %303 = vmatpush1.msra.mxu0 0.0
        %304 = vmatprep.subr.mxu0 0.0
        %305 = vmatpush1.msra.mxu0 0.0
        %306 = vmatprep.subr.mxu0 0.0
        %307 = vmatpush1.msra.mxu0 0.0
        %308 = vmatprep.subr.mxu0 0.0
        %309 = vmatpush1.msra.mxu0 0.0
        %310 = vmatprep.subr.mxu0 0.0
        %311 = vmatpush1.msra.mxu0 0.0
        %312 = vmatprep.subr.mxu0 0.0
        %313 = vmatpush1.msra.mxu0 0.0
        %314 = vmatprep.subr.mxu0 0.0
        %315 = vmatpush1.msra.mxu0 0.0
        %316 = vmatprep.subr.mxu0 0.0
        %317 = vmatpush1.msra.mxu0 0.0
        %318 = vmatprep.subr.mxu0 0.0
        %319 = vmatpush1.msra.mxu0 0.0
        %320 = vmatprep.subr.mxu0 0.0
        %321 = vmatpush1.msra.mxu0 0.0
        %322 = vmatprep.subr.mxu0 0.0
        %323 = vmatpush1.msra.mxu0 0.0
        %324 = vmatprep.subr.mxu0 0.0
        %325 = vmatpush1.msra.mxu0 0.0
        %326 = vmatprep.subr.mxu0 0.0
        %v327 = vand.u32 %v290, 4294901760
        %328 = vmatpush1.msra.mxu0 %v327
        %329 = vmatprep.subr.mxu0 0.0
        %v330 = vand.u32 %v289, 4294901760
        %331 = vmatpush1.msra.mxu0 %v330
        %332 = vmatprep.subr.mxu0 0.0
        %333 = vmatpush2.msra.mxu0 0.0
        %334 = vmatprep.subr.mxu0 0.0
        %335 = vmatpush2.msra.mxu0 0.0
        %336 = vmatprep.subr.mxu0 0.0
        %337 = vmatpush2.msra.mxu0 0.0
        %338 = vmatprep.subr.mxu0 0.0
        %339 = vmatpush2.msra.mxu0 0.0
        %340 = vmatprep.subr.mxu0 0.0
        %341 = vmatpush2.msra.mxu0 0.0
        %342 = vmatprep.subr.mxu0 0.0
        %343 = vmatpush2.msra.mxu0 0.0
        %344 = vmatprep.subr.mxu0 0.0
        %345 = vmatpush2.msra.mxu0 0.0
        %346 = vmatprep.subr.mxu0 0.0
        %347 = vmatpush2.msra.mxu0 0.0
        %348 = vmatprep.subr.mxu0 0.0
        %349 = vmatpush2.msra.mxu0 0.0
        %350 = vmatprep.subr.mxu0 0.0
        %351 = vmatpush2.msra.mxu0 0.0
        %352 = vmatprep.subr.mxu0 0.0
        %353 = vmatpush2.msra.mxu0 0.0
        %354 = vmatprep.subr.mxu0 0.0
        %355 = vmatpush2.msra.mxu0 0.0
        %356 = vmatprep.subr.mxu0 0.0
        %357 = vmatpush2.msra.mxu0 0.0
        %358 = vmatprep.subr.mxu0 0.0
        %359 = vmatpush2.msra.mxu0 0.0
        %360 = vmatprep.subr.mxu0 0.0
        %361 = vmatpush2.msra.mxu0 0.0
        %362 = vmatprep.subr.mxu0 0.0
        %363 = vmatpush2.msra.mxu0 0.0
        %364 = vmatprep.mubr.f32.mxu0 0.0
        %v365 = vand.u32 %v293, 4294901760
        %v366 = vsub.f32 %v293, %v365
        %v367 = vand.u32 %v366, 4294901760
        %v368 = vsub.f32 %v366, %v367
        %v369 = vand.u32 %v368, 4294901760
        %370 = vmatmul.mubr.f32.gmra.mxu0 %v369
        %v371 = vpop.f32.mrf.mxu0
        %v372 = vadd.f32 0.0, %v371
        %v373 = vpop.f32.mrf.mxu0
        %374 = vmatprep.mubr.f32.mxu0 0.0
        %v375 = vand.u32 %v296, 4294901760
        %v376 = vsub.f32 %v296, %v375
        %v377 = vand.u32 %v376, 4294901760
        %v378 = vsub.f32 %v376, %v377
        %v379 = vand.u32 %v378, 4294901760
        %380 = vmatmul.mubr.f32.gmra.mxu0 %v379
        %v381 = vpop.f32.mrf.mxu0
        %v382 = vadd.f32 0.0, %v381
        %v383 = vpop.f32.mrf.mxu0
        %384 = vdwg.mxu0
        %385 = vmatprep.subr.mxu0 0.0
        %386 = vmatpush1.msra.mxu0 0.0
        %387 = vmatprep.subr.mxu0 0.0
        %388 = vmatpush1.msra.mxu0 0.0
        %389 = vmatprep.subr.mxu0 0.0
        %390 = vmatpush1.msra.mxu0 0.0
        %391 = vmatprep.subr.mxu0 0.0
        %392 = vmatpush1.msra.mxu0 0.0
        %393 = vmatprep.subr.mxu0 0.0
        %394 = vmatpush1.msra.mxu0 0.0
        %395 = vmatprep.subr.mxu0 0.0
        %396 = vmatpush1.msra.mxu0 0.0
        %397 = vmatprep.subr.mxu0 0.0
        %398 = vmatpush1.msra.mxu0 0.0
        %399 = vmatprep.subr.mxu0 0.0
        %400 = vmatpush1.msra.mxu0 0.0
        %401 = vmatprep.subr.mxu0 0.0
        %402 = vmatpush1.msra.mxu0 0.0
        %403 = vmatprep.subr.mxu0 0.0
        %404 = vmatpush1.msra.mxu0 0.0
        %405 = vmatprep.subr.mxu0 0.0
        %406 = vmatpush1.msra.mxu0 0.0
        %407 = vmatprep.subr.mxu0 0.0
        %408 = vmatpush1.msra.mxu0 0.0
        %409 = vmatprep.subr.mxu0 0.0
        %410 = vmatpush1.msra.mxu0 0.0
        %411 = vmatprep.subr.mxu0 0.0
        %412 = vmatpush1.msra.mxu0 0.0
        %413 = vmatprep.subr.mxu0 0.0
        %v414 = vand.u32 %v290, 4294901760
        %v415 = vsub.f32 %v290, %v414
        %v416 = vand.u32 %v415, 4294901760
        %v417 = vsub.f32 %v415, %v416
        %v418 = vand.u32 %v417, 4294901760
        %419 = vmatpush1.msra.mxu0 %v418
        %420 = vmatprep.subr.mxu0 0.0
        %v421 = vand.u32 %v289, 4294901760
        %v422 = vsub.f32 %v289, %v421
        %v423 = vand.u32 %v422, 4294901760
        %v424 = vsub.f32 %v422, %v423
        %v425 = vand.u32 %v424, 4294901760
        %426 = vmatpush1.msra.mxu0 %v425
        %427 = vmatprep.subr.mxu0 0.0
        %428 = vmatpush2.msra.mxu0 0.0
        %429 = vmatprep.subr.mxu0 0.0
        %430 = vmatpush2.msra.mxu0 0.0
        %431 = vmatprep.subr.mxu0 0.0
        %432 = vmatpush2.msra.mxu0 0.0
        %433 = vmatprep.subr.mxu0 0.0
        %434 = vmatpush2.msra.mxu0 0.0
        %435 = vmatprep.subr.mxu0 0.0
        %436 = vmatpush2.msra.mxu0 0.0
        %437 = vmatprep.subr.mxu0 0.0
        %438 = vmatpush2.msra.mxu0 0.0
        %439 = vmatprep.subr.mxu0 0.0
        %440 = vmatpush2.msra.mxu0 0.0
        %441 = vmatprep.subr.mxu0 0.0
        %442 = vmatpush2.msra.mxu0 0.0
        %443 = vmatprep.subr.mxu0 0.0
        %444 = vmatpush2.msra.mxu0 0.0
        %445 = vmatprep.subr.mxu0 0.0
        %446 = vmatpush2.msra.mxu0 0.0
        %447 = vmatprep.subr.mxu0 0.0
        %448 = vmatpush2.msra.mxu0 0.0
        %449 = vmatprep.subr.mxu0 0.0
        %450 = vmatpush2.msra.mxu0 0.0
        %451 = vmatprep.subr.mxu0 0.0
        %452 = vmatpush2.msra.mxu0 0.0
        %453 = vmatprep.subr.mxu0 0.0
        %454 = vmatpush2.msra.mxu0 0.0
        %455 = vmatprep.subr.mxu0 0.0
        %456 = vmatpush2.msra.mxu0 0.0
        %457 = vmatprep.subr.mxu0 0.0
        %458 = vmatpush2.msra.mxu0 0.0
        %459 = vmatprep.mubr.f32.mxu0 0.0
        %v460 = vand.u32 %v293, 4294901760
        %461 = vmatmul.mubr.f32.gmra.mxu0 %v460
        %v462 = vpop.f32.mrf.mxu0
        %v463 = vadd.f32 %v372, %v462
        %v464 = vpop.f32.mrf.mxu0
        %465 = vmatprep.mubr.f32.mxu0 0.0
        %v466 = vand.u32 %v296, 4294901760
        %467 = vmatmul.mubr.f32.gmra.mxu0 %v466
        %v468 = vpop.f32.mrf.mxu0
        %v469 = vadd.f32 %v382, %v468
        %v470 = vpop.f32.mrf.mxu0
        %471 = vdwg.mxu0
        %472 = vmatprep.subr.mxu0 0.0
        %473 = vmatpush1.msra.mxu0 0.0
        %474 = vmatprep.subr.mxu0 0.0
        %475 = vmatpush1.msra.mxu0 0.0
        %476 = vmatprep.subr.mxu0 0.0
        %477 = vmatpush1.msra.mxu0 0.0
        %478 = vmatprep.subr.mxu0 0.0
        %479 = vmatpush1.msra.mxu0 0.0
        %480 = vmatprep.subr.mxu0 0.0
        %481 = vmatpush1.msra.mxu0 0.0
        %482 = vmatprep.subr.mxu0 0.0
        %483 = vmatpush1.msra.mxu0 0.0
        %484 = vmatprep.subr.mxu0 0.0
        %485 = vmatpush1.msra.mxu0 0.0
        %486 = vmatprep.subr.mxu0 0.0
        %487 = vmatpush1.msra.mxu0 0.0
        %488 = vmatprep.subr.mxu0 0.0
        %489 = vmatpush1.msra.mxu0 0.0
        %490 = vmatprep.subr.mxu0 0.0
        %491 = vmatpush1.msra.mxu0 0.0
        %492 = vmatprep.subr.mxu0 0.0
        %493 = vmatpush1.msra.mxu0 0.0
        %494 = vmatprep.subr.mxu0 0.0
        %495 = vmatpush1.msra.mxu0 0.0
        %496 = vmatprep.subr.mxu0 0.0
        %497 = vmatpush1.msra.mxu0 0.0
        %498 = vmatprep.subr.mxu0 0.0
        %499 = vmatpush1.msra.mxu0 0.0
        %500 = vmatprep.subr.mxu0 0.0
        %v501 = vand.u32 %v290, 4294901760
        %v502 = vsub.f32 %v290, %v501
        %503 = vmatpush1.msra.mxu0 %v502
        %504 = vmatprep.subr.mxu0 0.0
        %v505 = vand.u32 %v289, 4294901760
        %v506 = vsub.f32 %v289, %v505
        %507 = vmatpush1.msra.mxu0 %v506
        %508 = vmatprep.subr.mxu0 0.0
        %509 = vmatpush2.msra.mxu0 0.0
        %510 = vmatprep.subr.mxu0 0.0
        %511 = vmatpush2.msra.mxu0 0.0
        %512 = vmatprep.subr.mxu0 0.0
        %513 = vmatpush2.msra.mxu0 0.0
        %514 = vmatprep.subr.mxu0 0.0
        %515 = vmatpush2.msra.mxu0 0.0
        %516 = vmatprep.subr.mxu0 0.0
        %517 = vmatpush2.msra.mxu0 0.0
        %518 = vmatprep.subr.mxu0 0.0
        %519 = vmatpush2.msra.mxu0 0.0
        %520 = vmatprep.subr.mxu0 0.0
        %521 = vmatpush2.msra.mxu0 0.0
        %522 = vmatprep.subr.mxu0 0.0
        %523 = vmatpush2.msra.mxu0 0.0
        %524 = vmatprep.subr.mxu0 0.0
        %525 = vmatpush2.msra.mxu0 0.0
        %526 = vmatprep.subr.mxu0 0.0
        %527 = vmatpush2.msra.mxu0 0.0
        %528 = vmatprep.subr.mxu0 0.0
        %529 = vmatpush2.msra.mxu0 0.0
        %530 = vmatprep.subr.mxu0 0.0
        %531 = vmatpush2.msra.mxu0 0.0
        %532 = vmatprep.subr.mxu0 0.0
        %533 = vmatpush2.msra.mxu0 0.0
        %534 = vmatprep.subr.mxu0 0.0
        %535 = vmatpush2.msra.mxu0 0.0
        %536 = vmatprep.subr.mxu0 0.0
        %537 = vmatpush2.msra.mxu0 0.0
        %538 = vmatprep.subr.mxu0 0.0
        %539 = vmatpush2.msra.mxu0 0.0
        %540 = vmatprep.mubr.f32.mxu0 0.0
        %v541 = vand.u32 %v293, 4294901760
        %v542 = vsub.f32 %v293, %v541
        %543 = vmatmul.mubr.f32.gmra.mxu0 %v542
        %v544 = vpop.f32.mrf.mxu0
        %v545 = vadd.f32 %v463, %v544
        %v546 = vpop.f32.mrf.mxu0
        %547 = vmatprep.mubr.f32.mxu0 0.0
        %v548 = vand.u32 %v296, 4294901760
        %v549 = vsub.f32 %v296, %v548
        %550 = vmatmul.mubr.f32.gmra.mxu0 %v549
        %v551 = vpop.f32.mrf.mxu0
        %v552 = vadd.f32 %v469, %v551
        %v553 = vpop.f32.mrf.mxu0
        %554 = vdwg.mxu0
        %555 = vmatprep.subr.mxu0 0.0
        %556 = vmatpush1.msra.mxu0 0.0
        %557 = vmatprep.subr.mxu0 0.0
        %558 = vmatpush1.msra.mxu0 0.0
        %559 = vmatprep.subr.mxu0 0.0
        %560 = vmatpush1.msra.mxu0 0.0
        %561 = vmatprep.subr.mxu0 0.0
        %562 = vmatpush1.msra.mxu0 0.0
        %563 = vmatprep.subr.mxu0 0.0
        %564 = vmatpush1.msra.mxu0 0.0
        %565 = vmatprep.subr.mxu0 0.0
        %566 = vmatpush1.msra.mxu0 0.0
        %567 = vmatprep.subr.mxu0 0.0
        %568 = vmatpush1.msra.mxu0 0.0
        %569 = vmatprep.subr.mxu0 0.0
        %570 = vmatpush1.msra.mxu0 0.0
        %571 = vmatprep.subr.mxu0 0.0
        %572 = vmatpush1.msra.mxu0 0.0
        %573 = vmatprep.subr.mxu0 0.0
        %574 = vmatpush1.msra.mxu0 0.0
        %575 = vmatprep.subr.mxu0 0.0
        %576 = vmatpush1.msra.mxu0 0.0
        %577 = vmatprep.subr.mxu0 0.0
        %578 = vmatpush1.msra.mxu0 0.0
        %579 = vmatprep.subr.mxu0 0.0
        %580 = vmatpush1.msra.mxu0 0.0
        %581 = vmatprep.subr.mxu0 0.0
        %582 = vmatpush1.msra.mxu0 0.0
        %583 = vmatprep.subr.mxu0 0.0
        %v584 = vand.u32 %v290, 4294901760
        %585 = vmatpush1.msra.mxu0 %v584
        %586 = vmatprep.subr.mxu0 0.0
        %v587 = vand.u32 %v289, 4294901760
        %588 = vmatpush1.msra.mxu0 %v587
        %589 = vmatprep.subr.mxu0 0.0
        %590 = vmatpush2.msra.mxu0 0.0
        %591 = vmatprep.subr.mxu0 0.0
        %592 = vmatpush2.msra.mxu0 0.0
        %593 = vmatprep.subr.mxu0 0.0
        %594 = vmatpush2.msra.mxu0 0.0
        %595 = vmatprep.subr.mxu0 0.0
        %596 = vmatpush2.msra.mxu0 0.0
        %597 = vmatprep.subr.mxu0 0.0
        %598 = vmatpush2.msra.mxu0 0.0
        %599 = vmatprep.subr.mxu0 0.0
        %600 = vmatpush2.msra.mxu0 0.0
        %601 = vmatprep.subr.mxu0 0.0
        %602 = vmatpush2.msra.mxu0 0.0
        %603 = vmatprep.subr.mxu0 0.0
        %604 = vmatpush2.msra.mxu0 0.0
        %605 = vmatprep.subr.mxu0 0.0
        %606 = vmatpush2.msra.mxu0 0.0
        %607 = vmatprep.subr.mxu0 0.0
        %608 = vmatpush2.msra.mxu0 0.0
        %609 = vmatprep.subr.mxu0 0.0
        %610 = vmatpush2.msra.mxu0 0.0
        %611 = vmatprep.subr.mxu0 0.0
        %612 = vmatpush2.msra.mxu0 0.0
        %613 = vmatprep.subr.mxu0 0.0
        %614 = vmatpush2.msra.mxu0 0.0
        %615 = vmatprep.subr.mxu0 0.0
        %616 = vmatpush2.msra.mxu0 0.0
        %617 = vmatprep.subr.mxu0 0.0
        %618 = vmatpush2.msra.mxu0 0.0
        %619 = vmatprep.subr.mxu0 0.0
        %620 = vmatpush2.msra.mxu0 0.0
        %621 = vmatprep.mubr.f32.mxu0 0.0
        %v622 = vand.u32 %v293, 4294901760
        %v623 = vsub.f32 %v293, %v622
        %v624 = vand.u32 %v623, 4294901760
        %625 = vmatmul.mubr.f32.gmra.mxu0 %v624
        %v626 = vpop.f32.mrf.mxu0
        %v627 = vadd.f32 %v545, %v626
        %v628 = vpop.f32.mrf.mxu0
        %629 = vmatprep.mubr.f32.mxu0 0.0
        %v630 = vand.u32 %v296, 4294901760
        %v631 = vsub.f32 %v296, %v630
        %v632 = vand.u32 %v631, 4294901760
        %633 = vmatmul.mubr.f32.gmra.mxu0 %v632
        %v634 = vpop.f32.mrf.mxu0
        %v635 = vadd.f32 %v552, %v634
        %v636 = vpop.f32.mrf.mxu0
        %637 = vdwg.mxu0
        %638 = vmatprep.subr.mxu0 0.0
        %639 = vmatpush1.msra.mxu0 0.0
        %640 = vmatprep.subr.mxu0 0.0
        %641 = vmatpush1.msra.mxu0 0.0
        %642 = vmatprep.subr.mxu0 0.0
        %643 = vmatpush1.msra.mxu0 0.0
        %644 = vmatprep.subr.mxu0 0.0
        %645 = vmatpush1.msra.mxu0 0.0
        %646 = vmatprep.subr.mxu0 0.0
        %647 = vmatpush1.msra.mxu0 0.0
        %648 = vmatprep.subr.mxu0 0.0
        %649 = vmatpush1.msra.mxu0 0.0
        %650 = vmatprep.subr.mxu0 0.0
        %651 = vmatpush1.msra.mxu0 0.0
        %652 = vmatprep.subr.mxu0 0.0
        %653 = vmatpush1.msra.mxu0 0.0
        %654 = vmatprep.subr.mxu0 0.0
        %655 = vmatpush1.msra.mxu0 0.0
        %656 = vmatprep.subr.mxu0 0.0
        %657 = vmatpush1.msra.mxu0 0.0
        %658 = vmatprep.subr.mxu0 0.0
        %659 = vmatpush1.msra.mxu0 0.0
        %660 = vmatprep.subr.mxu0 0.0
        %661 = vmatpush1.msra.mxu0 0.0
        %662 = vmatprep.subr.mxu0 0.0
        %663 = vmatpush1.msra.mxu0 0.0
        %664 = vmatprep.subr.mxu0 0.0
        %665 = vmatpush1.msra.mxu0 0.0
        %666 = vmatprep.subr.mxu0 0.0
        %v667 = vand.u32 %v290, 4294901760
        %v668 = vsub.f32 %v290, %v667
        %v669 = vand.u32 %v668, 4294901760
        %670 = vmatpush1.msra.mxu0 %v669
        %671 = vmatprep.subr.mxu0 0.0
        %v672 = vand.u32 %v289, 4294901760
        %v673 = vsub.f32 %v289, %v672
        %v674 = vand.u32 %v673, 4294901760
        %675 = vmatpush1.msra.mxu0 %v674
        %676 = vmatprep.subr.mxu0 0.0
        %677 = vmatpush2.msra.mxu0 0.0
        %678 = vmatprep.subr.mxu0 0.0
        %679 = vmatpush2.msra.mxu0 0.0
        %680 = vmatprep.subr.mxu0 0.0
        %681 = vmatpush2.msra.mxu0 0.0
        %682 = vmatprep.subr.mxu0 0.0
        %683 = vmatpush2.msra.mxu0 0.0
        %684 = vmatprep.subr.mxu0 0.0
        %685 = vmatpush2.msra.mxu0 0.0
        %686 = vmatprep.subr.mxu0 0.0
        %687 = vmatpush2.msra.mxu0 0.0
        %688 = vmatprep.subr.mxu0 0.0
        %689 = vmatpush2.msra.mxu0 0.0
        %690 = vmatprep.subr.mxu0 0.0
        %691 = vmatpush2.msra.mxu0 0.0
        %692 = vmatprep.subr.mxu0 0.0
        %693 = vmatpush2.msra.mxu0 0.0
        %694 = vmatprep.subr.mxu0 0.0
        %695 = vmatpush2.msra.mxu0 0.0
        %696 = vmatprep.subr.mxu0 0.0
        %697 = vmatpush2.msra.mxu0 0.0
        %698 = vmatprep.subr.mxu0 0.0
        %699 = vmatpush2.msra.mxu0 0.0
        %700 = vmatprep.subr.mxu0 0.0
        %701 = vmatpush2.msra.mxu0 0.0
        %702 = vmatprep.subr.mxu0 0.0
        %703 = vmatpush2.msra.mxu0 0.0
        %704 = vmatprep.subr.mxu0 0.0
        %705 = vmatpush2.msra.mxu0 0.0
        %706 = vmatprep.subr.mxu0 0.0
        %707 = vmatpush2.msra.mxu0 0.0
        %708 = vmatprep.mubr.f32.mxu0 0.0
        %v709 = vand.u32 %v293, 4294901760
        %710 = vmatmul.mubr.f32.gmra.mxu0 %v709
        %v711 = vpop.f32.mrf.mxu0
        %v712 = vadd.f32 %v627, %v711
        %v713 = vpop.f32.mrf.mxu0
        %714 = vmatprep.mubr.f32.mxu0 0.0
        %v715 = vand.u32 %v296, 4294901760
        %716 = vmatmul.mubr.f32.gmra.mxu0 %v715
        %v717 = vpop.f32.mrf.mxu0
        %v718 = vadd.f32 %v635, %v717
        %v719 = vpop.f32.mrf.mxu0
        %720 = vdwg.mxu0
        %721 = vmatprep.subr.mxu0 0.0
        %722 = vmatpush1.msra.mxu0 0.0
        %723 = vmatprep.subr.mxu0 0.0
        %724 = vmatpush1.msra.mxu0 0.0
        %725 = vmatprep.subr.mxu0 0.0
        %726 = vmatpush1.msra.mxu0 0.0
        %727 = vmatprep.subr.mxu0 0.0
        %728 = vmatpush1.msra.mxu0 0.0
        %729 = vmatprep.subr.mxu0 0.0
        %730 = vmatpush1.msra.mxu0 0.0
        %731 = vmatprep.subr.mxu0 0.0
        %732 = vmatpush1.msra.mxu0 0.0
        %733 = vmatprep.subr.mxu0 0.0
        %734 = vmatpush1.msra.mxu0 0.0
        %735 = vmatprep.subr.mxu0 0.0
        %736 = vmatpush1.msra.mxu0 0.0
        %737 = vmatprep.subr.mxu0 0.0
        %738 = vmatpush1.msra.mxu0 0.0
        %739 = vmatprep.subr.mxu0 0.0
        %740 = vmatpush1.msra.mxu0 0.0
        %741 = vmatprep.subr.mxu0 0.0
        %742 = vmatpush1.msra.mxu0 0.0
        %743 = vmatprep.subr.mxu0 0.0
        %744 = vmatpush1.msra.mxu0 0.0
        %745 = vmatprep.subr.mxu0 0.0
        %746 = vmatpush1.msra.mxu0 0.0
        %747 = vmatprep.subr.mxu0 0.0
        %748 = vmatpush1.msra.mxu0 0.0
        %749 = vmatprep.subr.mxu0 0.0
        %v750 = vand.u32 %v290, 4294901760
        %751 = vmatpush1.msra.mxu0 %v750
        %752 = vmatprep.subr.mxu0 0.0
        %v753 = vand.u32 %v289, 4294901760
        %754 = vmatpush1.msra.mxu0 %v753
        %755 = vmatprep.subr.mxu0 0.0
        %756 = vmatpush2.msra.mxu0 0.0
        %757 = vmatprep.subr.mxu0 0.0
        %758 = vmatpush2.msra.mxu0 0.0
        %759 = vmatprep.subr.mxu0 0.0
        %760 = vmatpush2.msra.mxu0 0.0
        %761 = vmatprep.subr.mxu0 0.0
        %762 = vmatpush2.msra.mxu0 0.0
        %763 = vmatprep.subr.mxu0 0.0
        %764 = vmatpush2.msra.mxu0 0.0
        %765 = vmatprep.subr.mxu0 0.0
        %766 = vmatpush2.msra.mxu0 0.0
        %767 = vmatprep.subr.mxu0 0.0
        %768 = vmatpush2.msra.mxu0 0.0
        %769 = vmatprep.subr.mxu0 0.0
        %770 = vmatpush2.msra.mxu0 0.0
        %771 = vmatprep.subr.mxu0 0.0
        %772 = vmatpush2.msra.mxu0 0.0
        %773 = vmatprep.subr.mxu0 0.0
        %774 = vmatpush2.msra.mxu0 0.0
        %775 = vmatprep.subr.mxu0 0.0
        %776 = vmatpush2.msra.mxu0 0.0
        %777 = vmatprep.subr.mxu0 0.0
        %778 = vmatpush2.msra.mxu0 0.0
        %779 = vmatprep.subr.mxu0 0.0
        %780 = vmatpush2.msra.mxu0 0.0
        %781 = vmatprep.subr.mxu0 0.0
        %782 = vmatpush2.msra.mxu0 0.0
        %783 = vmatprep.subr.mxu0 0.0
        %784 = vmatpush2.msra.mxu0 0.0
        %785 = vmatprep.subr.mxu0 0.0
        %786 = vmatpush2.msra.mxu0 0.0
        %787 = vmatprep.mubr.f32.mxu0 0.0
        %v788 = vand.u32 %v293, 4294901760
        %789 = vmatmul.mubr.f32.gmra.mxu0 %v788
        %v790 = vpop.f32.mrf.mxu0
        %v791 = vadd.f32 %v712, %v790
        %v792 = vpop.f32.mrf.mxu0
        %793 = vmatprep.mubr.f32.mxu0 0.0
        %v794 = vand.u32 %v296, 4294901760
        %795 = vmatmul.mubr.f32.gmra.mxu0 %v794
        %v796 = vpop.f32.mrf.mxu0
        %v797 = vadd.f32 %v718, %v796
        %v798 = vpop.f32.mrf.mxu0
        %799 = vdwg.mxu0
        %v801 = vsel %vm291, %v287, 0
        %v804 = vsel %vm291, %v288, 0
        %806 = vmatprep.subr.mxu0 0.0
        %807 = vmatpush1.msra.mxu0 0.0
        %808 = vmatprep.subr.mxu0 0.0
        %809 = vmatpush1.msra.mxu0 0.0
        %810 = vmatprep.subr.mxu0 0.0
        %811 = vmatpush1.msra.mxu0 0.0
        %812 = vmatprep.subr.mxu0 0.0
        %813 = vmatpush1.msra.mxu0 0.0
        %814 = vmatprep.subr.mxu0 0.0
        %815 = vmatpush1.msra.mxu0 0.0
        %816 = vmatprep.subr.mxu0 0.0
        %817 = vmatpush1.msra.mxu0 0.0
        %818 = vmatprep.subr.mxu0 0.0
        %819 = vmatpush1.msra.mxu0 0.0
        %820 = vmatprep.subr.mxu0 0.0
        %821 = vmatpush1.msra.mxu0 0.0
        %822 = vmatprep.subr.mxu0 0.0
        %823 = vmatpush1.msra.mxu0 0.0
        %824 = vmatprep.subr.mxu0 0.0
        %825 = vmatpush1.msra.mxu0 0.0
        %826 = vmatprep.subr.mxu0 0.0
        %827 = vmatpush1.msra.mxu0 0.0
        %828 = vmatprep.subr.mxu0 0.0
        %829 = vmatpush1.msra.mxu0 0.0
        %830 = vmatprep.subr.mxu0 0.0
        %831 = vmatpush1.msra.mxu0 0.0
        %832 = vmatprep.subr.mxu0 0.0
        %833 = vmatpush1.msra.mxu0 0.0
        %834 = vmatprep.subr.mxu0 0.0
        %v835 = vand.u32 %v286, 4294901760
        %836 = vmatpush1.msra.mxu0 %v835
        %837 = vmatprep.subr.mxu0 0.0
        %v838 = vand.u32 %v285, 4294901760
        %839 = vmatpush1.msra.mxu0 %v838
        %840 = vmatprep.subr.mxu0 0.0
        %841 = vmatpush2.msra.mxu0 0.0
        %842 = vmatprep.subr.mxu0 0.0
        %843 = vmatpush2.msra.mxu0 0.0
        %844 = vmatprep.subr.mxu0 0.0
        %845 = vmatpush2.msra.mxu0 0.0
        %846 = vmatprep.subr.mxu0 0.0
        %847 = vmatpush2.msra.mxu0 0.0
        %848 = vmatprep.subr.mxu0 0.0
        %849 = vmatpush2.msra.mxu0 0.0
        %850 = vmatprep.subr.mxu0 0.0
        %851 = vmatpush2.msra.mxu0 0.0
        %852 = vmatprep.subr.mxu0 0.0
        %853 = vmatpush2.msra.mxu0 0.0
        %854 = vmatprep.subr.mxu0 0.0
        %855 = vmatpush2.msra.mxu0 0.0
        %856 = vmatprep.subr.mxu0 0.0
        %857 = vmatpush2.msra.mxu0 0.0
        %858 = vmatprep.subr.mxu0 0.0
        %859 = vmatpush2.msra.mxu0 0.0
        %860 = vmatprep.subr.mxu0 0.0
        %861 = vmatpush2.msra.mxu0 0.0
        %862 = vmatprep.subr.mxu0 0.0
        %863 = vmatpush2.msra.mxu0 0.0
        %864 = vmatprep.subr.mxu0 0.0
        %865 = vmatpush2.msra.mxu0 0.0
        %866 = vmatprep.subr.mxu0 0.0
        %867 = vmatpush2.msra.mxu0 0.0
        %868 = vmatprep.subr.mxu0 0.0
        %869 = vmatpush2.msra.mxu0 0.0
        %870 = vmatprep.subr.mxu0 0.0
        %871 = vmatpush2.msra.mxu0 0.0
        %872 = vmatprep.mubr.f32.mxu0 0.0
        %v873 = vand.u32 %v801, 4294901760
        %v874 = vsub.f32 %v801, %v873
        %v875 = vand.u32 %v874, 4294901760
        %v876 = vsub.f32 %v874, %v875
        %v877 = vand.u32 %v876, 4294901760
        %878 = vmatmul.mubr.f32.gmra.mxu0 %v877
        %v879 = vpop.f32.mrf.mxu0
        %v880 = vadd.f32 %v791, %v879
        %v881 = vpop.f32.mrf.mxu0
        %882 = vmatprep.mubr.f32.mxu0 0.0
        %v883 = vand.u32 %v804, 4294901760
        %v884 = vsub.f32 %v804, %v883
        %v885 = vand.u32 %v884, 4294901760
        %v886 = vsub.f32 %v884, %v885
        %v887 = vand.u32 %v886, 4294901760
        %888 = vmatmul.mubr.f32.gmra.mxu0 %v887
        %v889 = vpop.f32.mrf.mxu0
        %v890 = vadd.f32 %v797, %v889
        %v891 = vpop.f32.mrf.mxu0
        %892 = vdwg.mxu0
        %893 = vmatprep.subr.mxu0 0.0
        %894 = vmatpush1.msra.mxu0 0.0
        %895 = vmatprep.subr.mxu0 0.0
        %896 = vmatpush1.msra.mxu0 0.0
        %897 = vmatprep.subr.mxu0 0.0
        %898 = vmatpush1.msra.mxu0 0.0
        %899 = vmatprep.subr.mxu0 0.0
        %900 = vmatpush1.msra.mxu0 0.0
        %901 = vmatprep.subr.mxu0 0.0
        %902 = vmatpush1.msra.mxu0 0.0
        %903 = vmatprep.subr.mxu0 0.0
        %904 = vmatpush1.msra.mxu0 0.0
        %905 = vmatprep.subr.mxu0 0.0
        %906 = vmatpush1.msra.mxu0 0.0
        %907 = vmatprep.subr.mxu0 0.0
        %908 = vmatpush1.msra.mxu0 0.0
        %909 = vmatprep.subr.mxu0 0.0
        %910 = vmatpush1.msra.mxu0 0.0
        %911 = vmatprep.subr.mxu0 0.0
        %912 = vmatpush1.msra.mxu0 0.0
        %913 = vmatprep.subr.mxu0 0.0
        %914 = vmatpush1.msra.mxu0 0.0
        %915 = vmatprep.subr.mxu0 0.0
        %916 = vmatpush1.msra.mxu0 0.0
        %917 = vmatprep.subr.mxu0 0.0
        %918 = vmatpush1.msra.mxu0 0.0
        %919 = vmatprep.subr.mxu0 0.0
        %920 = vmatpush1.msra.mxu0 0.0
        %921 = vmatprep.subr.mxu0 0.0
        %v922 = vand.u32 %v286, 4294901760
        %v923 = vsub.f32 %v286, %v922
        %v924 = vand.u32 %v923, 4294901760
        %v925 = vsub.f32 %v923, %v924
        %v926 = vand.u32 %v925, 4294901760
        %927 = vmatpush1.msra.mxu0 %v926
        %928 = vmatprep.subr.mxu0 0.0
        %v929 = vand.u32 %v285, 4294901760
        %v930 = vsub.f32 %v285, %v929
        %v931 = vand.u32 %v930, 4294901760
        %v932 = vsub.f32 %v930, %v931
        %v933 = vand.u32 %v932, 4294901760
        %934 = vmatpush1.msra.mxu0 %v933
        %935 = vmatprep.subr.mxu0 0.0
        %936 = vmatpush2.msra.mxu0 0.0
        %937 = vmatprep.subr.mxu0 0.0
        %938 = vmatpush2.msra.mxu0 0.0
        %939 = vmatprep.subr.mxu0 0.0
        %940 = vmatpush2.msra.mxu0 0.0
        %941 = vmatprep.subr.mxu0 0.0
        %942 = vmatpush2.msra.mxu0 0.0
        %943 = vmatprep.subr.mxu0 0.0
        %944 = vmatpush2.msra.mxu0 0.0
        %945 = vmatprep.subr.mxu0 0.0
        %946 = vmatpush2.msra.mxu0 0.0
        %947 = vmatprep.subr.mxu0 0.0
        %948 = vmatpush2.msra.mxu0 0.0
        %949 = vmatprep.subr.mxu0 0.0
        %950 = vmatpush2.msra.mxu0 0.0
        %951 = vmatprep.subr.mxu0 0.0
        %952 = vmatpush2.msra.mxu0 0.0
        %953 = vmatprep.subr.mxu0 0.0
        %954 = vmatpush2.msra.mxu0 0.0
        %955 = vmatprep.subr.mxu0 0.0
        %956 = vmatpush2.msra.mxu0 0.0
        %957 = vmatprep.subr.mxu0 0.0
        %958 = vmatpush2.msra.mxu0 0.0
        %959 = vmatprep.subr.mxu0 0.0
        %960 = vmatpush2.msra.mxu0 0.0
        %961 = vmatprep.subr.mxu0 0.0
        %962 = vmatpush2.msra.mxu0 0.0
        %963 = vmatprep.subr.mxu0 0.0
        %964 = vmatpush2.msra.mxu0 0.0
        %965 = vmatprep.subr.mxu0 0.0
        %966 = vmatpush2.msra.mxu0 0.0
        %967 = vmatprep.mubr.f32.mxu0 0.0
        %v968 = vand.u32 %v801, 4294901760
        %969 = vmatmul.mubr.f32.gmra.mxu0 %v968
        %v970 = vpop.f32.mrf.mxu0
        %v971 = vadd.f32 %v880, %v970
        %v972 = vpop.f32.mrf.mxu0
        %973 = vmatprep.mubr.f32.mxu0 0.0
        %v974 = vand.u32 %v804, 4294901760
        %975 = vmatmul.mubr.f32.gmra.mxu0 %v974
        %v976 = vpop.f32.mrf.mxu0
        %v977 = vadd.f32 %v890, %v976
        %v978 = vpop.f32.mrf.mxu0
        %979 = vdwg.mxu0
        %980 = vmatprep.subr.mxu0 0.0
        %981 = vmatpush1.msra.mxu0 0.0
        %982 = vmatprep.subr.mxu0 0.0
        %983 = vmatpush1.msra.mxu0 0.0
        %984 = vmatprep.subr.mxu0 0.0
        %985 = vmatpush1.msra.mxu0 0.0
        %986 = vmatprep.subr.mxu0 0.0
        %987 = vmatpush1.msra.mxu0 0.0
        %988 = vmatprep.subr.mxu0 0.0
        %989 = vmatpush1.msra.mxu0 0.0
        %990 = vmatprep.subr.mxu0 0.0
        %991 = vmatpush1.msra.mxu0 0.0
        %992 = vmatprep.subr.mxu0 0.0
        %993 = vmatpush1.msra.mxu0 0.0
        %994 = vmatprep.subr.mxu0 0.0
        %995 = vmatpush1.msra.mxu0 0.0
        %996 = vmatprep.subr.mxu0 0.0
        %997 = vmatpush1.msra.mxu0 0.0
        %998 = vmatprep.subr.mxu0 0.0
        %999 = vmatpush1.msra.mxu0 0.0
        %1000 = vmatprep.subr.mxu0 0.0
        %1001 = vmatpush1.msra.mxu0 0.0
        %1002 = vmatprep.subr.mxu0 0.0
        %1003 = vmatpush1.msra.mxu0 0.0
        %1004 = vmatprep.subr.mxu0 0.0
        %1005 = vmatpush1.msra.mxu0 0.0
        %1006 = vmatprep.subr.mxu0 0.0
        %1007 = vmatpush1.msra.mxu0 0.0
        %1008 = vmatprep.subr.mxu0 0.0
        %v1009 = vand.u32 %v286, 4294901760
        %v1010 = vsub.f32 %v286, %v1009
        %1011 = vmatpush1.msra.mxu0 %v1010
        %1012 = vmatprep.subr.mxu0 0.0
        %v1013 = vand.u32 %v285, 4294901760
        %v1014 = vsub.f32 %v285, %v1013
        %1015 = vmatpush1.msra.mxu0 %v1014
        %1016 = vmatprep.subr.mxu0 0.0
        %1017 = vmatpush2.msra.mxu0 0.0
        %1018 = vmatprep.subr.mxu0 0.0
        %1019 = vmatpush2.msra.mxu0 0.0
        %1020 = vmatprep.subr.mxu0 0.0
        %1021 = vmatpush2.msra.mxu0 0.0
        %1022 = vmatprep.subr.mxu0 0.0
        %1023 = vmatpush2.msra.mxu0 0.0
        %1024 = vmatprep.subr.mxu0 0.0
        %1025 = vmatpush2.msra.mxu0 0.0
        %1026 = vmatprep.subr.mxu0 0.0
        %1027 = vmatpush2.msra.mxu0 0.0
        %1028 = vmatprep.subr.mxu0 0.0
        %1029 = vmatpush2.msra.mxu0 0.0
        %1030 = vmatprep.subr.mxu0 0.0
        %1031 = vmatpush2.msra.mxu0 0.0
        %1032 = vmatprep.subr.mxu0 0.0
        %1033 = vmatpush2.msra.mxu0 0.0
        %1034 = vmatprep.subr.mxu0 0.0
        %1035 = vmatpush2.msra.mxu0 0.0
        %1036 = vmatprep.subr.mxu0 0.0
        %1037 = vmatpush2.msra.mxu0 0.0
        %1038 = vmatprep.subr.mxu0 0.0
        %1039 = vmatpush2.msra.mxu0 0.0
        %1040 = vmatprep.subr.mxu0 0.0
        %1041 = vmatpush2.msra.mxu0 0.0
        %1042 = vmatprep.subr.mxu0 0.0
        %1043 = vmatpush2.msra.mxu0 0.0
        %1044 = vmatprep.subr.mxu0 0.0
        %1045 = vmatpush2.msra.mxu0 0.0
        %1046 = vmatprep.subr.mxu0 0.0
        %1047 = vmatpush2.msra.mxu0 0.0
        %1048 = vmatprep.mubr.f32.mxu0 0.0
        %v1049 = vand.u32 %v801, 4294901760
        %v1050 = vsub.f32 %v801, %v1049
        %1051 = vmatmul.mubr.f32.gmra.mxu0 %v1050
        %v1052 = vpop.f32.mrf.mxu0
        %v1053 = vadd.f32 %v971, %v1052
        %v1054 = vpop.f32.mrf.mxu0
        %1055 = vmatprep.mubr.f32.mxu0 0.0
        %v1056 = vand.u32 %v804, 4294901760
        %v1057 = vsub.f32 %v804, %v1056
        %1058 = vmatmul.mubr.f32.gmra.mxu0 %v1057
        %v1059 = vpop.f32.mrf.mxu0
        %v1060 = vadd.f32 %v977, %v1059
        %v1061 = vpop.f32.mrf.mxu0
        %1062 = vdwg.mxu0
        %1063 = vmatprep.subr.mxu0 0.0
        %1064 = vmatpush1.msra.mxu0 0.0
        %1065 = vmatprep.subr.mxu0 0.0
        %1066 = vmatpush1.msra.mxu0 0.0
        %1067 = vmatprep.subr.mxu0 0.0
        %1068 = vmatpush1.msra.mxu0 0.0
        %1069 = vmatprep.subr.mxu0 0.0
        %1070 = vmatpush1.msra.mxu0 0.0
        %1071 = vmatprep.subr.mxu0 0.0
        %1072 = vmatpush1.msra.mxu0 0.0
        %1073 = vmatprep.subr.mxu0 0.0
        %1074 = vmatpush1.msra.mxu0 0.0
        %1075 = vmatprep.subr.mxu0 0.0
        %1076 = vmatpush1.msra.mxu0 0.0
        %1077 = vmatprep.subr.mxu0 0.0
        %1078 = vmatpush1.msra.mxu0 0.0
        %1079 = vmatprep.subr.mxu0 0.0
        %1080 = vmatpush1.msra.mxu0 0.0
        %1081 = vmatprep.subr.mxu0 0.0
        %1082 = vmatpush1.msra.mxu0 0.0
        %1083 = vmatprep.subr.mxu0 0.0
        %1084 = vmatpush1.msra.mxu0 0.0
        %1085 = vmatprep.subr.mxu0 0.0
        %1086 = vmatpush1.msra.mxu0 0.0
        %1087 = vmatprep.subr.mxu0 0.0
        %1088 = vmatpush1.msra.mxu0 0.0
        %1089 = vmatprep.subr.mxu0 0.0
        %1090 = vmatpush1.msra.mxu0 0.0
        %1091 = vmatprep.subr.mxu0 0.0
        %v1092 = vand.u32 %v286, 4294901760
        %1093 = vmatpush1.msra.mxu0 %v1092
        %1094 = vmatprep.subr.mxu0 0.0
        %v1095 = vand.u32 %v285, 4294901760
        %1096 = vmatpush1.msra.mxu0 %v1095
        %1097 = vmatprep.subr.mxu0 0.0
        %1098 = vmatpush2.msra.mxu0 0.0
        %1099 = vmatprep.subr.mxu0 0.0
        %1100 = vmatpush2.msra.mxu0 0.0
        %1101 = vmatprep.subr.mxu0 0.0
        %1102 = vmatpush2.msra.mxu0 0.0
        %1103 = vmatprep.subr.mxu0 0.0
        %1104 = vmatpush2.msra.mxu0 0.0
        %1105 = vmatprep.subr.mxu0 0.0
        %1106 = vmatpush2.msra.mxu0 0.0
        %1107 = vmatprep.subr.mxu0 0.0
        %1108 = vmatpush2.msra.mxu0 0.0
        %1109 = vmatprep.subr.mxu0 0.0
        %1110 = vmatpush2.msra.mxu0 0.0
        %1111 = vmatprep.subr.mxu0 0.0
        %1112 = vmatpush2.msra.mxu0 0.0
        %1113 = vmatprep.subr.mxu0 0.0
        %1114 = vmatpush2.msra.mxu0 0.0
        %1115 = vmatprep.subr.mxu0 0.0
        %1116 = vmatpush2.msra.mxu0 0.0
        %1117 = vmatprep.subr.mxu0 0.0
        %1118 = vmatpush2.msra.mxu0 0.0
        %1119 = vmatprep.subr.mxu0 0.0
        %1120 = vmatpush2.msra.mxu0 0.0
        %1121 = vmatprep.subr.mxu0 0.0
        %1122 = vmatpush2.msra.mxu0 0.0
        %1123 = vmatprep.subr.mxu0 0.0
        %1124 = vmatpush2.msra.mxu0 0.0
        %1125 = vmatprep.subr.mxu0 0.0
        %1126 = vmatpush2.msra.mxu0 0.0
        %1127 = vmatprep.subr.mxu0 0.0
        %1128 = vmatpush2.msra.mxu0 0.0
        %1129 = vmatprep.mubr.f32.mxu0 0.0
        %v1130 = vand.u32 %v801, 4294901760
        %v1131 = vsub.f32 %v801, %v1130
        %v1132 = vand.u32 %v1131, 4294901760
        %1133 = vmatmul.mubr.f32.gmra.mxu0 %v1132
        %v1134 = vpop.f32.mrf.mxu0
        %v1135 = vadd.f32 %v1053, %v1134
        %v1136 = vpop.f32.mrf.mxu0
        %1137 = vmatprep.mubr.f32.mxu0 0.0
        %v1138 = vand.u32 %v804, 4294901760
        %v1139 = vsub.f32 %v804, %v1138
        %v1140 = vand.u32 %v1139, 4294901760
        %1141 = vmatmul.mubr.f32.gmra.mxu0 %v1140
        %v1142 = vpop.f32.mrf.mxu0
        %v1143 = vadd.f32 %v1060, %v1142
        %v1144 = vpop.f32.mrf.mxu0
        %1145 = vdwg.mxu0
        %1146 = vmatprep.subr.mxu0 0.0
        %1147 = vmatpush1.msra.mxu0 0.0
        %1148 = vmatprep.subr.mxu0 0.0
        %1149 = vmatpush1.msra.mxu0 0.0
        %1150 = vmatprep.subr.mxu0 0.0
        %1151 = vmatpush1.msra.mxu0 0.0
        %1152 = vmatprep.subr.mxu0 0.0
        %1153 = vmatpush1.msra.mxu0 0.0
        %1154 = vmatprep.subr.mxu0 0.0
        %1155 = vmatpush1.msra.mxu0 0.0
        %1156 = vmatprep.subr.mxu0 0.0
        %1157 = vmatpush1.msra.mxu0 0.0
        %1158 = vmatprep.subr.mxu0 0.0
        %1159 = vmatpush1.msra.mxu0 0.0
        %1160 = vmatprep.subr.mxu0 0.0
        %1161 = vmatpush1.msra.mxu0 0.0
        %1162 = vmatprep.subr.mxu0 0.0
        %1163 = vmatpush1.msra.mxu0 0.0
        %1164 = vmatprep.subr.mxu0 0.0
        %1165 = vmatpush1.msra.mxu0 0.0
        %1166 = vmatprep.subr.mxu0 0.0
        %1167 = vmatpush1.msra.mxu0 0.0
        %1168 = vmatprep.subr.mxu0 0.0
        %1169 = vmatpush1.msra.mxu0 0.0
        %1170 = vmatprep.subr.mxu0 0.0
        %1171 = vmatpush1.msra.mxu0 0.0
        %1172 = vmatprep.subr.mxu0 0.0
        %1173 = vmatpush1.msra.mxu0 0.0
        %1174 = vmatprep.subr.mxu0 0.0
        %v1175 = vand.u32 %v286, 4294901760
        %v1176 = vsub.f32 %v286, %v1175
        %v1177 = vand.u32 %v1176, 4294901760
        %1178 = vmatpush1.msra.mxu0 %v1177
        %1179 = vmatprep.subr.mxu0 0.0
        %v1180 = vand.u32 %v285, 4294901760
        %v1181 = vsub.f32 %v285, %v1180
        %v1182 = vand.u32 %v1181, 4294901760
        %1183 = vmatpush1.msra.mxu0 %v1182
        %1184 = vmatprep.subr.mxu0 0.0
        %1185 = vmatpush2.msra.mxu0 0.0
        %1186 = vmatprep.subr.mxu0 0.0
        %1187 = vmatpush2.msra.mxu0 0.0
        %1188 = vmatprep.subr.mxu0 0.0
        %1189 = vmatpush2.msra.mxu0 0.0
        %1190 = vmatprep.subr.mxu0 0.0
        %1191 = vmatpush2.msra.mxu0 0.0
        %1192 = vmatprep.subr.mxu0 0.0
        %1193 = vmatpush2.msra.mxu0 0.0
        %1194 = vmatprep.subr.mxu0 0.0
        %1195 = vmatpush2.msra.mxu0 0.0
        %1196 = vmatprep.subr.mxu0 0.0
        %1197 = vmatpush2.msra.mxu0 0.0
        %1198 = vmatprep.subr.mxu0 0.0
        %1199 = vmatpush2.msra.mxu0 0.0
        %1200 = vmatprep.subr.mxu0 0.0
        %1201 = vmatpush2.msra.mxu0 0.0
        %1202 = vmatprep.subr.mxu0 0.0
        %1203 = vmatpush2.msra.mxu0 0.0
        %1204 = vmatprep.subr.mxu0 0.0
        %1205 = vmatpush2.msra.mxu0 0.0
        %1206 = vmatprep.subr.mxu0 0.0
        %1207 = vmatpush2.msra.mxu0 0.0
        %1208 = vmatprep.subr.mxu0 0.0
        %1209 = vmatpush2.msra.mxu0 0.0
        %1210 = vmatprep.subr.mxu0 0.0
        %1211 = vmatpush2.msra.mxu0 0.0
        %1212 = vmatprep.subr.mxu0 0.0
        %1213 = vmatpush2.msra.mxu0 0.0
        %1214 = vmatprep.subr.mxu0 0.0
        %1215 = vmatpush2.msra.mxu0 0.0
        %1216 = vmatprep.mubr.f32.mxu0 0.0
        %v1217 = vand.u32 %v801, 4294901760
        %1218 = vmatmul.mubr.f32.gmra.mxu0 %v1217
        %v1219 = vpop.f32.mrf.mxu0
        %v1220 = vadd.f32 %v1135, %v1219
        %v1221 = vpop.f32.mrf.mxu0
        %1222 = vmatprep.mubr.f32.mxu0 0.0
        %v1223 = vand.u32 %v804, 4294901760
        %1224 = vmatmul.mubr.f32.gmra.mxu0 %v1223
        %v1225 = vpop.f32.mrf.mxu0
        %v1226 = vadd.f32 %v1143, %v1225
        %v1227 = vpop.f32.mrf.mxu0
        %1228 = vdwg.mxu0
        %1229 = vmatprep.subr.mxu0 0.0
        %1230 = vmatpush1.msra.mxu0 0.0
        %1231 = vmatprep.subr.mxu0 0.0
        %1232 = vmatpush1.msra.mxu0 0.0
        %1233 = vmatprep.subr.mxu0 0.0
        %1234 = vmatpush1.msra.mxu0 0.0
        %1235 = vmatprep.subr.mxu0 0.0
        %1236 = vmatpush1.msra.mxu0 0.0
        %1237 = vmatprep.subr.mxu0 0.0
        %1238 = vmatpush1.msra.mxu0 0.0
        %1239 = vmatprep.subr.mxu0 0.0
        %1240 = vmatpush1.msra.mxu0 0.0
        %1241 = vmatprep.subr.mxu0 0.0
        %1242 = vmatpush1.msra.mxu0 0.0
        %1243 = vmatprep.subr.mxu0 0.0
        %1244 = vmatpush1.msra.mxu0 0.0
        %1245 = vmatprep.subr.mxu0 0.0
        %1246 = vmatpush1.msra.mxu0 0.0
        %1247 = vmatprep.subr.mxu0 0.0
        %1248 = vmatpush1.msra.mxu0 0.0
        %1249 = vmatprep.subr.mxu0 0.0
        %1250 = vmatpush1.msra.mxu0 0.0
        %1251 = vmatprep.subr.mxu0 0.0
        %1252 = vmatpush1.msra.mxu0 0.0
        %1253 = vmatprep.subr.mxu0 0.0
        %1254 = vmatpush1.msra.mxu0 0.0
        %1255 = vmatprep.subr.mxu0 0.0
        %1256 = vmatpush1.msra.mxu0 0.0
        %1257 = vmatprep.subr.mxu0 0.0
        %v1258 = vand.u32 %v286, 4294901760
        %1259 = vmatpush1.msra.mxu0 %v1258
        %1260 = vmatprep.subr.mxu0 0.0
        %v1261 = vand.u32 %v285, 4294901760
        %1262 = vmatpush1.msra.mxu0 %v1261
        %1263 = vmatprep.subr.mxu0 0.0
        %1264 = vmatpush2.msra.mxu0 0.0
        %1265 = vmatprep.subr.mxu0 0.0
        %1266 = vmatpush2.msra.mxu0 0.0
        %1267 = vmatprep.subr.mxu0 0.0
        %1268 = vmatpush2.msra.mxu0 0.0
        %1269 = vmatprep.subr.mxu0 0.0
        %1270 = vmatpush2.msra.mxu0 0.0
        %1271 = vmatprep.subr.mxu0 0.0
        %1272 = vmatpush2.msra.mxu0 0.0
        %1273 = vmatprep.subr.mxu0 0.0
        %1274 = vmatpush2.msra.mxu0 0.0
        %1275 = vmatprep.subr.mxu0 0.0
        %1276 = vmatpush2.msra.mxu0 0.0
        %1277 = vmatprep.subr.mxu0 0.0
        %1278 = vmatpush2.msra.mxu0 0.0
        %1279 = vmatprep.subr.mxu0 0.0
        %1280 = vmatpush2.msra.mxu0 0.0
        %1281 = vmatprep.subr.mxu0 0.0
        %1282 = vmatpush2.msra.mxu0 0.0
        %1283 = vmatprep.subr.mxu0 0.0
        %1284 = vmatpush2.msra.mxu0 0.0
        %1285 = vmatprep.subr.mxu0 0.0
        %1286 = vmatpush2.msra.mxu0 0.0
        %1287 = vmatprep.subr.mxu0 0.0
        %1288 = vmatpush2.msra.mxu0 0.0
        %1289 = vmatprep.subr.mxu0 0.0
        %1290 = vmatpush2.msra.mxu0 0.0
        %1291 = vmatprep.subr.mxu0 0.0
        %1292 = vmatpush2.msra.mxu0 0.0
        %1293 = vmatprep.subr.mxu0 0.0
        %1294 = vmatpush2.msra.mxu0 0.0
        %1295 = vmatprep.mubr.f32.mxu0 0.0
        %v1296 = vand.u32 %v801, 4294901760
        %1297 = vmatmul.mubr.f32.gmra.mxu0 %v1296
        %v1298 = vpop.f32.mrf.mxu0
        %v1299 = vadd.f32 %v1220, %v1298
        %v1300 = vpop.f32.mrf.mxu0
        %1301 = vmatprep.mubr.f32.mxu0 0.0
        %v1302 = vand.u32 %v804, 4294901760
        %1303 = vmatmul.mubr.f32.gmra.mxu0 %v1302
        %v1304 = vpop.f32.mrf.mxu0
        %v1305 = vadd.f32 %v1226, %v1304
        %v1306 = vpop.f32.mrf.mxu0
        %1307 = vdwg.mxu0
        %v1308 = vld [vmem:[#allocation9] sm:$0xff]
        %v1309 = vld [vmem:[#allocation9 + $0x8] sm:$0xff]
        %v1311 = vsel %vm291, %v1308, 0
        %v1314 = vsel %vm291, %v1309, 0
        %1316 = vmatprep.subr.mxu0 0.0
        %1317 = vmatpush1.msra.mxu0 0.0
        %1318 = vmatprep.subr.mxu0 0.0
        %1319 = vmatpush1.msra.mxu0 0.0
        %1320 = vmatprep.subr.mxu0 0.0
        %1321 = vmatpush1.msra.mxu0 0.0
        %1322 = vmatprep.subr.mxu0 0.0
        %1323 = vmatpush1.msra.mxu0 0.0
        %1324 = vmatprep.subr.mxu0 0.0
        %1325 = vmatpush1.msra.mxu0 0.0
        %1326 = vmatprep.subr.mxu0 0.0
        %1327 = vmatpush1.msra.mxu0 0.0
        %1328 = vmatprep.subr.mxu0 0.0
        %1329 = vmatpush1.msra.mxu0 0.0
        %1330 = vmatprep.subr.mxu0 0.0
        %1331 = vmatpush1.msra.mxu0 0.0
        %1332 = vmatprep.subr.mxu0 0.0
        %1333 = vmatpush1.msra.mxu0 0.0
        %1334 = vmatprep.subr.mxu0 0.0
        %1335 = vmatpush1.msra.mxu0 0.0
        %1336 = vmatprep.subr.mxu0 0.0
        %1337 = vmatpush1.msra.mxu0 0.0
        %1338 = vmatprep.subr.mxu0 0.0
        %1339 = vmatpush1.msra.mxu0 0.0
        %1340 = vmatprep.subr.mxu0 0.0
        %1341 = vmatpush1.msra.mxu0 0.0
        %1342 = vmatprep.subr.mxu0 0.0
        %1343 = vmatpush1.msra.mxu0 0.0
        %1344 = vmatprep.subr.mxu0 0.0
        %v1345 = vand.u32 %v1305, 4294901760
        %1346 = vmatpush1.msra.mxu0 %v1345
        %1347 = vmatprep.subr.mxu0 0.0
        %v1348 = vand.u32 %v1299, 4294901760
        %1349 = vmatpush1.msra.mxu0 %v1348
        %1350 = vmatprep.subr.mxu0 0.0
        %1351 = vmatpush2.msra.mxu0 0.0
        %1352 = vmatprep.subr.mxu0 0.0
        %1353 = vmatpush2.msra.mxu0 0.0
        %1354 = vmatprep.subr.mxu0 0.0
        %1355 = vmatpush2.msra.mxu0 0.0
        %1356 = vmatprep.subr.mxu0 0.0
        %1357 = vmatpush2.msra.mxu0 0.0
        %1358 = vmatprep.subr.mxu0 0.0
        %1359 = vmatpush2.msra.mxu0 0.0
        %1360 = vmatprep.subr.mxu0 0.0
        %1361 = vmatpush2.msra.mxu0 0.0
        %1362 = vmatprep.subr.mxu0 0.0
        %1363 = vmatpush2.msra.mxu0 0.0
        %1364 = vmatprep.subr.mxu0 0.0
        %1365 = vmatpush2.msra.mxu0 0.0
        %1366 = vmatprep.subr.mxu0 0.0
        %1367 = vmatpush2.msra.mxu0 0.0
        %1368 = vmatprep.subr.mxu0 0.0
        %1369 = vmatpush2.msra.mxu0 0.0
        %1370 = vmatprep.subr.mxu0 0.0
        %1371 = vmatpush2.msra.mxu0 0.0
        %1372 = vmatprep.subr.mxu0 0.0
        %1373 = vmatpush2.msra.mxu0 0.0
        %1374 = vmatprep.subr.mxu0 0.0
        %1375 = vmatpush2.msra.mxu0 0.0
        %1376 = vmatprep.subr.mxu0 0.0
        %1377 = vmatpush2.msra.mxu0 0.0
        %1378 = vmatprep.subr.mxu0 0.0
        %1379 = vmatpush2.msra.mxu0 0.0
        %1380 = vmatprep.subr.mxu0 0.0
        %1381 = vmatpush2.msra.mxu0 0.0
        %1382 = vmatprep.mubr.f32.mxu0 0.0
        %v1383 = vand.u32 %v1311, 4294901760
        %v1384 = vsub.f32 %v1311, %v1383
        %v1385 = vand.u32 %v1384, 4294901760
        %v1386 = vsub.f32 %v1384, %v1385
        %v1387 = vand.u32 %v1386, 4294901760
        %1388 = vmatmul.mubr.f32.gmra.mxu0 %v1387
        %v1389 = vpop.f32.mrf.mxu0
        %v1390 = vadd.f32 0.0, %v1389
        %v1391 = vpop.f32.mrf.mxu0
        %1392 = vmatprep.mubr.f32.mxu0 0.0
        %v1393 = vand.u32 %v1314, 4294901760
        %v1394 = vsub.f32 %v1314, %v1393
        %v1395 = vand.u32 %v1394, 4294901760
        %v1396 = vsub.f32 %v1394, %v1395
        %v1397 = vand.u32 %v1396, 4294901760
        %1398 = vmatmul.mubr.f32.gmra.mxu0 %v1397
        %v1399 = vpop.f32.mrf.mxu0
        %v1400 = vadd.f32 0.0, %v1399
        %v1401 = vpop.f32.mrf.mxu0
        %1402 = vdwg.mxu0
        %1403 = vmatprep.subr.mxu0 0.0
        %1404 = vmatpush1.msra.mxu0 0.0
        %1405 = vmatprep.subr.mxu0 0.0
        %1406 = vmatpush1.msra.mxu0 0.0
        %1407 = vmatprep.subr.mxu0 0.0
        %1408 = vmatpush1.msra.mxu0 0.0
        %1409 = vmatprep.subr.mxu0 0.0
        %1410 = vmatpush1.msra.mxu0 0.0
        %1411 = vmatprep.subr.mxu0 0.0
        %1412 = vmatpush1.msra.mxu0 0.0
        %1413 = vmatprep.subr.mxu0 0.0
        %1414 = vmatpush1.msra.mxu0 0.0
        %1415 = vmatprep.subr.mxu0 0.0
        %1416 = vmatpush1.msra.mxu0 0.0
        %1417 = vmatprep.subr.mxu0 0.0
        %1418 = vmatpush1.msra.mxu0 0.0
        %1419 = vmatprep.subr.mxu0 0.0
        %1420 = vmatpush1.msra.mxu0 0.0
        %1421 = vmatprep.subr.mxu0 0.0
        %1422 = vmatpush1.msra.mxu0 0.0
        %1423 = vmatprep.subr.mxu0 0.0
        %1424 = vmatpush1.msra.mxu0 0.0
        %1425 = vmatprep.subr.mxu0 0.0
        %1426 = vmatpush1.msra.mxu0 0.0
        %1427 = vmatprep.subr.mxu0 0.0
        %1428 = vmatpush1.msra.mxu0 0.0
        %1429 = vmatprep.subr.mxu0 0.0
        %1430 = vmatpush1.msra.mxu0 0.0
        %1431 = vmatprep.subr.mxu0 0.0
        %v1432 = vand.u32 %v1305, 4294901760
        %v1433 = vsub.f32 %v1305, %v1432
        %v1434 = vand.u32 %v1433, 4294901760
        %v1435 = vsub.f32 %v1433, %v1434
        %v1436 = vand.u32 %v1435, 4294901760
        %1437 = vmatpush1.msra.mxu0 %v1436
        %1438 = vmatprep.subr.mxu0 0.0
        %v1439 = vand.u32 %v1299, 4294901760
        %v1440 = vsub.f32 %v1299, %v1439
        %v1441 = vand.u32 %v1440, 4294901760
        %v1442 = vsub.f32 %v1440, %v1441
        %v1443 = vand.u32 %v1442, 4294901760
        %1444 = vmatpush1.msra.mxu0 %v1443
        %1445 = vmatprep.subr.mxu0 0.0
        %1446 = vmatpush2.msra.mxu0 0.0
        %1447 = vmatprep.subr.mxu0 0.0
        %1448 = vmatpush2.msra.mxu0 0.0
        %1449 = vmatprep.subr.mxu0 0.0
        %1450 = vmatpush2.msra.mxu0 0.0
        %1451 = vmatprep.subr.mxu0 0.0
        %1452 = vmatpush2.msra.mxu0 0.0
        %1453 = vmatprep.subr.mxu0 0.0
        %1454 = vmatpush2.msra.mxu0 0.0
        %1455 = vmatprep.subr.mxu0 0.0
        %1456 = vmatpush2.msra.mxu0 0.0
        %1457 = vmatprep.subr.mxu0 0.0
        %1458 = vmatpush2.msra.mxu0 0.0
        %1459 = vmatprep.subr.mxu0 0.0
        %1460 = vmatpush2.msra.mxu0 0.0
        %1461 = vmatprep.subr.mxu0 0.0
        %1462 = vmatpush2.msra.mxu0 0.0
        %1463 = vmatprep.subr.mxu0 0.0
        %1464 = vmatpush2.msra.mxu0 0.0
        %1465 = vmatprep.subr.mxu0 0.0
        %1466 = vmatpush2.msra.mxu0 0.0
        %1467 = vmatprep.subr.mxu0 0.0
        %1468 = vmatpush2.msra.mxu0 0.0
        %1469 = vmatprep.subr.mxu0 0.0
        %1470 = vmatpush2.msra.mxu0 0.0
        %1471 = vmatprep.subr.mxu0 0.0
        %1472 = vmatpush2.msra.mxu0 0.0
        %1473 = vmatprep.subr.mxu0 0.0
        %1474 = vmatpush2.msra.mxu0 0.0
        %1475 = vmatprep.subr.mxu0 0.0
        %1476 = vmatpush2.msra.mxu0 0.0
        %1477 = vmatprep.mubr.f32.mxu0 0.0
        %v1478 = vand.u32 %v1311, 4294901760
        %1479 = vmatmul.mubr.f32.gmra.mxu0 %v1478
        %v1480 = vpop.f32.mrf.mxu0
        %v1481 = vadd.f32 %v1390, %v1480
        %v1482 = vpop.f32.mrf.mxu0
        %1483 = vmatprep.mubr.f32.mxu0 0.0
        %v1484 = vand.u32 %v1314, 4294901760
        %1485 = vmatmul.mubr.f32.gmra.mxu0 %v1484
        %v1486 = vpop.f32.mrf.mxu0
        %v1487 = vadd.f32 %v1400, %v1486
        %v1488 = vpop.f32.mrf.mxu0
        %1489 = vdwg.mxu0
        %1490 = vmatprep.subr.mxu0 0.0
        %1491 = vmatpush1.msra.mxu0 0.0
        %1492 = vmatprep.subr.mxu0 0.0
        %1493 = vmatpush1.msra.mxu0 0.0
        %1494 = vmatprep.subr.mxu0 0.0
        %1495 = vmatpush1.msra.mxu0 0.0
        %1496 = vmatprep.subr.mxu0 0.0
        %1497 = vmatpush1.msra.mxu0 0.0
        %1498 = vmatprep.subr.mxu0 0.0
        %1499 = vmatpush1.msra.mxu0 0.0
        %1500 = vmatprep.subr.mxu0 0.0
        %1501 = vmatpush1.msra.mxu0 0.0
        %1502 = vmatprep.subr.mxu0 0.0
        %1503 = vmatpush1.msra.mxu0 0.0
        %1504 = vmatprep.subr.mxu0 0.0
        %1505 = vmatpush1.msra.mxu0 0.0
        %1506 = vmatprep.subr.mxu0 0.0
        %1507 = vmatpush1.msra.mxu0 0.0
        %1508 = vmatprep.subr.mxu0 0.0
        %1509 = vmatpush1.msra.mxu0 0.0
        %1510 = vmatprep.subr.mxu0 0.0
        %1511 = vmatpush1.msra.mxu0 0.0
        %1512 = vmatprep.subr.mxu0 0.0
        %1513 = vmatpush1.msra.mxu0 0.0
        %1514 = vmatprep.subr.mxu0 0.0
        %1515 = vmatpush1.msra.mxu0 0.0
        %1516 = vmatprep.subr.mxu0 0.0
        %1517 = vmatpush1.msra.mxu0 0.0
        %1518 = vmatprep.subr.mxu0 0.0
        %v1519 = vand.u32 %v1305, 4294901760
        %v1520 = vsub.f32 %v1305, %v1519
        %1521 = vmatpush1.msra.mxu0 %v1520
        %1522 = vmatprep.subr.mxu0 0.0
        %v1523 = vand.u32 %v1299, 4294901760
        %v1524 = vsub.f32 %v1299, %v1523
        %1525 = vmatpush1.msra.mxu0 %v1524
        %1526 = vmatprep.subr.mxu0 0.0
        %1527 = vmatpush2.msra.mxu0 0.0
        %1528 = vmatprep.subr.mxu0 0.0
        %1529 = vmatpush2.msra.mxu0 0.0
        %1530 = vmatprep.subr.mxu0 0.0
        %1531 = vmatpush2.msra.mxu0 0.0
        %1532 = vmatprep.subr.mxu0 0.0
        %1533 = vmatpush2.msra.mxu0 0.0
        %1534 = vmatprep.subr.mxu0 0.0
        %1535 = vmatpush2.msra.mxu0 0.0
        %1536 = vmatprep.subr.mxu0 0.0
        %1537 = vmatpush2.msra.mxu0 0.0
        %1538 = vmatprep.subr.mxu0 0.0
        %1539 = vmatpush2.msra.mxu0 0.0
        %1540 = vmatprep.subr.mxu0 0.0
        %1541 = vmatpush2.msra.mxu0 0.0
        %1542 = vmatprep.subr.mxu0 0.0
        %1543 = vmatpush2.msra.mxu0 0.0
        %1544 = vmatprep.subr.mxu0 0.0
        %1545 = vmatpush2.msra.mxu0 0.0
        %1546 = vmatprep.subr.mxu0 0.0
        %1547 = vmatpush2.msra.mxu0 0.0
        %1548 = vmatprep.subr.mxu0 0.0
        %1549 = vmatpush2.msra.mxu0 0.0
        %1550 = vmatprep.subr.mxu0 0.0
        %1551 = vmatpush2.msra.mxu0 0.0
        %1552 = vmatprep.subr.mxu0 0.0
        %1553 = vmatpush2.msra.mxu0 0.0
        %1554 = vmatprep.subr.mxu0 0.0
        %1555 = vmatpush2.msra.mxu0 0.0
        %1556 = vmatprep.subr.mxu0 0.0
        %1557 = vmatpush2.msra.mxu0 0.0
        %1558 = vmatprep.mubr.f32.mxu0 0.0
        %v1559 = vand.u32 %v1311, 4294901760
        %v1560 = vsub.f32 %v1311, %v1559
        %1561 = vmatmul.mubr.f32.gmra.mxu0 %v1560
        %v1562 = vpop.f32.mrf.mxu0
        %v1563 = vadd.f32 %v1481, %v1562
        %v1564 = vpop.f32.mrf.mxu0
        %1565 = vmatprep.mubr.f32.mxu0 0.0
        %v1566 = vand.u32 %v1314, 4294901760
        %v1567 = vsub.f32 %v1314, %v1566
        %1568 = vmatmul.mubr.f32.gmra.mxu0 %v1567
        %v1569 = vpop.f32.mrf.mxu0
        %v1570 = vadd.f32 %v1487, %v1569
        %v1571 = vpop.f32.mrf.mxu0
        %1572 = vdwg.mxu0
        %1573 = vmatprep.subr.mxu0 0.0
        %1574 = vmatpush1.msra.mxu0 0.0
        %1575 = vmatprep.subr.mxu0 0.0
        %1576 = vmatpush1.msra.mxu0 0.0
        %1577 = vmatprep.subr.mxu0 0.0
        %1578 = vmatpush1.msra.mxu0 0.0
        %1579 = vmatprep.subr.mxu0 0.0
        %1580 = vmatpush1.msra.mxu0 0.0
        %1581 = vmatprep.subr.mxu0 0.0
        %1582 = vmatpush1.msra.mxu0 0.0
        %1583 = vmatprep.subr.mxu0 0.0
        %1584 = vmatpush1.msra.mxu0 0.0
        %1585 = vmatprep.subr.mxu0 0.0
        %1586 = vmatpush1.msra.mxu0 0.0
        %1587 = vmatprep.subr.mxu0 0.0
        %1588 = vmatpush1.msra.mxu0 0.0
        %1589 = vmatprep.subr.mxu0 0.0
        %1590 = vmatpush1.msra.mxu0 0.0
        %1591 = vmatprep.subr.mxu0 0.0
        %1592 = vmatpush1.msra.mxu0 0.0
        %1593 = vmatprep.subr.mxu0 0.0
        %1594 = vmatpush1.msra.mxu0 0.0
        %1595 = vmatprep.subr.mxu0 0.0
        %1596 = vmatpush1.msra.mxu0 0.0
        %1597 = vmatprep.subr.mxu0 0.0
        %1598 = vmatpush1.msra.mxu0 0.0
        %1599 = vmatprep.subr.mxu0 0.0
        %1600 = vmatpush1.msra.mxu0 0.0
        %1601 = vmatprep.subr.mxu0 0.0
        %v1602 = vand.u32 %v1305, 4294901760
        %1603 = vmatpush1.msra.mxu0 %v1602
        %1604 = vmatprep.subr.mxu0 0.0
        %v1605 = vand.u32 %v1299, 4294901760
        %1606 = vmatpush1.msra.mxu0 %v1605
        %1607 = vmatprep.subr.mxu0 0.0
        %1608 = vmatpush2.msra.mxu0 0.0
        %1609 = vmatprep.subr.mxu0 0.0
        %1610 = vmatpush2.msra.mxu0 0.0
        %1611 = vmatprep.subr.mxu0 0.0
        %1612 = vmatpush2.msra.mxu0 0.0
        %1613 = vmatprep.subr.mxu0 0.0
        %1614 = vmatpush2.msra.mxu0 0.0
        %1615 = vmatprep.subr.mxu0 0.0
        %1616 = vmatpush2.msra.mxu0 0.0
        %1617 = vmatprep.subr.mxu0 0.0
        %1618 = vmatpush2.msra.mxu0 0.0
        %1619 = vmatprep.subr.mxu0 0.0
        %1620 = vmatpush2.msra.mxu0 0.0
        %1621 = vmatprep.subr.mxu0 0.0
        %1622 = vmatpush2.msra.mxu0 0.0
        %1623 = vmatprep.subr.mxu0 0.0
        %1624 = vmatpush2.msra.mxu0 0.0
        %1625 = vmatprep.subr.mxu0 0.0
        %1626 = vmatpush2.msra.mxu0 0.0
        %1627 = vmatprep.subr.mxu0 0.0
        %1628 = vmatpush2.msra.mxu0 0.0
        %1629 = vmatprep.subr.mxu0 0.0
        %1630 = vmatpush2.msra.mxu0 0.0
        %1631 = vmatprep.subr.mxu0 0.0
        %1632 = vmatpush2.msra.mxu0 0.0
        %1633 = vmatprep.subr.mxu0 0.0
        %1634 = vmatpush2.msra.mxu0 0.0
        %1635 = vmatprep.subr.mxu0 0.0
        %1636 = vmatpush2.msra.mxu0 0.0
        %1637 = vmatprep.subr.mxu0 0.0
        %1638 = vmatpush2.msra.mxu0 0.0
        %1639 = vmatprep.mubr.f32.mxu0 0.0
        %v1640 = vand.u32 %v1311, 4294901760
        %v1641 = vsub.f32 %v1311, %v1640
        %v1642 = vand.u32 %v1641, 4294901760
        %1643 = vmatmul.mubr.f32.gmra.mxu0 %v1642
        %v1644 = vpop.f32.mrf.mxu0
        %v1645 = vadd.f32 %v1563, %v1644
        %v1646 = vpop.f32.mrf.mxu0
        %1647 = vmatprep.mubr.f32.mxu0 0.0
        %v1648 = vand.u32 %v1314, 4294901760
        %v1649 = vsub.f32 %v1314, %v1648
        %v1650 = vand.u32 %v1649, 4294901760
        %1651 = vmatmul.mubr.f32.gmra.mxu0 %v1650
        %v1652 = vpop.f32.mrf.mxu0
        %v1653 = vadd.f32 %v1570, %v1652
        %v1654 = vpop.f32.mrf.mxu0
        %1655 = vdwg.mxu0
        %1656 = vmatprep.subr.mxu0 0.0
        %1657 = vmatpush1.msra.mxu0 0.0
        %1658 = vmatprep.subr.mxu0 0.0
        %1659 = vmatpush1.msra.mxu0 0.0
        %1660 = vmatprep.subr.mxu0 0.0
        %1661 = vmatpush1.msra.mxu0 0.0
        %1662 = vmatprep.subr.mxu0 0.0
        %1663 = vmatpush1.msra.mxu0 0.0
        %1664 = vmatprep.subr.mxu0 0.0
        %1665 = vmatpush1.msra.mxu0 0.0
        %1666 = vmatprep.subr.mxu0 0.0
        %1667 = vmatpush1.msra.mxu0 0.0
        %1668 = vmatprep.subr.mxu0 0.0
        %1669 = vmatpush1.msra.mxu0 0.0
        %1670 = vmatprep.subr.mxu0 0.0
        %1671 = vmatpush1.msra.mxu0 0.0
        %1672 = vmatprep.subr.mxu0 0.0
        %1673 = vmatpush1.msra.mxu0 0.0
        %1674 = vmatprep.subr.mxu0 0.0
        %1675 = vmatpush1.msra.mxu0 0.0
        %1676 = vmatprep.subr.mxu0 0.0
        %1677 = vmatpush1.msra.mxu0 0.0
        %1678 = vmatprep.subr.mxu0 0.0
        %1679 = vmatpush1.msra.mxu0 0.0
        %1680 = vmatprep.subr.mxu0 0.0
        %1681 = vmatpush1.msra.mxu0 0.0
        %1682 = vmatprep.subr.mxu0 0.0
        %1683 = vmatpush1.msra.mxu0 0.0
        %1684 = vmatprep.subr.mxu0 0.0
        %v1685 = vand.u32 %v1305, 4294901760
        %v1686 = vsub.f32 %v1305, %v1685
        %v1687 = vand.u32 %v1686, 4294901760
        %1688 = vmatpush1.msra.mxu0 %v1687
        %1689 = vmatprep.subr.mxu0 0.0
        %v1690 = vand.u32 %v1299, 4294901760
        %v1691 = vsub.f32 %v1299, %v1690
        %v1692 = vand.u32 %v1691, 4294901760
        %1693 = vmatpush1.msra.mxu0 %v1692
        %1694 = vmatprep.subr.mxu0 0.0
        %1695 = vmatpush2.msra.mxu0 0.0
        %1696 = vmatprep.subr.mxu0 0.0
        %1697 = vmatpush2.msra.mxu0 0.0
        %1698 = vmatprep.subr.mxu0 0.0
        %1699 = vmatpush2.msra.mxu0 0.0
        %1700 = vmatprep.subr.mxu0 0.0
        %1701 = vmatpush2.msra.mxu0 0.0
        %1702 = vmatprep.subr.mxu0 0.0
        %1703 = vmatpush2.msra.mxu0 0.0
        %1704 = vmatprep.subr.mxu0 0.0
        %1705 = vmatpush2.msra.mxu0 0.0
        %1706 = vmatprep.subr.mxu0 0.0
        %1707 = vmatpush2.msra.mxu0 0.0
        %1708 = vmatprep.subr.mxu0 0.0
        %1709 = vmatpush2.msra.mxu0 0.0
        %1710 = vmatprep.subr.mxu0 0.0
        %1711 = vmatpush2.msra.mxu0 0.0
        %1712 = vmatprep.subr.mxu0 0.0
        %1713 = vmatpush2.msra.mxu0 0.0
        %1714 = vmatprep.subr.mxu0 0.0
        %1715 = vmatpush2.msra.mxu0 0.0
        %1716 = vmatprep.subr.mxu0 0.0
        %1717 = vmatpush2.msra.mxu0 0.0
        %1718 = vmatprep.subr.mxu0 0.0
        %1719 = vmatpush2.msra.mxu0 0.0
        %1720 = vmatprep.subr.mxu0 0.0
        %1721 = vmatpush2.msra.mxu0 0.0
        %1722 = vmatprep.subr.mxu0 0.0
        %1723 = vmatpush2.msra.mxu0 0.0
        %1724 = vmatprep.subr.mxu0 0.0
        %1725 = vmatpush2.msra.mxu0 0.0
        %1726 = vmatprep.mubr.f32.mxu0 0.0
        %v1727 = vand.u32 %v1311, 4294901760
        %1728 = vmatmul.mubr.f32.gmra.mxu0 %v1727
        %v1729 = vpop.f32.mrf.mxu0
        %v1730 = vadd.f32 %v1645, %v1729
        %v1731 = vpop.f32.mrf.mxu0
        %1732 = vmatprep.mubr.f32.mxu0 0.0
        %v1733 = vand.u32 %v1314, 4294901760
        %1734 = vmatmul.mubr.f32.gmra.mxu0 %v1733
        %v1735 = vpop.f32.mrf.mxu0
        %v1736 = vadd.f32 %v1653, %v1735
        %v1737 = vpop.f32.mrf.mxu0
        %1738 = vdwg.mxu0
        %1739 = vmatprep.subr.mxu0 0.0
        %1740 = vmatpush1.msra.mxu0 0.0
        %1741 = vmatprep.subr.mxu0 0.0
        %1742 = vmatpush1.msra.mxu0 0.0
        %1743 = vmatprep.subr.mxu0 0.0
        %1744 = vmatpush1.msra.mxu0 0.0
        %1745 = vmatprep.subr.mxu0 0.0
        %1746 = vmatpush1.msra.mxu0 0.0
        %1747 = vmatprep.subr.mxu0 0.0
        %1748 = vmatpush1.msra.mxu0 0.0
        %1749 = vmatprep.subr.mxu0 0.0
        %1750 = vmatpush1.msra.mxu0 0.0
        %1751 = vmatprep.subr.mxu0 0.0
        %1752 = vmatpush1.msra.mxu0 0.0
        %1753 = vmatprep.subr.mxu0 0.0
        %1754 = vmatpush1.msra.mxu0 0.0
        %1755 = vmatprep.subr.mxu0 0.0
        %1756 = vmatpush1.msra.mxu0 0.0
        %1757 = vmatprep.subr.mxu0 0.0
        %1758 = vmatpush1.msra.mxu0 0.0
        %1759 = vmatprep.subr.mxu0 0.0
        %1760 = vmatpush1.msra.mxu0 0.0
        %1761 = vmatprep.subr.mxu0 0.0
        %1762 = vmatpush1.msra.mxu0 0.0
        %1763 = vmatprep.subr.mxu0 0.0
        %1764 = vmatpush1.msra.mxu0 0.0
        %1765 = vmatprep.subr.mxu0 0.0
        %1766 = vmatpush1.msra.mxu0 0.0
        %1767 = vmatprep.subr.mxu0 0.0
        %v1768 = vand.u32 %v1305, 4294901760
        %1769 = vmatpush1.msra.mxu0 %v1768
        %1770 = vmatprep.subr.mxu0 0.0
        %v1771 = vand.u32 %v1299, 4294901760
        %1772 = vmatpush1.msra.mxu0 %v1771
        %1773 = vmatprep.subr.mxu0 0.0
        %1774 = vmatpush2.msra.mxu0 0.0
        %1775 = vmatprep.subr.mxu0 0.0
        %1776 = vmatpush2.msra.mxu0 0.0
        %1777 = vmatprep.subr.mxu0 0.0
        %1778 = vmatpush2.msra.mxu0 0.0
        %1779 = vmatprep.subr.mxu0 0.0
        %1780 = vmatpush2.msra.mxu0 0.0
        %1781 = vmatprep.subr.mxu0 0.0
        %1782 = vmatpush2.msra.mxu0 0.0
        %1783 = vmatprep.subr.mxu0 0.0
        %1784 = vmatpush2.msra.mxu0 0.0
        %1785 = vmatprep.subr.mxu0 0.0
        %1786 = vmatpush2.msra.mxu0 0.0
        %1787 = vmatprep.subr.mxu0 0.0
        %1788 = vmatpush2.msra.mxu0 0.0
        %1789 = vmatprep.subr.mxu0 0.0
        %1790 = vmatpush2.msra.mxu0 0.0
        %1791 = vmatprep.subr.mxu0 0.0
        %1792 = vmatpush2.msra.mxu0 0.0
        %1793 = vmatprep.subr.mxu0 0.0
        %1794 = vmatpush2.msra.mxu0 0.0
        %1795 = vmatprep.subr.mxu0 0.0
        %1796 = vmatpush2.msra.mxu0 0.0
        %1797 = vmatprep.subr.mxu0 0.0
        %1798 = vmatpush2.msra.mxu0 0.0
        %1799 = vmatprep.subr.mxu0 0.0
        %1800 = vmatpush2.msra.mxu0 0.0
        %1801 = vmatprep.subr.mxu0 0.0
        %1802 = vmatpush2.msra.mxu0 0.0
        %1803 = vmatprep.subr.mxu0 0.0
        %1804 = vmatpush2.msra.mxu0 0.0
        %1805 = vmatprep.mubr.f32.mxu0 0.0
        %v1806 = vand.u32 %v1311, 4294901760
        %1807 = vmatmul.mubr.f32.gmra.mxu0 %v1806
        %v1808 = vpop.f32.mrf.mxu0
        %v1809 = vadd.f32 %v1730, %v1808
        %v1810 = vpop.f32.mrf.mxu0
        %1811 = vmatprep.mubr.f32.mxu0 0.0
        %v1812 = vand.u32 %v1314, 4294901760
        %1813 = vmatmul.mubr.f32.gmra.mxu0 %v1812
        %v1814 = vpop.f32.mrf.mxu0
        %v1815 = vadd.f32 %v1736, %v1814
        %v1816 = vpop.f32.mrf.mxu0
        %1817 = vdwg.mxu0
        %v1818 = vld [vmem:[#allocation11] sm:$0xff]
        %v1819 = vld [vmem:[#allocation11 + $0x8] sm:$0xff]
        %v1821 = vsel %vm291, %v1809, 0
        %v1824 = vsel %vm291, %v1815, 0
        %1826 = vmatprep.subr.mxu0 0.0
        %1827 = vmatpush1.msra.mxu0 0.0
        %1828 = vmatprep.subr.mxu0 0.0
        %1829 = vmatpush1.msra.mxu0 0.0
        %1830 = vmatprep.subr.mxu0 0.0
        %1831 = vmatpush1.msra.mxu0 0.0
        %1832 = vmatprep.subr.mxu0 0.0
        %1833 = vmatpush1.msra.mxu0 0.0
        %1834 = vmatprep.subr.mxu0 0.0
        %1835 = vmatpush1.msra.mxu0 0.0
        %1836 = vmatprep.subr.mxu0 0.0
        %1837 = vmatpush1.msra.mxu0 0.0
        %1838 = vmatprep.subr.mxu0 0.0
        %1839 = vmatpush1.msra.mxu0 0.0
        %1840 = vmatprep.subr.mxu0 0.0
        %1841 = vmatpush1.msra.mxu0 0.0
        %1842 = vmatprep.subr.mxu0 0.0
        %1843 = vmatpush1.msra.mxu0 0.0
        %1844 = vmatprep.subr.mxu0 0.0
        %1845 = vmatpush1.msra.mxu0 0.0
        %1846 = vmatprep.subr.mxu0 0.0
        %1847 = vmatpush1.msra.mxu0 0.0
        %1848 = vmatprep.subr.mxu0 0.0
        %1849 = vmatpush1.msra.mxu0 0.0
        %1850 = vmatprep.subr.mxu0 0.0
        %1851 = vmatpush1.msra.mxu0 0.0
        %1852 = vmatprep.subr.mxu0 0.0
        %1853 = vmatpush1.msra.mxu0 0.0
        %1854 = vmatprep.subr.mxu0 0.0
        %v1855 = vand.u32 %v1819, 4294901760
        %1856 = vmatpush1.msra.mxu0 %v1855
        %1857 = vmatprep.subr.mxu0 0.0
        %v1858 = vand.u32 %v1818, 4294901760
        %1859 = vmatpush1.msra.mxu0 %v1858
        %1860 = vmatprep.subr.mxu0 0.0
        %1861 = vmatpush2.msra.mxu0 0.0
        %1862 = vmatprep.subr.mxu0 0.0
        %1863 = vmatpush2.msra.mxu0 0.0
        %1864 = vmatprep.subr.mxu0 0.0
        %1865 = vmatpush2.msra.mxu0 0.0
        %1866 = vmatprep.subr.mxu0 0.0
        %1867 = vmatpush2.msra.mxu0 0.0
        %1868 = vmatprep.subr.mxu0 0.0
        %1869 = vmatpush2.msra.mxu0 0.0
        %1870 = vmatprep.subr.mxu0 0.0
        %1871 = vmatpush2.msra.mxu0 0.0
        %1872 = vmatprep.subr.mxu0 0.0
        %1873 = vmatpush2.msra.mxu0 0.0
        %1874 = vmatprep.subr.mxu0 0.0
        %1875 = vmatpush2.msra.mxu0 0.0
        %1876 = vmatprep.subr.mxu0 0.0
        %1877 = vmatpush2.msra.mxu0 0.0
        %1878 = vmatprep.subr.mxu0 0.0
        %1879 = vmatpush2.msra.mxu0 0.0
        %1880 = vmatprep.subr.mxu0 0.0
        %1881 = vmatpush2.msra.mxu0 0.0
        %1882 = vmatprep.subr.mxu0 0.0
        %1883 = vmatpush2.msra.mxu0 0.0
        %1884 = vmatprep.subr.mxu0 0.0
        %1885 = vmatpush2.msra.mxu0 0.0
        %1886 = vmatprep.subr.mxu0 0.0
        %1887 = vmatpush2.msra.mxu0 0.0
        %1888 = vmatprep.subr.mxu0 0.0
        %1889 = vmatpush2.msra.mxu0 0.0
        %1890 = vmatprep.subr.mxu0 0.0
        %1891 = vmatpush2.msra.mxu0 0.0
        %1892 = vmatprep.mubr.f32.mxu0 0.0
        %v1893 = vand.u32 %v1821, 4294901760
        %v1894 = vsub.f32 %v1821, %v1893
        %v1895 = vand.u32 %v1894, 4294901760
        %v1896 = vsub.f32 %v1894, %v1895
        %v1897 = vand.u32 %v1896, 4294901760
        %1898 = vmatmul.mubr.f32.gmra.mxu0 %v1897
        %v1899 = vpop.f32.mrf.mxu0
        %v1900 = vadd.f32 0.0, %v1899
        %v1901 = vpop.f32.mrf.mxu0
        %1902 = vmatprep.mubr.f32.mxu0 0.0
        %v1903 = vand.u32 %v1824, 4294901760
        %v1904 = vsub.f32 %v1824, %v1903
        %v1905 = vand.u32 %v1904, 4294901760
        %v1906 = vsub.f32 %v1904, %v1905
        %v1907 = vand.u32 %v1906, 4294901760
        %1908 = vmatmul.mubr.f32.gmra.mxu0 %v1907
        %v1909 = vpop.f32.mrf.mxu0
        %v1910 = vadd.f32 0.0, %v1909
        %v1911 = vpop.f32.mrf.mxu0
        %1912 = vdwg.mxu0
        %1913 = vmatprep.subr.mxu0 0.0
        %1914 = vmatpush1.msra.mxu0 0.0
        %1915 = vmatprep.subr.mxu0 0.0
        %1916 = vmatpush1.msra.mxu0 0.0
        %1917 = vmatprep.subr.mxu0 0.0
        %1918 = vmatpush1.msra.mxu0 0.0
        %1919 = vmatprep.subr.mxu0 0.0
        %1920 = vmatpush1.msra.mxu0 0.0
        %1921 = vmatprep.subr.mxu0 0.0
        %1922 = vmatpush1.msra.mxu0 0.0
        %1923 = vmatprep.subr.mxu0 0.0
        %1924 = vmatpush1.msra.mxu0 0.0
        %1925 = vmatprep.subr.mxu0 0.0
        %1926 = vmatpush1.msra.mxu0 0.0
        %1927 = vmatprep.subr.mxu0 0.0
        %1928 = vmatpush1.msra.mxu0 0.0
        %1929 = vmatprep.subr.mxu0 0.0
        %1930 = vmatpush1.msra.mxu0 0.0
        %1931 = vmatprep.subr.mxu0 0.0
        %1932 = vmatpush1.msra.mxu0 0.0
        %1933 = vmatprep.subr.mxu0 0.0
        %1934 = vmatpush1.msra.mxu0 0.0
        %1935 = vmatprep.subr.mxu0 0.0
        %1936 = vmatpush1.msra.mxu0 0.0
        %1937 = vmatprep.subr.mxu0 0.0
        %1938 = vmatpush1.msra.mxu0 0.0
        %1939 = vmatprep.subr.mxu0 0.0
        %1940 = vmatpush1.msra.mxu0 0.0
        %1941 = vmatprep.subr.mxu0 0.0
        %v1942 = vand.u32 %v1819, 4294901760
        %v1943 = vsub.f32 %v1819, %v1942
        %v1944 = vand.u32 %v1943, 4294901760
        %v1945 = vsub.f32 %v1943, %v1944
        %v1946 = vand.u32 %v1945, 4294901760
        %1947 = vmatpush1.msra.mxu0 %v1946
        %1948 = vmatprep.subr.mxu0 0.0
        %v1949 = vand.u32 %v1818, 4294901760
        %v1950 = vsub.f32 %v1818, %v1949
        %v1951 = vand.u32 %v1950, 4294901760
        %v1952 = vsub.f32 %v1950, %v1951
        %v1953 = vand.u32 %v1952, 4294901760
        %1954 = vmatpush1.msra.mxu0 %v1953
        %1955 = vmatprep.subr.mxu0 0.0
        %1956 = vmatpush2.msra.mxu0 0.0
        %1957 = vmatprep.subr.mxu0 0.0
        %1958 = vmatpush2.msra.mxu0 0.0
        %1959 = vmatprep.subr.mxu0 0.0
        %1960 = vmatpush2.msra.mxu0 0.0
        %1961 = vmatprep.subr.mxu0 0.0
        %1962 = vmatpush2.msra.mxu0 0.0
        %1963 = vmatprep.subr.mxu0 0.0
        %1964 = vmatpush2.msra.mxu0 0.0
        %1965 = vmatprep.subr.mxu0 0.0
        %1966 = vmatpush2.msra.mxu0 0.0
        %1967 = vmatprep.subr.mxu0 0.0
        %1968 = vmatpush2.msra.mxu0 0.0
        %1969 = vmatprep.subr.mxu0 0.0
        %1970 = vmatpush2.msra.mxu0 0.0
        %1971 = vmatprep.subr.mxu0 0.0
        %1972 = vmatpush2.msra.mxu0 0.0
        %1973 = vmatprep.subr.mxu0 0.0
        %1974 = vmatpush2.msra.mxu0 0.0
        %1975 = vmatprep.subr.mxu0 0.0
        %1976 = vmatpush2.msra.mxu0 0.0
        %1977 = vmatprep.subr.mxu0 0.0
        %1978 = vmatpush2.msra.mxu0 0.0
        %1979 = vmatprep.subr.mxu0 0.0
        %1980 = vmatpush2.msra.mxu0 0.0
        %1981 = vmatprep.subr.mxu0 0.0
        %1982 = vmatpush2.msra.mxu0 0.0
        %1983 = vmatprep.subr.mxu0 0.0
        %1984 = vmatpush2.msra.mxu0 0.0
        %1985 = vmatprep.subr.mxu0 0.0
        %1986 = vmatpush2.msra.mxu0 0.0
        %1987 = vmatprep.mubr.f32.mxu0 0.0
        %v1988 = vand.u32 %v1821, 4294901760
        %1989 = vmatmul.mubr.f32.gmra.mxu0 %v1988
        %v1990 = vpop.f32.mrf.mxu0
        %v1991 = vadd.f32 %v1900, %v1990
        %v1992 = vpop.f32.mrf.mxu0
        %1993 = vmatprep.mubr.f32.mxu0 0.0
        %v1994 = vand.u32 %v1824, 4294901760
        %1995 = vmatmul.mubr.f32.gmra.mxu0 %v1994
        %v1996 = vpop.f32.mrf.mxu0
        %v1997 = vadd.f32 %v1910, %v1996
        %v1998 = vpop.f32.mrf.mxu0
        %1999 = vdwg.mxu0
        %2000 = vmatprep.subr.mxu0 0.0
        %2001 = vmatpush1.msra.mxu0 0.0
        %2002 = vmatprep.subr.mxu0 0.0
        %2003 = vmatpush1.msra.mxu0 0.0
        %2004 = vmatprep.subr.mxu0 0.0
        %2005 = vmatpush1.msra.mxu0 0.0
        %2006 = vmatprep.subr.mxu0 0.0
        %2007 = vmatpush1.msra.mxu0 0.0
        %2008 = vmatprep.subr.mxu0 0.0
        %2009 = vmatpush1.msra.mxu0 0.0
        %2010 = vmatprep.subr.mxu0 0.0
        %2011 = vmatpush1.msra.mxu0 0.0
        %2012 = vmatprep.subr.mxu0 0.0
        %2013 = vmatpush1.msra.mxu0 0.0
        %2014 = vmatprep.subr.mxu0 0.0
        %2015 = vmatpush1.msra.mxu0 0.0
        %2016 = vmatprep.subr.mxu0 0.0
        %2017 = vmatpush1.msra.mxu0 0.0
        %2018 = vmatprep.subr.mxu0 0.0
        %2019 = vmatpush1.msra.mxu0 0.0
        %2020 = vmatprep.subr.mxu0 0.0
        %2021 = vmatpush1.msra.mxu0 0.0
        %2022 = vmatprep.subr.mxu0 0.0
        %2023 = vmatpush1.msra.mxu0 0.0
        %2024 = vmatprep.subr.mxu0 0.0
        %2025 = vmatpush1.msra.mxu0 0.0
        %2026 = vmatprep.subr.mxu0 0.0
        %2027 = vmatpush1.msra.mxu0 0.0
        %2028 = vmatprep.subr.mxu0 0.0
        %v2029 = vand.u32 %v1819, 4294901760
        %v2030 = vsub.f32 %v1819, %v2029
        %2031 = vmatpush1.msra.mxu0 %v2030
        %2032 = vmatprep.subr.mxu0 0.0
        %v2033 = vand.u32 %v1818, 4294901760
        %v2034 = vsub.f32 %v1818, %v2033
        %2035 = vmatpush1.msra.mxu0 %v2034
        %2036 = vmatprep.subr.mxu0 0.0
        %2037 = vmatpush2.msra.mxu0 0.0
        %2038 = vmatprep.subr.mxu0 0.0
        %2039 = vmatpush2.msra.mxu0 0.0
        %2040 = vmatprep.subr.mxu0 0.0
        %2041 = vmatpush2.msra.mxu0 0.0
        %2042 = vmatprep.subr.mxu0 0.0
        %2043 = vmatpush2.msra.mxu0 0.0
        %2044 = vmatprep.subr.mxu0 0.0
        %2045 = vmatpush2.msra.mxu0 0.0
        %2046 = vmatprep.subr.mxu0 0.0
        %2047 = vmatpush2.msra.mxu0 0.0
        %2048 = vmatprep.subr.mxu0 0.0
        %2049 = vmatpush2.msra.mxu0 0.0
        %2050 = vmatprep.subr.mxu0 0.0
        %2051 = vmatpush2.msra.mxu0 0.0
        %2052 = vmatprep.subr.mxu0 0.0
        %2053 = vmatpush2.msra.mxu0 0.0
        %2054 = vmatprep.subr.mxu0 0.0
        %2055 = vmatpush2.msra.mxu0 0.0
        %2056 = vmatprep.subr.mxu0 0.0
        %2057 = vmatpush2.msra.mxu0 0.0
        %2058 = vmatprep.subr.mxu0 0.0
        %2059 = vmatpush2.msra.mxu0 0.0
        %2060 = vmatprep.subr.mxu0 0.0
        %2061 = vmatpush2.msra.mxu0 0.0
        %2062 = vmatprep.subr.mxu0 0.0
        %2063 = vmatpush2.msra.mxu0 0.0
        %2064 = vmatprep.subr.mxu0 0.0
        %2065 = vmatpush2.msra.mxu0 0.0
        %2066 = vmatprep.subr.mxu0 0.0
        %2067 = vmatpush2.msra.mxu0 0.0
        %2068 = vmatprep.mubr.f32.mxu0 0.0
        %v2069 = vand.u32 %v1821, 4294901760
        %v2070 = vsub.f32 %v1821, %v2069
        %2071 = vmatmul.mubr.f32.gmra.mxu0 %v2070
        %v2072 = vpop.f32.mrf.mxu0
        %v2073 = vadd.f32 %v1991, %v2072
        %v2074 = vpop.f32.mrf.mxu0
        %2075 = vmatprep.mubr.f32.mxu0 0.0
        %v2076 = vand.u32 %v1824, 4294901760
        %v2077 = vsub.f32 %v1824, %v2076
        %2078 = vmatmul.mubr.f32.gmra.mxu0 %v2077
        %v2079 = vpop.f32.mrf.mxu0
        %v2080 = vadd.f32 %v1997, %v2079
        %v2081 = vpop.f32.mrf.mxu0
        %2082 = vdwg.mxu0
        %2083 = vmatprep.subr.mxu0 0.0
        %2084 = vmatpush1.msra.mxu0 0.0
        %2085 = vmatprep.subr.mxu0 0.0
        %2086 = vmatpush1.msra.mxu0 0.0
        %2087 = vmatprep.subr.mxu0 0.0
        %2088 = vmatpush1.msra.mxu0 0.0
        %2089 = vmatprep.subr.mxu0 0.0
        %2090 = vmatpush1.msra.mxu0 0.0
        %2091 = vmatprep.subr.mxu0 0.0
        %2092 = vmatpush1.msra.mxu0 0.0
        %2093 = vmatprep.subr.mxu0 0.0
        %2094 = vmatpush1.msra.mxu0 0.0
        %2095 = vmatprep.subr.mxu0 0.0
        %2096 = vmatpush1.msra.mxu0 0.0
        %2097 = vmatprep.subr.mxu0 0.0
        %2098 = vmatpush1.msra.mxu0 0.0
        %2099 = vmatprep.subr.mxu0 0.0
        %2100 = vmatpush1.msra.mxu0 0.0
        %2101 = vmatprep.subr.mxu0 0.0
        %2102 = vmatpush1.msra.mxu0 0.0
        %2103 = vmatprep.subr.mxu0 0.0
        %2104 = vmatpush1.msra.mxu0 0.0
        %2105 = vmatprep.subr.mxu0 0.0
        %2106 = vmatpush1.msra.mxu0 0.0
        %2107 = vmatprep.subr.mxu0 0.0
        %2108 = vmatpush1.msra.mxu0 0.0
        %2109 = vmatprep.subr.mxu0 0.0
        %2110 = vmatpush1.msra.mxu0 0.0
        %2111 = vmatprep.subr.mxu0 0.0
        %v2112 = vand.u32 %v1819, 4294901760
        %2113 = vmatpush1.msra.mxu0 %v2112
        %2114 = vmatprep.subr.mxu0 0.0
        %v2115 = vand.u32 %v1818, 4294901760
        %2116 = vmatpush1.msra.mxu0 %v2115
        %2117 = vmatprep.subr.mxu0 0.0
        %2118 = vmatpush2.msra.mxu0 0.0
        %2119 = vmatprep.subr.mxu0 0.0
        %2120 = vmatpush2.msra.mxu0 0.0
        %2121 = vmatprep.subr.mxu0 0.0
        %2122 = vmatpush2.msra.mxu0 0.0
        %2123 = vmatprep.subr.mxu0 0.0
        %2124 = vmatpush2.msra.mxu0 0.0
        %2125 = vmatprep.subr.mxu0 0.0
        %2126 = vmatpush2.msra.mxu0 0.0
        %2127 = vmatprep.subr.mxu0 0.0
        %2128 = vmatpush2.msra.mxu0 0.0
        %2129 = vmatprep.subr.mxu0 0.0
        %2130 = vmatpush2.msra.mxu0 0.0
        %2131 = vmatprep.subr.mxu0 0.0
        %2132 = vmatpush2.msra.mxu0 0.0
        %2133 = vmatprep.subr.mxu0 0.0
        %2134 = vmatpush2.msra.mxu0 0.0
        %2135 = vmatprep.subr.mxu0 0.0
        %2136 = vmatpush2.msra.mxu0 0.0
        %2137 = vmatprep.subr.mxu0 0.0
        %2138 = vmatpush2.msra.mxu0 0.0
        %2139 = vmatprep.subr.mxu0 0.0
        %2140 = vmatpush2.msra.mxu0 0.0
        %2141 = vmatprep.subr.mxu0 0.0
        %2142 = vmatpush2.msra.mxu0 0.0
        %2143 = vmatprep.subr.mxu0 0.0
        %2144 = vmatpush2.msra.mxu0 0.0
        %2145 = vmatprep.subr.mxu0 0.0
        %2146 = vmatpush2.msra.mxu0 0.0
        %2147 = vmatprep.subr.mxu0 0.0
        %2148 = vmatpush2.msra.mxu0 0.0
        %2149 = vmatprep.mubr.f32.mxu0 0.0
        %v2150 = vand.u32 %v1821, 4294901760
        %v2151 = vsub.f32 %v1821, %v2150
        %v2152 = vand.u32 %v2151, 4294901760
        %2153 = vmatmul.mubr.f32.gmra.mxu0 %v2152
        %v2154 = vpop.f32.mrf.mxu0
        %v2155 = vadd.f32 %v2073, %v2154
        %v2156 = vpop.f32.mrf.mxu0
        %2157 = vmatprep.mubr.f32.mxu0 0.0
        %v2158 = vand.u32 %v1824, 4294901760
        %v2159 = vsub.f32 %v1824, %v2158
        %v2160 = vand.u32 %v2159, 4294901760
        %2161 = vmatmul.mubr.f32.gmra.mxu0 %v2160
        %v2162 = vpop.f32.mrf.mxu0
        %v2163 = vadd.f32 %v2080, %v2162
        %v2164 = vpop.f32.mrf.mxu0
        %2165 = vdwg.mxu0
        %2166 = vmatprep.subr.mxu0 0.0
        %2167 = vmatpush1.msra.mxu0 0.0
        %2168 = vmatprep.subr.mxu0 0.0
        %2169 = vmatpush1.msra.mxu0 0.0
        %2170 = vmatprep.subr.mxu0 0.0
        %2171 = vmatpush1.msra.mxu0 0.0
        %2172 = vmatprep.subr.mxu0 0.0
        %2173 = vmatpush1.msra.mxu0 0.0
        %2174 = vmatprep.subr.mxu0 0.0
        %2175 = vmatpush1.msra.mxu0 0.0
        %2176 = vmatprep.subr.mxu0 0.0
        %2177 = vmatpush1.msra.mxu0 0.0
        %2178 = vmatprep.subr.mxu0 0.0
        %2179 = vmatpush1.msra.mxu0 0.0
        %2180 = vmatprep.subr.mxu0 0.0
        %2181 = vmatpush1.msra.mxu0 0.0
        %2182 = vmatprep.subr.mxu0 0.0
        %2183 = vmatpush1.msra.mxu0 0.0
        %2184 = vmatprep.subr.mxu0 0.0
        %2185 = vmatpush1.msra.mxu0 0.0
        %2186 = vmatprep.subr.mxu0 0.0
        %2187 = vmatpush1.msra.mxu0 0.0
        %2188 = vmatprep.subr.mxu0 0.0
        %2189 = vmatpush1.msra.mxu0 0.0
        %2190 = vmatprep.subr.mxu0 0.0
        %2191 = vmatpush1.msra.mxu0 0.0
        %2192 = vmatprep.subr.mxu0 0.0
        %2193 = vmatpush1.msra.mxu0 0.0
        %2194 = vmatprep.subr.mxu0 0.0
        %v2195 = vand.u32 %v1819, 4294901760
        %v2196 = vsub.f32 %v1819, %v2195
        %v2197 = vand.u32 %v2196, 4294901760
        %2198 = vmatpush1.msra.mxu0 %v2197
        %2199 = vmatprep.subr.mxu0 0.0
        %v2200 = vand.u32 %v1818, 4294901760
        %v2201 = vsub.f32 %v1818, %v2200
        %v2202 = vand.u32 %v2201, 4294901760
        %2203 = vmatpush1.msra.mxu0 %v2202
        %2204 = vmatprep.subr.mxu0 0.0
        %2205 = vmatpush2.msra.mxu0 0.0
        %2206 = vmatprep.subr.mxu0 0.0
        %2207 = vmatpush2.msra.mxu0 0.0
        %2208 = vmatprep.subr.mxu0 0.0
        %2209 = vmatpush2.msra.mxu0 0.0
        %2210 = vmatprep.subr.mxu0 0.0
        %2211 = vmatpush2.msra.mxu0 0.0
        %2212 = vmatprep.subr.mxu0 0.0
        %2213 = vmatpush2.msra.mxu0 0.0
        %2214 = vmatprep.subr.mxu0 0.0
        %2215 = vmatpush2.msra.mxu0 0.0
        %2216 = vmatprep.subr.mxu0 0.0
        %2217 = vmatpush2.msra.mxu0 0.0
        %2218 = vmatprep.subr.mxu0 0.0
        %2219 = vmatpush2.msra.mxu0 0.0
        %2220 = vmatprep.subr.mxu0 0.0
        %2221 = vmatpush2.msra.mxu0 0.0
        %2222 = vmatprep.subr.mxu0 0.0
        %2223 = vmatpush2.msra.mxu0 0.0
        %2224 = vmatprep.subr.mxu0 0.0
        %2225 = vmatpush2.msra.mxu0 0.0
        %2226 = vmatprep.subr.mxu0 0.0
        %2227 = vmatpush2.msra.mxu0 0.0
        %2228 = vmatprep.subr.mxu0 0.0
        %2229 = vmatpush2.msra.mxu0 0.0
        %2230 = vmatprep.subr.mxu0 0.0
        %2231 = vmatpush2.msra.mxu0 0.0
        %2232 = vmatprep.subr.mxu0 0.0
        %2233 = vmatpush2.msra.mxu0 0.0
        %2234 = vmatprep.subr.mxu0 0.0
        %2235 = vmatpush2.msra.mxu0 0.0
        %2236 = vmatprep.mubr.f32.mxu0 0.0
        %v2237 = vand.u32 %v1821, 4294901760
        %2238 = vmatmul.mubr.f32.gmra.mxu0 %v2237
        %v2239 = vpop.f32.mrf.mxu0
        %v2240 = vadd.f32 %v2155, %v2239
        %v2241 = vpop.f32.mrf.mxu0
        %2242 = vmatprep.mubr.f32.mxu0 0.0
        %v2243 = vand.u32 %v1824, 4294901760
        %2244 = vmatmul.mubr.f32.gmra.mxu0 %v2243
        %v2245 = vpop.f32.mrf.mxu0
        %v2246 = vadd.f32 %v2163, %v2245
        %v2247 = vpop.f32.mrf.mxu0
        %2248 = vdwg.mxu0
        %2249 = vmatprep.subr.mxu0 0.0
        %2250 = vmatpush1.msra.mxu0 0.0
        %2251 = vmatprep.subr.mxu0 0.0
        %2252 = vmatpush1.msra.mxu0 0.0
        %2253 = vmatprep.subr.mxu0 0.0
        %2254 = vmatpush1.msra.mxu0 0.0
        %2255 = vmatprep.subr.mxu0 0.0
        %2256 = vmatpush1.msra.mxu0 0.0
        %2257 = vmatprep.subr.mxu0 0.0
        %2258 = vmatpush1.msra.mxu0 0.0
        %2259 = vmatprep.subr.mxu0 0.0
        %2260 = vmatpush1.msra.mxu0 0.0
        %2261 = vmatprep.subr.mxu0 0.0
        %2262 = vmatpush1.msra.mxu0 0.0
        %2263 = vmatprep.subr.mxu0 0.0
        %2264 = vmatpush1.msra.mxu0 0.0
        %2265 = vmatprep.subr.mxu0 0.0
        %2266 = vmatpush1.msra.mxu0 0.0
        %2267 = vmatprep.subr.mxu0 0.0
        %2268 = vmatpush1.msra.mxu0 0.0
        %2269 = vmatprep.subr.mxu0 0.0
        %2270 = vmatpush1.msra.mxu0 0.0
        %2271 = vmatprep.subr.mxu0 0.0
        %2272 = vmatpush1.msra.mxu0 0.0
        %2273 = vmatprep.subr.mxu0 0.0
        %2274 = vmatpush1.msra.mxu0 0.0
        %2275 = vmatprep.subr.mxu0 0.0
        %2276 = vmatpush1.msra.mxu0 0.0
        %2277 = vmatprep.subr.mxu0 0.0
        %v2278 = vand.u32 %v1819, 4294901760
        %2279 = vmatpush1.msra.mxu0 %v2278
        %2280 = vmatprep.subr.mxu0 0.0
        %v2281 = vand.u32 %v1818, 4294901760
        %2282 = vmatpush1.msra.mxu0 %v2281
        %2283 = vmatprep.subr.mxu0 0.0
        %2284 = vmatpush2.msra.mxu0 0.0
        %2285 = vmatprep.subr.mxu0 0.0
        %2286 = vmatpush2.msra.mxu0 0.0
        %2287 = vmatprep.subr.mxu0 0.0
        %2288 = vmatpush2.msra.mxu0 0.0
        %2289 = vmatprep.subr.mxu0 0.0
        %2290 = vmatpush2.msra.mxu0 0.0
        %2291 = vmatprep.subr.mxu0 0.0
        %2292 = vmatpush2.msra.mxu0 0.0
        %2293 = vmatprep.subr.mxu0 0.0
        %2294 = vmatpush2.msra.mxu0 0.0
        %2295 = vmatprep.subr.mxu0 0.0
        %2296 = vmatpush2.msra.mxu0 0.0
        %2297 = vmatprep.subr.mxu0 0.0
        %2298 = vmatpush2.msra.mxu0 0.0
        %2299 = vmatprep.subr.mxu0 0.0
        %2300 = vmatpush2.msra.mxu0 0.0
        %2301 = vmatprep.subr.mxu0 0.0
        %2302 = vmatpush2.msra.mxu0 0.0
        %2303 = vmatprep.subr.mxu0 0.0
        %2304 = vmatpush2.msra.mxu0 0.0
        %2305 = vmatprep.subr.mxu0 0.0
        %2306 = vmatpush2.msra.mxu0 0.0
        %2307 = vmatprep.subr.mxu0 0.0
        %2308 = vmatpush2.msra.mxu0 0.0
        %2309 = vmatprep.subr.mxu0 0.0
        %2310 = vmatpush2.msra.mxu0 0.0
        %2311 = vmatprep.subr.mxu0 0.0
        %2312 = vmatpush2.msra.mxu0 0.0
        %2313 = vmatprep.subr.mxu0 0.0
        %2314 = vmatpush2.msra.mxu0 0.0
        %2315 = vmatprep.mubr.f32.mxu0 0.0
        %v2316 = vand.u32 %v1821, 4294901760
        %2317 = vmatmul.mubr.f32.gmra.mxu0 %v2316
        %v2318 = vpop.f32.mrf.mxu0
        %v2319 = vadd.f32 %v2240, %v2318
        %v2320 = vpop.f32.mrf.mxu0
        %2321 = vmatprep.mubr.f32.mxu0 0.0
        %v2322 = vand.u32 %v1824, 4294901760
        %2323 = vmatmul.mubr.f32.gmra.mxu0 %v2322
        %v2324 = vpop.f32.mrf.mxu0
        %v2325 = vadd.f32 %v2246, %v2324
        %v2326 = vpop.f32.mrf.mxu0
        %2327 = vdwg.mxu0
        %v2328 = vmul.f32 %v2319, 0.9071118
        %v2329 = vmul.f32 %v2325, 0.9071118
        %v2330 = vmul.f32 %v1299, 0.9071118
        %v2331 = vmul.f32 %v1305, 0.9071118
        %v2332 = vadd.f32 %v2328, %v2330
        %v2333 = vadd.f32 %v2329, %v2331
        %v2334 = vsub.f32 %v285, %v2332
        %v2335 = vsub.f32 %v286, %v2333
        %v2337 = vsel %vm291, %v2334, 0
        %v2340 = vsel %vm291, %v2335, 0
        %2342 = vmatprep.subr.mxu0 0.0
        %2343 = vmatpush1.msra.mxu0 0.0
        %2344 = vmatprep.subr.mxu0 0.0
        %2345 = vmatpush1.msra.mxu0 0.0
        %2346 = vmatprep.subr.mxu0 0.0
        %2347 = vmatpush1.msra.mxu0 0.0
        %2348 = vmatprep.subr.mxu0 0.0
        %2349 = vmatpush1.msra.mxu0 0.0
        %2350 = vmatprep.subr.mxu0 0.0
        %2351 = vmatpush1.msra.mxu0 0.0
        %2352 = vmatprep.subr.mxu0 0.0
        %2353 = vmatpush1.msra.mxu0 0.0
        %2354 = vmatprep.subr.mxu0 0.0
        %2355 = vmatpush1.msra.mxu0 0.0
        %2356 = vmatprep.subr.mxu0 0.0
        %2357 = vmatpush1.msra.mxu0 0.0
        %2358 = vmatprep.subr.mxu0 0.0
        %2359 = vmatpush1.msra.mxu0 0.0
        %2360 = vmatprep.subr.mxu0 0.0
        %2361 = vmatpush1.msra.mxu0 0.0
        %2362 = vmatprep.subr.mxu0 0.0
        %2363 = vmatpush1.msra.mxu0 0.0
        %2364 = vmatprep.subr.mxu0 0.0
        %2365 = vmatpush1.msra.mxu0 0.0
        %2366 = vmatprep.subr.mxu0 0.0
        %2367 = vmatpush1.msra.mxu0 0.0
        %2368 = vmatprep.subr.mxu0 0.0
        %2369 = vmatpush1.msra.mxu0 0.0
        %2370 = vmatprep.subr.mxu0 0.0
        %v2371 = vand.u32 %v290, 4294901760
        %2372 = vmatpush1.msra.mxu0 %v2371
        %2373 = vmatprep.subr.mxu0 0.0
        %v2374 = vand.u32 %v289, 4294901760
        %2375 = vmatpush1.msra.mxu0 %v2374
        %2376 = vmatprep.subr.mxu0 0.0
        %2377 = vmatpush2.msra.mxu0 0.0
        %2378 = vmatprep.subr.mxu0 0.0
        %2379 = vmatpush2.msra.mxu0 0.0
        %2380 = vmatprep.subr.mxu0 0.0
        %2381 = vmatpush2.msra.mxu0 0.0
        %2382 = vmatprep.subr.mxu0 0.0
        %2383 = vmatpush2.msra.mxu0 0.0
        %2384 = vmatprep.subr.mxu0 0.0
        %2385 = vmatpush2.msra.mxu0 0.0
        %2386 = vmatprep.subr.mxu0 0.0
        %2387 = vmatpush2.msra.mxu0 0.0
        %2388 = vmatprep.subr.mxu0 0.0
        %2389 = vmatpush2.msra.mxu0 0.0
        %2390 = vmatprep.subr.mxu0 0.0
        %2391 = vmatpush2.msra.mxu0 0.0
        %2392 = vmatprep.subr.mxu0 0.0
        %2393 = vmatpush2.msra.mxu0 0.0
        %2394 = vmatprep.subr.mxu0 0.0
        %2395 = vmatpush2.msra.mxu0 0.0
        %2396 = vmatprep.subr.mxu0 0.0
        %2397 = vmatpush2.msra.mxu0 0.0
        %2398 = vmatprep.subr.mxu0 0.0
        %2399 = vmatpush2.msra.mxu0 0.0
        %2400 = vmatprep.subr.mxu0 0.0
        %2401 = vmatpush2.msra.mxu0 0.0
        %2402 = vmatprep.subr.mxu0 0.0
        %2403 = vmatpush2.msra.mxu0 0.0
        %2404 = vmatprep.subr.mxu0 0.0
        %2405 = vmatpush2.msra.mxu0 0.0
        %2406 = vmatprep.subr.mxu0 0.0
        %2407 = vmatpush2.msra.mxu0 0.0
        %2408 = vmatprep.mubr.f32.mxu0 0.0
        %v2409 = vand.u32 %v2337, 4294901760
        %v2410 = vsub.f32 %v2337, %v2409
        %v2411 = vand.u32 %v2410, 4294901760
        %v2412 = vsub.f32 %v2410, %v2411
        %v2413 = vand.u32 %v2412, 4294901760
        %2414 = vmatmul.mubr.f32.gmra.mxu0 %v2413
        %v2415 = vpop.f32.mrf.mxu0
        %v2416 = vadd.f32 0.0, %v2415
        %v2417 = vpop.f32.mrf.mxu0
        %2418 = vmatprep.mubr.f32.mxu0 0.0
        %v2419 = vand.u32 %v2340, 4294901760
        %v2420 = vsub.f32 %v2340, %v2419
        %v2421 = vand.u32 %v2420, 4294901760
        %v2422 = vsub.f32 %v2420, %v2421
        %v2423 = vand.u32 %v2422, 4294901760
        %2424 = vmatmul.mubr.f32.gmra.mxu0 %v2423
        %v2425 = vpop.f32.mrf.mxu0
        %v2426 = vadd.f32 0.0, %v2425
        %v2427 = vpop.f32.mrf.mxu0
        %2428 = vdwg.mxu0
        %2429 = vmatprep.subr.mxu0 0.0
        %2430 = vmatpush1.msra.mxu0 0.0
        %2431 = vmatprep.subr.mxu0 0.0
        %2432 = vmatpush1.msra.mxu0 0.0
        %2433 = vmatprep.subr.mxu0 0.0
        %2434 = vmatpush1.msra.mxu0 0.0
        %2435 = vmatprep.subr.mxu0 0.0
        %2436 = vmatpush1.msra.mxu0 0.0
        %2437 = vmatprep.subr.mxu0 0.0
        %2438 = vmatpush1.msra.mxu0 0.0
        %2439 = vmatprep.subr.mxu0 0.0
        %2440 = vmatpush1.msra.mxu0 0.0
        %2441 = vmatprep.subr.mxu0 0.0
        %2442 = vmatpush1.msra.mxu0 0.0
        %2443 = vmatprep.subr.mxu0 0.0
        %2444 = vmatpush1.msra.mxu0 0.0
        %2445 = vmatprep.subr.mxu0 0.0
        %2446 = vmatpush1.msra.mxu0 0.0
        %2447 = vmatprep.subr.mxu0 0.0
        %2448 = vmatpush1.msra.mxu0 0.0
        %2449 = vmatprep.subr.mxu0 0.0
        %2450 = vmatpush1.msra.mxu0 0.0
        %2451 = vmatprep.subr.mxu0 0.0
        %2452 = vmatpush1.msra.mxu0 0.0
        %2453 = vmatprep.subr.mxu0 0.0
        %2454 = vmatpush1.msra.mxu0 0.0
        %2455 = vmatprep.subr.mxu0 0.0
        %2456 = vmatpush1.msra.mxu0 0.0
        %2457 = vmatprep.subr.mxu0 0.0
        %v2458 = vand.u32 %v290, 4294901760
        %v2459 = vsub.f32 %v290, %v2458
        %v2460 = vand.u32 %v2459, 4294901760
        %v2461 = vsub.f32 %v2459, %v2460
        %v2462 = vand.u32 %v2461, 4294901760
        %2463 = vmatpush1.msra.mxu0 %v2462
        %2464 = vmatprep.subr.mxu0 0.0
        %v2465 = vand.u32 %v289, 4294901760
        %v2466 = vsub.f32 %v289, %v2465
        %v2467 = vand.u32 %v2466, 4294901760
        %v2468 = vsub.f32 %v2466, %v2467
        %v2469 = vand.u32 %v2468, 4294901760
        %2470 = vmatpush1.msra.mxu0 %v2469
        %2471 = vmatprep.subr.mxu0 0.0
        %2472 = vmatpush2.msra.mxu0 0.0
        %2473 = vmatprep.subr.mxu0 0.0
        %2474 = vmatpush2.msra.mxu0 0.0
        %2475 = vmatprep.subr.mxu0 0.0
        %2476 = vmatpush2.msra.mxu0 0.0
        %2477 = vmatprep.subr.mxu0 0.0
        %2478 = vmatpush2.msra.mxu0 0.0
        %2479 = vmatprep.subr.mxu0 0.0
        %2480 = vmatpush2.msra.mxu0 0.0
        %2481 = vmatprep.subr.mxu0 0.0
        %2482 = vmatpush2.msra.mxu0 0.0
        %2483 = vmatprep.subr.mxu0 0.0
        %2484 = vmatpush2.msra.mxu0 0.0
        %2485 = vmatprep.subr.mxu0 0.0
        %2486 = vmatpush2.msra.mxu0 0.0
        %2487 = vmatprep.subr.mxu0 0.0
        %2488 = vmatpush2.msra.mxu0 0.0
        %2489 = vmatprep.subr.mxu0 0.0
        %2490 = vmatpush2.msra.mxu0 0.0
        %2491 = vmatprep.subr.mxu0 0.0
        %2492 = vmatpush2.msra.mxu0 0.0
        %2493 = vmatprep.subr.mxu0 0.0
        %2494 = vmatpush2.msra.mxu0 0.0
        %2495 = vmatprep.subr.mxu0 0.0
        %2496 = vmatpush2.msra.mxu0 0.0
        %2497 = vmatprep.subr.mxu0 0.0
        %2498 = vmatpush2.msra.mxu0 0.0
        %2499 = vmatprep.subr.mxu0 0.0
        %2500 = vmatpush2.msra.mxu0 0.0
        %2501 = vmatprep.subr.mxu0 0.0
        %2502 = vmatpush2.msra.mxu0 0.0
        %2503 = vmatprep.mubr.f32.mxu0 0.0
        %v2504 = vand.u32 %v2337, 4294901760
        %2505 = vmatmul.mubr.f32.gmra.mxu0 %v2504
        %v2506 = vpop.f32.mrf.mxu0
        %v2507 = vadd.f32 %v2416, %v2506
        %v2508 = vpop.f32.mrf.mxu0
        %2509 = vmatprep.mubr.f32.mxu0 0.0
        %v2510 = vand.u32 %v2340, 4294901760
        %2511 = vmatmul.mubr.f32.gmra.mxu0 %v2510
        %v2512 = vpop.f32.mrf.mxu0
        %v2513 = vadd.f32 %v2426, %v2512
        %v2514 = vpop.f32.mrf.mxu0
        %2515 = vdwg.mxu0
        %2516 = vmatprep.subr.mxu0 0.0
        %2517 = vmatpush1.msra.mxu0 0.0
        %2518 = vmatprep.subr.mxu0 0.0
        %2519 = vmatpush1.msra.mxu0 0.0
        %2520 = vmatprep.subr.mxu0 0.0
        %2521 = vmatpush1.msra.mxu0 0.0
        %2522 = vmatprep.subr.mxu0 0.0
        %2523 = vmatpush1.msra.mxu0 0.0
        %2524 = vmatprep.subr.mxu0 0.0
        %2525 = vmatpush1.msra.mxu0 0.0
        %2526 = vmatprep.subr.mxu0 0.0
        %2527 = vmatpush1.msra.mxu0 0.0
        %2528 = vmatprep.subr.mxu0 0.0
        %2529 = vmatpush1.msra.mxu0 0.0
        %2530 = vmatprep.subr.mxu0 0.0
        %2531 = vmatpush1.msra.mxu0 0.0
        %2532 = vmatprep.subr.mxu0 0.0
        %2533 = vmatpush1.msra.mxu0 0.0
        %2534 = vmatprep.subr.mxu0 0.0
        %2535 = vmatpush1.msra.mxu0 0.0
        %2536 = vmatprep.subr.mxu0 0.0
        %2537 = vmatpush1.msra.mxu0 0.0
        %2538 = vmatprep.subr.mxu0 0.0
        %2539 = vmatpush1.msra.mxu0 0.0
        %2540 = vmatprep.subr.mxu0 0.0
        %2541 = vmatpush1.msra.mxu0 0.0
        %2542 = vmatprep.subr.mxu0 0.0
        %2543 = vmatpush1.msra.mxu0 0.0
        %2544 = vmatprep.subr.mxu0 0.0
        %v2545 = vand.u32 %v290, 4294901760
        %v2546 = vsub.f32 %v290, %v2545
        %2547 = vmatpush1.msra.mxu0 %v2546
        %2548 = vmatprep.subr.mxu0 0.0
        %v2549 = vand.u32 %v289, 4294901760
        %v2550 = vsub.f32 %v289, %v2549
        %2551 = vmatpush1.msra.mxu0 %v2550
        %2552 = vmatprep.subr.mxu0 0.0
        %2553 = vmatpush2.msra.mxu0 0.0
        %2554 = vmatprep.subr.mxu0 0.0
        %2555 = vmatpush2.msra.mxu0 0.0
        %2556 = vmatprep.subr.mxu0 0.0
        %2557 = vmatpush2.msra.mxu0 0.0
        %2558 = vmatprep.subr.mxu0 0.0
        %2559 = vmatpush2.msra.mxu0 0.0
        %2560 = vmatprep.subr.mxu0 0.0
        %2561 = vmatpush2.msra.mxu0 0.0
        %2562 = vmatprep.subr.mxu0 0.0
        %2563 = vmatpush2.msra.mxu0 0.0
        %2564 = vmatprep.subr.mxu0 0.0
        %2565 = vmatpush2.msra.mxu0 0.0
        %2566 = vmatprep.subr.mxu0 0.0
        %2567 = vmatpush2.msra.mxu0 0.0
        %2568 = vmatprep.subr.mxu0 0.0
        %2569 = vmatpush2.msra.mxu0 0.0
        %2570 = vmatprep.subr.mxu0 0.0
        %2571 = vmatpush2.msra.mxu0 0.0
        %2572 = vmatprep.subr.mxu0 0.0
        %2573 = vmatpush2.msra.mxu0 0.0
        %2574 = vmatprep.subr.mxu0 0.0
        %2575 = vmatpush2.msra.mxu0 0.0
        %2576 = vmatprep.subr.mxu0 0.0
        %2577 = vmatpush2.msra.mxu0 0.0
        %2578 = vmatprep.subr.mxu0 0.0
        %2579 = vmatpush2.msra.mxu0 0.0
        %2580 = vmatprep.subr.mxu0 0.0
        %2581 = vmatpush2.msra.mxu0 0.0
        %2582 = vmatprep.subr.mxu0 0.0
        %2583 = vmatpush2.msra.mxu0 0.0
        %2584 = vmatprep.mubr.f32.mxu0 0.0
        %v2585 = vand.u32 %v2337, 4294901760
        %v2586 = vsub.f32 %v2337, %v2585
        %2587 = vmatmul.mubr.f32.gmra.mxu0 %v2586
        %v2588 = vpop.f32.mrf.mxu0
        %v2589 = vadd.f32 %v2507, %v2588
        %v2590 = vpop.f32.mrf.mxu0
        %2591 = vmatprep.mubr.f32.mxu0 0.0
        %v2592 = vand.u32 %v2340, 4294901760
        %v2593 = vsub.f32 %v2340, %v2592
        %2594 = vmatmul.mubr.f32.gmra.mxu0 %v2593
        %v2595 = vpop.f32.mrf.mxu0
        %v2596 = vadd.f32 %v2513, %v2595
        %v2597 = vpop.f32.mrf.mxu0
        %2598 = vdwg.mxu0
        %2599 = vmatprep.subr.mxu0 0.0
        %2600 = vmatpush1.msra.mxu0 0.0
        %2601 = vmatprep.subr.mxu0 0.0
        %2602 = vmatpush1.msra.mxu0 0.0
        %2603 = vmatprep.subr.mxu0 0.0
        %2604 = vmatpush1.msra.mxu0 0.0
        %2605 = vmatprep.subr.mxu0 0.0
        %2606 = vmatpush1.msra.mxu0 0.0
        %2607 = vmatprep.subr.mxu0 0.0
        %2608 = vmatpush1.msra.mxu0 0.0
        %2609 = vmatprep.subr.mxu0 0.0
        %2610 = vmatpush1.msra.mxu0 0.0
        %2611 = vmatprep.subr.mxu0 0.0
        %2612 = vmatpush1.msra.mxu0 0.0
        %2613 = vmatprep.subr.mxu0 0.0
        %2614 = vmatpush1.msra.mxu0 0.0
        %2615 = vmatprep.subr.mxu0 0.0
        %2616 = vmatpush1.msra.mxu0 0.0
        %2617 = vmatprep.subr.mxu0 0.0
        %2618 = vmatpush1.msra.mxu0 0.0
        %2619 = vmatprep.subr.mxu0 0.0
        %2620 = vmatpush1.msra.mxu0 0.0
        %2621 = vmatprep.subr.mxu0 0.0
        %2622 = vmatpush1.msra.mxu0 0.0
        %2623 = vmatprep.subr.mxu0 0.0
        %2624 = vmatpush1.msra.mxu0 0.0
        %2625 = vmatprep.subr.mxu0 0.0
        %2626 = vmatpush1.msra.mxu0 0.0
        %2627 = vmatprep.subr.mxu0 0.0
        %v2628 = vand.u32 %v290, 4294901760
        %2629 = vmatpush1.msra.mxu0 %v2628
        %2630 = vmatprep.subr.mxu0 0.0
        %v2631 = vand.u32 %v289, 4294901760
        %2632 = vmatpush1.msra.mxu0 %v2631
        %2633 = vmatprep.subr.mxu0 0.0
        %2634 = vmatpush2.msra.mxu0 0.0
        %2635 = vmatprep.subr.mxu0 0.0
        %2636 = vmatpush2.msra.mxu0 0.0
        %2637 = vmatprep.subr.mxu0 0.0
        %2638 = vmatpush2.msra.mxu0 0.0
        %2639 = vmatprep.subr.mxu0 0.0
        %2640 = vmatpush2.msra.mxu0 0.0
        %2641 = vmatprep.subr.mxu0 0.0
        %2642 = vmatpush2.msra.mxu0 0.0
        %2643 = vmatprep.subr.mxu0 0.0
        %2644 = vmatpush2.msra.mxu0 0.0
        %2645 = vmatprep.subr.mxu0 0.0
        %2646 = vmatpush2.msra.mxu0 0.0
        %2647 = vmatprep.subr.mxu0 0.0
        %2648 = vmatpush2.msra.mxu0 0.0
        %2649 = vmatprep.subr.mxu0 0.0
        %2650 = vmatpush2.msra.mxu0 0.0
        %2651 = vmatprep.subr.mxu0 0.0
        %2652 = vmatpush2.msra.mxu0 0.0
        %2653 = vmatprep.subr.mxu0 0.0
        %2654 = vmatpush2.msra.mxu0 0.0
        %2655 = vmatprep.subr.mxu0 0.0
        %2656 = vmatpush2.msra.mxu0 0.0
        %2657 = vmatprep.subr.mxu0 0.0
        %2658 = vmatpush2.msra.mxu0 0.0
        %2659 = vmatprep.subr.mxu0 0.0
        %2660 = vmatpush2.msra.mxu0 0.0
        %2661 = vmatprep.subr.mxu0 0.0
        %2662 = vmatpush2.msra.mxu0 0.0
        %2663 = vmatprep.subr.mxu0 0.0
        %2664 = vmatpush2.msra.mxu0 0.0
        %2665 = vmatprep.mubr.f32.mxu0 0.0
        %v2666 = vand.u32 %v2337, 4294901760
        %v2667 = vsub.f32 %v2337, %v2666
        %v2668 = vand.u32 %v2667, 4294901760
        %2669 = vmatmul.mubr.f32.gmra.mxu0 %v2668
        %v2670 = vpop.f32.mrf.mxu0
        %v2671 = vadd.f32 %v2589, %v2670
        %v2672 = vpop.f32.mrf.mxu0
        %2673 = vmatprep.mubr.f32.mxu0 0.0
        %v2674 = vand.u32 %v2340, 4294901760
        %v2675 = vsub.f32 %v2340, %v2674
        %v2676 = vand.u32 %v2675, 4294901760
        %2677 = vmatmul.mubr.f32.gmra.mxu0 %v2676
        %v2678 = vpop.f32.mrf.mxu0
        %v2679 = vadd.f32 %v2596, %v2678
        %v2680 = vpop.f32.mrf.mxu0
        %2681 = vdwg.mxu0
        %2682 = vmatprep.subr.mxu0 0.0
        %2683 = vmatpush1.msra.mxu0 0.0
        %2684 = vmatprep.subr.mxu0 0.0
        %2685 = vmatpush1.msra.mxu0 0.0
        %2686 = vmatprep.subr.mxu0 0.0
        %2687 = vmatpush1.msra.mxu0 0.0
        %2688 = vmatprep.subr.mxu0 0.0
        %2689 = vmatpush1.msra.mxu0 0.0
        %2690 = vmatprep.subr.mxu0 0.0
        %2691 = vmatpush1.msra.mxu0 0.0
        %2692 = vmatprep.subr.mxu0 0.0
        %2693 = vmatpush1.msra.mxu0 0.0
        %2694 = vmatprep.subr.mxu0 0.0
        %2695 = vmatpush1.msra.mxu0 0.0
        %2696 = vmatprep.subr.mxu0 0.0
        %2697 = vmatpush1.msra.mxu0 0.0
        %2698 = vmatprep.subr.mxu0 0.0
        %2699 = vmatpush1.msra.mxu0 0.0
        %2700 = vmatprep.subr.mxu0 0.0
        %2701 = vmatpush1.msra.mxu0 0.0
        %2702 = vmatprep.subr.mxu0 0.0
        %2703 = vmatpush1.msra.mxu0 0.0
        %2704 = vmatprep.subr.mxu0 0.0
        %2705 = vmatpush1.msra.mxu0 0.0
        %2706 = vmatprep.subr.mxu0 0.0
        %2707 = vmatpush1.msra.mxu0 0.0
        %2708 = vmatprep.subr.mxu0 0.0
        %2709 = vmatpush1.msra.mxu0 0.0
        %2710 = vmatprep.subr.mxu0 0.0
        %v2711 = vand.u32 %v290, 4294901760
        %v2712 = vsub.f32 %v290, %v2711
        %v2713 = vand.u32 %v2712, 4294901760
        %2714 = vmatpush1.msra.mxu0 %v2713
        %2715 = vmatprep.subr.mxu0 0.0
        %v2716 = vand.u32 %v289, 4294901760
        %v2717 = vsub.f32 %v289, %v2716
        %v2718 = vand.u32 %v2717, 4294901760
        %2719 = vmatpush1.msra.mxu0 %v2718
        %2720 = vmatprep.subr.mxu0 0.0
        %2721 = vmatpush2.msra.mxu0 0.0
        %2722 = vmatprep.subr.mxu0 0.0
        %2723 = vmatpush2.msra.mxu0 0.0
        %2724 = vmatprep.subr.mxu0 0.0
        %2725 = vmatpush2.msra.mxu0 0.0
        %2726 = vmatprep.subr.mxu0 0.0
        %2727 = vmatpush2.msra.mxu0 0.0
        %2728 = vmatprep.subr.mxu0 0.0
        %2729 = vmatpush2.msra.mxu0 0.0
        %2730 = vmatprep.subr.mxu0 0.0
        %2731 = vmatpush2.msra.mxu0 0.0
        %2732 = vmatprep.subr.mxu0 0.0
        %2733 = vmatpush2.msra.mxu0 0.0
        %2734 = vmatprep.subr.mxu0 0.0
        %2735 = vmatpush2.msra.mxu0 0.0
        %2736 = vmatprep.subr.mxu0 0.0
        %2737 = vmatpush2.msra.mxu0 0.0
        %2738 = vmatprep.subr.mxu0 0.0
        %2739 = vmatpush2.msra.mxu0 0.0
        %2740 = vmatprep.subr.mxu0 0.0
        %2741 = vmatpush2.msra.mxu0 0.0
        %2742 = vmatprep.subr.mxu0 0.0
        %2743 = vmatpush2.msra.mxu0 0.0
        %2744 = vmatprep.subr.mxu0 0.0
        %2745 = vmatpush2.msra.mxu0 0.0
        %2746 = vmatprep.subr.mxu0 0.0
        %2747 = vmatpush2.msra.mxu0 0.0
        %2748 = vmatprep.subr.mxu0 0.0
        %2749 = vmatpush2.msra.mxu0 0.0
        %2750 = vmatprep.subr.mxu0 0.0
        %2751 = vmatpush2.msra.mxu0 0.0
        %2752 = vmatprep.mubr.f32.mxu0 0.0
        %v2753 = vand.u32 %v2337, 4294901760
        %2754 = vmatmul.mubr.f32.gmra.mxu0 %v2753
        %v2755 = vpop.f32.mrf.mxu0
        %v2756 = vadd.f32 %v2671, %v2755
        %v2757 = vpop.f32.mrf.mxu0
        %2758 = vmatprep.mubr.f32.mxu0 0.0
        %v2759 = vand.u32 %v2340, 4294901760
        %2760 = vmatmul.mubr.f32.gmra.mxu0 %v2759
        %v2761 = vpop.f32.mrf.mxu0
        %v2762 = vadd.f32 %v2679, %v2761
        %v2763 = vpop.f32.mrf.mxu0
        %2764 = vdwg.mxu0
        %2765 = vmatprep.subr.mxu0 0.0
        %2766 = vmatpush1.msra.mxu0 0.0
        %2767 = vmatprep.subr.mxu0 0.0
        %2768 = vmatpush1.msra.mxu0 0.0
        %2769 = vmatprep.subr.mxu0 0.0
        %2770 = vmatpush1.msra.mxu0 0.0
        %2771 = vmatprep.subr.mxu0 0.0
        %2772 = vmatpush1.msra.mxu0 0.0
        %2773 = vmatprep.subr.mxu0 0.0
        %2774 = vmatpush1.msra.mxu0 0.0
        %2775 = vmatprep.subr.mxu0 0.0
        %2776 = vmatpush1.msra.mxu0 0.0
        %2777 = vmatprep.subr.mxu0 0.0
        %2778 = vmatpush1.msra.mxu0 0.0
        %2779 = vmatprep.subr.mxu0 0.0
        %2780 = vmatpush1.msra.mxu0 0.0
        %2781 = vmatprep.subr.mxu0 0.0
        %2782 = vmatpush1.msra.mxu0 0.0
        %2783 = vmatprep.subr.mxu0 0.0
        %2784 = vmatpush1.msra.mxu0 0.0
        %2785 = vmatprep.subr.mxu0 0.0
        %2786 = vmatpush1.msra.mxu0 0.0
        %2787 = vmatprep.subr.mxu0 0.0
        %2788 = vmatpush1.msra.mxu0 0.0
        %2789 = vmatprep.subr.mxu0 0.0
        %2790 = vmatpush1.msra.mxu0 0.0
        %2791 = vmatprep.subr.mxu0 0.0
        %2792 = vmatpush1.msra.mxu0 0.0
        %2793 = vmatprep.subr.mxu0 0.0
        %v2794 = vand.u32 %v290, 4294901760
        %2795 = vmatpush1.msra.mxu0 %v2794
        %2796 = vmatprep.subr.mxu0 0.0
        %v2797 = vand.u32 %v289, 4294901760
        %2798 = vmatpush1.msra.mxu0 %v2797
        %2799 = vmatprep.subr.mxu0 0.0
        %2800 = vmatpush2.msra.mxu0 0.0
        %2801 = vmatprep.subr.mxu0 0.0
        %2802 = vmatpush2.msra.mxu0 0.0
        %2803 = vmatprep.subr.mxu0 0.0
        %2804 = vmatpush2.msra.mxu0 0.0
        %2805 = vmatprep.subr.mxu0 0.0
        %2806 = vmatpush2.msra.mxu0 0.0
        %2807 = vmatprep.subr.mxu0 0.0
        %2808 = vmatpush2.msra.mxu0 0.0
        %2809 = vmatprep.subr.mxu0 0.0
        %2810 = vmatpush2.msra.mxu0 0.0
        %2811 = vmatprep.subr.mxu0 0.0
        %2812 = vmatpush2.msra.mxu0 0.0
        %2813 = vmatprep.subr.mxu0 0.0
        %2814 = vmatpush2.msra.mxu0 0.0
        %2815 = vmatprep.subr.mxu0 0.0
        %2816 = vmatpush2.msra.mxu0 0.0
        %2817 = vmatprep.subr.mxu0 0.0
        %2818 = vmatpush2.msra.mxu0 0.0
        %2819 = vmatprep.subr.mxu0 0.0
        %2820 = vmatpush2.msra.mxu0 0.0
        %2821 = vmatprep.subr.mxu0 0.0
        %2822 = vmatpush2.msra.mxu0 0.0
        %2823 = vmatprep.subr.mxu0 0.0
        %2824 = vmatpush2.msra.mxu0 0.0
        %2825 = vmatprep.subr.mxu0 0.0
        %2826 = vmatpush2.msra.mxu0 0.0
        %2827 = vmatprep.subr.mxu0 0.0
        %2828 = vmatpush2.msra.mxu0 0.0
        %2829 = vmatprep.subr.mxu0 0.0
        %2830 = vmatpush2.msra.mxu0 0.0
        %2831 = vmatprep.mubr.f32.mxu0 0.0
        %v2832 = vand.u32 %v2337, 4294901760
        %2833 = vmatmul.mubr.f32.gmra.mxu0 %v2832
        %v2834 = vpop.f32.mrf.mxu0
        %v2835 = vadd.f32 %v2756, %v2834
        %v2836 = vpop.f32.mrf.mxu0
        %2837 = vmatprep.mubr.f32.mxu0 0.0
        %v2838 = vand.u32 %v2340, 4294901760
        %2839 = vmatmul.mubr.f32.gmra.mxu0 %v2838
        %v2840 = vpop.f32.mrf.mxu0
        %v2841 = vadd.f32 %v2762, %v2840
        %v2842 = vpop.f32.mrf.mxu0
        %2843 = vdwg.mxu0
        %2844 = vmatprep.subr.mxu0 0.0
        %2845 = vmatpush1.msra.mxu0 0.0
        %2846 = vmatprep.subr.mxu0 0.0
        %2847 = vmatpush1.msra.mxu0 0.0
        %2848 = vmatprep.subr.mxu0 0.0
        %2849 = vmatpush1.msra.mxu0 0.0
        %2850 = vmatprep.subr.mxu0 0.0
        %2851 = vmatpush1.msra.mxu0 0.0
        %2852 = vmatprep.subr.mxu0 0.0
        %2853 = vmatpush1.msra.mxu0 0.0
        %2854 = vmatprep.subr.mxu0 0.0
        %2855 = vmatpush1.msra.mxu0 0.0
        %2856 = vmatprep.subr.mxu0 0.0
        %2857 = vmatpush1.msra.mxu0 0.0
        %2858 = vmatprep.subr.mxu0 0.0
        %2859 = vmatpush1.msra.mxu0 0.0
        %2860 = vmatprep.subr.mxu0 0.0
        %2861 = vmatpush1.msra.mxu0 0.0
        %2862 = vmatprep.subr.mxu0 0.0
        %2863 = vmatpush1.msra.mxu0 0.0
        %2864 = vmatprep.subr.mxu0 0.0
        %2865 = vmatpush1.msra.mxu0 0.0
        %2866 = vmatprep.subr.mxu0 0.0
        %2867 = vmatpush1.msra.mxu0 0.0
        %2868 = vmatprep.subr.mxu0 0.0
        %2869 = vmatpush1.msra.mxu0 0.0
        %2870 = vmatprep.subr.mxu0 0.0
        %2871 = vmatpush1.msra.mxu0 0.0
        %2872 = vmatprep.subr.mxu0 0.0
        %v2873 = vand.u32 %v2335, 4294901760
        %2874 = vmatpush1.msra.mxu0 %v2873
        %2875 = vmatprep.subr.mxu0 0.0
        %v2876 = vand.u32 %v2334, 4294901760
        %2877 = vmatpush1.msra.mxu0 %v2876
        %2878 = vmatprep.subr.mxu0 0.0
        %2879 = vmatpush2.msra.mxu0 0.0
        %2880 = vmatprep.subr.mxu0 0.0
        %2881 = vmatpush2.msra.mxu0 0.0
        %2882 = vmatprep.subr.mxu0 0.0
        %2883 = vmatpush2.msra.mxu0 0.0
        %2884 = vmatprep.subr.mxu0 0.0
        %2885 = vmatpush2.msra.mxu0 0.0
        %2886 = vmatprep.subr.mxu0 0.0
        %2887 = vmatpush2.msra.mxu0 0.0
        %2888 = vmatprep.subr.mxu0 0.0
        %2889 = vmatpush2.msra.mxu0 0.0
        %2890 = vmatprep.subr.mxu0 0.0
        %2891 = vmatpush2.msra.mxu0 0.0
        %2892 = vmatprep.subr.mxu0 0.0
        %2893 = vmatpush2.msra.mxu0 0.0
        %2894 = vmatprep.subr.mxu0 0.0
        %2895 = vmatpush2.msra.mxu0 0.0
        %2896 = vmatprep.subr.mxu0 0.0
        %2897 = vmatpush2.msra.mxu0 0.0
        %2898 = vmatprep.subr.mxu0 0.0
        %2899 = vmatpush2.msra.mxu0 0.0
        %2900 = vmatprep.subr.mxu0 0.0
        %2901 = vmatpush2.msra.mxu0 0.0
        %2902 = vmatprep.subr.mxu0 0.0
        %2903 = vmatpush2.msra.mxu0 0.0
        %2904 = vmatprep.subr.mxu0 0.0
        %2905 = vmatpush2.msra.mxu0 0.0
        %2906 = vmatprep.subr.mxu0 0.0
        %2907 = vmatpush2.msra.mxu0 0.0
        %2908 = vmatprep.subr.mxu0 0.0
        %2909 = vmatpush2.msra.mxu0 0.0
        %2910 = vmatprep.mubr.f32.mxu0 0.0
        %v2911 = vand.u32 %v801, 4294901760
        %v2912 = vsub.f32 %v801, %v2911
        %v2913 = vand.u32 %v2912, 4294901760
        %v2914 = vsub.f32 %v2912, %v2913
        %v2915 = vand.u32 %v2914, 4294901760
        %2916 = vmatmul.mubr.f32.gmra.mxu0 %v2915
        %v2917 = vpop.f32.mrf.mxu0
        %v2918 = vadd.f32 %v2835, %v2917
        %v2919 = vpop.f32.mrf.mxu0
        %2920 = vmatprep.mubr.f32.mxu0 0.0
        %v2921 = vand.u32 %v804, 4294901760
        %v2922 = vsub.f32 %v804, %v2921
        %v2923 = vand.u32 %v2922, 4294901760
        %v2924 = vsub.f32 %v2922, %v2923
        %v2925 = vand.u32 %v2924, 4294901760
        %2926 = vmatmul.mubr.f32.gmra.mxu0 %v2925
        %v2927 = vpop.f32.mrf.mxu0
        %v2928 = vadd.f32 %v2841, %v2927
        %v2929 = vpop.f32.mrf.mxu0
        %2930 = vdwg.mxu0
        %2931 = vmatprep.subr.mxu0 0.0
        %2932 = vmatpush1.msra.mxu0 0.0
        %2933 = vmatprep.subr.mxu0 0.0
        %2934 = vmatpush1.msra.mxu0 0.0
        %2935 = vmatprep.subr.mxu0 0.0
        %2936 = vmatpush1.msra.mxu0 0.0
        %2937 = vmatprep.subr.mxu0 0.0
        %2938 = vmatpush1.msra.mxu0 0.0
        %2939 = vmatprep.subr.mxu0 0.0
        %2940 = vmatpush1.msra.mxu0 0.0
        %2941 = vmatprep.subr.mxu0 0.0
        %2942 = vmatpush1.msra.mxu0 0.0
        %2943 = vmatprep.subr.mxu0 0.0
        %2944 = vmatpush1.msra.mxu0 0.0
        %2945 = vmatprep.subr.mxu0 0.0
        %2946 = vmatpush1.msra.mxu0 0.0
        %2947 = vmatprep.subr.mxu0 0.0
        %2948 = vmatpush1.msra.mxu0 0.0
        %2949 = vmatprep.subr.mxu0 0.0
        %2950 = vmatpush1.msra.mxu0 0.0
        %2951 = vmatprep.subr.mxu0 0.0
        %2952 = vmatpush1.msra.mxu0 0.0
        %2953 = vmatprep.subr.mxu0 0.0
        %2954 = vmatpush1.msra.mxu0 0.0
        %2955 = vmatprep.subr.mxu0 0.0
        %2956 = vmatpush1.msra.mxu0 0.0
        %2957 = vmatprep.subr.mxu0 0.0
        %2958 = vmatpush1.msra.mxu0 0.0
        %2959 = vmatprep.subr.mxu0 0.0
        %v2960 = vand.u32 %v2335, 4294901760
        %v2961 = vsub.f32 %v2335, %v2960
        %v2962 = vand.u32 %v2961, 4294901760
        %v2963 = vsub.f32 %v2961, %v2962
        %v2964 = vand.u32 %v2963, 4294901760
        %2965 = vmatpush1.msra.mxu0 %v2964
        %2966 = vmatprep.subr.mxu0 0.0
        %v2967 = vand.u32 %v2334, 4294901760
        %v2968 = vsub.f32 %v2334, %v2967
        %v2969 = vand.u32 %v2968, 4294901760
        %v2970 = vsub.f32 %v2968, %v2969
        %v2971 = vand.u32 %v2970, 4294901760
        %2972 = vmatpush1.msra.mxu0 %v2971
        %2973 = vmatprep.subr.mxu0 0.0
        %2974 = vmatpush2.msra.mxu0 0.0
        %2975 = vmatprep.subr.mxu0 0.0
        %2976 = vmatpush2.msra.mxu0 0.0
        %2977 = vmatprep.subr.mxu0 0.0
        %2978 = vmatpush2.msra.mxu0 0.0
        %2979 = vmatprep.subr.mxu0 0.0
        %2980 = vmatpush2.msra.mxu0 0.0
        %2981 = vmatprep.subr.mxu0 0.0
        %2982 = vmatpush2.msra.mxu0 0.0
        %2983 = vmatprep.subr.mxu0 0.0
        %2984 = vmatpush2.msra.mxu0 0.0
        %2985 = vmatprep.subr.mxu0 0.0
        %2986 = vmatpush2.msra.mxu0 0.0
        %2987 = vmatprep.subr.mxu0 0.0
        %2988 = vmatpush2.msra.mxu0 0.0
        %2989 = vmatprep.subr.mxu0 0.0
        %2990 = vmatpush2.msra.mxu0 0.0
        %2991 = vmatprep.subr.mxu0 0.0
        %2992 = vmatpush2.msra.mxu0 0.0
        %2993 = vmatprep.subr.mxu0 0.0
        %2994 = vmatpush2.msra.mxu0 0.0
        %2995 = vmatprep.subr.mxu0 0.0
        %2996 = vmatpush2.msra.mxu0 0.0
        %2997 = vmatprep.subr.mxu0 0.0
        %2998 = vmatpush2.msra.mxu0 0.0
        %2999 = vmatprep.subr.mxu0 0.0
        %3000 = vmatpush2.msra.mxu0 0.0
        %3001 = vmatprep.subr.mxu0 0.0
        %3002 = vmatpush2.msra.mxu0 0.0
        %3003 = vmatprep.subr.mxu0 0.0
        %3004 = vmatpush2.msra.mxu0 0.0
        %3005 = vmatprep.mubr.f32.mxu0 0.0
        %v3006 = vand.u32 %v801, 4294901760
        %3007 = vmatmul.mubr.f32.gmra.mxu0 %v3006
        %v3008 = vpop.f32.mrf.mxu0
        %v3009 = vadd.f32 %v2918, %v3008
        %v3010 = vpop.f32.mrf.mxu0
        %3011 = vmatprep.mubr.f32.mxu0 0.0
        %v3012 = vand.u32 %v804, 4294901760
        %3013 = vmatmul.mubr.f32.gmra.mxu0 %v3012
        %v3014 = vpop.f32.mrf.mxu0
        %v3015 = vadd.f32 %v2928, %v3014
        %v3016 = vpop.f32.mrf.mxu0
        %3017 = vdwg.mxu0
        %3018 = vmatprep.subr.mxu0 0.0
        %3019 = vmatpush1.msra.mxu0 0.0
        %3020 = vmatprep.subr.mxu0 0.0
        %3021 = vmatpush1.msra.mxu0 0.0
        %3022 = vmatprep.subr.mxu0 0.0
        %3023 = vmatpush1.msra.mxu0 0.0
        %3024 = vmatprep.subr.mxu0 0.0
        %3025 = vmatpush1.msra.mxu0 0.0
        %3026 = vmatprep.subr.mxu0 0.0
        %3027 = vmatpush1.msra.mxu0 0.0
        %3028 = vmatprep.subr.mxu0 0.0
        %3029 = vmatpush1.msra.mxu0 0.0
        %3030 = vmatprep.subr.mxu0 0.0
        %3031 = vmatpush1.msra.mxu0 0.0
        %3032 = vmatprep.subr.mxu0 0.0
        %3033 = vmatpush1.msra.mxu0 0.0
        %3034 = vmatprep.subr.mxu0 0.0
        %3035 = vmatpush1.msra.mxu0 0.0
        %3036 = vmatprep.subr.mxu0 0.0
        %3037 = vmatpush1.msra.mxu0 0.0
        %3038 = vmatprep.subr.mxu0 0.0
        %3039 = vmatpush1.msra.mxu0 0.0
        %3040 = vmatprep.subr.mxu0 0.0
        %3041 = vmatpush1.msra.mxu0 0.0
        %3042 = vmatprep.subr.mxu0 0.0
        %3043 = vmatpush1.msra.mxu0 0.0
        %3044 = vmatprep.subr.mxu0 0.0
        %3045 = vmatpush1.msra.mxu0 0.0
        %3046 = vmatprep.subr.mxu0 0.0
        %v3047 = vand.u32 %v2335, 4294901760
        %v3048 = vsub.f32 %v2335, %v3047
        %3049 = vmatpush1.msra.mxu0 %v3048
        %3050 = vmatprep.subr.mxu0 0.0
        %v3051 = vand.u32 %v2334, 4294901760
        %v3052 = vsub.f32 %v2334, %v3051
        %3053 = vmatpush1.msra.mxu0 %v3052
        %3054 = vmatprep.subr.mxu0 0.0
        %3055 = vmatpush2.msra.mxu0 0.0
        %3056 = vmatprep.subr.mxu0 0.0
        %3057 = vmatpush2.msra.mxu0 0.0
        %3058 = vmatprep.subr.mxu0 0.0
        %3059 = vmatpush2.msra.mxu0 0.0
        %3060 = vmatprep.subr.mxu0 0.0
        %3061 = vmatpush2.msra.mxu0 0.0
        %3062 = vmatprep.subr.mxu0 0.0
        %3063 = vmatpush2.msra.mxu0 0.0
        %3064 = vmatprep.subr.mxu0 0.0
        %3065 = vmatpush2.msra.mxu0 0.0
        %3066 = vmatprep.subr.mxu0 0.0
        %3067 = vmatpush2.msra.mxu0 0.0
        %3068 = vmatprep.subr.mxu0 0.0
        %3069 = vmatpush2.msra.mxu0 0.0
        %3070 = vmatprep.subr.mxu0 0.0
        %3071 = vmatpush2.msra.mxu0 0.0
        %3072 = vmatprep.subr.mxu0 0.0
        %3073 = vmatpush2.msra.mxu0 0.0
        %3074 = vmatprep.subr.mxu0 0.0
        %3075 = vmatpush2.msra.mxu0 0.0
        %3076 = vmatprep.subr.mxu0 0.0
        %3077 = vmatpush2.msra.mxu0 0.0
        %3078 = vmatprep.subr.mxu0 0.0
        %3079 = vmatpush2.msra.mxu0 0.0
        %3080 = vmatprep.subr.mxu0 0.0
        %3081 = vmatpush2.msra.mxu0 0.0
        %3082 = vmatprep.subr.mxu0 0.0
        %3083 = vmatpush2.msra.mxu0 0.0
        %3084 = vmatprep.subr.mxu0 0.0
        %3085 = vmatpush2.msra.mxu0 0.0
        %3086 = vmatprep.mubr.f32.mxu0 0.0
        %v3087 = vand.u32 %v801, 4294901760
        %v3088 = vsub.f32 %v801, %v3087
        %3089 = vmatmul.mubr.f32.gmra.mxu0 %v3088
        %v3090 = vpop.f32.mrf.mxu0
        %v3091 = vadd.f32 %v3009, %v3090
        %v3092 = vpop.f32.mrf.mxu0
        %3093 = vmatprep.mubr.f32.mxu0 0.0
        %v3094 = vand.u32 %v804, 4294901760
        %v3095 = vsub.f32 %v804, %v3094
        %3096 = vmatmul.mubr.f32.gmra.mxu0 %v3095
        %v3097 = vpop.f32.mrf.mxu0
        %v3098 = vadd.f32 %v3015, %v3097
        %v3099 = vpop.f32.mrf.mxu0
        %3100 = vdwg.mxu0
        %3101 = vmatprep.subr.mxu0 0.0
        %3102 = vmatpush1.msra.mxu0 0.0
        %3103 = vmatprep.subr.mxu0 0.0
        %3104 = vmatpush1.msra.mxu0 0.0
        %3105 = vmatprep.subr.mxu0 0.0
        %3106 = vmatpush1.msra.mxu0 0.0
        %3107 = vmatprep.subr.mxu0 0.0
        %3108 = vmatpush1.msra.mxu0 0.0
        %3109 = vmatprep.subr.mxu0 0.0
        %3110 = vmatpush1.msra.mxu0 0.0
        %3111 = vmatprep.subr.mxu0 0.0
        %3112 = vmatpush1.msra.mxu0 0.0
        %3113 = vmatprep.subr.mxu0 0.0
        %3114 = vmatpush1.msra.mxu0 0.0
        %3115 = vmatprep.subr.mxu0 0.0
        %3116 = vmatpush1.msra.mxu0 0.0
        %3117 = vmatprep.subr.mxu0 0.0
        %3118 = vmatpush1.msra.mxu0 0.0
        %3119 = vmatprep.subr.mxu0 0.0
        %3120 = vmatpush1.msra.mxu0 0.0
        %3121 = vmatprep.subr.mxu0 0.0
        %3122 = vmatpush1.msra.mxu0 0.0
        %3123 = vmatprep.subr.mxu0 0.0
        %3124 = vmatpush1.msra.mxu0 0.0
        %3125 = vmatprep.subr.mxu0 0.0
        %3126 = vmatpush1.msra.mxu0 0.0
        %3127 = vmatprep.subr.mxu0 0.0
        %3128 = vmatpush1.msra.mxu0 0.0
        %3129 = vmatprep.subr.mxu0 0.0
        %v3130 = vand.u32 %v2335, 4294901760
        %3131 = vmatpush1.msra.mxu0 %v3130
        %3132 = vmatprep.subr.mxu0 0.0
        %v3133 = vand.u32 %v2334, 4294901760
        %3134 = vmatpush1.msra.mxu0 %v3133
        %3135 = vmatprep.subr.mxu0 0.0
        %3136 = vmatpush2.msra.mxu0 0.0
        %3137 = vmatprep.subr.mxu0 0.0
        %3138 = vmatpush2.msra.mxu0 0.0
        %3139 = vmatprep.subr.mxu0 0.0
        %3140 = vmatpush2.msra.mxu0 0.0
        %3141 = vmatprep.subr.mxu0 0.0
        %3142 = vmatpush2.msra.mxu0 0.0
        %3143 = vmatprep.subr.mxu0 0.0
        %3144 = vmatpush2.msra.mxu0 0.0
        %3145 = vmatprep.subr.mxu0 0.0
        %3146 = vmatpush2.msra.mxu0 0.0
        %3147 = vmatprep.subr.mxu0 0.0
        %3148 = vmatpush2.msra.mxu0 0.0
        %3149 = vmatprep.subr.mxu0 0.0
        %3150 = vmatpush2.msra.mxu0 0.0
        %3151 = vmatprep.subr.mxu0 0.0
        %3152 = vmatpush2.msra.mxu0 0.0
        %3153 = vmatprep.subr.mxu0 0.0
        %3154 = vmatpush2.msra.mxu0 0.0
        %3155 = vmatprep.subr.mxu0 0.0
        %3156 = vmatpush2.msra.mxu0 0.0
        %3157 = vmatprep.subr.mxu0 0.0
        %3158 = vmatpush2.msra.mxu0 0.0
        %3159 = vmatprep.subr.mxu0 0.0
        %3160 = vmatpush2.msra.mxu0 0.0
        %3161 = vmatprep.subr.mxu0 0.0
        %3162 = vmatpush2.msra.mxu0 0.0
        %3163 = vmatprep.subr.mxu0 0.0
        %3164 = vmatpush2.msra.mxu0 0.0
        %3165 = vmatprep.subr.mxu0 0.0
        %3166 = vmatpush2.msra.mxu0 0.0
        %3167 = vmatprep.mubr.f32.mxu0 0.0
        %v3168 = vand.u32 %v801, 4294901760
        %v3169 = vsub.f32 %v801, %v3168
        %v3170 = vand.u32 %v3169, 4294901760
        %3171 = vmatmul.mubr.f32.gmra.mxu0 %v3170
        %v3172 = vpop.f32.mrf.mxu0
        %v3173 = vadd.f32 %v3091, %v3172
        %v3174 = vpop.f32.mrf.mxu0
        %3175 = vmatprep.mubr.f32.mxu0 0.0
        %v3176 = vand.u32 %v804, 4294901760
        %v3177 = vsub.f32 %v804, %v3176
        %v3178 = vand.u32 %v3177, 4294901760
        %3179 = vmatmul.mubr.f32.gmra.mxu0 %v3178
        %v3180 = vpop.f32.mrf.mxu0
        %v3181 = vadd.f32 %v3098, %v3180
        %v3182 = vpop.f32.mrf.mxu0
        %3183 = vdwg.mxu0
        %3184 = vmatprep.subr.mxu0 0.0
        %3185 = vmatpush1.msra.mxu0 0.0
        %3186 = vmatprep.subr.mxu0 0.0
        %3187 = vmatpush1.msra.mxu0 0.0
        %3188 = vmatprep.subr.mxu0 0.0
        %3189 = vmatpush1.msra.mxu0 0.0
        %3190 = vmatprep.subr.mxu0 0.0
        %3191 = vmatpush1.msra.mxu0 0.0
        %3192 = vmatprep.subr.mxu0 0.0
        %3193 = vmatpush1.msra.mxu0 0.0
        %3194 = vmatprep.subr.mxu0 0.0
        %3195 = vmatpush1.msra.mxu0 0.0
        %3196 = vmatprep.subr.mxu0 0.0
        %3197 = vmatpush1.msra.mxu0 0.0
        %3198 = vmatprep.subr.mxu0 0.0
        %3199 = vmatpush1.msra.mxu0 0.0
        %3200 = vmatprep.subr.mxu0 0.0
        %3201 = vmatpush1.msra.mxu0 0.0
        %3202 = vmatprep.subr.mxu0 0.0
        %3203 = vmatpush1.msra.mxu0 0.0
        %3204 = vmatprep.subr.mxu0 0.0
        %3205 = vmatpush1.msra.mxu0 0.0
        %3206 = vmatprep.subr.mxu0 0.0
        %3207 = vmatpush1.msra.mxu0 0.0
        %3208 = vmatprep.subr.mxu0 0.0
        %3209 = vmatpush1.msra.mxu0 0.0
        %3210 = vmatprep.subr.mxu0 0.0
        %3211 = vmatpush1.msra.mxu0 0.0
        %3212 = vmatprep.subr.mxu0 0.0
        %v3213 = vand.u32 %v2335, 4294901760
        %v3214 = vsub.f32 %v2335, %v3213
        %v3215 = vand.u32 %v3214, 4294901760
        %3216 = vmatpush1.msra.mxu0 %v3215
        %3217 = vmatprep.subr.mxu0 0.0
        %v3218 = vand.u32 %v2334, 4294901760
        %v3219 = vsub.f32 %v2334, %v3218
        %v3220 = vand.u32 %v3219, 4294901760
        %3221 = vmatpush1.msra.mxu0 %v3220
        %3222 = vmatprep.subr.mxu0 0.0
        %3223 = vmatpush2.msra.mxu0 0.0
        %3224 = vmatprep.subr.mxu0 0.0
        %3225 = vmatpush2.msra.mxu0 0.0
        %3226 = vmatprep.subr.mxu0 0.0
        %3227 = vmatpush2.msra.mxu0 0.0
        %3228 = vmatprep.subr.mxu0 0.0
        %3229 = vmatpush2.msra.mxu0 0.0
        %3230 = vmatprep.subr.mxu0 0.0
        %3231 = vmatpush2.msra.mxu0 0.0
        %3232 = vmatprep.subr.mxu0 0.0
        %3233 = vmatpush2.msra.mxu0 0.0
        %3234 = vmatprep.subr.mxu0 0.0
        %3235 = vmatpush2.msra.mxu0 0.0
        %3236 = vmatprep.subr.mxu0 0.0
        %3237 = vmatpush2.msra.mxu0 0.0
        %3238 = vmatprep.subr.mxu0 0.0
        %3239 = vmatpush2.msra.mxu0 0.0
        %3240 = vmatprep.subr.mxu0 0.0
        %3241 = vmatpush2.msra.mxu0 0.0
        %3242 = vmatprep.subr.mxu0 0.0
        %3243 = vmatpush2.msra.mxu0 0.0
        %3244 = vmatprep.subr.mxu0 0.0
        %3245 = vmatpush2.msra.mxu0 0.0
        %3246 = vmatprep.subr.mxu0 0.0
        %3247 = vmatpush2.msra.mxu0 0.0
        %3248 = vmatprep.subr.mxu0 0.0
        %3249 = vmatpush2.msra.mxu0 0.0
        %3250 = vmatprep.subr.mxu0 0.0
        %3251 = vmatpush2.msra.mxu0 0.0
        %3252 = vmatprep.subr.mxu0 0.0
        %3253 = vmatpush2.msra.mxu0 0.0
        %3254 = vmatprep.mubr.f32.mxu0 0.0
        %v3255 = vand.u32 %v801, 4294901760
        %3256 = vmatmul.mubr.f32.gmra.mxu0 %v3255
        %v3257 = vpop.f32.mrf.mxu0
        %v3258 = vadd.f32 %v3173, %v3257
        %v3259 = vpop.f32.mrf.mxu0
        %3260 = vmatprep.mubr.f32.mxu0 0.0
        %v3261 = vand.u32 %v804, 4294901760
        %3262 = vmatmul.mubr.f32.gmra.mxu0 %v3261
        %v3263 = vpop.f32.mrf.mxu0
        %v3264 = vadd.f32 %v3181, %v3263
        %v3265 = vpop.f32.mrf.mxu0
        %3266 = vdwg.mxu0
        %3267 = vmatprep.subr.mxu0 0.0
        %3268 = vmatpush1.msra.mxu0 0.0
        %3269 = vmatprep.subr.mxu0 0.0
        %3270 = vmatpush1.msra.mxu0 0.0
        %3271 = vmatprep.subr.mxu0 0.0
        %3272 = vmatpush1.msra.mxu0 0.0
        %3273 = vmatprep.subr.mxu0 0.0
        %3274 = vmatpush1.msra.mxu0 0.0
        %3275 = vmatprep.subr.mxu0 0.0
        %3276 = vmatpush1.msra.mxu0 0.0
        %3277 = vmatprep.subr.mxu0 0.0
        %3278 = vmatpush1.msra.mxu0 0.0
        %3279 = vmatprep.subr.mxu0 0.0
        %3280 = vmatpush1.msra.mxu0 0.0
        %3281 = vmatprep.subr.mxu0 0.0
        %3282 = vmatpush1.msra.mxu0 0.0
        %3283 = vmatprep.subr.mxu0 0.0
        %3284 = vmatpush1.msra.mxu0 0.0
        %3285 = vmatprep.subr.mxu0 0.0
        %3286 = vmatpush1.msra.mxu0 0.0
        %3287 = vmatprep.subr.mxu0 0.0
        %3288 = vmatpush1.msra.mxu0 0.0
        %3289 = vmatprep.subr.mxu0 0.0
        %3290 = vmatpush1.msra.mxu0 0.0
        %3291 = vmatprep.subr.mxu0 0.0
        %3292 = vmatpush1.msra.mxu0 0.0
        %3293 = vmatprep.subr.mxu0 0.0
        %3294 = vmatpush1.msra.mxu0 0.0
        %3295 = vmatprep.subr.mxu0 0.0
        %v3296 = vand.u32 %v2335, 4294901760
        %3297 = vmatpush1.msra.mxu0 %v3296
        %3298 = vmatprep.subr.mxu0 0.0
        %v3299 = vand.u32 %v2334, 4294901760
        %3300 = vmatpush1.msra.mxu0 %v3299
        %3301 = vmatprep.subr.mxu0 0.0
        %3302 = vmatpush2.msra.mxu0 0.0
        %3303 = vmatprep.subr.mxu0 0.0
        %3304 = vmatpush2.msra.mxu0 0.0
        %3305 = vmatprep.subr.mxu0 0.0
        %3306 = vmatpush2.msra.mxu0 0.0
        %3307 = vmatprep.subr.mxu0 0.0
        %3308 = vmatpush2.msra.mxu0 0.0
        %3309 = vmatprep.subr.mxu0 0.0
        %3310 = vmatpush2.msra.mxu0 0.0
        %3311 = vmatprep.subr.mxu0 0.0
        %3312 = vmatpush2.msra.mxu0 0.0
        %3313 = vmatprep.subr.mxu0 0.0
        %3314 = vmatpush2.msra.mxu0 0.0
        %3315 = vmatprep.subr.mxu0 0.0
        %3316 = vmatpush2.msra.mxu0 0.0
        %3317 = vmatprep.subr.mxu0 0.0
        %3318 = vmatpush2.msra.mxu0 0.0
        %3319 = vmatprep.subr.mxu0 0.0
        %3320 = vmatpush2.msra.mxu0 0.0
        %3321 = vmatprep.subr.mxu0 0.0
        %3322 = vmatpush2.msra.mxu0 0.0
        %3323 = vmatprep.subr.mxu0 0.0
        %3324 = vmatpush2.msra.mxu0 0.0
        %3325 = vmatprep.subr.mxu0 0.0
        %3326 = vmatpush2.msra.mxu0 0.0
        %3327 = vmatprep.subr.mxu0 0.0
        %3328 = vmatpush2.msra.mxu0 0.0
        %3329 = vmatprep.subr.mxu0 0.0
        %3330 = vmatpush2.msra.mxu0 0.0
        %3331 = vmatprep.subr.mxu0 0.0
        %3332 = vmatpush2.msra.mxu0 0.0
        %3333 = vmatprep.mubr.f32.mxu0 0.0
        %v3334 = vand.u32 %v801, 4294901760
        %3335 = vmatmul.mubr.f32.gmra.mxu0 %v3334
        %v3336 = vpop.f32.mrf.mxu0
        %v3337 = vadd.f32 %v3258, %v3336
        %v3338 = vpop.f32.mrf.mxu0
        %3339 = vmatprep.mubr.f32.mxu0 0.0
        %v3340 = vand.u32 %v804, 4294901760
        %3341 = vmatmul.mubr.f32.gmra.mxu0 %v3340
        %v3342 = vpop.f32.mrf.mxu0
        %v3343 = vadd.f32 %v3264, %v3342
        %v3344 = vpop.f32.mrf.mxu0
        %3345 = vdwg.mxu0
        %3346 = vmatprep.subr.mxu0 0.0
        %3347 = vmatpush1.msra.mxu0 0.0
        %3348 = vmatprep.subr.mxu0 0.0
        %3349 = vmatpush1.msra.mxu0 0.0
        %3350 = vmatprep.subr.mxu0 0.0
        %3351 = vmatpush1.msra.mxu0 0.0
        %3352 = vmatprep.subr.mxu0 0.0
        %3353 = vmatpush1.msra.mxu0 0.0
        %3354 = vmatprep.subr.mxu0 0.0
        %3355 = vmatpush1.msra.mxu0 0.0
        %3356 = vmatprep.subr.mxu0 0.0
        %3357 = vmatpush1.msra.mxu0 0.0
        %3358 = vmatprep.subr.mxu0 0.0
        %3359 = vmatpush1.msra.mxu0 0.0
        %3360 = vmatprep.subr.mxu0 0.0
        %3361 = vmatpush1.msra.mxu0 0.0
        %3362 = vmatprep.subr.mxu0 0.0
        %3363 = vmatpush1.msra.mxu0 0.0
        %3364 = vmatprep.subr.mxu0 0.0
        %3365 = vmatpush1.msra.mxu0 0.0
        %3366 = vmatprep.subr.mxu0 0.0
        %3367 = vmatpush1.msra.mxu0 0.0
        %3368 = vmatprep.subr.mxu0 0.0
        %3369 = vmatpush1.msra.mxu0 0.0
        %3370 = vmatprep.subr.mxu0 0.0
        %3371 = vmatpush1.msra.mxu0 0.0
        %3372 = vmatprep.subr.mxu0 0.0
        %3373 = vmatpush1.msra.mxu0 0.0
        %3374 = vmatprep.subr.mxu0 0.0
        %v3375 = vand.u32 %v3343, 4294901760
        %3376 = vmatpush1.msra.mxu0 %v3375
        %3377 = vmatprep.subr.mxu0 0.0
        %v3378 = vand.u32 %v3337, 4294901760
        %3379 = vmatpush1.msra.mxu0 %v3378
        %3380 = vmatprep.subr.mxu0 0.0
        %3381 = vmatpush2.msra.mxu0 0.0
        %3382 = vmatprep.subr.mxu0 0.0
        %3383 = vmatpush2.msra.mxu0 0.0
        %3384 = vmatprep.subr.mxu0 0.0
        %3385 = vmatpush2.msra.mxu0 0.0
        %3386 = vmatprep.subr.mxu0 0.0
        %3387 = vmatpush2.msra.mxu0 0.0
        %3388 = vmatprep.subr.mxu0 0.0
        %3389 = vmatpush2.msra.mxu0 0.0
        %3390 = vmatprep.subr.mxu0 0.0
        %3391 = vmatpush2.msra.mxu0 0.0
        %3392 = vmatprep.subr.mxu0 0.0
        %3393 = vmatpush2.msra.mxu0 0.0
        %3394 = vmatprep.subr.mxu0 0.0
        %3395 = vmatpush2.msra.mxu0 0.0
        %3396 = vmatprep.subr.mxu0 0.0
        %3397 = vmatpush2.msra.mxu0 0.0
        %3398 = vmatprep.subr.mxu0 0.0
        %3399 = vmatpush2.msra.mxu0 0.0
        %3400 = vmatprep.subr.mxu0 0.0
        %3401 = vmatpush2.msra.mxu0 0.0
        %3402 = vmatprep.subr.mxu0 0.0
        %3403 = vmatpush2.msra.mxu0 0.0
        %3404 = vmatprep.subr.mxu0 0.0
        %3405 = vmatpush2.msra.mxu0 0.0
        %3406 = vmatprep.subr.mxu0 0.0
        %3407 = vmatpush2.msra.mxu0 0.0
        %3408 = vmatprep.subr.mxu0 0.0
        %3409 = vmatpush2.msra.mxu0 0.0
        %3410 = vmatprep.subr.mxu0 0.0
        %3411 = vmatpush2.msra.mxu0 0.0
        %3412 = vmatprep.mubr.f32.mxu0 0.0
        %v3413 = vand.u32 %v1311, 4294901760
        %v3414 = vsub.f32 %v1311, %v3413
        %v3415 = vand.u32 %v3414, 4294901760
        %v3416 = vsub.f32 %v3414, %v3415
        %v3417 = vand.u32 %v3416, 4294901760
        %3418 = vmatmul.mubr.f32.gmra.mxu0 %v3417
        %v3419 = vpop.f32.mrf.mxu0
        %v3420 = vadd.f32 0.0, %v3419
        %v3421 = vpop.f32.mrf.mxu0
        %3422 = vmatprep.mubr.f32.mxu0 0.0
        %v3423 = vand.u32 %v1314, 4294901760
        %v3424 = vsub.f32 %v1314, %v3423
        %v3425 = vand.u32 %v3424, 4294901760
        %v3426 = vsub.f32 %v3424, %v3425
        %v3427 = vand.u32 %v3426, 4294901760
        %3428 = vmatmul.mubr.f32.gmra.mxu0 %v3427
        %v3429 = vpop.f32.mrf.mxu0
        %v3430 = vadd.f32 0.0, %v3429
        %v3431 = vpop.f32.mrf.mxu0
        %3432 = vdwg.mxu0
        %3433 = vmatprep.subr.mxu0 0.0
        %3434 = vmatpush1.msra.mxu0 0.0
        %3435 = vmatprep.subr.mxu0 0.0
        %3436 = vmatpush1.msra.mxu0 0.0
        %3437 = vmatprep.subr.mxu0 0.0
        %3438 = vmatpush1.msra.mxu0 0.0
        %3439 = vmatprep.subr.mxu0 0.0
        %3440 = vmatpush1.msra.mxu0 0.0
        %3441 = vmatprep.subr.mxu0 0.0
        %3442 = vmatpush1.msra.mxu0 0.0
        %3443 = vmatprep.subr.mxu0 0.0
        %3444 = vmatpush1.msra.mxu0 0.0
        %3445 = vmatprep.subr.mxu0 0.0
        %3446 = vmatpush1.msra.mxu0 0.0
        %3447 = vmatprep.subr.mxu0 0.0
        %3448 = vmatpush1.msra.mxu0 0.0
        %3449 = vmatprep.subr.mxu0 0.0
        %3450 = vmatpush1.msra.mxu0 0.0
        %3451 = vmatprep.subr.mxu0 0.0
        %3452 = vmatpush1.msra.mxu0 0.0
        %3453 = vmatprep.subr.mxu0 0.0
        %3454 = vmatpush1.msra.mxu0 0.0
        %3455 = vmatprep.subr.mxu0 0.0
        %3456 = vmatpush1.msra.mxu0 0.0
        %3457 = vmatprep.subr.mxu0 0.0
        %3458 = vmatpush1.msra.mxu0 0.0
        %3459 = vmatprep.subr.mxu0 0.0
        %3460 = vmatpush1.msra.mxu0 0.0
        %3461 = vmatprep.subr.mxu0 0.0
        %v3462 = vand.u32 %v3343, 4294901760
        %v3463 = vsub.f32 %v3343, %v3462
        %v3464 = vand.u32 %v3463, 4294901760
        %v3465 = vsub.f32 %v3463, %v3464
        %v3466 = vand.u32 %v3465, 4294901760
        %3467 = vmatpush1.msra.mxu0 %v3466
        %3468 = vmatprep.subr.mxu0 0.0
        %v3469 = vand.u32 %v3337, 4294901760
        %v3470 = vsub.f32 %v3337, %v3469
        %v3471 = vand.u32 %v3470, 4294901760
        %v3472 = vsub.f32 %v3470, %v3471
        %v3473 = vand.u32 %v3472, 4294901760
        %3474 = vmatpush1.msra.mxu0 %v3473
        %3475 = vmatprep.subr.mxu0 0.0
        %3476 = vmatpush2.msra.mxu0 0.0
        %3477 = vmatprep.subr.mxu0 0.0
        %3478 = vmatpush2.msra.mxu0 0.0
        %3479 = vmatprep.subr.mxu0 0.0
        %3480 = vmatpush2.msra.mxu0 0.0
        %3481 = vmatprep.subr.mxu0 0.0
        %3482 = vmatpush2.msra.mxu0 0.0
        %3483 = vmatprep.subr.mxu0 0.0
        %3484 = vmatpush2.msra.mxu0 0.0
        %3485 = vmatprep.subr.mxu0 0.0
        %3486 = vmatpush2.msra.mxu0 0.0
        %3487 = vmatprep.subr.mxu0 0.0
        %3488 = vmatpush2.msra.mxu0 0.0
        %3489 = vmatprep.subr.mxu0 0.0
        %3490 = vmatpush2.msra.mxu0 0.0
        %3491 = vmatprep.subr.mxu0 0.0
        %3492 = vmatpush2.msra.mxu0 0.0
        %3493 = vmatprep.subr.mxu0 0.0
        %3494 = vmatpush2.msra.mxu0 0.0
        %3495 = vmatprep.subr.mxu0 0.0
        %3496 = vmatpush2.msra.mxu0 0.0
        %3497 = vmatprep.subr.mxu0 0.0
        %3498 = vmatpush2.msra.mxu0 0.0
        %3499 = vmatprep.subr.mxu0 0.0
        %3500 = vmatpush2.msra.mxu0 0.0
        %3501 = vmatprep.subr.mxu0 0.0
        %3502 = vmatpush2.msra.mxu0 0.0
        %3503 = vmatprep.subr.mxu0 0.0
        %3504 = vmatpush2.msra.mxu0 0.0
        %3505 = vmatprep.subr.mxu0 0.0
        %3506 = vmatpush2.msra.mxu0 0.0
        %3507 = vmatprep.mubr.f32.mxu0 0.0
        %v3508 = vand.u32 %v1311, 4294901760
        %3509 = vmatmul.mubr.f32.gmra.mxu0 %v3508
        %v3510 = vpop.f32.mrf.mxu0
        %v3511 = vadd.f32 %v3420, %v3510
        %v3512 = vpop.f32.mrf.mxu0
        %3513 = vmatprep.mubr.f32.mxu0 0.0
        %v3514 = vand.u32 %v1314, 4294901760
        %3515 = vmatmul.mubr.f32.gmra.mxu0 %v3514
        %v3516 = vpop.f32.mrf.mxu0
        %v3517 = vadd.f32 %v3430, %v3516
        %v3518 = vpop.f32.mrf.mxu0
        %3519 = vdwg.mxu0
        %3520 = vmatprep.subr.mxu0 0.0
        %3521 = vmatpush1.msra.mxu0 0.0
        %3522 = vmatprep.subr.mxu0 0.0
        %3523 = vmatpush1.msra.mxu0 0.0
        %3524 = vmatprep.subr.mxu0 0.0
        %3525 = vmatpush1.msra.mxu0 0.0
        %3526 = vmatprep.subr.mxu0 0.0
        %3527 = vmatpush1.msra.mxu0 0.0
        %3528 = vmatprep.subr.mxu0 0.0
        %3529 = vmatpush1.msra.mxu0 0.0
        %3530 = vmatprep.subr.mxu0 0.0
        %3531 = vmatpush1.msra.mxu0 0.0
        %3532 = vmatprep.subr.mxu0 0.0
        %3533 = vmatpush1.msra.mxu0 0.0
        %3534 = vmatprep.subr.mxu0 0.0
        %3535 = vmatpush1.msra.mxu0 0.0
        %3536 = vmatprep.subr.mxu0 0.0
        %3537 = vmatpush1.msra.mxu0 0.0
        %3538 = vmatprep.subr.mxu0 0.0
        %3539 = vmatpush1.msra.mxu0 0.0
        %3540 = vmatprep.subr.mxu0 0.0
        %3541 = vmatpush1.msra.mxu0 0.0
        %3542 = vmatprep.subr.mxu0 0.0
        %3543 = vmatpush1.msra.mxu0 0.0
        %3544 = vmatprep.subr.mxu0 0.0
        %3545 = vmatpush1.msra.mxu0 0.0
        %3546 = vmatprep.subr.mxu0 0.0
        %3547 = vmatpush1.msra.mxu0 0.0
        %3548 = vmatprep.subr.mxu0 0.0
        %v3549 = vand.u32 %v3343, 4294901760
        %v3550 = vsub.f32 %v3343, %v3549
        %3551 = vmatpush1.msra.mxu0 %v3550
        %3552 = vmatprep.subr.mxu0 0.0
        %v3553 = vand.u32 %v3337, 4294901760
        %v3554 = vsub.f32 %v3337, %v3553
        %3555 = vmatpush1.msra.mxu0 %v3554
        %3556 = vmatprep.subr.mxu0 0.0
        %3557 = vmatpush2.msra.mxu0 0.0
        %3558 = vmatprep.subr.mxu0 0.0
        %3559 = vmatpush2.msra.mxu0 0.0
        %3560 = vmatprep.subr.mxu0 0.0
        %3561 = vmatpush2.msra.mxu0 0.0
        %3562 = vmatprep.subr.mxu0 0.0
        %3563 = vmatpush2.msra.mxu0 0.0
        %3564 = vmatprep.subr.mxu0 0.0
        %3565 = vmatpush2.msra.mxu0 0.0
        %3566 = vmatprep.subr.mxu0 0.0
        %3567 = vmatpush2.msra.mxu0 0.0
        %3568 = vmatprep.subr.mxu0 0.0
        %3569 = vmatpush2.msra.mxu0 0.0
        %3570 = vmatprep.subr.mxu0 0.0
        %3571 = vmatpush2.msra.mxu0 0.0
        %3572 = vmatprep.subr.mxu0 0.0
        %3573 = vmatpush2.msra.mxu0 0.0
        %3574 = vmatprep.subr.mxu0 0.0
        %3575 = vmatpush2.msra.mxu0 0.0
        %3576 = vmatprep.subr.mxu0 0.0
        %3577 = vmatpush2.msra.mxu0 0.0
        %3578 = vmatprep.subr.mxu0 0.0
        %3579 = vmatpush2.msra.mxu0 0.0
        %3580 = vmatprep.subr.mxu0 0.0
        %3581 = vmatpush2.msra.mxu0 0.0
        %3582 = vmatprep.subr.mxu0 0.0
        %3583 = vmatpush2.msra.mxu0 0.0
        %3584 = vmatprep.subr.mxu0 0.0
        %3585 = vmatpush2.msra.mxu0 0.0
        %3586 = vmatprep.subr.mxu0 0.0
        %3587 = vmatpush2.msra.mxu0 0.0
        %3588 = vmatprep.mubr.f32.mxu0 0.0
        %v3589 = vand.u32 %v1311, 4294901760
        %v3590 = vsub.f32 %v1311, %v3589
        %3591 = vmatmul.mubr.f32.gmra.mxu0 %v3590
        %v3592 = vpop.f32.mrf.mxu0
        %v3593 = vadd.f32 %v3511, %v3592
        %v3594 = vpop.f32.mrf.mxu0
        %3595 = vmatprep.mubr.f32.mxu0 0.0
        %v3596 = vand.u32 %v1314, 4294901760
        %v3597 = vsub.f32 %v1314, %v3596
        %3598 = vmatmul.mubr.f32.gmra.mxu0 %v3597
        %v3599 = vpop.f32.mrf.mxu0
        %v3600 = vadd.f32 %v3517, %v3599
        %v3601 = vpop.f32.mrf.mxu0
        %3602 = vdwg.mxu0
        %3603 = vmatprep.subr.mxu0 0.0
        %3604 = vmatpush1.msra.mxu0 0.0
        %3605 = vmatprep.subr.mxu0 0.0
        %3606 = vmatpush1.msra.mxu0 0.0
        %3607 = vmatprep.subr.mxu0 0.0
        %3608 = vmatpush1.msra.mxu0 0.0
        %3609 = vmatprep.subr.mxu0 0.0
        %3610 = vmatpush1.msra.mxu0 0.0
        %3611 = vmatprep.subr.mxu0 0.0
        %3612 = vmatpush1.msra.mxu0 0.0
        %3613 = vmatprep.subr.mxu0 0.0
        %3614 = vmatpush1.msra.mxu0 0.0
        %3615 = vmatprep.subr.mxu0 0.0
        %3616 = vmatpush1.msra.mxu0 0.0
        %3617 = vmatprep.subr.mxu0 0.0
        %3618 = vmatpush1.msra.mxu0 0.0
        %3619 = vmatprep.subr.mxu0 0.0
        %3620 = vmatpush1.msra.mxu0 0.0
        %3621 = vmatprep.subr.mxu0 0.0
        %3622 = vmatpush1.msra.mxu0 0.0
        %3623 = vmatprep.subr.mxu0 0.0
        %3624 = vmatpush1.msra.mxu0 0.0
        %3625 = vmatprep.subr.mxu0 0.0
        %3626 = vmatpush1.msra.mxu0 0.0
        %3627 = vmatprep.subr.mxu0 0.0
        %3628 = vmatpush1.msra.mxu0 0.0
        %3629 = vmatprep.subr.mxu0 0.0
        %3630 = vmatpush1.msra.mxu0 0.0
        %3631 = vmatprep.subr.mxu0 0.0
        %v3632 = vand.u32 %v3343, 4294901760
        %3633 = vmatpush1.msra.mxu0 %v3632
        %3634 = vmatprep.subr.mxu0 0.0
        %v3635 = vand.u32 %v3337, 4294901760
        %3636 = vmatpush1.msra.mxu0 %v3635
        %3637 = vmatprep.subr.mxu0 0.0
        %3638 = vmatpush2.msra.mxu0 0.0
        %3639 = vmatprep.subr.mxu0 0.0
        %3640 = vmatpush2.msra.mxu0 0.0
        %3641 = vmatprep.subr.mxu0 0.0
        %3642 = vmatpush2.msra.mxu0 0.0
        %3643 = vmatprep.subr.mxu0 0.0
        %3644 = vmatpush2.msra.mxu0 0.0
        %3645 = vmatprep.subr.mxu0 0.0
        %3646 = vmatpush2.msra.mxu0 0.0
        %3647 = vmatprep.subr.mxu0 0.0
        %3648 = vmatpush2.msra.mxu0 0.0
        %3649 = vmatprep.subr.mxu0 0.0
        %3650 = vmatpush2.msra.mxu0 0.0
        %3651 = vmatprep.subr.mxu0 0.0
        %3652 = vmatpush2.msra.mxu0 0.0
        %3653 = vmatprep.subr.mxu0 0.0
        %3654 = vmatpush2.msra.mxu0 0.0
        %3655 = vmatprep.subr.mxu0 0.0
        %3656 = vmatpush2.msra.mxu0 0.0
        %3657 = vmatprep.subr.mxu0 0.0
        %3658 = vmatpush2.msra.mxu0 0.0
        %3659 = vmatprep.subr.mxu0 0.0
        %3660 = vmatpush2.msra.mxu0 0.0
        %3661 = vmatprep.subr.mxu0 0.0
        %3662 = vmatpush2.msra.mxu0 0.0
        %3663 = vmatprep.subr.mxu0 0.0
        %3664 = vmatpush2.msra.mxu0 0.0
        %3665 = vmatprep.subr.mxu0 0.0
        %3666 = vmatpush2.msra.mxu0 0.0
        %3667 = vmatprep.subr.mxu0 0.0
        %3668 = vmatpush2.msra.mxu0 0.0
        %3669 = vmatprep.mubr.f32.mxu0 0.0
        %v3670 = vand.u32 %v1311, 4294901760
        %v3671 = vsub.f32 %v1311, %v3670
        %v3672 = vand.u32 %v3671, 4294901760
        %3673 = vmatmul.mubr.f32.gmra.mxu0 %v3672
        %v3674 = vpop.f32.mrf.mxu0
        %v3675 = vadd.f32 %v3593, %v3674
        %v3676 = vpop.f32.mrf.mxu0
        %3677 = vmatprep.mubr.f32.mxu0 0.0
        %v3678 = vand.u32 %v1314, 4294901760
        %v3679 = vsub.f32 %v1314, %v3678
        %v3680 = vand.u32 %v3679, 4294901760
        %3681 = vmatmul.mubr.f32.gmra.mxu0 %v3680
        %v3682 = vpop.f32.mrf.mxu0
        %v3683 = vadd.f32 %v3600, %v3682
        %v3684 = vpop.f32.mrf.mxu0
        %3685 = vdwg.mxu0
        %3686 = vmatprep.subr.mxu0 0.0
        %3687 = vmatpush1.msra.mxu0 0.0
        %3688 = vmatprep.subr.mxu0 0.0
        %3689 = vmatpush1.msra.mxu0 0.0
        %3690 = vmatprep.subr.mxu0 0.0
        %3691 = vmatpush1.msra.mxu0 0.0
        %3692 = vmatprep.subr.mxu0 0.0
        %3693 = vmatpush1.msra.mxu0 0.0
        %3694 = vmatprep.subr.mxu0 0.0
        %3695 = vmatpush1.msra.mxu0 0.0
        %3696 = vmatprep.subr.mxu0 0.0
        %3697 = vmatpush1.msra.mxu0 0.0
        %3698 = vmatprep.subr.mxu0 0.0
        %3699 = vmatpush1.msra.mxu0 0.0
        %3700 = vmatprep.subr.mxu0 0.0
        %3701 = vmatpush1.msra.mxu0 0.0
        %3702 = vmatprep.subr.mxu0 0.0
        %3703 = vmatpush1.msra.mxu0 0.0
        %3704 = vmatprep.subr.mxu0 0.0
        %3705 = vmatpush1.msra.mxu0 0.0
        %3706 = vmatprep.subr.mxu0 0.0
        %3707 = vmatpush1.msra.mxu0 0.0
        %3708 = vmatprep.subr.mxu0 0.0
        %3709 = vmatpush1.msra.mxu0 0.0
        %3710 = vmatprep.subr.mxu0 0.0
        %3711 = vmatpush1.msra.mxu0 0.0
        %3712 = vmatprep.subr.mxu0 0.0
        %3713 = vmatpush1.msra.mxu0 0.0
        %3714 = vmatprep.subr.mxu0 0.0
        %v3715 = vand.u32 %v3343, 4294901760
        %v3716 = vsub.f32 %v3343, %v3715
        %v3717 = vand.u32 %v3716, 4294901760
        %3718 = vmatpush1.msra.mxu0 %v3717
        %3719 = vmatprep.subr.mxu0 0.0
        %v3720 = vand.u32 %v3337, 4294901760
        %v3721 = vsub.f32 %v3337, %v3720
        %v3722 = vand.u32 %v3721, 4294901760
        %3723 = vmatpush1.msra.mxu0 %v3722
        %3724 = vmatprep.subr.mxu0 0.0
        %3725 = vmatpush2.msra.mxu0 0.0
        %3726 = vmatprep.subr.mxu0 0.0
        %3727 = vmatpush2.msra.mxu0 0.0
        %3728 = vmatprep.subr.mxu0 0.0
        %3729 = vmatpush2.msra.mxu0 0.0
        %3730 = vmatprep.subr.mxu0 0.0
        %3731 = vmatpush2.msra.mxu0 0.0
        %3732 = vmatprep.subr.mxu0 0.0
        %3733 = vmatpush2.msra.mxu0 0.0
        %3734 = vmatprep.subr.mxu0 0.0
        %3735 = vmatpush2.msra.mxu0 0.0
        %3736 = vmatprep.subr.mxu0 0.0
        %3737 = vmatpush2.msra.mxu0 0.0
        %3738 = vmatprep.subr.mxu0 0.0
        %3739 = vmatpush2.msra.mxu0 0.0
        %3740 = vmatprep.subr.mxu0 0.0
        %3741 = vmatpush2.msra.mxu0 0.0
        %3742 = vmatprep.subr.mxu0 0.0
        %3743 = vmatpush2.msra.mxu0 0.0
        %3744 = vmatprep.subr.mxu0 0.0
        %3745 = vmatpush2.msra.mxu0 0.0
        %3746 = vmatprep.subr.mxu0 0.0
        %3747 = vmatpush2.msra.mxu0 0.0
        %3748 = vmatprep.subr.mxu0 0.0
        %3749 = vmatpush2.msra.mxu0 0.0
        %3750 = vmatprep.subr.mxu0 0.0
        %3751 = vmatpush2.msra.mxu0 0.0
        %3752 = vmatprep.subr.mxu0 0.0
        %3753 = vmatpush2.msra.mxu0 0.0
        %3754 = vmatprep.subr.mxu0 0.0
        %3755 = vmatpush2.msra.mxu0 0.0
        %3756 = vmatprep.mubr.f32.mxu0 0.0
        %v3757 = vand.u32 %v1311, 4294901760
        %3758 = vmatmul.mubr.f32.gmra.mxu0 %v3757
        %v3759 = vpop.f32.mrf.mxu0
        %v3760 = vadd.f32 %v3675, %v3759
        %v3761 = vpop.f32.mrf.mxu0
        %3762 = vmatprep.mubr.f32.mxu0 0.0
        %v3763 = vand.u32 %v1314, 4294901760
        %3764 = vmatmul.mubr.f32.gmra.mxu0 %v3763
        %v3765 = vpop.f32.mrf.mxu0
        %v3766 = vadd.f32 %v3683, %v3765
        %v3767 = vpop.f32.mrf.mxu0
        %3768 = vdwg.mxu0
        %3769 = vmatprep.subr.mxu0 0.0
        %3770 = vmatpush1.msra.mxu0 0.0
        %3771 = vmatprep.subr.mxu0 0.0
        %3772 = vmatpush1.msra.mxu0 0.0
        %3773 = vmatprep.subr.mxu0 0.0
        %3774 = vmatpush1.msra.mxu0 0.0
        %3775 = vmatprep.subr.mxu0 0.0
        %3776 = vmatpush1.msra.mxu0 0.0
        %3777 = vmatprep.subr.mxu0 0.0
        %3778 = vmatpush1.msra.mxu0 0.0
        %3779 = vmatprep.subr.mxu0 0.0
        %3780 = vmatpush1.msra.mxu0 0.0
        %3781 = vmatprep.subr.mxu0 0.0
        %3782 = vmatpush1.msra.mxu0 0.0
        %3783 = vmatprep.subr.mxu0 0.0
        %3784 = vmatpush1.msra.mxu0 0.0
        %3785 = vmatprep.subr.mxu0 0.0
        %3786 = vmatpush1.msra.mxu0 0.0
        %3787 = vmatprep.subr.mxu0 0.0
        %3788 = vmatpush1.msra.mxu0 0.0
        %3789 = vmatprep.subr.mxu0 0.0
        %3790 = vmatpush1.msra.mxu0 0.0
        %3791 = vmatprep.subr.mxu0 0.0
        %3792 = vmatpush1.msra.mxu0 0.0
        %3793 = vmatprep.subr.mxu0 0.0
        %3794 = vmatpush1.msra.mxu0 0.0
        %3795 = vmatprep.subr.mxu0 0.0
        %3796 = vmatpush1.msra.mxu0 0.0
        %3797 = vmatprep.subr.mxu0 0.0
        %v3798 = vand.u32 %v3343, 4294901760
        %3799 = vmatpush1.msra.mxu0 %v3798
        %3800 = vmatprep.subr.mxu0 0.0
        %v3801 = vand.u32 %v3337, 4294901760
        %3802 = vmatpush1.msra.mxu0 %v3801
        %3803 = vmatprep.subr.mxu0 0.0
        %3804 = vmatpush2.msra.mxu0 0.0
        %3805 = vmatprep.subr.mxu0 0.0
        %3806 = vmatpush2.msra.mxu0 0.0
        %3807 = vmatprep.subr.mxu0 0.0
        %3808 = vmatpush2.msra.mxu0 0.0
        %3809 = vmatprep.subr.mxu0 0.0
        %3810 = vmatpush2.msra.mxu0 0.0
        %3811 = vmatprep.subr.mxu0 0.0
        %3812 = vmatpush2.msra.mxu0 0.0
        %3813 = vmatprep.subr.mxu0 0.0
        %3814 = vmatpush2.msra.mxu0 0.0
        %3815 = vmatprep.subr.mxu0 0.0
        %3816 = vmatpush2.msra.mxu0 0.0
        %3817 = vmatprep.subr.mxu0 0.0
        %3818 = vmatpush2.msra.mxu0 0.0
        %3819 = vmatprep.subr.mxu0 0.0
        %3820 = vmatpush2.msra.mxu0 0.0
        %3821 = vmatprep.subr.mxu0 0.0
        %3822 = vmatpush2.msra.mxu0 0.0
        %3823 = vmatprep.subr.mxu0 0.0
        %3824 = vmatpush2.msra.mxu0 0.0
        %3825 = vmatprep.subr.mxu0 0.0
        %3826 = vmatpush2.msra.mxu0 0.0
        %3827 = vmatprep.subr.mxu0 0.0
        %3828 = vmatpush2.msra.mxu0 0.0
        %3829 = vmatprep.subr.mxu0 0.0
        %3830 = vmatpush2.msra.mxu0 0.0
        %3831 = vmatprep.subr.mxu0 0.0
        %3832 = vmatpush2.msra.mxu0 0.0
        %3833 = vmatprep.subr.mxu0 0.0
        %3834 = vmatpush2.msra.mxu0 0.0
        %3835 = vmatprep.mubr.f32.mxu0 0.0
        %v3836 = vand.u32 %v1311, 4294901760
        %3837 = vmatmul.mubr.f32.gmra.mxu0 %v3836
        %v3838 = vpop.f32.mrf.mxu0
        %v3839 = vadd.f32 %v3760, %v3838
        %v3840 = vpop.f32.mrf.mxu0
        %3841 = vmatprep.mubr.f32.mxu0 0.0
        %v3842 = vand.u32 %v1314, 4294901760
        %3843 = vmatmul.mubr.f32.gmra.mxu0 %v3842
        %v3844 = vpop.f32.mrf.mxu0
        %v3845 = vadd.f32 %v3766, %v3844
        %v3846 = vpop.f32.mrf.mxu0
        %3847 = vdwg.mxu0
        %v3849 = vsel %vm291, %v3839, 0
        %v3852 = vsel %vm291, %v3845, 0
        %3854 = vmatprep.subr.mxu0 0.0
        %3855 = vmatpush1.msra.mxu0 0.0
        %3856 = vmatprep.subr.mxu0 0.0
        %3857 = vmatpush1.msra.mxu0 0.0
        %3858 = vmatprep.subr.mxu0 0.0
        %3859 = vmatpush1.msra.mxu0 0.0
        %3860 = vmatprep.subr.mxu0 0.0
        %3861 = vmatpush1.msra.mxu0 0.0
        %3862 = vmatprep.subr.mxu0 0.0
        %3863 = vmatpush1.msra.mxu0 0.0
        %3864 = vmatprep.subr.mxu0 0.0
        %3865 = vmatpush1.msra.mxu0 0.0
        %3866 = vmatprep.subr.mxu0 0.0
        %3867 = vmatpush1.msra.mxu0 0.0
        %3868 = vmatprep.subr.mxu0 0.0
        %3869 = vmatpush1.msra.mxu0 0.0
        %3870 = vmatprep.subr.mxu0 0.0
        %3871 = vmatpush1.msra.mxu0 0.0
        %3872 = vmatprep.subr.mxu0 0.0
        %3873 = vmatpush1.msra.mxu0 0.0
        %3874 = vmatprep.subr.mxu0 0.0
        %3875 = vmatpush1.msra.mxu0 0.0
        %3876 = vmatprep.subr.mxu0 0.0
        %3877 = vmatpush1.msra.mxu0 0.0
        %3878 = vmatprep.subr.mxu0 0.0
        %3879 = vmatpush1.msra.mxu0 0.0
        %3880 = vmatprep.subr.mxu0 0.0
        %3881 = vmatpush1.msra.mxu0 0.0
        %3882 = vmatprep.subr.mxu0 0.0
        %v3883 = vand.u32 %v1819, 4294901760
        %3884 = vmatpush1.msra.mxu0 %v3883
        %3885 = vmatprep.subr.mxu0 0.0
        %v3886 = vand.u32 %v1818, 4294901760
        %3887 = vmatpush1.msra.mxu0 %v3886
        %3888 = vmatprep.subr.mxu0 0.0
        %3889 = vmatpush2.msra.mxu0 0.0
        %3890 = vmatprep.subr.mxu0 0.0
        %3891 = vmatpush2.msra.mxu0 0.0
        %3892 = vmatprep.subr.mxu0 0.0
        %3893 = vmatpush2.msra.mxu0 0.0
        %3894 = vmatprep.subr.mxu0 0.0
        %3895 = vmatpush2.msra.mxu0 0.0
        %3896 = vmatprep.subr.mxu0 0.0
        %3897 = vmatpush2.msra.mxu0 0.0
        %3898 = vmatprep.subr.mxu0 0.0
        %3899 = vmatpush2.msra.mxu0 0.0
        %3900 = vmatprep.subr.mxu0 0.0
        %3901 = vmatpush2.msra.mxu0 0.0
        %3902 = vmatprep.subr.mxu0 0.0
        %3903 = vmatpush2.msra.mxu0 0.0
        %3904 = vmatprep.subr.mxu0 0.0
        %3905 = vmatpush2.msra.mxu0 0.0
        %3906 = vmatprep.subr.mxu0 0.0
        %3907 = vmatpush2.msra.mxu0 0.0
        %3908 = vmatprep.subr.mxu0 0.0
        %3909 = vmatpush2.msra.mxu0 0.0
        %3910 = vmatprep.subr.mxu0 0.0
        %3911 = vmatpush2.msra.mxu0 0.0
        %3912 = vmatprep.subr.mxu0 0.0
        %3913 = vmatpush2.msra.mxu0 0.0
        %3914 = vmatprep.subr.mxu0 0.0
        %3915 = vmatpush2.msra.mxu0 0.0
        %3916 = vmatprep.subr.mxu0 0.0
        %3917 = vmatpush2.msra.mxu0 0.0
        %3918 = vmatprep.subr.mxu0 0.0
        %3919 = vmatpush2.msra.mxu0 0.0
        %3920 = vmatprep.mubr.f32.mxu0 0.0
        %v3921 = vand.u32 %v3849, 4294901760
        %v3922 = vsub.f32 %v3849, %v3921
        %v3923 = vand.u32 %v3922, 4294901760
        %v3924 = vsub.f32 %v3922, %v3923
        %v3925 = vand.u32 %v3924, 4294901760
        %3926 = vmatmul.mubr.f32.gmra.mxu0 %v3925
        %v3927 = vpop.f32.mrf.mxu0
        %v3928 = vadd.f32 0.0, %v3927
        %v3929 = vpop.f32.mrf.mxu0
        %3930 = vmatprep.mubr.f32.mxu0 0.0
        %v3931 = vand.u32 %v3852, 4294901760
        %v3932 = vsub.f32 %v3852, %v3931
        %v3933 = vand.u32 %v3932, 4294901760
        %v3934 = vsub.f32 %v3932, %v3933
        %v3935 = vand.u32 %v3934, 4294901760
        %3936 = vmatmul.mubr.f32.gmra.mxu0 %v3935
        %v3937 = vpop.f32.mrf.mxu0
        %v3938 = vadd.f32 0.0, %v3937
        %v3939 = vpop.f32.mrf.mxu0
        %3940 = vdwg.mxu0
        %3941 = vmatprep.subr.mxu0 0.0
        %3942 = vmatpush1.msra.mxu0 0.0
        %3943 = vmatprep.subr.mxu0 0.0
        %3944 = vmatpush1.msra.mxu0 0.0
        %3945 = vmatprep.subr.mxu0 0.0
        %3946 = vmatpush1.msra.mxu0 0.0
        %3947 = vmatprep.subr.mxu0 0.0
        %3948 = vmatpush1.msra.mxu0 0.0
        %3949 = vmatprep.subr.mxu0 0.0
        %3950 = vmatpush1.msra.mxu0 0.0
        %3951 = vmatprep.subr.mxu0 0.0
        %3952 = vmatpush1.msra.mxu0 0.0
        %3953 = vmatprep.subr.mxu0 0.0
        %3954 = vmatpush1.msra.mxu0 0.0
        %3955 = vmatprep.subr.mxu0 0.0
        %3956 = vmatpush1.msra.mxu0 0.0
        %3957 = vmatprep.subr.mxu0 0.0
        %3958 = vmatpush1.msra.mxu0 0.0
        %3959 = vmatprep.subr.mxu0 0.0
        %3960 = vmatpush1.msra.mxu0 0.0
        %3961 = vmatprep.subr.mxu0 0.0
        %3962 = vmatpush1.msra.mxu0 0.0
        %3963 = vmatprep.subr.mxu0 0.0
        %3964 = vmatpush1.msra.mxu0 0.0
        %3965 = vmatprep.subr.mxu0 0.0
        %3966 = vmatpush1.msra.mxu0 0.0
        %3967 = vmatprep.subr.mxu0 0.0
        %3968 = vmatpush1.msra.mxu0 0.0
        %3969 = vmatprep.subr.mxu0 0.0
        %v3970 = vand.u32 %v1819, 4294901760
        %v3971 = vsub.f32 %v1819, %v3970
        %v3972 = vand.u32 %v3971, 4294901760
        %v3973 = vsub.f32 %v3971, %v3972
        %v3974 = vand.u32 %v3973, 4294901760
        %3975 = vmatpush1.msra.mxu0 %v3974
        %3976 = vmatprep.subr.mxu0 0.0
        %v3977 = vand.u32 %v1818, 4294901760
        %v3978 = vsub.f32 %v1818, %v3977
        %v3979 = vand.u32 %v3978, 4294901760
        %v3980 = vsub.f32 %v3978, %v3979
        %v3981 = vand.u32 %v3980, 4294901760
        %3982 = vmatpush1.msra.mxu0 %v3981
        %3983 = vmatprep.subr.mxu0 0.0
        %3984 = vmatpush2.msra.mxu0 0.0
        %3985 = vmatprep.subr.mxu0 0.0
        %3986 = vmatpush2.msra.mxu0 0.0
        %3987 = vmatprep.subr.mxu0 0.0
        %3988 = vmatpush2.msra.mxu0 0.0
        %3989 = vmatprep.subr.mxu0 0.0
        %3990 = vmatpush2.msra.mxu0 0.0
        %3991 = vmatprep.subr.mxu0 0.0
        %3992 = vmatpush2.msra.mxu0 0.0
        %3993 = vmatprep.subr.mxu0 0.0
        %3994 = vmatpush2.msra.mxu0 0.0
        %3995 = vmatprep.subr.mxu0 0.0
        %3996 = vmatpush2.msra.mxu0 0.0
        %3997 = vmatprep.subr.mxu0 0.0
        %3998 = vmatpush2.msra.mxu0 0.0
        %3999 = vmatprep.subr.mxu0 0.0
        %4000 = vmatpush2.msra.mxu0 0.0
        %4001 = vmatprep.subr.mxu0 0.0
        %4002 = vmatpush2.msra.mxu0 0.0
        %4003 = vmatprep.subr.mxu0 0.0
        %4004 = vmatpush2.msra.mxu0 0.0
        %4005 = vmatprep.subr.mxu0 0.0
        %4006 = vmatpush2.msra.mxu0 0.0
        %4007 = vmatprep.subr.mxu0 0.0
        %4008 = vmatpush2.msra.mxu0 0.0
        %4009 = vmatprep.subr.mxu0 0.0
        %4010 = vmatpush2.msra.mxu0 0.0
        %4011 = vmatprep.subr.mxu0 0.0
        %4012 = vmatpush2.msra.mxu0 0.0
        %4013 = vmatprep.subr.mxu0 0.0
        %4014 = vmatpush2.msra.mxu0 0.0
        %4015 = vmatprep.mubr.f32.mxu0 0.0
        %v4016 = vand.u32 %v3849, 4294901760
        %4017 = vmatmul.mubr.f32.gmra.mxu0 %v4016
        %v4018 = vpop.f32.mrf.mxu0
        %v4019 = vadd.f32 %v3928, %v4018
        %v4020 = vpop.f32.mrf.mxu0
        %4021 = vmatprep.mubr.f32.mxu0 0.0
        %v4022 = vand.u32 %v3852, 4294901760
        %4023 = vmatmul.mubr.f32.gmra.mxu0 %v4022
        %v4024 = vpop.f32.mrf.mxu0
        %v4025 = vadd.f32 %v3938, %v4024
        %v4026 = vpop.f32.mrf.mxu0
        %4027 = vdwg.mxu0
        %4028 = vmatprep.subr.mxu0 0.0
        %4029 = vmatpush1.msra.mxu0 0.0
        %4030 = vmatprep.subr.mxu0 0.0
        %4031 = vmatpush1.msra.mxu0 0.0
        %4032 = vmatprep.subr.mxu0 0.0
        %4033 = vmatpush1.msra.mxu0 0.0
        %4034 = vmatprep.subr.mxu0 0.0
        %4035 = vmatpush1.msra.mxu0 0.0
        %4036 = vmatprep.subr.mxu0 0.0
        %4037 = vmatpush1.msra.mxu0 0.0
        %4038 = vmatprep.subr.mxu0 0.0
        %4039 = vmatpush1.msra.mxu0 0.0
        %4040 = vmatprep.subr.mxu0 0.0
        %4041 = vmatpush1.msra.mxu0 0.0
        %4042 = vmatprep.subr.mxu0 0.0
        %4043 = vmatpush1.msra.mxu0 0.0
        %4044 = vmatprep.subr.mxu0 0.0
        %4045 = vmatpush1.msra.mxu0 0.0
        %4046 = vmatprep.subr.mxu0 0.0
        %4047 = vmatpush1.msra.mxu0 0.0
        %4048 = vmatprep.subr.mxu0 0.0
        %4049 = vmatpush1.msra.mxu0 0.0
        %4050 = vmatprep.subr.mxu0 0.0
        %4051 = vmatpush1.msra.mxu0 0.0
        %4052 = vmatprep.subr.mxu0 0.0
        %4053 = vmatpush1.msra.mxu0 0.0
        %4054 = vmatprep.subr.mxu0 0.0
        %4055 = vmatpush1.msra.mxu0 0.0
        %4056 = vmatprep.subr.mxu0 0.0
        %v4057 = vand.u32 %v1819, 4294901760
        %v4058 = vsub.f32 %v1819, %v4057
        %4059 = vmatpush1.msra.mxu0 %v4058
        %4060 = vmatprep.subr.mxu0 0.0
        %v4061 = vand.u32 %v1818, 4294901760
        %v4062 = vsub.f32 %v1818, %v4061
        %4063 = vmatpush1.msra.mxu0 %v4062
        %4064 = vmatprep.subr.mxu0 0.0
        %4065 = vmatpush2.msra.mxu0 0.0
        %4066 = vmatprep.subr.mxu0 0.0
        %4067 = vmatpush2.msra.mxu0 0.0
        %4068 = vmatprep.subr.mxu0 0.0
        %4069 = vmatpush2.msra.mxu0 0.0
        %4070 = vmatprep.subr.mxu0 0.0
        %4071 = vmatpush2.msra.mxu0 0.0
        %4072 = vmatprep.subr.mxu0 0.0
        %4073 = vmatpush2.msra.mxu0 0.0
        %4074 = vmatprep.subr.mxu0 0.0
        %4075 = vmatpush2.msra.mxu0 0.0
        %4076 = vmatprep.subr.mxu0 0.0
        %4077 = vmatpush2.msra.mxu0 0.0
        %4078 = vmatprep.subr.mxu0 0.0
        %4079 = vmatpush2.msra.mxu0 0.0
        %4080 = vmatprep.subr.mxu0 0.0
        %4081 = vmatpush2.msra.mxu0 0.0
        %4082 = vmatprep.subr.mxu0 0.0
        %4083 = vmatpush2.msra.mxu0 0.0
        %4084 = vmatprep.subr.mxu0 0.0
        %4085 = vmatpush2.msra.mxu0 0.0
        %4086 = vmatprep.subr.mxu0 0.0
        %4087 = vmatpush2.msra.mxu0 0.0
        %4088 = vmatprep.subr.mxu0 0.0
        %4089 = vmatpush2.msra.mxu0 0.0
        %4090 = vmatprep.subr.mxu0 0.0
        %4091 = vmatpush2.msra.mxu0 0.0
        %4092 = vmatprep.subr.mxu0 0.0
        %4093 = vmatpush2.msra.mxu0 0.0
        %4094 = vmatprep.subr.mxu0 0.0
        %4095 = vmatpush2.msra.mxu0 0.0
        %4096 = vmatprep.mubr.f32.mxu0 0.0
        %v4097 = vand.u32 %v3849, 4294901760
        %v4098 = vsub.f32 %v3849, %v4097
        %4099 = vmatmul.mubr.f32.gmra.mxu0 %v4098
        %v4100 = vpop.f32.mrf.mxu0
        %v4101 = vadd.f32 %v4019, %v4100
        %v4102 = vpop.f32.mrf.mxu0
        %4103 = vmatprep.mubr.f32.mxu0 0.0
        %v4104 = vand.u32 %v3852, 4294901760
        %v4105 = vsub.f32 %v3852, %v4104
        %4106 = vmatmul.mubr.f32.gmra.mxu0 %v4105
        %v4107 = vpop.f32.mrf.mxu0
        %v4108 = vadd.f32 %v4025, %v4107
        %v4109 = vpop.f32.mrf.mxu0
        %4110 = vdwg.mxu0
        %4111 = vmatprep.subr.mxu0 0.0
        %4112 = vmatpush1.msra.mxu0 0.0
        %4113 = vmatprep.subr.mxu0 0.0
        %4114 = vmatpush1.msra.mxu0 0.0
        %4115 = vmatprep.subr.mxu0 0.0
        %4116 = vmatpush1.msra.mxu0 0.0
        %4117 = vmatprep.subr.mxu0 0.0
        %4118 = vmatpush1.msra.mxu0 0.0
        %4119 = vmatprep.subr.mxu0 0.0
        %4120 = vmatpush1.msra.mxu0 0.0
        %4121 = vmatprep.subr.mxu0 0.0
        %4122 = vmatpush1.msra.mxu0 0.0
        %4123 = vmatprep.subr.mxu0 0.0
        %4124 = vmatpush1.msra.mxu0 0.0
        %4125 = vmatprep.subr.mxu0 0.0
        %4126 = vmatpush1.msra.mxu0 0.0
        %4127 = vmatprep.subr.mxu0 0.0
        %4128 = vmatpush1.msra.mxu0 0.0
        %4129 = vmatprep.subr.mxu0 0.0
        %4130 = vmatpush1.msra.mxu0 0.0
        %4131 = vmatprep.subr.mxu0 0.0
        %4132 = vmatpush1.msra.mxu0 0.0
        %4133 = vmatprep.subr.mxu0 0.0
        %4134 = vmatpush1.msra.mxu0 0.0
        %4135 = vmatprep.subr.mxu0 0.0
        %4136 = vmatpush1.msra.mxu0 0.0
        %4137 = vmatprep.subr.mxu0 0.0
        %4138 = vmatpush1.msra.mxu0 0.0
        %4139 = vmatprep.subr.mxu0 0.0
        %v4140 = vand.u32 %v1819, 4294901760
        %4141 = vmatpush1.msra.mxu0 %v4140
        %4142 = vmatprep.subr.mxu0 0.0
        %v4143 = vand.u32 %v1818, 4294901760
        %4144 = vmatpush1.msra.mxu0 %v4143
        %4145 = vmatprep.subr.mxu0 0.0
        %4146 = vmatpush2.msra.mxu0 0.0
        %4147 = vmatprep.subr.mxu0 0.0
        %4148 = vmatpush2.msra.mxu0 0.0
        %4149 = vmatprep.subr.mxu0 0.0
        %4150 = vmatpush2.msra.mxu0 0.0
        %4151 = vmatprep.subr.mxu0 0.0
        %4152 = vmatpush2.msra.mxu0 0.0
        %4153 = vmatprep.subr.mxu0 0.0
        %4154 = vmatpush2.msra.mxu0 0.0
        %4155 = vmatprep.subr.mxu0 0.0
        %4156 = vmatpush2.msra.mxu0 0.0
        %4157 = vmatprep.subr.mxu0 0.0
        %4158 = vmatpush2.msra.mxu0 0.0
        %4159 = vmatprep.subr.mxu0 0.0
        %4160 = vmatpush2.msra.mxu0 0.0
        %4161 = vmatprep.subr.mxu0 0.0
        %4162 = vmatpush2.msra.mxu0 0.0
        %4163 = vmatprep.subr.mxu0 0.0
        %4164 = vmatpush2.msra.mxu0 0.0
        %4165 = vmatprep.subr.mxu0 0.0
        %4166 = vmatpush2.msra.mxu0 0.0
        %4167 = vmatprep.subr.mxu0 0.0
        %4168 = vmatpush2.msra.mxu0 0.0
        %4169 = vmatprep.subr.mxu0 0.0
        %4170 = vmatpush2.msra.mxu0 0.0
        %4171 = vmatprep.subr.mxu0 0.0
        %4172 = vmatpush2.msra.mxu0 0.0
        %4173 = vmatprep.subr.mxu0 0.0
        %4174 = vmatpush2.msra.mxu0 0.0
        %4175 = vmatprep.subr.mxu0 0.0
        %4176 = vmatpush2.msra.mxu0 0.0
        %4177 = vmatprep.mubr.f32.mxu0 0.0
        %v4178 = vand.u32 %v3849, 4294901760
        %v4179 = vsub.f32 %v3849, %v4178
        %v4180 = vand.u32 %v4179, 4294901760
        %4181 = vmatmul.mubr.f32.gmra.mxu0 %v4180
        %v4182 = vpop.f32.mrf.mxu0
        %v4183 = vadd.f32 %v4101, %v4182
        %v4184 = vpop.f32.mrf.mxu0
        %4185 = vmatprep.mubr.f32.mxu0 0.0
        %v4186 = vand.u32 %v3852, 4294901760
        %v4187 = vsub.f32 %v3852, %v4186
        %v4188 = vand.u32 %v4187, 4294901760
        %4189 = vmatmul.mubr.f32.gmra.mxu0 %v4188
        %v4190 = vpop.f32.mrf.mxu0
        %v4191 = vadd.f32 %v4108, %v4190
        %v4192 = vpop.f32.mrf.mxu0
        %4193 = vdwg.mxu0
        %4194 = vmatprep.subr.mxu0 0.0
        %4195 = vmatpush1.msra.mxu0 0.0
        %4196 = vmatprep.subr.mxu0 0.0
        %4197 = vmatpush1.msra.mxu0 0.0
        %4198 = vmatprep.subr.mxu0 0.0
        %4199 = vmatpush1.msra.mxu0 0.0
        %4200 = vmatprep.subr.mxu0 0.0
        %4201 = vmatpush1.msra.mxu0 0.0
        %4202 = vmatprep.subr.mxu0 0.0
        %4203 = vmatpush1.msra.mxu0 0.0
        %4204 = vmatprep.subr.mxu0 0.0
        %4205 = vmatpush1.msra.mxu0 0.0
        %4206 = vmatprep.subr.mxu0 0.0
        %4207 = vmatpush1.msra.mxu0 0.0
        %4208 = vmatprep.subr.mxu0 0.0
        %4209 = vmatpush1.msra.mxu0 0.0
        %4210 = vmatprep.subr.mxu0 0.0
        %4211 = vmatpush1.msra.mxu0 0.0
        %4212 = vmatprep.subr.mxu0 0.0
        %4213 = vmatpush1.msra.mxu0 0.0
        %4214 = vmatprep.subr.mxu0 0.0
        %4215 = vmatpush1.msra.mxu0 0.0
        %4216 = vmatprep.subr.mxu0 0.0
        %4217 = vmatpush1.msra.mxu0 0.0
        %4218 = vmatprep.subr.mxu0 0.0
        %4219 = vmatpush1.msra.mxu0 0.0
        %4220 = vmatprep.subr.mxu0 0.0
        %4221 = vmatpush1.msra.mxu0 0.0
        %4222 = vmatprep.subr.mxu0 0.0
        %v4223 = vand.u32 %v1819, 4294901760
        %v4224 = vsub.f32 %v1819, %v4223
        %v4225 = vand.u32 %v4224, 4294901760
        %4226 = vmatpush1.msra.mxu0 %v4225
        %4227 = vmatprep.subr.mxu0 0.0
        %v4228 = vand.u32 %v1818, 4294901760
        %v4229 = vsub.f32 %v1818, %v4228
        %v4230 = vand.u32 %v4229, 4294901760
        %4231 = vmatpush1.msra.mxu0 %v4230
        %4232 = vmatprep.subr.mxu0 0.0
        %4233 = vmatpush2.msra.mxu0 0.0
        %4234 = vmatprep.subr.mxu0 0.0
        %4235 = vmatpush2.msra.mxu0 0.0
        %4236 = vmatprep.subr.mxu0 0.0
        %4237 = vmatpush2.msra.mxu0 0.0
        %4238 = vmatprep.subr.mxu0 0.0
        %4239 = vmatpush2.msra.mxu0 0.0
        %4240 = vmatprep.subr.mxu0 0.0
        %4241 = vmatpush2.msra.mxu0 0.0
        %4242 = vmatprep.subr.mxu0 0.0
        %4243 = vmatpush2.msra.mxu0 0.0
        %4244 = vmatprep.subr.mxu0 0.0
        %4245 = vmatpush2.msra.mxu0 0.0
        %4246 = vmatprep.subr.mxu0 0.0
        %4247 = vmatpush2.msra.mxu0 0.0
        %4248 = vmatprep.subr.mxu0 0.0
        %4249 = vmatpush2.msra.mxu0 0.0
        %4250 = vmatprep.subr.mxu0 0.0
        %4251 = vmatpush2.msra.mxu0 0.0
        %4252 = vmatprep.subr.mxu0 0.0
        %4253 = vmatpush2.msra.mxu0 0.0
        %4254 = vmatprep.subr.mxu0 0.0
        %4255 = vmatpush2.msra.mxu0 0.0
        %4256 = vmatprep.subr.mxu0 0.0
        %4257 = vmatpush2.msra.mxu0 0.0
        %4258 = vmatprep.subr.mxu0 0.0
        %4259 = vmatpush2.msra.mxu0 0.0
        %4260 = vmatprep.subr.mxu0 0.0
        %4261 = vmatpush2.msra.mxu0 0.0
        %4262 = vmatprep.subr.mxu0 0.0
        %4263 = vmatpush2.msra.mxu0 0.0
        %4264 = vmatprep.mubr.f32.mxu0 0.0
        %v4265 = vand.u32 %v3849, 4294901760
        %4266 = vmatmul.mubr.f32.gmra.mxu0 %v4265
        %v4267 = vpop.f32.mrf.mxu0
        %v4268 = vadd.f32 %v4183, %v4267
        %v4269 = vpop.f32.mrf.mxu0
        %4270 = vmatprep.mubr.f32.mxu0 0.0
        %v4271 = vand.u32 %v3852, 4294901760
        %4272 = vmatmul.mubr.f32.gmra.mxu0 %v4271
        %v4273 = vpop.f32.mrf.mxu0
        %v4274 = vadd.f32 %v4191, %v4273
        %v4275 = vpop.f32.mrf.mxu0
        %4276 = vdwg.mxu0
        %4277 = vmatprep.subr.mxu0 0.0
        %4278 = vmatpush1.msra.mxu0 0.0
        %4279 = vmatprep.subr.mxu0 0.0
        %4280 = vmatpush1.msra.mxu0 0.0
        %4281 = vmatprep.subr.mxu0 0.0
        %4282 = vmatpush1.msra.mxu0 0.0
        %4283 = vmatprep.subr.mxu0 0.0
        %4284 = vmatpush1.msra.mxu0 0.0
        %4285 = vmatprep.subr.mxu0 0.0
        %4286 = vmatpush1.msra.mxu0 0.0
        %4287 = vmatprep.subr.mxu0 0.0
        %4288 = vmatpush1.msra.mxu0 0.0
        %4289 = vmatprep.subr.mxu0 0.0
        %4290 = vmatpush1.msra.mxu0 0.0
        %4291 = vmatprep.subr.mxu0 0.0
        %4292 = vmatpush1.msra.mxu0 0.0
        %4293 = vmatprep.subr.mxu0 0.0
        %4294 = vmatpush1.msra.mxu0 0.0
        %4295 = vmatprep.subr.mxu0 0.0
        %4296 = vmatpush1.msra.mxu0 0.0
        %4297 = vmatprep.subr.mxu0 0.0
        %4298 = vmatpush1.msra.mxu0 0.0
        %4299 = vmatprep.subr.mxu0 0.0
        %4300 = vmatpush1.msra.mxu0 0.0
        %4301 = vmatprep.subr.mxu0 0.0
        %4302 = vmatpush1.msra.mxu0 0.0
        %4303 = vmatprep.subr.mxu0 0.0
        %4304 = vmatpush1.msra.mxu0 0.0
        %4305 = vmatprep.subr.mxu0 0.0
        %v4306 = vand.u32 %v1819, 4294901760
        %4307 = vmatpush1.msra.mxu0 %v4306
        %4308 = vmatprep.subr.mxu0 0.0
        %v4309 = vand.u32 %v1818, 4294901760
        %4310 = vmatpush1.msra.mxu0 %v4309
        %4311 = vmatprep.subr.mxu0 0.0
        %4312 = vmatpush2.msra.mxu0 0.0
        %4313 = vmatprep.subr.mxu0 0.0
        %4314 = vmatpush2.msra.mxu0 0.0
        %4315 = vmatprep.subr.mxu0 0.0
        %4316 = vmatpush2.msra.mxu0 0.0
        %4317 = vmatprep.subr.mxu0 0.0
        %4318 = vmatpush2.msra.mxu0 0.0
        %4319 = vmatprep.subr.mxu0 0.0
        %4320 = vmatpush2.msra.mxu0 0.0
        %4321 = vmatprep.subr.mxu0 0.0
        %4322 = vmatpush2.msra.mxu0 0.0
        %4323 = vmatprep.subr.mxu0 0.0
        %4324 = vmatpush2.msra.mxu0 0.0
        %4325 = vmatprep.subr.mxu0 0.0
        %4326 = vmatpush2.msra.mxu0 0.0
        %4327 = vmatprep.subr.mxu0 0.0
        %4328 = vmatpush2.msra.mxu0 0.0
        %4329 = vmatprep.subr.mxu0 0.0
        %4330 = vmatpush2.msra.mxu0 0.0
        %4331 = vmatprep.subr.mxu0 0.0
        %4332 = vmatpush2.msra.mxu0 0.0
        %4333 = vmatprep.subr.mxu0 0.0
        %4334 = vmatpush2.msra.mxu0 0.0
        %4335 = vmatprep.subr.mxu0 0.0
        %4336 = vmatpush2.msra.mxu0 0.0
        %4337 = vmatprep.subr.mxu0 0.0
        %4338 = vmatpush2.msra.mxu0 0.0
        %4339 = vmatprep.subr.mxu0 0.0
        %4340 = vmatpush2.msra.mxu0 0.0
        %4341 = vmatprep.subr.mxu0 0.0
        %4342 = vmatpush2.msra.mxu0 0.0
        %4343 = vmatprep.mubr.f32.mxu0 0.0
        %v4344 = vand.u32 %v3849, 4294901760
        %4345 = vmatmul.mubr.f32.gmra.mxu0 %v4344
        %v4346 = vpop.f32.mrf.mxu0
        %v4347 = vadd.f32 %v4268, %v4346
        %v4348 = vpop.f32.mrf.mxu0
        %4349 = vmatprep.mubr.f32.mxu0 0.0
        %v4350 = vand.u32 %v3852, 4294901760
        %4351 = vmatmul.mubr.f32.gmra.mxu0 %v4350
        %v4352 = vpop.f32.mrf.mxu0
        %v4353 = vadd.f32 %v4274, %v4352
        %v4354 = vpop.f32.mrf.mxu0
        %4355 = vdwg.mxu0
        %v4356 = vmul.f32 %v4347, 0.9071118
        %v4357 = vmul.f32 %v4353, 0.9071118
        %v4358 = vmul.f32 %v3337, 0.9071118
        %v4359 = vmul.f32 %v3343, 0.9071118
        %v4360 = vadd.f32 %v4356, %v4358
        %v4361 = vadd.f32 %v4357, %v4359
        %v4362 = vsub.f32 %v2334, %v4360
        %v4363 = vsub.f32 %v2335, %v4361
        %v4365 = vsel %vm291, %v4362, 0
        %v4368 = vsel %vm291, %v4363, 0
        %4370 = vmatprep.subr.mxu0 0.0
        %4371 = vmatpush1.msra.mxu0 0.0
        %4372 = vmatprep.subr.mxu0 0.0
        %4373 = vmatpush1.msra.mxu0 0.0
        %4374 = vmatprep.subr.mxu0 0.0
        %4375 = vmatpush1.msra.mxu0 0.0
        %4376 = vmatprep.subr.mxu0 0.0
        %4377 = vmatpush1.msra.mxu0 0.0
        %4378 = vmatprep.subr.mxu0 0.0
        %4379 = vmatpush1.msra.mxu0 0.0
        %4380 = vmatprep.subr.mxu0 0.0
        %4381 = vmatpush1.msra.mxu0 0.0
        %4382 = vmatprep.subr.mxu0 0.0
        %4383 = vmatpush1.msra.mxu0 0.0
        %4384 = vmatprep.subr.mxu0 0.0
        %4385 = vmatpush1.msra.mxu0 0.0
        %4386 = vmatprep.subr.mxu0 0.0
        %4387 = vmatpush1.msra.mxu0 0.0
        %4388 = vmatprep.subr.mxu0 0.0
        %4389 = vmatpush1.msra.mxu0 0.0
        %4390 = vmatprep.subr.mxu0 0.0
        %4391 = vmatpush1.msra.mxu0 0.0
        %4392 = vmatprep.subr.mxu0 0.0
        %4393 = vmatpush1.msra.mxu0 0.0
        %4394 = vmatprep.subr.mxu0 0.0
        %4395 = vmatpush1.msra.mxu0 0.0
        %4396 = vmatprep.subr.mxu0 0.0
        %4397 = vmatpush1.msra.mxu0 0.0
        %4398 = vmatprep.subr.mxu0 0.0
        %v4399 = vand.u32 %v290, 4294901760
        %4400 = vmatpush1.msra.mxu0 %v4399
        %4401 = vmatprep.subr.mxu0 0.0
        %v4402 = vand.u32 %v289, 4294901760
        %4403 = vmatpush1.msra.mxu0 %v4402
        %4404 = vmatprep.subr.mxu0 0.0
        %4405 = vmatpush2.msra.mxu0 0.0
        %4406 = vmatprep.subr.mxu0 0.0
        %4407 = vmatpush2.msra.mxu0 0.0
        %4408 = vmatprep.subr.mxu0 0.0
        %4409 = vmatpush2.msra.mxu0 0.0
        %4410 = vmatprep.subr.mxu0 0.0
        %4411 = vmatpush2.msra.mxu0 0.0
        %4412 = vmatprep.subr.mxu0 0.0
        %4413 = vmatpush2.msra.mxu0 0.0
        %4414 = vmatprep.subr.mxu0 0.0
        %4415 = vmatpush2.msra.mxu0 0.0
        %4416 = vmatprep.subr.mxu0 0.0
        %4417 = vmatpush2.msra.mxu0 0.0
        %4418 = vmatprep.subr.mxu0 0.0
        %4419 = vmatpush2.msra.mxu0 0.0
        %4420 = vmatprep.subr.mxu0 0.0
        %4421 = vmatpush2.msra.mxu0 0.0
        %4422 = vmatprep.subr.mxu0 0.0
        %4423 = vmatpush2.msra.mxu0 0.0
        %4424 = vmatprep.subr.mxu0 0.0
        %4425 = vmatpush2.msra.mxu0 0.0
        %4426 = vmatprep.subr.mxu0 0.0
        %4427 = vmatpush2.msra.mxu0 0.0
        %4428 = vmatprep.subr.mxu0 0.0
        %4429 = vmatpush2.msra.mxu0 0.0
        %4430 = vmatprep.subr.mxu0 0.0
        %4431 = vmatpush2.msra.mxu0 0.0
        %4432 = vmatprep.subr.mxu0 0.0
        %4433 = vmatpush2.msra.mxu0 0.0
        %4434 = vmatprep.subr.mxu0 0.0
        %4435 = vmatpush2.msra.mxu0 0.0
        %4436 = vmatprep.mubr.f32.mxu0 0.0
        %v4437 = vand.u32 %v4365, 4294901760
        %v4438 = vsub.f32 %v4365, %v4437
        %v4439 = vand.u32 %v4438, 4294901760
        %v4440 = vsub.f32 %v4438, %v4439
        %v4441 = vand.u32 %v4440, 4294901760
        %4442 = vmatmul.mubr.f32.gmra.mxu0 %v4441
        %v4443 = vpop.f32.mrf.mxu0
        %v4444 = vadd.f32 0.0, %v4443
        %v4445 = vpop.f32.mrf.mxu0
        %4446 = vmatprep.mubr.f32.mxu0 0.0
        %v4447 = vand.u32 %v4368, 4294901760
        %v4448 = vsub.f32 %v4368, %v4447
        %v4449 = vand.u32 %v4448, 4294901760
        %v4450 = vsub.f32 %v4448, %v4449
        %v4451 = vand.u32 %v4450, 4294901760
        %4452 = vmatmul.mubr.f32.gmra.mxu0 %v4451
        %v4453 = vpop.f32.mrf.mxu0
        %v4454 = vadd.f32 0.0, %v4453
        %v4455 = vpop.f32.mrf.mxu0
        %4456 = vdwg.mxu0
        %4457 = vmatprep.subr.mxu0 0.0
        %4458 = vmatpush1.msra.mxu0 0.0
        %4459 = vmatprep.subr.mxu0 0.0
        %4460 = vmatpush1.msra.mxu0 0.0
        %4461 = vmatprep.subr.mxu0 0.0
        %4462 = vmatpush1.msra.mxu0 0.0
        %4463 = vmatprep.subr.mxu0 0.0
        %4464 = vmatpush1.msra.mxu0 0.0
        %4465 = vmatprep.subr.mxu0 0.0
        %4466 = vmatpush1.msra.mxu0 0.0
        %4467 = vmatprep.subr.mxu0 0.0
        %4468 = vmatpush1.msra.mxu0 0.0
        %4469 = vmatprep.subr.mxu0 0.0
        %4470 = vmatpush1.msra.mxu0 0.0
        %4471 = vmatprep.subr.mxu0 0.0
        %4472 = vmatpush1.msra.mxu0 0.0
        %4473 = vmatprep.subr.mxu0 0.0
        %4474 = vmatpush1.msra.mxu0 0.0
        %4475 = vmatprep.subr.mxu0 0.0
        %4476 = vmatpush1.msra.mxu0 0.0
        %4477 = vmatprep.subr.mxu0 0.0
        %4478 = vmatpush1.msra.mxu0 0.0
        %4479 = vmatprep.subr.mxu0 0.0
        %4480 = vmatpush1.msra.mxu0 0.0
        %4481 = vmatprep.subr.mxu0 0.0
        %4482 = vmatpush1.msra.mxu0 0.0
        %4483 = vmatprep.subr.mxu0 0.0
        %4484 = vmatpush1.msra.mxu0 0.0
        %4485 = vmatprep.subr.mxu0 0.0
        %v4486 = vand.u32 %v290, 4294901760
        %v4487 = vsub.f32 %v290, %v4486
        %v4488 = vand.u32 %v4487, 4294901760
        %v4489 = vsub.f32 %v4487, %v4488
        %v4490 = vand.u32 %v4489, 4294901760
        %4491 = vmatpush1.msra.mxu0 %v4490
        %4492 = vmatprep.subr.mxu0 0.0
        %v4493 = vand.u32 %v289, 4294901760
        %v4494 = vsub.f32 %v289, %v4493
        %v4495 = vand.u32 %v4494, 4294901760
        %v4496 = vsub.f32 %v4494, %v4495
        %v4497 = vand.u32 %v4496, 4294901760
        %4498 = vmatpush1.msra.mxu0 %v4497
        %4499 = vmatprep.subr.mxu0 0.0
        %4500 = vmatpush2.msra.mxu0 0.0
        %4501 = vmatprep.subr.mxu0 0.0
        %4502 = vmatpush2.msra.mxu0 0.0
        %4503 = vmatprep.subr.mxu0 0.0
        %4504 = vmatpush2.msra.mxu0 0.0
        %4505 = vmatprep.subr.mxu0 0.0
        %4506 = vmatpush2.msra.mxu0 0.0
        %4507 = vmatprep.subr.mxu0 0.0
        %4508 = vmatpush2.msra.mxu0 0.0
        %4509 = vmatprep.subr.mxu0 0.0
        %4510 = vmatpush2.msra.mxu0 0.0
        %4511 = vmatprep.subr.mxu0 0.0
        %4512 = vmatpush2.msra.mxu0 0.0
        %4513 = vmatprep.subr.mxu0 0.0
        %4514 = vmatpush2.msra.mxu0 0.0
        %4515 = vmatprep.subr.mxu0 0.0
        %4516 = vmatpush2.msra.mxu0 0.0
        %4517 = vmatprep.subr.mxu0 0.0
        %4518 = vmatpush2.msra.mxu0 0.0
        %4519 = vmatprep.subr.mxu0 0.0
        %4520 = vmatpush2.msra.mxu0 0.0
        %4521 = vmatprep.subr.mxu0 0.0
        %4522 = vmatpush2.msra.mxu0 0.0
        %4523 = vmatprep.subr.mxu0 0.0
        %4524 = vmatpush2.msra.mxu0 0.0
        %4525 = vmatprep.subr.mxu0 0.0
        %4526 = vmatpush2.msra.mxu0 0.0
        %4527 = vmatprep.subr.mxu0 0.0
        %4528 = vmatpush2.msra.mxu0 0.0
        %4529 = vmatprep.subr.mxu0 0.0
        %4530 = vmatpush2.msra.mxu0 0.0
        %4531 = vmatprep.mubr.f32.mxu0 0.0
        %v4532 = vand.u32 %v4365, 4294901760
        %4533 = vmatmul.mubr.f32.gmra.mxu0 %v4532
        %v4534 = vpop.f32.mrf.mxu0
        %v4535 = vadd.f32 %v4444, %v4534
        %v4536 = vpop.f32.mrf.mxu0
        %4537 = vmatprep.mubr.f32.mxu0 0.0
        %v4538 = vand.u32 %v4368, 4294901760
        %4539 = vmatmul.mubr.f32.gmra.mxu0 %v4538
        %v4540 = vpop.f32.mrf.mxu0
        %v4541 = vadd.f32 %v4454, %v4540
        %v4542 = vpop.f32.mrf.mxu0
        %4543 = vdwg.mxu0
        %4544 = vmatprep.subr.mxu0 0.0
        %4545 = vmatpush1.msra.mxu0 0.0
        %4546 = vmatprep.subr.mxu0 0.0
        %4547 = vmatpush1.msra.mxu0 0.0
        %4548 = vmatprep.subr.mxu0 0.0
        %4549 = vmatpush1.msra.mxu0 0.0
        %4550 = vmatprep.subr.mxu0 0.0
        %4551 = vmatpush1.msra.mxu0 0.0
        %4552 = vmatprep.subr.mxu0 0.0
        %4553 = vmatpush1.msra.mxu0 0.0
        %4554 = vmatprep.subr.mxu0 0.0
        %4555 = vmatpush1.msra.mxu0 0.0
        %4556 = vmatprep.subr.mxu0 0.0
        %4557 = vmatpush1.msra.mxu0 0.0
        %4558 = vmatprep.subr.mxu0 0.0
        %4559 = vmatpush1.msra.mxu0 0.0
        %4560 = vmatprep.subr.mxu0 0.0
        %4561 = vmatpush1.msra.mxu0 0.0
        %4562 = vmatprep.subr.mxu0 0.0
        %4563 = vmatpush1.msra.mxu0 0.0
        %4564 = vmatprep.subr.mxu0 0.0
        %4565 = vmatpush1.msra.mxu0 0.0
        %4566 = vmatprep.subr.mxu0 0.0
        %4567 = vmatpush1.msra.mxu0 0.0
        %4568 = vmatprep.subr.mxu0 0.0
        %4569 = vmatpush1.msra.mxu0 0.0
        %4570 = vmatprep.subr.mxu0 0.0
        %4571 = vmatpush1.msra.mxu0 0.0
        %4572 = vmatprep.subr.mxu0 0.0
        %v4573 = vand.u32 %v290, 4294901760
        %v4574 = vsub.f32 %v290, %v4573
        %4575 = vmatpush1.msra.mxu0 %v4574
        %4576 = vmatprep.subr.mxu0 0.0
        %v4577 = vand.u32 %v289, 4294901760
        %v4578 = vsub.f32 %v289, %v4577
        %4579 = vmatpush1.msra.mxu0 %v4578
        %4580 = vmatprep.subr.mxu0 0.0
        %4581 = vmatpush2.msra.mxu0 0.0
        %4582 = vmatprep.subr.mxu0 0.0
        %4583 = vmatpush2.msra.mxu0 0.0
        %4584 = vmatprep.subr.mxu0 0.0
        %4585 = vmatpush2.msra.mxu0 0.0
        %4586 = vmatprep.subr.mxu0 0.0
        %4587 = vmatpush2.msra.mxu0 0.0
        %4588 = vmatprep.subr.mxu0 0.0
        %4589 = vmatpush2.msra.mxu0 0.0
        %4590 = vmatprep.subr.mxu0 0.0
        %4591 = vmatpush2.msra.mxu0 0.0
        %4592 = vmatprep.subr.mxu0 0.0
        %4593 = vmatpush2.msra.mxu0 0.0
        %4594 = vmatprep.subr.mxu0 0.0
        %4595 = vmatpush2.msra.mxu0 0.0
        %4596 = vmatprep.subr.mxu0 0.0
        %4597 = vmatpush2.msra.mxu0 0.0
        %4598 = vmatprep.subr.mxu0 0.0
        %4599 = vmatpush2.msra.mxu0 0.0
        %4600 = vmatprep.subr.mxu0 0.0
        %4601 = vmatpush2.msra.mxu0 0.0
        %4602 = vmatprep.subr.mxu0 0.0
        %4603 = vmatpush2.msra.mxu0 0.0
        %4604 = vmatprep.subr.mxu0 0.0
        %4605 = vmatpush2.msra.mxu0 0.0
        %4606 = vmatprep.subr.mxu0 0.0
        %4607 = vmatpush2.msra.mxu0 0.0
        %4608 = vmatprep.subr.mxu0 0.0
        %4609 = vmatpush2.msra.mxu0 0.0
        %4610 = vmatprep.subr.mxu0 0.0
        %4611 = vmatpush2.msra.mxu0 0.0
        %4612 = vmatprep.mubr.f32.mxu0 0.0
        %v4613 = vand.u32 %v4365, 4294901760
        %v4614 = vsub.f32 %v4365, %v4613
        %4615 = vmatmul.mubr.f32.gmra.mxu0 %v4614
        %v4616 = vpop.f32.mrf.mxu0
        %v4617 = vadd.f32 %v4535, %v4616
        %v4618 = vpop.f32.mrf.mxu0
        %4619 = vmatprep.mubr.f32.mxu0 0.0
        %v4620 = vand.u32 %v4368, 4294901760
        %v4621 = vsub.f32 %v4368, %v4620
        %4622 = vmatmul.mubr.f32.gmra.mxu0 %v4621
        %v4623 = vpop.f32.mrf.mxu0
        %v4624 = vadd.f32 %v4541, %v4623
        %v4625 = vpop.f32.mrf.mxu0
        %4626 = vdwg.mxu0
        %4627 = vmatprep.subr.mxu0 0.0
        %4628 = vmatpush1.msra.mxu0 0.0
        %4629 = vmatprep.subr.mxu0 0.0
        %4630 = vmatpush1.msra.mxu0 0.0
        %4631 = vmatprep.subr.mxu0 0.0
        %4632 = vmatpush1.msra.mxu0 0.0
        %4633 = vmatprep.subr.mxu0 0.0
        %4634 = vmatpush1.msra.mxu0 0.0
        %4635 = vmatprep.subr.mxu0 0.0
        %4636 = vmatpush1.msra.mxu0 0.0
        %4637 = vmatprep.subr.mxu0 0.0
        %4638 = vmatpush1.msra.mxu0 0.0
        %4639 = vmatprep.subr.mxu0 0.0
        %4640 = vmatpush1.msra.mxu0 0.0
        %4641 = vmatprep.subr.mxu0 0.0
        %4642 = vmatpush1.msra.mxu0 0.0
        %4643 = vmatprep.subr.mxu0 0.0
        %4644 = vmatpush1.msra.mxu0 0.0
        %4645 = vmatprep.subr.mxu0 0.0
        %4646 = vmatpush1.msra.mxu0 0.0
        %4647 = vmatprep.subr.mxu0 0.0
        %4648 = vmatpush1.msra.mxu0 0.0
        %4649 = vmatprep.subr.mxu0 0.0
        %4650 = vmatpush1.msra.mxu0 0.0
        %4651 = vmatprep.subr.mxu0 0.0
        %4652 = vmatpush1.msra.mxu0 0.0
        %4653 = vmatprep.subr.mxu0 0.0
        %4654 = vmatpush1.msra.mxu0 0.0
        %4655 = vmatprep.subr.mxu0 0.0
        %v4656 = vand.u32 %v290, 4294901760
        %4657 = vmatpush1.msra.mxu0 %v4656
        %4658 = vmatprep.subr.mxu0 0.0
        %v4659 = vand.u32 %v289, 4294901760
        %4660 = vmatpush1.msra.mxu0 %v4659
        %4661 = vmatprep.subr.mxu0 0.0
        %4662 = vmatpush2.msra.mxu0 0.0
        %4663 = vmatprep.subr.mxu0 0.0
        %4664 = vmatpush2.msra.mxu0 0.0
        %4665 = vmatprep.subr.mxu0 0.0
        %4666 = vmatpush2.msra.mxu0 0.0
        %4667 = vmatprep.subr.mxu0 0.0
        %4668 = vmatpush2.msra.mxu0 0.0
        %4669 = vmatprep.subr.mxu0 0.0
        %4670 = vmatpush2.msra.mxu0 0.0
        %4671 = vmatprep.subr.mxu0 0.0
        %4672 = vmatpush2.msra.mxu0 0.0
        %4673 = vmatprep.subr.mxu0 0.0
        %4674 = vmatpush2.msra.mxu0 0.0
        %4675 = vmatprep.subr.mxu0 0.0
        %4676 = vmatpush2.msra.mxu0 0.0
        %4677 = vmatprep.subr.mxu0 0.0
        %4678 = vmatpush2.msra.mxu0 0.0
        %4679 = vmatprep.subr.mxu0 0.0
        %4680 = vmatpush2.msra.mxu0 0.0
        %4681 = vmatprep.subr.mxu0 0.0
        %4682 = vmatpush2.msra.mxu0 0.0
        %4683 = vmatprep.subr.mxu0 0.0
        %4684 = vmatpush2.msra.mxu0 0.0
        %4685 = vmatprep.subr.mxu0 0.0
        %4686 = vmatpush2.msra.mxu0 0.0
        %4687 = vmatprep.subr.mxu0 0.0
        %4688 = vmatpush2.msra.mxu0 0.0
        %4689 = vmatprep.subr.mxu0 0.0
        %4690 = vmatpush2.msra.mxu0 0.0
        %4691 = vmatprep.subr.mxu0 0.0
        %4692 = vmatpush2.msra.mxu0 0.0
        %4693 = vmatprep.mubr.f32.mxu0 0.0
        %v4694 = vand.u32 %v4365, 4294901760
        %v4695 = vsub.f32 %v4365, %v4694
        %v4696 = vand.u32 %v4695, 4294901760
        %4697 = vmatmul.mubr.f32.gmra.mxu0 %v4696
        %v4698 = vpop.f32.mrf.mxu0
        %v4699 = vadd.f32 %v4617, %v4698
        %v4700 = vpop.f32.mrf.mxu0
        %4701 = vmatprep.mubr.f32.mxu0 0.0
        %v4702 = vand.u32 %v4368, 4294901760
        %v4703 = vsub.f32 %v4368, %v4702
        %v4704 = vand.u32 %v4703, 4294901760
        %4705 = vmatmul.mubr.f32.gmra.mxu0 %v4704
        %v4706 = vpop.f32.mrf.mxu0
        %v4707 = vadd.f32 %v4624, %v4706
        %v4708 = vpop.f32.mrf.mxu0
        %4709 = vdwg.mxu0
        %4710 = vmatprep.subr.mxu0 0.0
        %4711 = vmatpush1.msra.mxu0 0.0
        %4712 = vmatprep.subr.mxu0 0.0
        %4713 = vmatpush1.msra.mxu0 0.0
        %4714 = vmatprep.subr.mxu0 0.0
        %4715 = vmatpush1.msra.mxu0 0.0
        %4716 = vmatprep.subr.mxu0 0.0
        %4717 = vmatpush1.msra.mxu0 0.0
        %4718 = vmatprep.subr.mxu0 0.0
        %4719 = vmatpush1.msra.mxu0 0.0
        %4720 = vmatprep.subr.mxu0 0.0
        %4721 = vmatpush1.msra.mxu0 0.0
        %4722 = vmatprep.subr.mxu0 0.0
        %4723 = vmatpush1.msra.mxu0 0.0
        %4724 = vmatprep.subr.mxu0 0.0
        %4725 = vmatpush1.msra.mxu0 0.0
        %4726 = vmatprep.subr.mxu0 0.0
        %4727 = vmatpush1.msra.mxu0 0.0
        %4728 = vmatprep.subr.mxu0 0.0
        %4729 = vmatpush1.msra.mxu0 0.0
        %4730 = vmatprep.subr.mxu0 0.0
        %4731 = vmatpush1.msra.mxu0 0.0
        %4732 = vmatprep.subr.mxu0 0.0
        %4733 = vmatpush1.msra.mxu0 0.0
        %4734 = vmatprep.subr.mxu0 0.0
        %4735 = vmatpush1.msra.mxu0 0.0
        %4736 = vmatprep.subr.mxu0 0.0
        %4737 = vmatpush1.msra.mxu0 0.0
        %4738 = vmatprep.subr.mxu0 0.0
        %v4739 = vand.u32 %v290, 4294901760
        %v4740 = vsub.f32 %v290, %v4739
        %v4741 = vand.u32 %v4740, 4294901760
        %4742 = vmatpush1.msra.mxu0 %v4741
        %4743 = vmatprep.subr.mxu0 0.0
        %v4744 = vand.u32 %v289, 4294901760
        %v4745 = vsub.f32 %v289, %v4744
        %v4746 = vand.u32 %v4745, 4294901760
        %4747 = vmatpush1.msra.mxu0 %v4746
        %4748 = vmatprep.subr.mxu0 0.0
        %4749 = vmatpush2.msra.mxu0 0.0
        %4750 = vmatprep.subr.mxu0 0.0
        %4751 = vmatpush2.msra.mxu0 0.0
        %4752 = vmatprep.subr.mxu0 0.0
        %4753 = vmatpush2.msra.mxu0 0.0
        %4754 = vmatprep.subr.mxu0 0.0
        %4755 = vmatpush2.msra.mxu0 0.0
        %4756 = vmatprep.subr.mxu0 0.0
        %4757 = vmatpush2.msra.mxu0 0.0
        %4758 = vmatprep.subr.mxu0 0.0
        %4759 = vmatpush2.msra.mxu0 0.0
        %4760 = vmatprep.subr.mxu0 0.0
        %4761 = vmatpush2.msra.mxu0 0.0
        %4762 = vmatprep.subr.mxu0 0.0
        %4763 = vmatpush2.msra.mxu0 0.0
        %4764 = vmatprep.subr.mxu0 0.0
        %4765 = vmatpush2.msra.mxu0 0.0
        %4766 = vmatprep.subr.mxu0 0.0
        %4767 = vmatpush2.msra.mxu0 0.0
        %4768 = vmatprep.subr.mxu0 0.0
        %4769 = vmatpush2.msra.mxu0 0.0
        %4770 = vmatprep.subr.mxu0 0.0
        %4771 = vmatpush2.msra.mxu0 0.0
        %4772 = vmatprep.subr.mxu0 0.0
        %4773 = vmatpush2.msra.mxu0 0.0
        %4774 = vmatprep.subr.mxu0 0.0
        %4775 = vmatpush2.msra.mxu0 0.0
        %4776 = vmatprep.subr.mxu0 0.0
        %4777 = vmatpush2.msra.mxu0 0.0
        %4778 = vmatprep.subr.mxu0 0.0
        %4779 = vmatpush2.msra.mxu0 0.0
        %4780 = vmatprep.mubr.f32.mxu0 0.0
        %v4781 = vand.u32 %v4365, 4294901760
        %4782 = vmatmul.mubr.f32.gmra.mxu0 %v4781
        %v4783 = vpop.f32.mrf.mxu0
        %v4784 = vadd.f32 %v4699, %v4783
        %v4785 = vpop.f32.mrf.mxu0
        %4786 = vmatprep.mubr.f32.mxu0 0.0
        %v4787 = vand.u32 %v4368, 4294901760
        %4788 = vmatmul.mubr.f32.gmra.mxu0 %v4787
        %v4789 = vpop.f32.mrf.mxu0
        %v4790 = vadd.f32 %v4707, %v4789
        %v4791 = vpop.f32.mrf.mxu0
        %4792 = vdwg.mxu0
        %4793 = vmatprep.subr.mxu0 0.0
        %4794 = vmatpush1.msra.mxu0 0.0
        %4795 = vmatprep.subr.mxu0 0.0
        %4796 = vmatpush1.msra.mxu0 0.0
        %4797 = vmatprep.subr.mxu0 0.0
        %4798 = vmatpush1.msra.mxu0 0.0
        %4799 = vmatprep.subr.mxu0 0.0
        %4800 = vmatpush1.msra.mxu0 0.0
        %4801 = vmatprep.subr.mxu0 0.0
        %4802 = vmatpush1.msra.mxu0 0.0
        %4803 = vmatprep.subr.mxu0 0.0
        %4804 = vmatpush1.msra.mxu0 0.0
        %4805 = vmatprep.subr.mxu0 0.0
        %4806 = vmatpush1.msra.mxu0 0.0
        %4807 = vmatprep.subr.mxu0 0.0
        %4808 = vmatpush1.msra.mxu0 0.0
        %4809 = vmatprep.subr.mxu0 0.0
        %4810 = vmatpush1.msra.mxu0 0.0
        %4811 = vmatprep.subr.mxu0 0.0
        %4812 = vmatpush1.msra.mxu0 0.0
        %4813 = vmatprep.subr.mxu0 0.0
        %4814 = vmatpush1.msra.mxu0 0.0
        %4815 = vmatprep.subr.mxu0 0.0
        %4816 = vmatpush1.msra.mxu0 0.0
        %4817 = vmatprep.subr.mxu0 0.0
        %4818 = vmatpush1.msra.mxu0 0.0
        %4819 = vmatprep.subr.mxu0 0.0
        %4820 = vmatpush1.msra.mxu0 0.0
        %4821 = vmatprep.subr.mxu0 0.0
        %v4822 = vand.u32 %v290, 4294901760
        %4823 = vmatpush1.msra.mxu0 %v4822
        %4824 = vmatprep.subr.mxu0 0.0
        %v4825 = vand.u32 %v289, 4294901760
        %4826 = vmatpush1.msra.mxu0 %v4825
        %4827 = vmatprep.subr.mxu0 0.0
        %4828 = vmatpush2.msra.mxu0 0.0
        %4829 = vmatprep.subr.mxu0 0.0
        %4830 = vmatpush2.msra.mxu0 0.0
        %4831 = vmatprep.subr.mxu0 0.0
        %4832 = vmatpush2.msra.mxu0 0.0
        %4833 = vmatprep.subr.mxu0 0.0
        %4834 = vmatpush2.msra.mxu0 0.0
        %4835 = vmatprep.subr.mxu0 0.0
        %4836 = vmatpush2.msra.mxu0 0.0
        %4837 = vmatprep.subr.mxu0 0.0
        %4838 = vmatpush2.msra.mxu0 0.0
        %4839 = vmatprep.subr.mxu0 0.0
        %4840 = vmatpush2.msra.mxu0 0.0
        %4841 = vmatprep.subr.mxu0 0.0
        %4842 = vmatpush2.msra.mxu0 0.0
        %4843 = vmatprep.subr.mxu0 0.0
        %4844 = vmatpush2.msra.mxu0 0.0
        %4845 = vmatprep.subr.mxu0 0.0
        %4846 = vmatpush2.msra.mxu0 0.0
        %4847 = vmatprep.subr.mxu0 0.0
        %4848 = vmatpush2.msra.mxu0 0.0
        %4849 = vmatprep.subr.mxu0 0.0
        %4850 = vmatpush2.msra.mxu0 0.0
        %4851 = vmatprep.subr.mxu0 0.0
        %4852 = vmatpush2.msra.mxu0 0.0
        %4853 = vmatprep.subr.mxu0 0.0
        %4854 = vmatpush2.msra.mxu0 0.0
        %4855 = vmatprep.subr.mxu0 0.0
        %4856 = vmatpush2.msra.mxu0 0.0
        %4857 = vmatprep.subr.mxu0 0.0
        %4858 = vmatpush2.msra.mxu0 0.0
        %4859 = vmatprep.mubr.f32.mxu0 0.0
        %v4860 = vand.u32 %v4365, 4294901760
        %4861 = vmatmul.mubr.f32.gmra.mxu0 %v4860
        %v4862 = vpop.f32.mrf.mxu0
        %v4863 = vadd.f32 %v4784, %v4862
        %v4864 = vpop.f32.mrf.mxu0
        %4865 = vmatprep.mubr.f32.mxu0 0.0
        %v4866 = vand.u32 %v4368, 4294901760
        %4867 = vmatmul.mubr.f32.gmra.mxu0 %v4866
        %v4868 = vpop.f32.mrf.mxu0
        %v4869 = vadd.f32 %v4790, %v4868
        %v4870 = vpop.f32.mrf.mxu0
        %4871 = vdwg.mxu0
        %4872 = vmatprep.subr.mxu0 0.0
        %4873 = vmatpush1.msra.mxu0 0.0
        %4874 = vmatprep.subr.mxu0 0.0
        %4875 = vmatpush1.msra.mxu0 0.0
        %4876 = vmatprep.subr.mxu0 0.0
        %4877 = vmatpush1.msra.mxu0 0.0
        %4878 = vmatprep.subr.mxu0 0.0
        %4879 = vmatpush1.msra.mxu0 0.0
        %4880 = vmatprep.subr.mxu0 0.0
        %4881 = vmatpush1.msra.mxu0 0.0
        %4882 = vmatprep.subr.mxu0 0.0
        %4883 = vmatpush1.msra.mxu0 0.0
        %4884 = vmatprep.subr.mxu0 0.0
        %4885 = vmatpush1.msra.mxu0 0.0
        %4886 = vmatprep.subr.mxu0 0.0
        %4887 = vmatpush1.msra.mxu0 0.0
        %4888 = vmatprep.subr.mxu0 0.0
        %4889 = vmatpush1.msra.mxu0 0.0
        %4890 = vmatprep.subr.mxu0 0.0
        %4891 = vmatpush1.msra.mxu0 0.0
        %4892 = vmatprep.subr.mxu0 0.0
        %4893 = vmatpush1.msra.mxu0 0.0
        %4894 = vmatprep.subr.mxu0 0.0
        %4895 = vmatpush1.msra.mxu0 0.0
        %4896 = vmatprep.subr.mxu0 0.0
        %4897 = vmatpush1.msra.mxu0 0.0
        %4898 = vmatprep.subr.mxu0 0.0
        %4899 = vmatpush1.msra.mxu0 0.0
        %4900 = vmatprep.subr.mxu0 0.0
        %v4901 = vand.u32 %v4363, 4294901760
        %4902 = vmatpush1.msra.mxu0 %v4901
        %4903 = vmatprep.subr.mxu0 0.0
        %v4904 = vand.u32 %v4362, 4294901760
        %4905 = vmatpush1.msra.mxu0 %v4904
        %4906 = vmatprep.subr.mxu0 0.0
        %4907 = vmatpush2.msra.mxu0 0.0
        %4908 = vmatprep.subr.mxu0 0.0
        %4909 = vmatpush2.msra.mxu0 0.0
        %4910 = vmatprep.subr.mxu0 0.0
        %4911 = vmatpush2.msra.mxu0 0.0
        %4912 = vmatprep.subr.mxu0 0.0
        %4913 = vmatpush2.msra.mxu0 0.0
        %4914 = vmatprep.subr.mxu0 0.0
        %4915 = vmatpush2.msra.mxu0 0.0
        %4916 = vmatprep.subr.mxu0 0.0
        %4917 = vmatpush2.msra.mxu0 0.0
        %4918 = vmatprep.subr.mxu0 0.0
        %4919 = vmatpush2.msra.mxu0 0.0
        %4920 = vmatprep.subr.mxu0 0.0
        %4921 = vmatpush2.msra.mxu0 0.0
        %4922 = vmatprep.subr.mxu0 0.0
        %4923 = vmatpush2.msra.mxu0 0.0
        %4924 = vmatprep.subr.mxu0 0.0
        %4925 = vmatpush2.msra.mxu0 0.0
        %4926 = vmatprep.subr.mxu0 0.0
        %4927 = vmatpush2.msra.mxu0 0.0
        %4928 = vmatprep.subr.mxu0 0.0
        %4929 = vmatpush2.msra.mxu0 0.0
        %4930 = vmatprep.subr.mxu0 0.0
        %4931 = vmatpush2.msra.mxu0 0.0
        %4932 = vmatprep.subr.mxu0 0.0
        %4933 = vmatpush2.msra.mxu0 0.0
        %4934 = vmatprep.subr.mxu0 0.0
        %4935 = vmatpush2.msra.mxu0 0.0
        %4936 = vmatprep.subr.mxu0 0.0
        %4937 = vmatpush2.msra.mxu0 0.0
        %4938 = vmatprep.mubr.f32.mxu0 0.0
        %v4939 = vand.u32 %v801, 4294901760
        %v4940 = vsub.f32 %v801, %v4939
        %v4941 = vand.u32 %v4940, 4294901760
        %v4942 = vsub.f32 %v4940, %v4941
        %v4943 = vand.u32 %v4942, 4294901760
        %4944 = vmatmul.mubr.f32.gmra.mxu0 %v4943
        %v4945 = vpop.f32.mrf.mxu0
        %v4946 = vadd.f32 %v4863, %v4945
        %v4947 = vpop.f32.mrf.mxu0
        %4948 = vmatprep.mubr.f32.mxu0 0.0
        %v4949 = vand.u32 %v804, 4294901760
        %v4950 = vsub.f32 %v804, %v4949
        %v4951 = vand.u32 %v4950, 4294901760
        %v4952 = vsub.f32 %v4950, %v4951
        %v4953 = vand.u32 %v4952, 4294901760
        %4954 = vmatmul.mubr.f32.gmra.mxu0 %v4953
        %v4955 = vpop.f32.mrf.mxu0
        %v4956 = vadd.f32 %v4869, %v4955
        %v4957 = vpop.f32.mrf.mxu0
        %4958 = vdwg.mxu0
        %4959 = vmatprep.subr.mxu0 0.0
        %4960 = vmatpush1.msra.mxu0 0.0
        %4961 = vmatprep.subr.mxu0 0.0
        %4962 = vmatpush1.msra.mxu0 0.0
        %4963 = vmatprep.subr.mxu0 0.0
        %4964 = vmatpush1.msra.mxu0 0.0
        %4965 = vmatprep.subr.mxu0 0.0
        %4966 = vmatpush1.msra.mxu0 0.0
        %4967 = vmatprep.subr.mxu0 0.0
        %4968 = vmatpush1.msra.mxu0 0.0
        %4969 = vmatprep.subr.mxu0 0.0
        %4970 = vmatpush1.msra.mxu0 0.0
        %4971 = vmatprep.subr.mxu0 0.0
        %4972 = vmatpush1.msra.mxu0 0.0
        %4973 = vmatprep.subr.mxu0 0.0
        %4974 = vmatpush1.msra.mxu0 0.0
        %4975 = vmatprep.subr.mxu0 0.0
        %4976 = vmatpush1.msra.mxu0 0.0
        %4977 = vmatprep.subr.mxu0 0.0
        %4978 = vmatpush1.msra.mxu0 0.0
        %4979 = vmatprep.subr.mxu0 0.0
        %4980 = vmatpush1.msra.mxu0 0.0
        %4981 = vmatprep.subr.mxu0 0.0
        %4982 = vmatpush1.msra.mxu0 0.0
        %4983 = vmatprep.subr.mxu0 0.0
        %4984 = vmatpush1.msra.mxu0 0.0
        %4985 = vmatprep.subr.mxu0 0.0
        %4986 = vmatpush1.msra.mxu0 0.0
        %4987 = vmatprep.subr.mxu0 0.0
        %v4988 = vand.u32 %v4363, 4294901760
        %v4989 = vsub.f32 %v4363, %v4988
        %v4990 = vand.u32 %v4989, 4294901760
        %v4991 = vsub.f32 %v4989, %v4990
        %v4992 = vand.u32 %v4991, 4294901760
        %4993 = vmatpush1.msra.mxu0 %v4992
        %4994 = vmatprep.subr.mxu0 0.0
        %v4995 = vand.u32 %v4362, 4294901760
        %v4996 = vsub.f32 %v4362, %v4995
        %v4997 = vand.u32 %v4996, 4294901760
        %v4998 = vsub.f32 %v4996, %v4997
        %v4999 = vand.u32 %v4998, 4294901760
        %5000 = vmatpush1.msra.mxu0 %v4999
        %5001 = vmatprep.subr.mxu0 0.0
        %5002 = vmatpush2.msra.mxu0 0.0
        %5003 = vmatprep.subr.mxu0 0.0
        %5004 = vmatpush2.msra.mxu0 0.0
        %5005 = vmatprep.subr.mxu0 0.0
        %5006 = vmatpush2.msra.mxu0 0.0
        %5007 = vmatprep.subr.mxu0 0.0
        %5008 = vmatpush2.msra.mxu0 0.0
        %5009 = vmatprep.subr.mxu0 0.0
        %5010 = vmatpush2.msra.mxu0 0.0
        %5011 = vmatprep.subr.mxu0 0.0
        %5012 = vmatpush2.msra.mxu0 0.0
        %5013 = vmatprep.subr.mxu0 0.0
        %5014 = vmatpush2.msra.mxu0 0.0
        %5015 = vmatprep.subr.mxu0 0.0
        %5016 = vmatpush2.msra.mxu0 0.0
        %5017 = vmatprep.subr.mxu0 0.0
        %5018 = vmatpush2.msra.mxu0 0.0
        %5019 = vmatprep.subr.mxu0 0.0
        %5020 = vmatpush2.msra.mxu0 0.0
        %5021 = vmatprep.subr.mxu0 0.0
        %5022 = vmatpush2.msra.mxu0 0.0
        %5023 = vmatprep.subr.mxu0 0.0
        %5024 = vmatpush2.msra.mxu0 0.0
        %5025 = vmatprep.subr.mxu0 0.0
        %5026 = vmatpush2.msra.mxu0 0.0
        %5027 = vmatprep.subr.mxu0 0.0
        %5028 = vmatpush2.msra.mxu0 0.0
        %5029 = vmatprep.subr.mxu0 0.0
        %5030 = vmatpush2.msra.mxu0 0.0
        %5031 = vmatprep.subr.mxu0 0.0
        %5032 = vmatpush2.msra.mxu0 0.0
        %5033 = vmatprep.mubr.f32.mxu0 0.0
        %v5034 = vand.u32 %v801, 4294901760
        %5035 = vmatmul.mubr.f32.gmra.mxu0 %v5034
        %v5036 = vpop.f32.mrf.mxu0
        %v5037 = vadd.f32 %v4946, %v5036
        %v5038 = vpop.f32.mrf.mxu0
        %5039 = vmatprep.mubr.f32.mxu0 0.0
        %v5040 = vand.u32 %v804, 4294901760
        %5041 = vmatmul.mubr.f32.gmra.mxu0 %v5040
        %v5042 = vpop.f32.mrf.mxu0
        %v5043 = vadd.f32 %v4956, %v5042
        %v5044 = vpop.f32.mrf.mxu0
        %5045 = vdwg.mxu0
        %5046 = vmatprep.subr.mxu0 0.0
        %5047 = vmatpush1.msra.mxu0 0.0
        %5048 = vmatprep.subr.mxu0 0.0
        %5049 = vmatpush1.msra.mxu0 0.0
        %5050 = vmatprep.subr.mxu0 0.0
        %5051 = vmatpush1.msra.mxu0 0.0
        %5052 = vmatprep.subr.mxu0 0.0
        %5053 = vmatpush1.msra.mxu0 0.0
        %5054 = vmatprep.subr.mxu0 0.0
        %5055 = vmatpush1.msra.mxu0 0.0
        %5056 = vmatprep.subr.mxu0 0.0
        %5057 = vmatpush1.msra.mxu0 0.0
        %5058 = vmatprep.subr.mxu0 0.0
        %5059 = vmatpush1.msra.mxu0 0.0
        %5060 = vmatprep.subr.mxu0 0.0
        %5061 = vmatpush1.msra.mxu0 0.0
        %5062 = vmatprep.subr.mxu0 0.0
        %5063 = vmatpush1.msra.mxu0 0.0
        %5064 = vmatprep.subr.mxu0 0.0
        %5065 = vmatpush1.msra.mxu0 0.0
        %5066 = vmatprep.subr.mxu0 0.0
        %5067 = vmatpush1.msra.mxu0 0.0
        %5068 = vmatprep.subr.mxu0 0.0
        %5069 = vmatpush1.msra.mxu0 0.0
        %5070 = vmatprep.subr.mxu0 0.0
        %5071 = vmatpush1.msra.mxu0 0.0
        %5072 = vmatprep.subr.mxu0 0.0
        %5073 = vmatpush1.msra.mxu0 0.0
        %5074 = vmatprep.subr.mxu0 0.0
        %v5075 = vand.u32 %v4363, 4294901760
        %v5076 = vsub.f32 %v4363, %v5075
        %5077 = vmatpush1.msra.mxu0 %v5076
        %5078 = vmatprep.subr.mxu0 0.0
        %v5079 = vand.u32 %v4362, 4294901760
        %v5080 = vsub.f32 %v4362, %v5079
        %5081 = vmatpush1.msra.mxu0 %v5080
        %5082 = vmatprep.subr.mxu0 0.0
        %5083 = vmatpush2.msra.mxu0 0.0
        %5084 = vmatprep.subr.mxu0 0.0
        %5085 = vmatpush2.msra.mxu0 0.0
        %5086 = vmatprep.subr.mxu0 0.0
        %5087 = vmatpush2.msra.mxu0 0.0
        %5088 = vmatprep.subr.mxu0 0.0
        %5089 = vmatpush2.msra.mxu0 0.0
        %5090 = vmatprep.subr.mxu0 0.0
        %5091 = vmatpush2.msra.mxu0 0.0
        %5092 = vmatprep.subr.mxu0 0.0
        %5093 = vmatpush2.msra.mxu0 0.0
        %5094 = vmatprep.subr.mxu0 0.0
        %5095 = vmatpush2.msra.mxu0 0.0
        %5096 = vmatprep.subr.mxu0 0.0
        %5097 = vmatpush2.msra.mxu0 0.0
        %5098 = vmatprep.subr.mxu0 0.0
        %5099 = vmatpush2.msra.mxu0 0.0
        %5100 = vmatprep.subr.mxu0 0.0
        %5101 = vmatpush2.msra.mxu0 0.0
        %5102 = vmatprep.subr.mxu0 0.0
        %5103 = vmatpush2.msra.mxu0 0.0
        %5104 = vmatprep.subr.mxu0 0.0
        %5105 = vmatpush2.msra.mxu0 0.0
        %5106 = vmatprep.subr.mxu0 0.0
        %5107 = vmatpush2.msra.mxu0 0.0
        %5108 = vmatprep.subr.mxu0 0.0
        %5109 = vmatpush2.msra.mxu0 0.0
        %5110 = vmatprep.subr.mxu0 0.0
        %5111 = vmatpush2.msra.mxu0 0.0
        %5112 = vmatprep.subr.mxu0 0.0
        %5113 = vmatpush2.msra.mxu0 0.0
        %5114 = vmatprep.mubr.f32.mxu0 0.0
        %v5115 = vand.u32 %v801, 4294901760
        %v5116 = vsub.f32 %v801, %v5115
        %5117 = vmatmul.mubr.f32.gmra.mxu0 %v5116
        %v5118 = vpop.f32.mrf.mxu0
        %v5119 = vadd.f32 %v5037, %v5118
        %v5120 = vpop.f32.mrf.mxu0
        %5121 = vmatprep.mubr.f32.mxu0 0.0
        %v5122 = vand.u32 %v804, 4294901760
        %v5123 = vsub.f32 %v804, %v5122
        %5124 = vmatmul.mubr.f32.gmra.mxu0 %v5123
        %v5125 = vpop.f32.mrf.mxu0
        %v5126 = vadd.f32 %v5043, %v5125
        %v5127 = vpop.f32.mrf.mxu0
        %5128 = vdwg.mxu0
        %5129 = vmatprep.subr.mxu0 0.0
        %5130 = vmatpush1.msra.mxu0 0.0
        %5131 = vmatprep.subr.mxu0 0.0
        %5132 = vmatpush1.msra.mxu0 0.0
        %5133 = vmatprep.subr.mxu0 0.0
        %5134 = vmatpush1.msra.mxu0 0.0
        %5135 = vmatprep.subr.mxu0 0.0
        %5136 = vmatpush1.msra.mxu0 0.0
        %5137 = vmatprep.subr.mxu0 0.0
        %5138 = vmatpush1.msra.mxu0 0.0
        %5139 = vmatprep.subr.mxu0 0.0
        %5140 = vmatpush1.msra.mxu0 0.0
        %5141 = vmatprep.subr.mxu0 0.0
        %5142 = vmatpush1.msra.mxu0 0.0
        %5143 = vmatprep.subr.mxu0 0.0
        %5144 = vmatpush1.msra.mxu0 0.0
        %5145 = vmatprep.subr.mxu0 0.0
        %5146 = vmatpush1.msra.mxu0 0.0
        %5147 = vmatprep.subr.mxu0 0.0
        %5148 = vmatpush1.msra.mxu0 0.0
        %5149 = vmatprep.subr.mxu0 0.0
        %5150 = vmatpush1.msra.mxu0 0.0
        %5151 = vmatprep.subr.mxu0 0.0
        %5152 = vmatpush1.msra.mxu0 0.0
        %5153 = vmatprep.subr.mxu0 0.0
        %5154 = vmatpush1.msra.mxu0 0.0
        %5155 = vmatprep.subr.mxu0 0.0
        %5156 = vmatpush1.msra.mxu0 0.0
        %5157 = vmatprep.subr.mxu0 0.0
        %v5158 = vand.u32 %v4363, 4294901760
        %5159 = vmatpush1.msra.mxu0 %v5158
        %5160 = vmatprep.subr.mxu0 0.0
        %v5161 = vand.u32 %v4362, 4294901760
        %5162 = vmatpush1.msra.mxu0 %v5161
        %5163 = vmatprep.subr.mxu0 0.0
        %5164 = vmatpush2.msra.mxu0 0.0
        %5165 = vmatprep.subr.mxu0 0.0
        %5166 = vmatpush2.msra.mxu0 0.0
        %5167 = vmatprep.subr.mxu0 0.0
        %5168 = vmatpush2.msra.mxu0 0.0
        %5169 = vmatprep.subr.mxu0 0.0
        %5170 = vmatpush2.msra.mxu0 0.0
        %5171 = vmatprep.subr.mxu0 0.0
        %5172 = vmatpush2.msra.mxu0 0.0
        %5173 = vmatprep.subr.mxu0 0.0
        %5174 = vmatpush2.msra.mxu0 0.0
        %5175 = vmatprep.subr.mxu0 0.0
        %5176 = vmatpush2.msra.mxu0 0.0
        %5177 = vmatprep.subr.mxu0 0.0
        %5178 = vmatpush2.msra.mxu0 0.0
        %5179 = vmatprep.subr.mxu0 0.0
        %5180 = vmatpush2.msra.mxu0 0.0
        %5181 = vmatprep.subr.mxu0 0.0
        %5182 = vmatpush2.msra.mxu0 0.0
        %5183 = vmatprep.subr.mxu0 0.0
        %5184 = vmatpush2.msra.mxu0 0.0
        %5185 = vmatprep.subr.mxu0 0.0
        %5186 = vmatpush2.msra.mxu0 0.0
        %5187 = vmatprep.subr.mxu0 0.0
        %5188 = vmatpush2.msra.mxu0 0.0
        %5189 = vmatprep.subr.mxu0 0.0
        %5190 = vmatpush2.msra.mxu0 0.0
        %5191 = vmatprep.subr.mxu0 0.0
        %5192 = vmatpush2.msra.mxu0 0.0
        %5193 = vmatprep.subr.mxu0 0.0
        %5194 = vmatpush2.msra.mxu0 0.0
        %5195 = vmatprep.mubr.f32.mxu0 0.0
        %v5196 = vand.u32 %v801, 4294901760
        %v5197 = vsub.f32 %v801, %v5196
        %v5198 = vand.u32 %v5197, 4294901760
        %5199 = vmatmul.mubr.f32.gmra.mxu0 %v5198
        %v5200 = vpop.f32.mrf.mxu0
        %v5201 = vadd.f32 %v5119, %v5200
        %v5202 = vpop.f32.mrf.mxu0
        %5203 = vmatprep.mubr.f32.mxu0 0.0
        %v5204 = vand.u32 %v804, 4294901760
        %v5205 = vsub.f32 %v804, %v5204
        %v5206 = vand.u32 %v5205, 4294901760
        %5207 = vmatmul.mubr.f32.gmra.mxu0 %v5206
        %v5208 = vpop.f32.mrf.mxu0
        %v5209 = vadd.f32 %v5126, %v5208
        %v5210 = vpop.f32.mrf.mxu0
        %5211 = vdwg.mxu0
        %5212 = vmatprep.subr.mxu0 0.0
        %5213 = vmatpush1.msra.mxu0 0.0
        %5214 = vmatprep.subr.mxu0 0.0
        %5215 = vmatpush1.msra.mxu0 0.0
        %5216 = vmatprep.subr.mxu0 0.0
        %5217 = vmatpush1.msra.mxu0 0.0
        %5218 = vmatprep.subr.mxu0 0.0
        %5219 = vmatpush1.msra.mxu0 0.0
        %5220 = vmatprep.subr.mxu0 0.0
        %5221 = vmatpush1.msra.mxu0 0.0
        %5222 = vmatprep.subr.mxu0 0.0
        %5223 = vmatpush1.msra.mxu0 0.0
        %5224 = vmatprep.subr.mxu0 0.0
        %5225 = vmatpush1.msra.mxu0 0.0
        %5226 = vmatprep.subr.mxu0 0.0
        %5227 = vmatpush1.msra.mxu0 0.0
        %5228 = vmatprep.subr.mxu0 0.0
        %5229 = vmatpush1.msra.mxu0 0.0
        %5230 = vmatprep.subr.mxu0 0.0
        %5231 = vmatpush1.msra.mxu0 0.0
        %5232 = vmatprep.subr.mxu0 0.0
        %5233 = vmatpush1.msra.mxu0 0.0
        %5234 = vmatprep.subr.mxu0 0.0
        %5235 = vmatpush1.msra.mxu0 0.0
        %5236 = vmatprep.subr.mxu0 0.0
        %5237 = vmatpush1.msra.mxu0 0.0
        %5238 = vmatprep.subr.mxu0 0.0
        %5239 = vmatpush1.msra.mxu0 0.0
        %5240 = vmatprep.subr.mxu0 0.0
        %v5241 = vand.u32 %v4363, 4294901760
        %v5242 = vsub.f32 %v4363, %v5241
        %v5243 = vand.u32 %v5242, 4294901760
        %5244 = vmatpush1.msra.mxu0 %v5243
        %5245 = vmatprep.subr.mxu0 0.0
        %v5246 = vand.u32 %v4362, 4294901760
        %v5247 = vsub.f32 %v4362, %v5246
        %v5248 = vand.u32 %v5247, 4294901760
        %5249 = vmatpush1.msra.mxu0 %v5248
        %5250 = vmatprep.subr.mxu0 0.0
        %5251 = vmatpush2.msra.mxu0 0.0
        %5252 = vmatprep.subr.mxu0 0.0
        %5253 = vmatpush2.msra.mxu0 0.0
        %5254 = vmatprep.subr.mxu0 0.0
        %5255 = vmatpush2.msra.mxu0 0.0
        %5256 = vmatprep.subr.mxu0 0.0
        %5257 = vmatpush2.msra.mxu0 0.0
        %5258 = vmatprep.subr.mxu0 0.0
        %5259 = vmatpush2.msra.mxu0 0.0
        %5260 = vmatprep.subr.mxu0 0.0
        %5261 = vmatpush2.msra.mxu0 0.0
        %5262 = vmatprep.subr.mxu0 0.0
        %5263 = vmatpush2.msra.mxu0 0.0
        %5264 = vmatprep.subr.mxu0 0.0
        %5265 = vmatpush2.msra.mxu0 0.0
        %5266 = vmatprep.subr.mxu0 0.0
        %5267 = vmatpush2.msra.mxu0 0.0
        %5268 = vmatprep.subr.mxu0 0.0
        %5269 = vmatpush2.msra.mxu0 0.0
        %5270 = vmatprep.subr.mxu0 0.0
        %5271 = vmatpush2.msra.mxu0 0.0
        %5272 = vmatprep.subr.mxu0 0.0
        %5273 = vmatpush2.msra.mxu0 0.0
        %5274 = vmatprep.subr.mxu0 0.0
        %5275 = vmatpush2.msra.mxu0 0.0
        %5276 = vmatprep.subr.mxu0 0.0
        %5277 = vmatpush2.msra.mxu0 0.0
        %5278 = vmatprep.subr.mxu0 0.0
        %5279 = vmatpush2.msra.mxu0 0.0
        %5280 = vmatprep.subr.mxu0 0.0
        %5281 = vmatpush2.msra.mxu0 0.0
        %5282 = vmatprep.mubr.f32.mxu0 0.0
        %v5283 = vand.u32 %v801, 4294901760
        %5284 = vmatmul.mubr.f32.gmra.mxu0 %v5283
        %v5285 = vpop.f32.mrf.mxu0
        %v5286 = vadd.f32 %v5201, %v5285
        %v5287 = vpop.f32.mrf.mxu0
        %5288 = vmatprep.mubr.f32.mxu0 0.0
        %v5289 = vand.u32 %v804, 4294901760
        %5290 = vmatmul.mubr.f32.gmra.mxu0 %v5289
        %v5291 = vpop.f32.mrf.mxu0
        %v5292 = vadd.f32 %v5209, %v5291
        %v5293 = vpop.f32.mrf.mxu0
        %5294 = vdwg.mxu0
        %5295 = vmatprep.subr.mxu0 0.0
        %5296 = vmatpush1.msra.mxu0 0.0
        %5297 = vmatprep.subr.mxu0 0.0
        %5298 = vmatpush1.msra.mxu0 0.0
        %5299 = vmatprep.subr.mxu0 0.0
        %5300 = vmatpush1.msra.mxu0 0.0
        %5301 = vmatprep.subr.mxu0 0.0
        %5302 = vmatpush1.msra.mxu0 0.0
        %5303 = vmatprep.subr.mxu0 0.0
        %5304 = vmatpush1.msra.mxu0 0.0
        %5305 = vmatprep.subr.mxu0 0.0
        %5306 = vmatpush1.msra.mxu0 0.0
        %5307 = vmatprep.subr.mxu0 0.0
        %5308 = vmatpush1.msra.mxu0 0.0
        %5309 = vmatprep.subr.mxu0 0.0
        %5310 = vmatpush1.msra.mxu0 0.0
        %5311 = vmatprep.subr.mxu0 0.0
        %5312 = vmatpush1.msra.mxu0 0.0
        %5313 = vmatprep.subr.mxu0 0.0
        %5314 = vmatpush1.msra.mxu0 0.0
        %5315 = vmatprep.subr.mxu0 0.0
        %5316 = vmatpush1.msra.mxu0 0.0
        %5317 = vmatprep.subr.mxu0 0.0
        %5318 = vmatpush1.msra.mxu0 0.0
        %5319 = vmatprep.subr.mxu0 0.0
        %5320 = vmatpush1.msra.mxu0 0.0
        %5321 = vmatprep.subr.mxu0 0.0
        %5322 = vmatpush1.msra.mxu0 0.0
        %5323 = vmatprep.subr.mxu0 0.0
        %v5324 = vand.u32 %v4363, 4294901760
        %5325 = vmatpush1.msra.mxu0 %v5324
        %5326 = vmatprep.subr.mxu0 0.0
        %v5327 = vand.u32 %v4362, 4294901760
        %5328 = vmatpush1.msra.mxu0 %v5327
        %5329 = vmatprep.subr.mxu0 0.0
        %5330 = vmatpush2.msra.mxu0 0.0
        %5331 = vmatprep.subr.mxu0 0.0
        %5332 = vmatpush2.msra.mxu0 0.0
        %5333 = vmatprep.subr.mxu0 0.0
        %5334 = vmatpush2.msra.mxu0 0.0
        %5335 = vmatprep.subr.mxu0 0.0
        %5336 = vmatpush2.msra.mxu0 0.0
        %5337 = vmatprep.subr.mxu0 0.0
        %5338 = vmatpush2.msra.mxu0 0.0
        %5339 = vmatprep.subr.mxu0 0.0
        %5340 = vmatpush2.msra.mxu0 0.0
        %5341 = vmatprep.subr.mxu0 0.0
        %5342 = vmatpush2.msra.mxu0 0.0
        %5343 = vmatprep.subr.mxu0 0.0
        %5344 = vmatpush2.msra.mxu0 0.0
        %5345 = vmatprep.subr.mxu0 0.0
        %5346 = vmatpush2.msra.mxu0 0.0
        %5347 = vmatprep.subr.mxu0 0.0
        %5348 = vmatpush2.msra.mxu0 0.0
        %5349 = vmatprep.subr.mxu0 0.0
        %5350 = vmatpush2.msra.mxu0 0.0
        %5351 = vmatprep.subr.mxu0 0.0
        %5352 = vmatpush2.msra.mxu0 0.0
        %5353 = vmatprep.subr.mxu0 0.0
        %5354 = vmatpush2.msra.mxu0 0.0
        %5355 = vmatprep.subr.mxu0 0.0
        %5356 = vmatpush2.msra.mxu0 0.0
        %5357 = vmatprep.subr.mxu0 0.0
        %5358 = vmatpush2.msra.mxu0 0.0
        %5359 = vmatprep.subr.mxu0 0.0
        %5360 = vmatpush2.msra.mxu0 0.0
        %5361 = vmatprep.mubr.f32.mxu0 0.0
        %v5362 = vand.u32 %v801, 4294901760
        %5363 = vmatmul.mubr.f32.gmra.mxu0 %v5362
        %v5364 = vpop.f32.mrf.mxu0
        %v5365 = vadd.f32 %v5286, %v5364
        %v5366 = vpop.f32.mrf.mxu0
        %5367 = vmatprep.mubr.f32.mxu0 0.0
        %v5368 = vand.u32 %v804, 4294901760
        %5369 = vmatmul.mubr.f32.gmra.mxu0 %v5368
        %v5370 = vpop.f32.mrf.mxu0
        %v5371 = vadd.f32 %v5292, %v5370
        %v5372 = vpop.f32.mrf.mxu0
        %5373 = vdwg.mxu0
        %5374 = vmatprep.subr.mxu0 0.0
        %5375 = vmatpush1.msra.mxu0 0.0
        %5376 = vmatprep.subr.mxu0 0.0
        %5377 = vmatpush1.msra.mxu0 0.0
        %5378 = vmatprep.subr.mxu0 0.0
        %5379 = vmatpush1.msra.mxu0 0.0
        %5380 = vmatprep.subr.mxu0 0.0
        %5381 = vmatpush1.msra.mxu0 0.0
        %5382 = vmatprep.subr.mxu0 0.0
        %5383 = vmatpush1.msra.mxu0 0.0
        %5384 = vmatprep.subr.mxu0 0.0
        %5385 = vmatpush1.msra.mxu0 0.0
        %5386 = vmatprep.subr.mxu0 0.0
        %5387 = vmatpush1.msra.mxu0 0.0
        %5388 = vmatprep.subr.mxu0 0.0
        %5389 = vmatpush1.msra.mxu0 0.0
        %5390 = vmatprep.subr.mxu0 0.0
        %5391 = vmatpush1.msra.mxu0 0.0
        %5392 = vmatprep.subr.mxu0 0.0
        %5393 = vmatpush1.msra.mxu0 0.0
        %5394 = vmatprep.subr.mxu0 0.0
        %5395 = vmatpush1.msra.mxu0 0.0
        %5396 = vmatprep.subr.mxu0 0.0
        %5397 = vmatpush1.msra.mxu0 0.0
        %5398 = vmatprep.subr.mxu0 0.0
        %5399 = vmatpush1.msra.mxu0 0.0
        %5400 = vmatprep.subr.mxu0 0.0
        %5401 = vmatpush1.msra.mxu0 0.0
        %5402 = vmatprep.subr.mxu0 0.0
        %v5403 = vand.u32 %v5371, 4294901760
        %5404 = vmatpush1.msra.mxu0 %v5403
        %5405 = vmatprep.subr.mxu0 0.0
        %v5406 = vand.u32 %v5365, 4294901760
        %5407 = vmatpush1.msra.mxu0 %v5406
        %5408 = vmatprep.subr.mxu0 0.0
        %5409 = vmatpush2.msra.mxu0 0.0
        %5410 = vmatprep.subr.mxu0 0.0
        %5411 = vmatpush2.msra.mxu0 0.0
        %5412 = vmatprep.subr.mxu0 0.0
        %5413 = vmatpush2.msra.mxu0 0.0
        %5414 = vmatprep.subr.mxu0 0.0
        %5415 = vmatpush2.msra.mxu0 0.0
        %5416 = vmatprep.subr.mxu0 0.0
        %5417 = vmatpush2.msra.mxu0 0.0
        %5418 = vmatprep.subr.mxu0 0.0
        %5419 = vmatpush2.msra.mxu0 0.0
        %5420 = vmatprep.subr.mxu0 0.0
        %5421 = vmatpush2.msra.mxu0 0.0
        %5422 = vmatprep.subr.mxu0 0.0
        %5423 = vmatpush2.msra.mxu0 0.0
        %5424 = vmatprep.subr.mxu0 0.0
        %5425 = vmatpush2.msra.mxu0 0.0
        %5426 = vmatprep.subr.mxu0 0.0
        %5427 = vmatpush2.msra.mxu0 0.0
        %5428 = vmatprep.subr.mxu0 0.0
        %5429 = vmatpush2.msra.mxu0 0.0
        %5430 = vmatprep.subr.mxu0 0.0
        %5431 = vmatpush2.msra.mxu0 0.0
        %5432 = vmatprep.subr.mxu0 0.0
        %5433 = vmatpush2.msra.mxu0 0.0
        %5434 = vmatprep.subr.mxu0 0.0
        %5435 = vmatpush2.msra.mxu0 0.0
        %5436 = vmatprep.subr.mxu0 0.0
        %5437 = vmatpush2.msra.mxu0 0.0
        %5438 = vmatprep.subr.mxu0 0.0
        %5439 = vmatpush2.msra.mxu0 0.0
        %5440 = vmatprep.mubr.f32.mxu0 0.0
        %v5441 = vand.u32 %v1311, 4294901760
        %v5442 = vsub.f32 %v1311, %v5441
        %v5443 = vand.u32 %v5442, 4294901760
        %v5444 = vsub.f32 %v5442, %v5443
        %v5445 = vand.u32 %v5444, 4294901760
        %5446 = vmatmul.mubr.f32.gmra.mxu0 %v5445
        %v5447 = vpop.f32.mrf.mxu0
        %v5448 = vadd.f32 0.0, %v5447
        %v5449 = vpop.f32.mrf.mxu0
        %5450 = vmatprep.mubr.f32.mxu0 0.0
        %v5451 = vand.u32 %v1314, 4294901760
        %v5452 = vsub.f32 %v1314, %v5451
        %v5453 = vand.u32 %v5452, 4294901760
        %v5454 = vsub.f32 %v5452, %v5453
        %v5455 = vand.u32 %v5454, 4294901760
        %5456 = vmatmul.mubr.f32.gmra.mxu0 %v5455
        %v5457 = vpop.f32.mrf.mxu0
        %v5458 = vadd.f32 0.0, %v5457
        %v5459 = vpop.f32.mrf.mxu0
        %5460 = vdwg.mxu0
        %5461 = vmatprep.subr.mxu0 0.0
        %5462 = vmatpush1.msra.mxu0 0.0
        %5463 = vmatprep.subr.mxu0 0.0
        %5464 = vmatpush1.msra.mxu0 0.0
        %5465 = vmatprep.subr.mxu0 0.0
        %5466 = vmatpush1.msra.mxu0 0.0
        %5467 = vmatprep.subr.mxu0 0.0
        %5468 = vmatpush1.msra.mxu0 0.0
        %5469 = vmatprep.subr.mxu0 0.0
        %5470 = vmatpush1.msra.mxu0 0.0
        %5471 = vmatprep.subr.mxu0 0.0
        %5472 = vmatpush1.msra.mxu0 0.0
        %5473 = vmatprep.subr.mxu0 0.0
        %5474 = vmatpush1.msra.mxu0 0.0
        %5475 = vmatprep.subr.mxu0 0.0
        %5476 = vmatpush1.msra.mxu0 0.0
        %5477 = vmatprep.subr.mxu0 0.0
        %5478 = vmatpush1.msra.mxu0 0.0
        %5479 = vmatprep.subr.mxu0 0.0
        %5480 = vmatpush1.msra.mxu0 0.0
        %5481 = vmatprep.subr.mxu0 0.0
        %5482 = vmatpush1.msra.mxu0 0.0
        %5483 = vmatprep.subr.mxu0 0.0
        %5484 = vmatpush1.msra.mxu0 0.0
        %5485 = vmatprep.subr.mxu0 0.0
        %5486 = vmatpush1.msra.mxu0 0.0
        %5487 = vmatprep.subr.mxu0 0.0
        %5488 = vmatpush1.msra.mxu0 0.0
        %5489 = vmatprep.subr.mxu0 0.0
        %v5490 = vand.u32 %v5371, 4294901760
        %v5491 = vsub.f32 %v5371, %v5490
        %v5492 = vand.u32 %v5491, 4294901760
        %v5493 = vsub.f32 %v5491, %v5492
        %v5494 = vand.u32 %v5493, 4294901760
        %5495 = vmatpush1.msra.mxu0 %v5494
        %5496 = vmatprep.subr.mxu0 0.0
        %v5497 = vand.u32 %v5365, 4294901760
        %v5498 = vsub.f32 %v5365, %v5497
        %v5499 = vand.u32 %v5498, 4294901760
        %v5500 = vsub.f32 %v5498, %v5499
        %v5501 = vand.u32 %v5500, 4294901760
        %5502 = vmatpush1.msra.mxu0 %v5501
        %5503 = vmatprep.subr.mxu0 0.0
        %5504 = vmatpush2.msra.mxu0 0.0
        %5505 = vmatprep.subr.mxu0 0.0
        %5506 = vmatpush2.msra.mxu0 0.0
        %5507 = vmatprep.subr.mxu0 0.0
        %5508 = vmatpush2.msra.mxu0 0.0
        %5509 = vmatprep.subr.mxu0 0.0
        %5510 = vmatpush2.msra.mxu0 0.0
        %5511 = vmatprep.subr.mxu0 0.0
        %5512 = vmatpush2.msra.mxu0 0.0
        %5513 = vmatprep.subr.mxu0 0.0
        %5514 = vmatpush2.msra.mxu0 0.0
        %5515 = vmatprep.subr.mxu0 0.0
        %5516 = vmatpush2.msra.mxu0 0.0
        %5517 = vmatprep.subr.mxu0 0.0
        %5518 = vmatpush2.msra.mxu0 0.0
        %5519 = vmatprep.subr.mxu0 0.0
        %5520 = vmatpush2.msra.mxu0 0.0
        %5521 = vmatprep.subr.mxu0 0.0
        %5522 = vmatpush2.msra.mxu0 0.0
        %5523 = vmatprep.subr.mxu0 0.0
        %5524 = vmatpush2.msra.mxu0 0.0
        %5525 = vmatprep.subr.mxu0 0.0
        %5526 = vmatpush2.msra.mxu0 0.0
        %5527 = vmatprep.subr.mxu0 0.0
        %5528 = vmatpush2.msra.mxu0 0.0
        %5529 = vmatprep.subr.mxu0 0.0
        %5530 = vmatpush2.msra.mxu0 0.0
        %5531 = vmatprep.subr.mxu0 0.0
        %5532 = vmatpush2.msra.mxu0 0.0
        %5533 = vmatprep.subr.mxu0 0.0
        %5534 = vmatpush2.msra.mxu0 0.0
        %5535 = vmatprep.mubr.f32.mxu0 0.0
        %v5536 = vand.u32 %v1311, 4294901760
        %5537 = vmatmul.mubr.f32.gmra.mxu0 %v5536
        %v5538 = vpop.f32.mrf.mxu0
        %v5539 = vadd.f32 %v5448, %v5538
        %v5540 = vpop.f32.mrf.mxu0
        %5541 = vmatprep.mubr.f32.mxu0 0.0
        %v5542 = vand.u32 %v1314, 4294901760
        %5543 = vmatmul.mubr.f32.gmra.mxu0 %v5542
        %v5544 = vpop.f32.mrf.mxu0
        %v5545 = vadd.f32 %v5458, %v5544
        %v5546 = vpop.f32.mrf.mxu0
        %5547 = vdwg.mxu0
        %5548 = vmatprep.subr.mxu0 0.0
        %5549 = vmatpush1.msra.mxu0 0.0
        %5550 = vmatprep.subr.mxu0 0.0
        %5551 = vmatpush1.msra.mxu0 0.0
        %5552 = vmatprep.subr.mxu0 0.0
        %5553 = vmatpush1.msra.mxu0 0.0
        %5554 = vmatprep.subr.mxu0 0.0
        %5555 = vmatpush1.msra.mxu0 0.0
        %5556 = vmatprep.subr.mxu0 0.0
        %5557 = vmatpush1.msra.mxu0 0.0
        %5558 = vmatprep.subr.mxu0 0.0
        %5559 = vmatpush1.msra.mxu0 0.0
        %5560 = vmatprep.subr.mxu0 0.0
        %5561 = vmatpush1.msra.mxu0 0.0
        %5562 = vmatprep.subr.mxu0 0.0
        %5563 = vmatpush1.msra.mxu0 0.0
        %5564 = vmatprep.subr.mxu0 0.0
        %5565 = vmatpush1.msra.mxu0 0.0
        %5566 = vmatprep.subr.mxu0 0.0
        %5567 = vmatpush1.msra.mxu0 0.0
        %5568 = vmatprep.subr.mxu0 0.0
        %5569 = vmatpush1.msra.mxu0 0.0
        %5570 = vmatprep.subr.mxu0 0.0
        %5571 = vmatpush1.msra.mxu0 0.0
        %5572 = vmatprep.subr.mxu0 0.0
        %5573 = vmatpush1.msra.mxu0 0.0
        %5574 = vmatprep.subr.mxu0 0.0
        %5575 = vmatpush1.msra.mxu0 0.0
        %5576 = vmatprep.subr.mxu0 0.0
        %v5577 = vand.u32 %v5371, 4294901760
        %v5578 = vsub.f32 %v5371, %v5577
        %5579 = vmatpush1.msra.mxu0 %v5578
        %5580 = vmatprep.subr.mxu0 0.0
        %v5581 = vand.u32 %v5365, 4294901760
        %v5582 = vsub.f32 %v5365, %v5581
        %5583 = vmatpush1.msra.mxu0 %v5582
        %5584 = vmatprep.subr.mxu0 0.0
        %5585 = vmatpush2.msra.mxu0 0.0
        %5586 = vmatprep.subr.mxu0 0.0
        %5587 = vmatpush2.msra.mxu0 0.0
        %5588 = vmatprep.subr.mxu0 0.0
        %5589 = vmatpush2.msra.mxu0 0.0
        %5590 = vmatprep.subr.mxu0 0.0
        %5591 = vmatpush2.msra.mxu0 0.0
        %5592 = vmatprep.subr.mxu0 0.0
        %5593 = vmatpush2.msra.mxu0 0.0
        %5594 = vmatprep.subr.mxu0 0.0
        %5595 = vmatpush2.msra.mxu0 0.0
        %5596 = vmatprep.subr.mxu0 0.0
        %5597 = vmatpush2.msra.mxu0 0.0
        %5598 = vmatprep.subr.mxu0 0.0
        %5599 = vmatpush2.msra.mxu0 0.0
        %5600 = vmatprep.subr.mxu0 0.0
        %5601 = vmatpush2.msra.mxu0 0.0
        %5602 = vmatprep.subr.mxu0 0.0
        %5603 = vmatpush2.msra.mxu0 0.0
        %5604 = vmatprep.subr.mxu0 0.0
        %5605 = vmatpush2.msra.mxu0 0.0
        %5606 = vmatprep.subr.mxu0 0.0
        %5607 = vmatpush2.msra.mxu0 0.0
        %5608 = vmatprep.subr.mxu0 0.0
        %5609 = vmatpush2.msra.mxu0 0.0
        %5610 = vmatprep.subr.mxu0 0.0
        %5611 = vmatpush2.msra.mxu0 0.0
        %5612 = vmatprep.subr.mxu0 0.0
        %5613 = vmatpush2.msra.mxu0 0.0
        %5614 = vmatprep.subr.mxu0 0.0
        %5615 = vmatpush2.msra.mxu0 0.0
        %5616 = vmatprep.mubr.f32.mxu0 0.0
        %v5617 = vand.u32 %v1311, 4294901760
        %v5618 = vsub.f32 %v1311, %v5617
        %5619 = vmatmul.mubr.f32.gmra.mxu0 %v5618
        %v5620 = vpop.f32.mrf.mxu0
        %v5621 = vadd.f32 %v5539, %v5620
        %v5622 = vpop.f32.mrf.mxu0
        %5623 = vmatprep.mubr.f32.mxu0 0.0
        %v5624 = vand.u32 %v1314, 4294901760
        %v5625 = vsub.f32 %v1314, %v5624
        %5626 = vmatmul.mubr.f32.gmra.mxu0 %v5625
        %v5627 = vpop.f32.mrf.mxu0
        %v5628 = vadd.f32 %v5545, %v5627
        %v5629 = vpop.f32.mrf.mxu0
        %5630 = vdwg.mxu0
        %5631 = vmatprep.subr.mxu0 0.0
        %5632 = vmatpush1.msra.mxu0 0.0
        %5633 = vmatprep.subr.mxu0 0.0
        %5634 = vmatpush1.msra.mxu0 0.0
        %5635 = vmatprep.subr.mxu0 0.0
        %5636 = vmatpush1.msra.mxu0 0.0
        %5637 = vmatprep.subr.mxu0 0.0
        %5638 = vmatpush1.msra.mxu0 0.0
        %5639 = vmatprep.subr.mxu0 0.0
        %5640 = vmatpush1.msra.mxu0 0.0
        %5641 = vmatprep.subr.mxu0 0.0
        %5642 = vmatpush1.msra.mxu0 0.0
        %5643 = vmatprep.subr.mxu0 0.0
        %5644 = vmatpush1.msra.mxu0 0.0
        %5645 = vmatprep.subr.mxu0 0.0
        %5646 = vmatpush1.msra.mxu0 0.0
        %5647 = vmatprep.subr.mxu0 0.0
        %5648 = vmatpush1.msra.mxu0 0.0
        %5649 = vmatprep.subr.mxu0 0.0
        %5650 = vmatpush1.msra.mxu0 0.0
        %5651 = vmatprep.subr.mxu0 0.0
        %5652 = vmatpush1.msra.mxu0 0.0
        %5653 = vmatprep.subr.mxu0 0.0
        %5654 = vmatpush1.msra.mxu0 0.0
        %5655 = vmatprep.subr.mxu0 0.0
        %5656 = vmatpush1.msra.mxu0 0.0
        %5657 = vmatprep.subr.mxu0 0.0
        %5658 = vmatpush1.msra.mxu0 0.0
        %5659 = vmatprep.subr.mxu0 0.0
        %v5660 = vand.u32 %v5371, 4294901760
        %5661 = vmatpush1.msra.mxu0 %v5660
        %5662 = vmatprep.subr.mxu0 0.0
        %v5663 = vand.u32 %v5365, 4294901760
        %5664 = vmatpush1.msra.mxu0 %v5663
        %5665 = vmatprep.subr.mxu0 0.0
        %5666 = vmatpush2.msra.mxu0 0.0
        %5667 = vmatprep.subr.mxu0 0.0
        %5668 = vmatpush2.msra.mxu0 0.0
        %5669 = vmatprep.subr.mxu0 0.0
        %5670 = vmatpush2.msra.mxu0 0.0
        %5671 = vmatprep.subr.mxu0 0.0
        %5672 = vmatpush2.msra.mxu0 0.0
        %5673 = vmatprep.subr.mxu0 0.0
        %5674 = vmatpush2.msra.mxu0 0.0
        %5675 = vmatprep.subr.mxu0 0.0
        %5676 = vmatpush2.msra.mxu0 0.0
        %5677 = vmatprep.subr.mxu0 0.0
        %5678 = vmatpush2.msra.mxu0 0.0
        %5679 = vmatprep.subr.mxu0 0.0
        %5680 = vmatpush2.msra.mxu0 0.0
        %5681 = vmatprep.subr.mxu0 0.0
        %5682 = vmatpush2.msra.mxu0 0.0
        %5683 = vmatprep.subr.mxu0 0.0
        %5684 = vmatpush2.msra.mxu0 0.0
        %5685 = vmatprep.subr.mxu0 0.0
        %5686 = vmatpush2.msra.mxu0 0.0
        %5687 = vmatprep.subr.mxu0 0.0
        %5688 = vmatpush2.msra.mxu0 0.0
        %5689 = vmatprep.subr.mxu0 0.0
        %5690 = vmatpush2.msra.mxu0 0.0
        %5691 = vmatprep.subr.mxu0 0.0
        %5692 = vmatpush2.msra.mxu0 0.0
        %5693 = vmatprep.subr.mxu0 0.0
        %5694 = vmatpush2.msra.mxu0 0.0
        %5695 = vmatprep.subr.mxu0 0.0
        %5696 = vmatpush2.msra.mxu0 0.0
        %5697 = vmatprep.mubr.f32.mxu0 0.0
        %v5698 = vand.u32 %v1311, 4294901760
        %v5699 = vsub.f32 %v1311, %v5698
        %v5700 = vand.u32 %v5699, 4294901760
        %5701 = vmatmul.mubr.f32.gmra.mxu0 %v5700
        %v5702 = vpop.f32.mrf.mxu0
        %v5703 = vadd.f32 %v5621, %v5702
        %v5704 = vpop.f32.mrf.mxu0
        %5705 = vmatprep.mubr.f32.mxu0 0.0
        %v5706 = vand.u32 %v1314, 4294901760
        %v5707 = vsub.f32 %v1314, %v5706
        %v5708 = vand.u32 %v5707, 4294901760
        %5709 = vmatmul.mubr.f32.gmra.mxu0 %v5708
        %v5710 = vpop.f32.mrf.mxu0
        %v5711 = vadd.f32 %v5628, %v5710
        %v5712 = vpop.f32.mrf.mxu0
        %5713 = vdwg.mxu0
        %5714 = vmatprep.subr.mxu0 0.0
        %5715 = vmatpush1.msra.mxu0 0.0
        %5716 = vmatprep.subr.mxu0 0.0
        %5717 = vmatpush1.msra.mxu0 0.0
        %5718 = vmatprep.subr.mxu0 0.0
        %5719 = vmatpush1.msra.mxu0 0.0
        %5720 = vmatprep.subr.mxu0 0.0
        %5721 = vmatpush1.msra.mxu0 0.0
        %5722 = vmatprep.subr.mxu0 0.0
        %5723 = vmatpush1.msra.mxu0 0.0
        %5724 = vmatprep.subr.mxu0 0.0
        %5725 = vmatpush1.msra.mxu0 0.0
        %5726 = vmatprep.subr.mxu0 0.0
        %5727 = vmatpush1.msra.mxu0 0.0
        %5728 = vmatprep.subr.mxu0 0.0
        %5729 = vmatpush1.msra.mxu0 0.0
        %5730 = vmatprep.subr.mxu0 0.0
        %5731 = vmatpush1.msra.mxu0 0.0
        %5732 = vmatprep.subr.mxu0 0.0
        %5733 = vmatpush1.msra.mxu0 0.0
        %5734 = vmatprep.subr.mxu0 0.0
        %5735 = vmatpush1.msra.mxu0 0.0
        %5736 = vmatprep.subr.mxu0 0.0
        %5737 = vmatpush1.msra.mxu0 0.0
        %5738 = vmatprep.subr.mxu0 0.0
        %5739 = vmatpush1.msra.mxu0 0.0
        %5740 = vmatprep.subr.mxu0 0.0
        %5741 = vmatpush1.msra.mxu0 0.0
        %5742 = vmatprep.subr.mxu0 0.0
        %v5743 = vand.u32 %v5371, 4294901760
        %v5744 = vsub.f32 %v5371, %v5743
        %v5745 = vand.u32 %v5744, 4294901760
        %5746 = vmatpush1.msra.mxu0 %v5745
        %5747 = vmatprep.subr.mxu0 0.0
        %v5748 = vand.u32 %v5365, 4294901760
        %v5749 = vsub.f32 %v5365, %v5748
        %v5750 = vand.u32 %v5749, 4294901760
        %5751 = vmatpush1.msra.mxu0 %v5750
        %5752 = vmatprep.subr.mxu0 0.0
        %5753 = vmatpush2.msra.mxu0 0.0
        %5754 = vmatprep.subr.mxu0 0.0
        %5755 = vmatpush2.msra.mxu0 0.0
        %5756 = vmatprep.subr.mxu0 0.0
        %5757 = vmatpush2.msra.mxu0 0.0
        %5758 = vmatprep.subr.mxu0 0.0
        %5759 = vmatpush2.msra.mxu0 0.0
        %5760 = vmatprep.subr.mxu0 0.0
        %5761 = vmatpush2.msra.mxu0 0.0
        %5762 = vmatprep.subr.mxu0 0.0
        %5763 = vmatpush2.msra.mxu0 0.0
        %5764 = vmatprep.subr.mxu0 0.0
        %5765 = vmatpush2.msra.mxu0 0.0
        %5766 = vmatprep.subr.mxu0 0.0
        %5767 = vmatpush2.msra.mxu0 0.0
        %5768 = vmatprep.subr.mxu0 0.0
        %5769 = vmatpush2.msra.mxu0 0.0
        %5770 = vmatprep.subr.mxu0 0.0
        %5771 = vmatpush2.msra.mxu0 0.0
        %5772 = vmatprep.subr.mxu0 0.0
        %5773 = vmatpush2.msra.mxu0 0.0
        %5774 = vmatprep.subr.mxu0 0.0
        %5775 = vmatpush2.msra.mxu0 0.0
        %5776 = vmatprep.subr.mxu0 0.0
        %5777 = vmatpush2.msra.mxu0 0.0
        %5778 = vmatprep.subr.mxu0 0.0
        %5779 = vmatpush2.msra.mxu0 0.0
        %5780 = vmatprep.subr.mxu0 0.0
        %5781 = vmatpush2.msra.mxu0 0.0
        %5782 = vmatprep.subr.mxu0 0.0
        %5783 = vmatpush2.msra.mxu0 0.0
        %5784 = vmatprep.mubr.f32.mxu0 0.0
        %v5785 = vand.u32 %v1311, 4294901760
        %5786 = vmatmul.mubr.f32.gmra.mxu0 %v5785
        %v5787 = vpop.f32.mrf.mxu0
        %v5788 = vadd.f32 %v5703, %v5787
        %v5789 = vpop.f32.mrf.mxu0
        %5790 = vmatprep.mubr.f32.mxu0 0.0
        %v5791 = vand.u32 %v1314, 4294901760
        %5792 = vmatmul.mubr.f32.gmra.mxu0 %v5791
        %v5793 = vpop.f32.mrf.mxu0
        %v5794 = vadd.f32 %v5711, %v5793
        %v5795 = vpop.f32.mrf.mxu0
        %5796 = vdwg.mxu0
        %5797 = vmatprep.subr.mxu0 0.0
        %5798 = vmatpush1.msra.mxu0 0.0
        %5799 = vmatprep.subr.mxu0 0.0
        %5800 = vmatpush1.msra.mxu0 0.0
        %5801 = vmatprep.subr.mxu0 0.0
        %5802 = vmatpush1.msra.mxu0 0.0
        %5803 = vmatprep.subr.mxu0 0.0
        %5804 = vmatpush1.msra.mxu0 0.0
        %5805 = vmatprep.subr.mxu0 0.0
        %5806 = vmatpush1.msra.mxu0 0.0
        %5807 = vmatprep.subr.mxu0 0.0
        %5808 = vmatpush1.msra.mxu0 0.0
        %5809 = vmatprep.subr.mxu0 0.0
        %5810 = vmatpush1.msra.mxu0 0.0
        %5811 = vmatprep.subr.mxu0 0.0
        %5812 = vmatpush1.msra.mxu0 0.0
        %5813 = vmatprep.subr.mxu0 0.0
        %5814 = vmatpush1.msra.mxu0 0.0
        %5815 = vmatprep.subr.mxu0 0.0
        %5816 = vmatpush1.msra.mxu0 0.0
        %5817 = vmatprep.subr.mxu0 0.0
        %5818 = vmatpush1.msra.mxu0 0.0
        %5819 = vmatprep.subr.mxu0 0.0
        %5820 = vmatpush1.msra.mxu0 0.0
        %5821 = vmatprep.subr.mxu0 0.0
        %5822 = vmatpush1.msra.mxu0 0.0
        %5823 = vmatprep.subr.mxu0 0.0
        %5824 = vmatpush1.msra.mxu0 0.0
        %5825 = vmatprep.subr.mxu0 0.0
        %v5826 = vand.u32 %v5371, 4294901760
        %5827 = vmatpush1.msra.mxu0 %v5826
        %5828 = vmatprep.subr.mxu0 0.0
        %v5829 = vand.u32 %v5365, 4294901760
        %5830 = vmatpush1.msra.mxu0 %v5829
        %5831 = vmatprep.subr.mxu0 0.0
        %5832 = vmatpush2.msra.mxu0 0.0
        %5833 = vmatprep.subr.mxu0 0.0
        %5834 = vmatpush2.msra.mxu0 0.0
        %5835 = vmatprep.subr.mxu0 0.0
        %5836 = vmatpush2.msra.mxu0 0.0
        %5837 = vmatprep.subr.mxu0 0.0
        %5838 = vmatpush2.msra.mxu0 0.0
        %5839 = vmatprep.subr.mxu0 0.0
        %5840 = vmatpush2.msra.mxu0 0.0
        %5841 = vmatprep.subr.mxu0 0.0
        %5842 = vmatpush2.msra.mxu0 0.0
        %5843 = vmatprep.subr.mxu0 0.0
        %5844 = vmatpush2.msra.mxu0 0.0
        %5845 = vmatprep.subr.mxu0 0.0
        %5846 = vmatpush2.msra.mxu0 0.0
        %5847 = vmatprep.subr.mxu0 0.0
        %5848 = vmatpush2.msra.mxu0 0.0
        %5849 = vmatprep.subr.mxu0 0.0
        %5850 = vmatpush2.msra.mxu0 0.0
        %5851 = vmatprep.subr.mxu0 0.0
        %5852 = vmatpush2.msra.mxu0 0.0
        %5853 = vmatprep.subr.mxu0 0.0
        %5854 = vmatpush2.msra.mxu0 0.0
        %5855 = vmatprep.subr.mxu0 0.0
        %5856 = vmatpush2.msra.mxu0 0.0
        %5857 = vmatprep.subr.mxu0 0.0
        %5858 = vmatpush2.msra.mxu0 0.0
        %5859 = vmatprep.subr.mxu0 0.0
        %5860 = vmatpush2.msra.mxu0 0.0
        %5861 = vmatprep.subr.mxu0 0.0
        %5862 = vmatpush2.msra.mxu0 0.0
        %5863 = vmatprep.mubr.f32.mxu0 0.0
        %v5864 = vand.u32 %v1311, 4294901760
        %5865 = vmatmul.mubr.f32.gmra.mxu0 %v5864
        %v5866 = vpop.f32.mrf.mxu0
        %v5867 = vadd.f32 %v5788, %v5866
        %v5868 = vpop.f32.mrf.mxu0
        %5869 = vmatprep.mubr.f32.mxu0 0.0
        %v5870 = vand.u32 %v1314, 4294901760
        %5871 = vmatmul.mubr.f32.gmra.mxu0 %v5870
        %v5872 = vpop.f32.mrf.mxu0
        %v5873 = vadd.f32 %v5794, %v5872
        %v5874 = vpop.f32.mrf.mxu0
        %5875 = vdwg.mxu0
        %v5877 = vsel %vm291, %v5867, 0
        %v5880 = vsel %vm291, %v5873, 0
        %5882 = vmatprep.subr.mxu0 0.0
        %5883 = vmatpush1.msra.mxu0 0.0
        %5884 = vmatprep.subr.mxu0 0.0
        %5885 = vmatpush1.msra.mxu0 0.0
        %5886 = vmatprep.subr.mxu0 0.0
        %5887 = vmatpush1.msra.mxu0 0.0
        %5888 = vmatprep.subr.mxu0 0.0
        %5889 = vmatpush1.msra.mxu0 0.0
        %5890 = vmatprep.subr.mxu0 0.0
        %5891 = vmatpush1.msra.mxu0 0.0
        %5892 = vmatprep.subr.mxu0 0.0
        %5893 = vmatpush1.msra.mxu0 0.0
        %5894 = vmatprep.subr.mxu0 0.0
        %5895 = vmatpush1.msra.mxu0 0.0
        %5896 = vmatprep.subr.mxu0 0.0
        %5897 = vmatpush1.msra.mxu0 0.0
        %5898 = vmatprep.subr.mxu0 0.0
        %5899 = vmatpush1.msra.mxu0 0.0
        %5900 = vmatprep.subr.mxu0 0.0
        %5901 = vmatpush1.msra.mxu0 0.0
        %5902 = vmatprep.subr.mxu0 0.0
        %5903 = vmatpush1.msra.mxu0 0.0
        %5904 = vmatprep.subr.mxu0 0.0
        %5905 = vmatpush1.msra.mxu0 0.0
        %5906 = vmatprep.subr.mxu0 0.0
        %5907 = vmatpush1.msra.mxu0 0.0
        %5908 = vmatprep.subr.mxu0 0.0
        %5909 = vmatpush1.msra.mxu0 0.0
        %5910 = vmatprep.subr.mxu0 0.0
        %v5911 = vand.u32 %v1819, 4294901760
        %5912 = vmatpush1.msra.mxu0 %v5911
        %5913 = vmatprep.subr.mxu0 0.0
        %v5914 = vand.u32 %v1818, 4294901760
        %5915 = vmatpush1.msra.mxu0 %v5914
        %5916 = vmatprep.subr.mxu0 0.0
        %5917 = vmatpush2.msra.mxu0 0.0
        %5918 = vmatprep.subr.mxu0 0.0
        %5919 = vmatpush2.msra.mxu0 0.0
        %5920 = vmatprep.subr.mxu0 0.0
        %5921 = vmatpush2.msra.mxu0 0.0
        %5922 = vmatprep.subr.mxu0 0.0
        %5923 = vmatpush2.msra.mxu0 0.0
        %5924 = vmatprep.subr.mxu0 0.0
        %5925 = vmatpush2.msra.mxu0 0.0
        %5926 = vmatprep.subr.mxu0 0.0
        %5927 = vmatpush2.msra.mxu0 0.0
        %5928 = vmatprep.subr.mxu0 0.0
        %5929 = vmatpush2.msra.mxu0 0.0
        %5930 = vmatprep.subr.mxu0 0.0
        %5931 = vmatpush2.msra.mxu0 0.0
        %5932 = vmatprep.subr.mxu0 0.0
        %5933 = vmatpush2.msra.mxu0 0.0
        %5934 = vmatprep.subr.mxu0 0.0
        %5935 = vmatpush2.msra.mxu0 0.0
        %5936 = vmatprep.subr.mxu0 0.0
        %5937 = vmatpush2.msra.mxu0 0.0
        %5938 = vmatprep.subr.mxu0 0.0
        %5939 = vmatpush2.msra.mxu0 0.0
        %5940 = vmatprep.subr.mxu0 0.0
        %5941 = vmatpush2.msra.mxu0 0.0
        %5942 = vmatprep.subr.mxu0 0.0
        %5943 = vmatpush2.msra.mxu0 0.0
        %5944 = vmatprep.subr.mxu0 0.0
        %5945 = vmatpush2.msra.mxu0 0.0
        %5946 = vmatprep.subr.mxu0 0.0
        %5947 = vmatpush2.msra.mxu0 0.0
        %5948 = vmatprep.mubr.f32.mxu0 0.0
        %v5949 = vand.u32 %v5877, 4294901760
        %v5950 = vsub.f32 %v5877, %v5949
        %v5951 = vand.u32 %v5950, 4294901760
        %v5952 = vsub.f32 %v5950, %v5951
        %v5953 = vand.u32 %v5952, 4294901760
        %5954 = vmatmul.mubr.f32.gmra.mxu0 %v5953
        %v5955 = vpop.f32.mrf.mxu0
        %v5956 = vadd.f32 0.0, %v5955
        %v5957 = vpop.f32.mrf.mxu0
        %5958 = vmatprep.mubr.f32.mxu0 0.0
        %v5959 = vand.u32 %v5880, 4294901760
        %v5960 = vsub.f32 %v5880, %v5959
        %v5961 = vand.u32 %v5960, 4294901760
        %v5962 = vsub.f32 %v5960, %v5961
        %v5963 = vand.u32 %v5962, 4294901760
        %5964 = vmatmul.mubr.f32.gmra.mxu0 %v5963
        %v5965 = vpop.f32.mrf.mxu0
        %v5966 = vadd.f32 0.0, %v5965
        %v5967 = vpop.f32.mrf.mxu0
        %5968 = vdwg.mxu0
        %5969 = vmatprep.subr.mxu0 0.0
        %5970 = vmatpush1.msra.mxu0 0.0
        %5971 = vmatprep.subr.mxu0 0.0
        %5972 = vmatpush1.msra.mxu0 0.0
        %5973 = vmatprep.subr.mxu0 0.0
        %5974 = vmatpush1.msra.mxu0 0.0
        %5975 = vmatprep.subr.mxu0 0.0
        %5976 = vmatpush1.msra.mxu0 0.0
        %5977 = vmatprep.subr.mxu0 0.0
        %5978 = vmatpush1.msra.mxu0 0.0
        %5979 = vmatprep.subr.mxu0 0.0
        %5980 = vmatpush1.msra.mxu0 0.0
        %5981 = vmatprep.subr.mxu0 0.0
        %5982 = vmatpush1.msra.mxu0 0.0
        %5983 = vmatprep.subr.mxu0 0.0
        %5984 = vmatpush1.msra.mxu0 0.0
        %5985 = vmatprep.subr.mxu0 0.0
        %5986 = vmatpush1.msra.mxu0 0.0
        %5987 = vmatprep.subr.mxu0 0.0
        %5988 = vmatpush1.msra.mxu0 0.0
        %5989 = vmatprep.subr.mxu0 0.0
        %5990 = vmatpush1.msra.mxu0 0.0
        %5991 = vmatprep.subr.mxu0 0.0
        %5992 = vmatpush1.msra.mxu0 0.0
        %5993 = vmatprep.subr.mxu0 0.0
        %5994 = vmatpush1.msra.mxu0 0.0
        %5995 = vmatprep.subr.mxu0 0.0
        %5996 = vmatpush1.msra.mxu0 0.0
        %5997 = vmatprep.subr.mxu0 0.0
        %v5998 = vand.u32 %v1819, 4294901760
        %v5999 = vsub.f32 %v1819, %v5998
        %v6000 = vand.u32 %v5999, 4294901760
        %v6001 = vsub.f32 %v5999, %v6000
        %v6002 = vand.u32 %v6001, 4294901760
        %6003 = vmatpush1.msra.mxu0 %v6002
        %6004 = vmatprep.subr.mxu0 0.0
        %v6005 = vand.u32 %v1818, 4294901760
        %v6006 = vsub.f32 %v1818, %v6005
        %v6007 = vand.u32 %v6006, 4294901760
        %v6008 = vsub.f32 %v6006, %v6007
        %v6009 = vand.u32 %v6008, 4294901760
        %6010 = vmatpush1.msra.mxu0 %v6009
        %6011 = vmatprep.subr.mxu0 0.0
        %6012 = vmatpush2.msra.mxu0 0.0
        %6013 = vmatprep.subr.mxu0 0.0
        %6014 = vmatpush2.msra.mxu0 0.0
        %6015 = vmatprep.subr.mxu0 0.0
        %6016 = vmatpush2.msra.mxu0 0.0
        %6017 = vmatprep.subr.mxu0 0.0
        %6018 = vmatpush2.msra.mxu0 0.0
        %6019 = vmatprep.subr.mxu0 0.0
        %6020 = vmatpush2.msra.mxu0 0.0
        %6021 = vmatprep.subr.mxu0 0.0
        %6022 = vmatpush2.msra.mxu0 0.0
        %6023 = vmatprep.subr.mxu0 0.0
        %6024 = vmatpush2.msra.mxu0 0.0
        %6025 = vmatprep.subr.mxu0 0.0
        %6026 = vmatpush2.msra.mxu0 0.0
        %6027 = vmatprep.subr.mxu0 0.0
        %6028 = vmatpush2.msra.mxu0 0.0
        %6029 = vmatprep.subr.mxu0 0.0
        %6030 = vmatpush2.msra.mxu0 0.0
        %6031 = vmatprep.subr.mxu0 0.0
        %6032 = vmatpush2.msra.mxu0 0.0
        %6033 = vmatprep.subr.mxu0 0.0
        %6034 = vmatpush2.msra.mxu0 0.0
        %6035 = vmatprep.subr.mxu0 0.0
        %6036 = vmatpush2.msra.mxu0 0.0
        %6037 = vmatprep.subr.mxu0 0.0
        %6038 = vmatpush2.msra.mxu0 0.0
        %6039 = vmatprep.subr.mxu0 0.0
        %6040 = vmatpush2.msra.mxu0 0.0
        %6041 = vmatprep.subr.mxu0 0.0
        %6042 = vmatpush2.msra.mxu0 0.0
        %6043 = vmatprep.mubr.f32.mxu0 0.0
        %v6044 = vand.u32 %v5877, 4294901760
        %6045 = vmatmul.mubr.f32.gmra.mxu0 %v6044
        %v6046 = vpop.f32.mrf.mxu0
        %v6047 = vadd.f32 %v5956, %v6046
        %v6048 = vpop.f32.mrf.mxu0
        %6049 = vmatprep.mubr.f32.mxu0 0.0
        %v6050 = vand.u32 %v5880, 4294901760
        %6051 = vmatmul.mubr.f32.gmra.mxu0 %v6050
        %v6052 = vpop.f32.mrf.mxu0
        %v6053 = vadd.f32 %v5966, %v6052
        %v6054 = vpop.f32.mrf.mxu0
        %6055 = vdwg.mxu0
        %6056 = vmatprep.subr.mxu0 0.0
        %6057 = vmatpush1.msra.mxu0 0.0
        %6058 = vmatprep.subr.mxu0 0.0
        %6059 = vmatpush1.msra.mxu0 0.0
        %6060 = vmatprep.subr.mxu0 0.0
        %6061 = vmatpush1.msra.mxu0 0.0
        %6062 = vmatprep.subr.mxu0 0.0
        %6063 = vmatpush1.msra.mxu0 0.0
        %6064 = vmatprep.subr.mxu0 0.0
        %6065 = vmatpush1.msra.mxu0 0.0
        %6066 = vmatprep.subr.mxu0 0.0
        %6067 = vmatpush1.msra.mxu0 0.0
        %6068 = vmatprep.subr.mxu0 0.0
        %6069 = vmatpush1.msra.mxu0 0.0
        %6070 = vmatprep.subr.mxu0 0.0
        %6071 = vmatpush1.msra.mxu0 0.0
        %6072 = vmatprep.subr.mxu0 0.0
        %6073 = vmatpush1.msra.mxu0 0.0
        %6074 = vmatprep.subr.mxu0 0.0
        %6075 = vmatpush1.msra.mxu0 0.0
        %6076 = vmatprep.subr.mxu0 0.0
        %6077 = vmatpush1.msra.mxu0 0.0
        %6078 = vmatprep.subr.mxu0 0.0
        %6079 = vmatpush1.msra.mxu0 0.0
        %6080 = vmatprep.subr.mxu0 0.0
        %6081 = vmatpush1.msra.mxu0 0.0
        %6082 = vmatprep.subr.mxu0 0.0
        %6083 = vmatpush1.msra.mxu0 0.0
        %6084 = vmatprep.subr.mxu0 0.0
        %v6085 = vand.u32 %v1819, 4294901760
        %v6086 = vsub.f32 %v1819, %v6085
        %6087 = vmatpush1.msra.mxu0 %v6086
        %6088 = vmatprep.subr.mxu0 0.0
        %v6089 = vand.u32 %v1818, 4294901760
        %v6090 = vsub.f32 %v1818, %v6089
        %6091 = vmatpush1.msra.mxu0 %v6090
        %6092 = vmatprep.subr.mxu0 0.0
        %6093 = vmatpush2.msra.mxu0 0.0
        %6094 = vmatprep.subr.mxu0 0.0
        %6095 = vmatpush2.msra.mxu0 0.0
        %6096 = vmatprep.subr.mxu0 0.0
        %6097 = vmatpush2.msra.mxu0 0.0
        %6098 = vmatprep.subr.mxu0 0.0
        %6099 = vmatpush2.msra.mxu0 0.0
        %6100 = vmatprep.subr.mxu0 0.0
        %6101 = vmatpush2.msra.mxu0 0.0
        %6102 = vmatprep.subr.mxu0 0.0
        %6103 = vmatpush2.msra.mxu0 0.0
        %6104 = vmatprep.subr.mxu0 0.0
        %6105 = vmatpush2.msra.mxu0 0.0
        %6106 = vmatprep.subr.mxu0 0.0
        %6107 = vmatpush2.msra.mxu0 0.0
        %6108 = vmatprep.subr.mxu0 0.0
        %6109 = vmatpush2.msra.mxu0 0.0
        %6110 = vmatprep.subr.mxu0 0.0
        %6111 = vmatpush2.msra.mxu0 0.0
        %6112 = vmatprep.subr.mxu0 0.0
        %6113 = vmatpush2.msra.mxu0 0.0
        %6114 = vmatprep.subr.mxu0 0.0
        %6115 = vmatpush2.msra.mxu0 0.0
        %6116 = vmatprep.subr.mxu0 0.0
        %6117 = vmatpush2.msra.mxu0 0.0
        %6118 = vmatprep.subr.mxu0 0.0
        %6119 = vmatpush2.msra.mxu0 0.0
        %6120 = vmatprep.subr.mxu0 0.0
        %6121 = vmatpush2.msra.mxu0 0.0
        %6122 = vmatprep.subr.mxu0 0.0
        %6123 = vmatpush2.msra.mxu0 0.0
        %6124 = vmatprep.mubr.f32.mxu0 0.0
        %v6125 = vand.u32 %v5877, 4294901760
        %v6126 = vsub.f32 %v5877, %v6125
        %6127 = vmatmul.mubr.f32.gmra.mxu0 %v6126
        %v6128 = vpop.f32.mrf.mxu0
        %v6129 = vadd.f32 %v6047, %v6128
        %v6130 = vpop.f32.mrf.mxu0
        %6131 = vmatprep.mubr.f32.mxu0 0.0
        %v6132 = vand.u32 %v5880, 4294901760
        %v6133 = vsub.f32 %v5880, %v6132
        %6134 = vmatmul.mubr.f32.gmra.mxu0 %v6133
        %v6135 = vpop.f32.mrf.mxu0
        %v6136 = vadd.f32 %v6053, %v6135
        %v6137 = vpop.f32.mrf.mxu0
        %6138 = vdwg.mxu0
        %6139 = vmatprep.subr.mxu0 0.0
        %6140 = vmatpush1.msra.mxu0 0.0
        %6141 = vmatprep.subr.mxu0 0.0
        %6142 = vmatpush1.msra.mxu0 0.0
        %6143 = vmatprep.subr.mxu0 0.0
        %6144 = vmatpush1.msra.mxu0 0.0
        %6145 = vmatprep.subr.mxu0 0.0
        %6146 = vmatpush1.msra.mxu0 0.0
        %6147 = vmatprep.subr.mxu0 0.0
        %6148 = vmatpush1.msra.mxu0 0.0
        %6149 = vmatprep.subr.mxu0 0.0
        %6150 = vmatpush1.msra.mxu0 0.0
        %6151 = vmatprep.subr.mxu0 0.0
        %6152 = vmatpush1.msra.mxu0 0.0
        %6153 = vmatprep.subr.mxu0 0.0
        %6154 = vmatpush1.msra.mxu0 0.0
        %6155 = vmatprep.subr.mxu0 0.0
        %6156 = vmatpush1.msra.mxu0 0.0
        %6157 = vmatprep.subr.mxu0 0.0
        %6158 = vmatpush1.msra.mxu0 0.0
        %6159 = vmatprep.subr.mxu0 0.0
        %6160 = vmatpush1.msra.mxu0 0.0
        %6161 = vmatprep.subr.mxu0 0.0
        %6162 = vmatpush1.msra.mxu0 0.0
        %6163 = vmatprep.subr.mxu0 0.0
        %6164 = vmatpush1.msra.mxu0 0.0
        %6165 = vmatprep.subr.mxu0 0.0
        %6166 = vmatpush1.msra.mxu0 0.0
        %6167 = vmatprep.subr.mxu0 0.0
        %v6168 = vand.u32 %v1819, 4294901760
        %6169 = vmatpush1.msra.mxu0 %v6168
        %6170 = vmatprep.subr.mxu0 0.0
        %v6171 = vand.u32 %v1818, 4294901760
        %6172 = vmatpush1.msra.mxu0 %v6171
        %6173 = vmatprep.subr.mxu0 0.0
        %6174 = vmatpush2.msra.mxu0 0.0
        %6175 = vmatprep.subr.mxu0 0.0
        %6176 = vmatpush2.msra.mxu0 0.0
        %6177 = vmatprep.subr.mxu0 0.0
        %6178 = vmatpush2.msra.mxu0 0.0
        %6179 = vmatprep.subr.mxu0 0.0
        %6180 = vmatpush2.msra.mxu0 0.0
        %6181 = vmatprep.subr.mxu0 0.0
        %6182 = vmatpush2.msra.mxu0 0.0
        %6183 = vmatprep.subr.mxu0 0.0
        %6184 = vmatpush2.msra.mxu0 0.0
        %6185 = vmatprep.subr.mxu0 0.0
        %6186 = vmatpush2.msra.mxu0 0.0
        %6187 = vmatprep.subr.mxu0 0.0
        %6188 = vmatpush2.msra.mxu0 0.0
        %6189 = vmatprep.subr.mxu0 0.0
        %6190 = vmatpush2.msra.mxu0 0.0
        %6191 = vmatprep.subr.mxu0 0.0
        %6192 = vmatpush2.msra.mxu0 0.0
        %6193 = vmatprep.subr.mxu0 0.0
        %6194 = vmatpush2.msra.mxu0 0.0
        %6195 = vmatprep.subr.mxu0 0.0
        %6196 = vmatpush2.msra.mxu0 0.0
        %6197 = vmatprep.subr.mxu0 0.0
        %6198 = vmatpush2.msra.mxu0 0.0
        %6199 = vmatprep.subr.mxu0 0.0
        %6200 = vmatpush2.msra.mxu0 0.0
        %6201 = vmatprep.subr.mxu0 0.0
        %6202 = vmatpush2.msra.mxu0 0.0
        %6203 = vmatprep.subr.mxu0 0.0
        %6204 = vmatpush2.msra.mxu0 0.0
        %6205 = vmatprep.mubr.f32.mxu0 0.0
        %v6206 = vand.u32 %v5877, 4294901760
        %v6207 = vsub.f32 %v5877, %v6206
        %v6208 = vand.u32 %v6207, 4294901760
        %6209 = vmatmul.mubr.f32.gmra.mxu0 %v6208
        %v6210 = vpop.f32.mrf.mxu0
        %v6211 = vadd.f32 %v6129, %v6210
        %v6212 = vpop.f32.mrf.mxu0
        %6213 = vmatprep.mubr.f32.mxu0 0.0
        %v6214 = vand.u32 %v5880, 4294901760
        %v6215 = vsub.f32 %v5880, %v6214
        %v6216 = vand.u32 %v6215, 4294901760
        %6217 = vmatmul.mubr.f32.gmra.mxu0 %v6216
        %v6218 = vpop.f32.mrf.mxu0
        %v6219 = vadd.f32 %v6136, %v6218
        %v6220 = vpop.f32.mrf.mxu0
        %6221 = vdwg.mxu0
        %6222 = vmatprep.subr.mxu0 0.0
        %6223 = vmatpush1.msra.mxu0 0.0
        %6224 = vmatprep.subr.mxu0 0.0
        %6225 = vmatpush1.msra.mxu0 0.0
        %6226 = vmatprep.subr.mxu0 0.0
        %6227 = vmatpush1.msra.mxu0 0.0
        %6228 = vmatprep.subr.mxu0 0.0
        %6229 = vmatpush1.msra.mxu0 0.0
        %6230 = vmatprep.subr.mxu0 0.0
        %6231 = vmatpush1.msra.mxu0 0.0
        %6232 = vmatprep.subr.mxu0 0.0
        %6233 = vmatpush1.msra.mxu0 0.0
        %6234 = vmatprep.subr.mxu0 0.0
        %6235 = vmatpush1.msra.mxu0 0.0
        %6236 = vmatprep.subr.mxu0 0.0
        %6237 = vmatpush1.msra.mxu0 0.0
        %6238 = vmatprep.subr.mxu0 0.0
        %6239 = vmatpush1.msra.mxu0 0.0
        %6240 = vmatprep.subr.mxu0 0.0
        %6241 = vmatpush1.msra.mxu0 0.0
        %6242 = vmatprep.subr.mxu0 0.0
        %6243 = vmatpush1.msra.mxu0 0.0
        %6244 = vmatprep.subr.mxu0 0.0
        %6245 = vmatpush1.msra.mxu0 0.0
        %6246 = vmatprep.subr.mxu0 0.0
        %6247 = vmatpush1.msra.mxu0 0.0
        %6248 = vmatprep.subr.mxu0 0.0
        %6249 = vmatpush1.msra.mxu0 0.0
        %6250 = vmatprep.subr.mxu0 0.0
        %v6251 = vand.u32 %v1819, 4294901760
        %v6252 = vsub.f32 %v1819, %v6251
        %v6253 = vand.u32 %v6252, 4294901760
        %6254 = vmatpush1.msra.mxu0 %v6253
        %6255 = vmatprep.subr.mxu0 0.0
        %v6256 = vand.u32 %v1818, 4294901760
        %v6257 = vsub.f32 %v1818, %v6256
        %v6258 = vand.u32 %v6257, 4294901760
        %6259 = vmatpush1.msra.mxu0 %v6258
        %6260 = vmatprep.subr.mxu0 0.0
        %6261 = vmatpush2.msra.mxu0 0.0
        %6262 = vmatprep.subr.mxu0 0.0
        %6263 = vmatpush2.msra.mxu0 0.0
        %6264 = vmatprep.subr.mxu0 0.0
        %6265 = vmatpush2.msra.mxu0 0.0
        %6266 = vmatprep.subr.mxu0 0.0
        %6267 = vmatpush2.msra.mxu0 0.0
        %6268 = vmatprep.subr.mxu0 0.0
        %6269 = vmatpush2.msra.mxu0 0.0
        %6270 = vmatprep.subr.mxu0 0.0
        %6271 = vmatpush2.msra.mxu0 0.0
        %6272 = vmatprep.subr.mxu0 0.0
        %6273 = vmatpush2.msra.mxu0 0.0
        %6274 = vmatprep.subr.mxu0 0.0
        %6275 = vmatpush2.msra.mxu0 0.0
        %6276 = vmatprep.subr.mxu0 0.0
        %6277 = vmatpush2.msra.mxu0 0.0
        %6278 = vmatprep.subr.mxu0 0.0
        %6279 = vmatpush2.msra.mxu0 0.0
        %6280 = vmatprep.subr.mxu0 0.0
        %6281 = vmatpush2.msra.mxu0 0.0
        %6282 = vmatprep.subr.mxu0 0.0
        %6283 = vmatpush2.msra.mxu0 0.0
        %6284 = vmatprep.subr.mxu0 0.0
        %6285 = vmatpush2.msra.mxu0 0.0
        %6286 = vmatprep.subr.mxu0 0.0
        %6287 = vmatpush2.msra.mxu0 0.0
        %6288 = vmatprep.subr.mxu0 0.0
        %6289 = vmatpush2.msra.mxu0 0.0
        %6290 = vmatprep.subr.mxu0 0.0
        %6291 = vmatpush2.msra.mxu0 0.0
        %6292 = vmatprep.mubr.f32.mxu0 0.0
        %v6293 = vand.u32 %v5877, 4294901760
        %6294 = vmatmul.mubr.f32.gmra.mxu0 %v6293
        %v6295 = vpop.f32.mrf.mxu0
        %v6296 = vadd.f32 %v6211, %v6295
        %v6297 = vpop.f32.mrf.mxu0
        %6298 = vmatprep.mubr.f32.mxu0 0.0
        %v6299 = vand.u32 %v5880, 4294901760
        %6300 = vmatmul.mubr.f32.gmra.mxu0 %v6299
        %v6301 = vpop.f32.mrf.mxu0
        %v6302 = vadd.f32 %v6219, %v6301
        %v6303 = vpop.f32.mrf.mxu0
        %6304 = vdwg.mxu0
        %6305 = vmatprep.subr.mxu0 0.0
        %6306 = vmatpush1.msra.mxu0 0.0
        %6307 = vmatprep.subr.mxu0 0.0
        %6308 = vmatpush1.msra.mxu0 0.0
        %6309 = vmatprep.subr.mxu0 0.0
        %6310 = vmatpush1.msra.mxu0 0.0
        %6311 = vmatprep.subr.mxu0 0.0
        %6312 = vmatpush1.msra.mxu0 0.0
        %6313 = vmatprep.subr.mxu0 0.0
        %6314 = vmatpush1.msra.mxu0 0.0
        %6315 = vmatprep.subr.mxu0 0.0
        %6316 = vmatpush1.msra.mxu0 0.0
        %6317 = vmatprep.subr.mxu0 0.0
        %6318 = vmatpush1.msra.mxu0 0.0
        %6319 = vmatprep.subr.mxu0 0.0
        %6320 = vmatpush1.msra.mxu0 0.0
        %6321 = vmatprep.subr.mxu0 0.0
        %6322 = vmatpush1.msra.mxu0 0.0
        %6323 = vmatprep.subr.mxu0 0.0
        %6324 = vmatpush1.msra.mxu0 0.0
        %6325 = vmatprep.subr.mxu0 0.0
        %6326 = vmatpush1.msra.mxu0 0.0
        %6327 = vmatprep.subr.mxu0 0.0
        %6328 = vmatpush1.msra.mxu0 0.0
        %6329 = vmatprep.subr.mxu0 0.0
        %6330 = vmatpush1.msra.mxu0 0.0
        %6331 = vmatprep.subr.mxu0 0.0
        %6332 = vmatpush1.msra.mxu0 0.0
        %6333 = vmatprep.subr.mxu0 0.0
        %v6334 = vand.u32 %v1819, 4294901760
        %6335 = vmatpush1.msra.mxu0 %v6334
        %6336 = vmatprep.subr.mxu0 0.0
        %v6337 = vand.u32 %v1818, 4294901760
        %6338 = vmatpush1.msra.mxu0 %v6337
        %6339 = vmatprep.subr.mxu0 0.0
        %6340 = vmatpush2.msra.mxu0 0.0
        %6341 = vmatprep.subr.mxu0 0.0
        %6342 = vmatpush2.msra.mxu0 0.0
        %6343 = vmatprep.subr.mxu0 0.0
        %6344 = vmatpush2.msra.mxu0 0.0
        %6345 = vmatprep.subr.mxu0 0.0
        %6346 = vmatpush2.msra.mxu0 0.0
        %6347 = vmatprep.subr.mxu0 0.0
        %6348 = vmatpush2.msra.mxu0 0.0
        %6349 = vmatprep.subr.mxu0 0.0
        %6350 = vmatpush2.msra.mxu0 0.0
        %6351 = vmatprep.subr.mxu0 0.0
        %6352 = vmatpush2.msra.mxu0 0.0
        %6353 = vmatprep.subr.mxu0 0.0
        %6354 = vmatpush2.msra.mxu0 0.0
        %6355 = vmatprep.subr.mxu0 0.0
        %6356 = vmatpush2.msra.mxu0 0.0
        %6357 = vmatprep.subr.mxu0 0.0
        %6358 = vmatpush2.msra.mxu0 0.0
        %6359 = vmatprep.subr.mxu0 0.0
        %6360 = vmatpush2.msra.mxu0 0.0
        %6361 = vmatprep.subr.mxu0 0.0
        %6362 = vmatpush2.msra.mxu0 0.0
        %6363 = vmatprep.subr.mxu0 0.0
        %6364 = vmatpush2.msra.mxu0 0.0
        %6365 = vmatprep.subr.mxu0 0.0
        %6366 = vmatpush2.msra.mxu0 0.0
        %6367 = vmatprep.subr.mxu0 0.0
        %6368 = vmatpush2.msra.mxu0 0.0
        %6369 = vmatprep.subr.mxu0 0.0
        %6370 = vmatpush2.msra.mxu0 0.0
        %6371 = vmatprep.mubr.f32.mxu0 0.0
        %v6372 = vand.u32 %v5877, 4294901760
        %6373 = vmatmul.mubr.f32.gmra.mxu0 %v6372
        %v6374 = vpop.f32.mrf.mxu0
        %v6375 = vadd.f32 %v6296, %v6374
        %v6376 = vpop.f32.mrf.mxu0
        %6377 = vmatprep.mubr.f32.mxu0 0.0
        %v6378 = vand.u32 %v5880, 4294901760
        %6379 = vmatmul.mubr.f32.gmra.mxu0 %v6378
        %v6380 = vpop.f32.mrf.mxu0
        %v6381 = vadd.f32 %v6302, %v6380
        %v6382 = vpop.f32.mrf.mxu0
        %6383 = vdwg.mxu0
        %v6384 = vmul.f32 %v6375, 0.9071118
        %v6385 = vmul.f32 %v6381, 0.9071118
        %v6386 = vmul.f32 %v5365, 0.9071118
        %v6387 = vmul.f32 %v5371, 0.9071118
        %v6388 = vadd.f32 %v6384, %v6386
        %v6389 = vadd.f32 %v6385, %v6387
        %v6390 = vsub.f32 %v4362, %v6388
        %v6391 = vsub.f32 %v4363, %v6389
        %v6393 = vsel %vm291, %v6390, 0
        %v6396 = vsel %vm291, %v6391, 0
        %6398 = vmatprep.subr.mxu0 0.0
        %6399 = vmatpush1.msra.mxu0 0.0
        %6400 = vmatprep.subr.mxu0 0.0
        %6401 = vmatpush1.msra.mxu0 0.0
        %6402 = vmatprep.subr.mxu0 0.0
        %6403 = vmatpush1.msra.mxu0 0.0
        %6404 = vmatprep.subr.mxu0 0.0
        %6405 = vmatpush1.msra.mxu0 0.0
        %6406 = vmatprep.subr.mxu0 0.0
        %6407 = vmatpush1.msra.mxu0 0.0
        %6408 = vmatprep.subr.mxu0 0.0
        %6409 = vmatpush1.msra.mxu0 0.0
        %6410 = vmatprep.subr.mxu0 0.0
        %6411 = vmatpush1.msra.mxu0 0.0
        %6412 = vmatprep.subr.mxu0 0.0
        %6413 = vmatpush1.msra.mxu0 0.0
        %6414 = vmatprep.subr.mxu0 0.0
        %6415 = vmatpush1.msra.mxu0 0.0
        %6416 = vmatprep.subr.mxu0 0.0
        %6417 = vmatpush1.msra.mxu0 0.0
        %6418 = vmatprep.subr.mxu0 0.0
        %6419 = vmatpush1.msra.mxu0 0.0
        %6420 = vmatprep.subr.mxu0 0.0
        %6421 = vmatpush1.msra.mxu0 0.0
        %6422 = vmatprep.subr.mxu0 0.0
        %6423 = vmatpush1.msra.mxu0 0.0
        %6424 = vmatprep.subr.mxu0 0.0
        %6425 = vmatpush1.msra.mxu0 0.0
        %6426 = vmatprep.subr.mxu0 0.0
        %v6427 = vand.u32 %v290, 4294901760
        %6428 = vmatpush1.msra.mxu0 %v6427
        %6429 = vmatprep.subr.mxu0 0.0
        %v6430 = vand.u32 %v289, 4294901760
        %6431 = vmatpush1.msra.mxu0 %v6430
        %6432 = vmatprep.subr.mxu0 0.0
        %6433 = vmatpush2.msra.mxu0 0.0
        %6434 = vmatprep.subr.mxu0 0.0
        %6435 = vmatpush2.msra.mxu0 0.0
        %6436 = vmatprep.subr.mxu0 0.0
        %6437 = vmatpush2.msra.mxu0 0.0
        %6438 = vmatprep.subr.mxu0 0.0
        %6439 = vmatpush2.msra.mxu0 0.0
        %6440 = vmatprep.subr.mxu0 0.0
        %6441 = vmatpush2.msra.mxu0 0.0
        %6442 = vmatprep.subr.mxu0 0.0
        %6443 = vmatpush2.msra.mxu0 0.0
        %6444 = vmatprep.subr.mxu0 0.0
        %6445 = vmatpush2.msra.mxu0 0.0
        %6446 = vmatprep.subr.mxu0 0.0
        %6447 = vmatpush2.msra.mxu0 0.0
        %6448 = vmatprep.subr.mxu0 0.0
        %6449 = vmatpush2.msra.mxu0 0.0
        %6450 = vmatprep.subr.mxu0 0.0
        %6451 = vmatpush2.msra.mxu0 0.0
        %6452 = vmatprep.subr.mxu0 0.0
        %6453 = vmatpush2.msra.mxu0 0.0
        %6454 = vmatprep.subr.mxu0 0.0
        %6455 = vmatpush2.msra.mxu0 0.0
        %6456 = vmatprep.subr.mxu0 0.0
        %6457 = vmatpush2.msra.mxu0 0.0
        %6458 = vmatprep.subr.mxu0 0.0
        %6459 = vmatpush2.msra.mxu0 0.0
        %6460 = vmatprep.subr.mxu0 0.0
        %6461 = vmatpush2.msra.mxu0 0.0
        %6462 = vmatprep.subr.mxu0 0.0
        %6463 = vmatpush2.msra.mxu0 0.0
        %6464 = vmatprep.mubr.f32.mxu0 0.0
        %v6465 = vand.u32 %v6393, 4294901760
        %v6466 = vsub.f32 %v6393, %v6465
        %v6467 = vand.u32 %v6466, 4294901760
        %v6468 = vsub.f32 %v6466, %v6467
        %v6469 = vand.u32 %v6468, 4294901760
        %6470 = vmatmul.mubr.f32.gmra.mxu0 %v6469
        %v6471 = vpop.f32.mrf.mxu0
        %v6472 = vadd.f32 0.0, %v6471
        %v6473 = vpop.f32.mrf.mxu0
        %6474 = vmatprep.mubr.f32.mxu0 0.0
        %v6475 = vand.u32 %v6396, 4294901760
        %v6476 = vsub.f32 %v6396, %v6475
        %v6477 = vand.u32 %v6476, 4294901760
        %v6478 = vsub.f32 %v6476, %v6477
        %v6479 = vand.u32 %v6478, 4294901760
        %6480 = vmatmul.mubr.f32.gmra.mxu0 %v6479
        %v6481 = vpop.f32.mrf.mxu0
        %v6482 = vadd.f32 0.0, %v6481
        %v6483 = vpop.f32.mrf.mxu0
        %6484 = vdwg.mxu0
        %6485 = vmatprep.subr.mxu0 0.0
        %6486 = vmatpush1.msra.mxu0 0.0
        %6487 = vmatprep.subr.mxu0 0.0
        %6488 = vmatpush1.msra.mxu0 0.0
        %6489 = vmatprep.subr.mxu0 0.0
        %6490 = vmatpush1.msra.mxu0 0.0
        %6491 = vmatprep.subr.mxu0 0.0
        %6492 = vmatpush1.msra.mxu0 0.0
        %6493 = vmatprep.subr.mxu0 0.0
        %6494 = vmatpush1.msra.mxu0 0.0
        %6495 = vmatprep.subr.mxu0 0.0
        %6496 = vmatpush1.msra.mxu0 0.0
        %6497 = vmatprep.subr.mxu0 0.0
        %6498 = vmatpush1.msra.mxu0 0.0
        %6499 = vmatprep.subr.mxu0 0.0
        %6500 = vmatpush1.msra.mxu0 0.0
        %6501 = vmatprep.subr.mxu0 0.0
        %6502 = vmatpush1.msra.mxu0 0.0
        %6503 = vmatprep.subr.mxu0 0.0
        %6504 = vmatpush1.msra.mxu0 0.0
        %6505 = vmatprep.subr.mxu0 0.0
        %6506 = vmatpush1.msra.mxu0 0.0
        %6507 = vmatprep.subr.mxu0 0.0
        %6508 = vmatpush1.msra.mxu0 0.0
        %6509 = vmatprep.subr.mxu0 0.0
        %6510 = vmatpush1.msra.mxu0 0.0
        %6511 = vmatprep.subr.mxu0 0.0
        %6512 = vmatpush1.msra.mxu0 0.0
        %6513 = vmatprep.subr.mxu0 0.0
        %v6514 = vand.u32 %v290, 4294901760
        %v6515 = vsub.f32 %v290, %v6514
        %v6516 = vand.u32 %v6515, 4294901760
        %v6517 = vsub.f32 %v6515, %v6516
        %v6518 = vand.u32 %v6517, 4294901760
        %6519 = vmatpush1.msra.mxu0 %v6518
        %6520 = vmatprep.subr.mxu0 0.0
        %v6521 = vand.u32 %v289, 4294901760
        %v6522 = vsub.f32 %v289, %v6521
        %v6523 = vand.u32 %v6522, 4294901760
        %v6524 = vsub.f32 %v6522, %v6523
        %v6525 = vand.u32 %v6524, 4294901760
        %6526 = vmatpush1.msra.mxu0 %v6525
        %6527 = vmatprep.subr.mxu0 0.0
        %6528 = vmatpush2.msra.mxu0 0.0
        %6529 = vmatprep.subr.mxu0 0.0
        %6530 = vmatpush2.msra.mxu0 0.0
        %6531 = vmatprep.subr.mxu0 0.0
        %6532 = vmatpush2.msra.mxu0 0.0
        %6533 = vmatprep.subr.mxu0 0.0
        %6534 = vmatpush2.msra.mxu0 0.0
        %6535 = vmatprep.subr.mxu0 0.0
        %6536 = vmatpush2.msra.mxu0 0.0
        %6537 = vmatprep.subr.mxu0 0.0
        %6538 = vmatpush2.msra.mxu0 0.0
        %6539 = vmatprep.subr.mxu0 0.0
        %6540 = vmatpush2.msra.mxu0 0.0
        %6541 = vmatprep.subr.mxu0 0.0
        %6542 = vmatpush2.msra.mxu0 0.0
        %6543 = vmatprep.subr.mxu0 0.0
        %6544 = vmatpush2.msra.mxu0 0.0
        %6545 = vmatprep.subr.mxu0 0.0
        %6546 = vmatpush2.msra.mxu0 0.0
        %6547 = vmatprep.subr.mxu0 0.0
        %6548 = vmatpush2.msra.mxu0 0.0
        %6549 = vmatprep.subr.mxu0 0.0
        %6550 = vmatpush2.msra.mxu0 0.0
        %6551 = vmatprep.subr.mxu0 0.0
        %6552 = vmatpush2.msra.mxu0 0.0
        %6553 = vmatprep.subr.mxu0 0.0
        %6554 = vmatpush2.msra.mxu0 0.0
        %6555 = vmatprep.subr.mxu0 0.0
        %6556 = vmatpush2.msra.mxu0 0.0
        %6557 = vmatprep.subr.mxu0 0.0
        %6558 = vmatpush2.msra.mxu0 0.0
        %6559 = vmatprep.mubr.f32.mxu0 0.0
        %v6560 = vand.u32 %v6393, 4294901760
        %6561 = vmatmul.mubr.f32.gmra.mxu0 %v6560
        %v6562 = vpop.f32.mrf.mxu0
        %v6563 = vadd.f32 %v6472, %v6562
        %v6564 = vpop.f32.mrf.mxu0
        %6565 = vmatprep.mubr.f32.mxu0 0.0
        %v6566 = vand.u32 %v6396, 4294901760
        %6567 = vmatmul.mubr.f32.gmra.mxu0 %v6566
        %v6568 = vpop.f32.mrf.mxu0
        %v6569 = vadd.f32 %v6482, %v6568
        %v6570 = vpop.f32.mrf.mxu0
        %6571 = vdwg.mxu0
        %6572 = vmatprep.subr.mxu0 0.0
        %6573 = vmatpush1.msra.mxu0 0.0
        %6574 = vmatprep.subr.mxu0 0.0
        %6575 = vmatpush1.msra.mxu0 0.0
        %6576 = vmatprep.subr.mxu0 0.0
        %6577 = vmatpush1.msra.mxu0 0.0
        %6578 = vmatprep.subr.mxu0 0.0
        %6579 = vmatpush1.msra.mxu0 0.0
        %6580 = vmatprep.subr.mxu0 0.0
        %6581 = vmatpush1.msra.mxu0 0.0
        %6582 = vmatprep.subr.mxu0 0.0
        %6583 = vmatpush1.msra.mxu0 0.0
        %6584 = vmatprep.subr.mxu0 0.0
        %6585 = vmatpush1.msra.mxu0 0.0
        %6586 = vmatprep.subr.mxu0 0.0
        %6587 = vmatpush1.msra.mxu0 0.0
        %6588 = vmatprep.subr.mxu0 0.0
        %6589 = vmatpush1.msra.mxu0 0.0
        %6590 = vmatprep.subr.mxu0 0.0
        %6591 = vmatpush1.msra.mxu0 0.0
        %6592 = vmatprep.subr.mxu0 0.0
        %6593 = vmatpush1.msra.mxu0 0.0
        %6594 = vmatprep.subr.mxu0 0.0
        %6595 = vmatpush1.msra.mxu0 0.0
        %6596 = vmatprep.subr.mxu0 0.0
        %6597 = vmatpush1.msra.mxu0 0.0
        %6598 = vmatprep.subr.mxu0 0.0
        %6599 = vmatpush1.msra.mxu0 0.0
        %6600 = vmatprep.subr.mxu0 0.0
        %v6601 = vand.u32 %v290, 4294901760
        %v6602 = vsub.f32 %v290, %v6601
        %6603 = vmatpush1.msra.mxu0 %v6602
        %6604 = vmatprep.subr.mxu0 0.0
        %v6605 = vand.u32 %v289, 4294901760
        %v6606 = vsub.f32 %v289, %v6605
        %6607 = vmatpush1.msra.mxu0 %v6606
        %6608 = vmatprep.subr.mxu0 0.0
        %6609 = vmatpush2.msra.mxu0 0.0
        %6610 = vmatprep.subr.mxu0 0.0
        %6611 = vmatpush2.msra.mxu0 0.0
        %6612 = vmatprep.subr.mxu0 0.0
        %6613 = vmatpush2.msra.mxu0 0.0
        %6614 = vmatprep.subr.mxu0 0.0
        %6615 = vmatpush2.msra.mxu0 0.0
        %6616 = vmatprep.subr.mxu0 0.0
        %6617 = vmatpush2.msra.mxu0 0.0
        %6618 = vmatprep.subr.mxu0 0.0
        %6619 = vmatpush2.msra.mxu0 0.0
        %6620 = vmatprep.subr.mxu0 0.0
        %6621 = vmatpush2.msra.mxu0 0.0
        %6622 = vmatprep.subr.mxu0 0.0
        %6623 = vmatpush2.msra.mxu0 0.0
        %6624 = vmatprep.subr.mxu0 0.0
        %6625 = vmatpush2.msra.mxu0 0.0
        %6626 = vmatprep.subr.mxu0 0.0
        %6627 = vmatpush2.msra.mxu0 0.0
        %6628 = vmatprep.subr.mxu0 0.0
        %6629 = vmatpush2.msra.mxu0 0.0
        %6630 = vmatprep.subr.mxu0 0.0
        %6631 = vmatpush2.msra.mxu0 0.0
        %6632 = vmatprep.subr.mxu0 0.0
        %6633 = vmatpush2.msra.mxu0 0.0
        %6634 = vmatprep.subr.mxu0 0.0
        %6635 = vmatpush2.msra.mxu0 0.0
        %6636 = vmatprep.subr.mxu0 0.0
        %6637 = vmatpush2.msra.mxu0 0.0
        %6638 = vmatprep.subr.mxu0 0.0
        %6639 = vmatpush2.msra.mxu0 0.0
        %6640 = vmatprep.mubr.f32.mxu0 0.0
        %v6641 = vand.u32 %v6393, 4294901760
        %v6642 = vsub.f32 %v6393, %v6641
        %6643 = vmatmul.mubr.f32.gmra.mxu0 %v6642
        %v6644 = vpop.f32.mrf.mxu0
        %v6645 = vadd.f32 %v6563, %v6644
        %v6646 = vpop.f32.mrf.mxu0
        %6647 = vmatprep.mubr.f32.mxu0 0.0
        %v6648 = vand.u32 %v6396, 4294901760
        %v6649 = vsub.f32 %v6396, %v6648
        %6650 = vmatmul.mubr.f32.gmra.mxu0 %v6649
        %v6651 = vpop.f32.mrf.mxu0
        %v6652 = vadd.f32 %v6569, %v6651
        %v6653 = vpop.f32.mrf.mxu0
        %6654 = vdwg.mxu0
        %6655 = vmatprep.subr.mxu0 0.0
        %6656 = vmatpush1.msra.mxu0 0.0
        %6657 = vmatprep.subr.mxu0 0.0
        %6658 = vmatpush1.msra.mxu0 0.0
        %6659 = vmatprep.subr.mxu0 0.0
        %6660 = vmatpush1.msra.mxu0 0.0
        %6661 = vmatprep.subr.mxu0 0.0
        %6662 = vmatpush1.msra.mxu0 0.0
        %6663 = vmatprep.subr.mxu0 0.0
        %6664 = vmatpush1.msra.mxu0 0.0
        %6665 = vmatprep.subr.mxu0 0.0
        %6666 = vmatpush1.msra.mxu0 0.0
        %6667 = vmatprep.subr.mxu0 0.0
        %6668 = vmatpush1.msra.mxu0 0.0
        %6669 = vmatprep.subr.mxu0 0.0
        %6670 = vmatpush1.msra.mxu0 0.0
        %6671 = vmatprep.subr.mxu0 0.0
        %6672 = vmatpush1.msra.mxu0 0.0
        %6673 = vmatprep.subr.mxu0 0.0
        %6674 = vmatpush1.msra.mxu0 0.0
        %6675 = vmatprep.subr.mxu0 0.0
        %6676 = vmatpush1.msra.mxu0 0.0
        %6677 = vmatprep.subr.mxu0 0.0
        %6678 = vmatpush1.msra.mxu0 0.0
        %6679 = vmatprep.subr.mxu0 0.0
        %6680 = vmatpush1.msra.mxu0 0.0
        %6681 = vmatprep.subr.mxu0 0.0
        %6682 = vmatpush1.msra.mxu0 0.0
        %6683 = vmatprep.subr.mxu0 0.0
        %v6684 = vand.u32 %v290, 4294901760
        %6685 = vmatpush1.msra.mxu0 %v6684
        %6686 = vmatprep.subr.mxu0 0.0
        %v6687 = vand.u32 %v289, 4294901760
        %6688 = vmatpush1.msra.mxu0 %v6687
        %6689 = vmatprep.subr.mxu0 0.0
        %6690 = vmatpush2.msra.mxu0 0.0
        %6691 = vmatprep.subr.mxu0 0.0
        %6692 = vmatpush2.msra.mxu0 0.0
        %6693 = vmatprep.subr.mxu0 0.0
        %6694 = vmatpush2.msra.mxu0 0.0
        %6695 = vmatprep.subr.mxu0 0.0
        %6696 = vmatpush2.msra.mxu0 0.0
        %6697 = vmatprep.subr.mxu0 0.0
        %6698 = vmatpush2.msra.mxu0 0.0
        %6699 = vmatprep.subr.mxu0 0.0
        %6700 = vmatpush2.msra.mxu0 0.0
        %6701 = vmatprep.subr.mxu0 0.0
        %6702 = vmatpush2.msra.mxu0 0.0
        %6703 = vmatprep.subr.mxu0 0.0
        %6704 = vmatpush2.msra.mxu0 0.0
        %6705 = vmatprep.subr.mxu0 0.0
        %6706 = vmatpush2.msra.mxu0 0.0
        %6707 = vmatprep.subr.mxu0 0.0
        %6708 = vmatpush2.msra.mxu0 0.0
        %6709 = vmatprep.subr.mxu0 0.0
        %6710 = vmatpush2.msra.mxu0 0.0
        %6711 = vmatprep.subr.mxu0 0.0
        %6712 = vmatpush2.msra.mxu0 0.0
        %6713 = vmatprep.subr.mxu0 0.0
        %6714 = vmatpush2.msra.mxu0 0.0
        %6715 = vmatprep.subr.mxu0 0.0
        %6716 = vmatpush2.msra.mxu0 0.0
        %6717 = vmatprep.subr.mxu0 0.0
        %6718 = vmatpush2.msra.mxu0 0.0
        %6719 = vmatprep.subr.mxu0 0.0
        %6720 = vmatpush2.msra.mxu0 0.0
        %6721 = vmatprep.mubr.f32.mxu0 0.0
        %v6722 = vand.u32 %v6393, 4294901760
        %v6723 = vsub.f32 %v6393, %v6722
        %v6724 = vand.u32 %v6723, 4294901760
        %6725 = vmatmul.mubr.f32.gmra.mxu0 %v6724
        %v6726 = vpop.f32.mrf.mxu0
        %v6727 = vadd.f32 %v6645, %v6726
        %v6728 = vpop.f32.mrf.mxu0
        %6729 = vmatprep.mubr.f32.mxu0 0.0
        %v6730 = vand.u32 %v6396, 4294901760
        %v6731 = vsub.f32 %v6396, %v6730
        %v6732 = vand.u32 %v6731, 4294901760
        %6733 = vmatmul.mubr.f32.gmra.mxu0 %v6732
        %v6734 = vpop.f32.mrf.mxu0
        %v6735 = vadd.f32 %v6652, %v6734
        %v6736 = vpop.f32.mrf.mxu0
        %6737 = vdwg.mxu0
        %6738 = vmatprep.subr.mxu0 0.0
        %6739 = vmatpush1.msra.mxu0 0.0
        %6740 = vmatprep.subr.mxu0 0.0
        %6741 = vmatpush1.msra.mxu0 0.0
        %6742 = vmatprep.subr.mxu0 0.0
        %6743 = vmatpush1.msra.mxu0 0.0
        %6744 = vmatprep.subr.mxu0 0.0
        %6745 = vmatpush1.msra.mxu0 0.0
        %6746 = vmatprep.subr.mxu0 0.0
        %6747 = vmatpush1.msra.mxu0 0.0
        %6748 = vmatprep.subr.mxu0 0.0
        %6749 = vmatpush1.msra.mxu0 0.0
        %6750 = vmatprep.subr.mxu0 0.0
        %6751 = vmatpush1.msra.mxu0 0.0
        %6752 = vmatprep.subr.mxu0 0.0
        %6753 = vmatpush1.msra.mxu0 0.0
        %6754 = vmatprep.subr.mxu0 0.0
        %6755 = vmatpush1.msra.mxu0 0.0
        %6756 = vmatprep.subr.mxu0 0.0
        %6757 = vmatpush1.msra.mxu0 0.0
        %6758 = vmatprep.subr.mxu0 0.0
        %6759 = vmatpush1.msra.mxu0 0.0
        %6760 = vmatprep.subr.mxu0 0.0
        %6761 = vmatpush1.msra.mxu0 0.0
        %6762 = vmatprep.subr.mxu0 0.0
        %6763 = vmatpush1.msra.mxu0 0.0
        %6764 = vmatprep.subr.mxu0 0.0
        %6765 = vmatpush1.msra.mxu0 0.0
        %6766 = vmatprep.subr.mxu0 0.0
        %v6767 = vand.u32 %v290, 4294901760
        %v6768 = vsub.f32 %v290, %v6767
        %v6769 = vand.u32 %v6768, 4294901760
        %6770 = vmatpush1.msra.mxu0 %v6769
        %6771 = vmatprep.subr.mxu0 0.0
        %v6772 = vand.u32 %v289, 4294901760
        %v6773 = vsub.f32 %v289, %v6772
        %v6774 = vand.u32 %v6773, 4294901760
        %6775 = vmatpush1.msra.mxu0 %v6774
        %6776 = vmatprep.subr.mxu0 0.0
        %6777 = vmatpush2.msra.mxu0 0.0
        %6778 = vmatprep.subr.mxu0 0.0
        %6779 = vmatpush2.msra.mxu0 0.0
        %6780 = vmatprep.subr.mxu0 0.0
        %6781 = vmatpush2.msra.mxu0 0.0
        %6782 = vmatprep.subr.mxu0 0.0
        %6783 = vmatpush2.msra.mxu0 0.0
        %6784 = vmatprep.subr.mxu0 0.0
        %6785 = vmatpush2.msra.mxu0 0.0
        %6786 = vmatprep.subr.mxu0 0.0
        %6787 = vmatpush2.msra.mxu0 0.0
        %6788 = vmatprep.subr.mxu0 0.0
        %6789 = vmatpush2.msra.mxu0 0.0
        %6790 = vmatprep.subr.mxu0 0.0
        %6791 = vmatpush2.msra.mxu0 0.0
        %6792 = vmatprep.subr.mxu0 0.0
        %6793 = vmatpush2.msra.mxu0 0.0
        %6794 = vmatprep.subr.mxu0 0.0
        %6795 = vmatpush2.msra.mxu0 0.0
        %6796 = vmatprep.subr.mxu0 0.0
        %6797 = vmatpush2.msra.mxu0 0.0
        %6798 = vmatprep.subr.mxu0 0.0
        %6799 = vmatpush2.msra.mxu0 0.0
        %6800 = vmatprep.subr.mxu0 0.0
        %6801 = vmatpush2.msra.mxu0 0.0
        %6802 = vmatprep.subr.mxu0 0.0
        %6803 = vmatpush2.msra.mxu0 0.0
        %6804 = vmatprep.subr.mxu0 0.0
        %6805 = vmatpush2.msra.mxu0 0.0
        %6806 = vmatprep.subr.mxu0 0.0
        %6807 = vmatpush2.msra.mxu0 0.0
        %6808 = vmatprep.mubr.f32.mxu0 0.0
        %v6809 = vand.u32 %v6393, 4294901760
        %6810 = vmatmul.mubr.f32.gmra.mxu0 %v6809
        %v6811 = vpop.f32.mrf.mxu0
        %v6812 = vadd.f32 %v6727, %v6811
        %v6813 = vpop.f32.mrf.mxu0
        %6814 = vmatprep.mubr.f32.mxu0 0.0
        %v6815 = vand.u32 %v6396, 4294901760
        %6816 = vmatmul.mubr.f32.gmra.mxu0 %v6815
        %v6817 = vpop.f32.mrf.mxu0
        %v6818 = vadd.f32 %v6735, %v6817
        %v6819 = vpop.f32.mrf.mxu0
        %6820 = vdwg.mxu0
        %6821 = vmatprep.subr.mxu0 0.0
        %6822 = vmatpush1.msra.mxu0 0.0
        %6823 = vmatprep.subr.mxu0 0.0
        %6824 = vmatpush1.msra.mxu0 0.0
        %6825 = vmatprep.subr.mxu0 0.0
        %6826 = vmatpush1.msra.mxu0 0.0
        %6827 = vmatprep.subr.mxu0 0.0
        %6828 = vmatpush1.msra.mxu0 0.0
        %6829 = vmatprep.subr.mxu0 0.0
        %6830 = vmatpush1.msra.mxu0 0.0
        %6831 = vmatprep.subr.mxu0 0.0
        %6832 = vmatpush1.msra.mxu0 0.0
        %6833 = vmatprep.subr.mxu0 0.0
        %6834 = vmatpush1.msra.mxu0 0.0
        %6835 = vmatprep.subr.mxu0 0.0
        %6836 = vmatpush1.msra.mxu0 0.0
        %6837 = vmatprep.subr.mxu0 0.0
        %6838 = vmatpush1.msra.mxu0 0.0
        %6839 = vmatprep.subr.mxu0 0.0
        %6840 = vmatpush1.msra.mxu0 0.0
        %6841 = vmatprep.subr.mxu0 0.0
        %6842 = vmatpush1.msra.mxu0 0.0
        %6843 = vmatprep.subr.mxu0 0.0
        %6844 = vmatpush1.msra.mxu0 0.0
        %6845 = vmatprep.subr.mxu0 0.0
        %6846 = vmatpush1.msra.mxu0 0.0
        %6847 = vmatprep.subr.mxu0 0.0
        %6848 = vmatpush1.msra.mxu0 0.0
        %6849 = vmatprep.subr.mxu0 0.0
        %v6850 = vand.u32 %v290, 4294901760
        %6851 = vmatpush1.msra.mxu0 %v6850
        %6852 = vmatprep.subr.mxu0 0.0
        %v6853 = vand.u32 %v289, 4294901760
        %6854 = vmatpush1.msra.mxu0 %v6853
        %6855 = vmatprep.subr.mxu0 0.0
        %6856 = vmatpush2.msra.mxu0 0.0
        %6857 = vmatprep.subr.mxu0 0.0
        %6858 = vmatpush2.msra.mxu0 0.0
        %6859 = vmatprep.subr.mxu0 0.0
        %6860 = vmatpush2.msra.mxu0 0.0
        %6861 = vmatprep.subr.mxu0 0.0
        %6862 = vmatpush2.msra.mxu0 0.0
        %6863 = vmatprep.subr.mxu0 0.0
        %6864 = vmatpush2.msra.mxu0 0.0
        %6865 = vmatprep.subr.mxu0 0.0
        %6866 = vmatpush2.msra.mxu0 0.0
        %6867 = vmatprep.subr.mxu0 0.0
        %6868 = vmatpush2.msra.mxu0 0.0
        %6869 = vmatprep.subr.mxu0 0.0
        %6870 = vmatpush2.msra.mxu0 0.0
        %6871 = vmatprep.subr.mxu0 0.0
        %6872 = vmatpush2.msra.mxu0 0.0
        %6873 = vmatprep.subr.mxu0 0.0
        %6874 = vmatpush2.msra.mxu0 0.0
        %6875 = vmatprep.subr.mxu0 0.0
        %6876 = vmatpush2.msra.mxu0 0.0
        %6877 = vmatprep.subr.mxu0 0.0
        %6878 = vmatpush2.msra.mxu0 0.0
        %6879 = vmatprep.subr.mxu0 0.0
        %6880 = vmatpush2.msra.mxu0 0.0
        %6881 = vmatprep.subr.mxu0 0.0
        %6882 = vmatpush2.msra.mxu0 0.0
        %6883 = vmatprep.subr.mxu0 0.0
        %6884 = vmatpush2.msra.mxu0 0.0
        %6885 = vmatprep.subr.mxu0 0.0
        %6886 = vmatpush2.msra.mxu0 0.0
        %6887 = vmatprep.mubr.f32.mxu0 0.0
        %v6888 = vand.u32 %v6393, 4294901760
        %6889 = vmatmul.mubr.f32.gmra.mxu0 %v6888
        %v6890 = vpop.f32.mrf.mxu0
        %v6891 = vadd.f32 %v6812, %v6890
        %v6892 = vpop.f32.mrf.mxu0
        %6893 = vmatprep.mubr.f32.mxu0 0.0
        %v6894 = vand.u32 %v6396, 4294901760
        %6895 = vmatmul.mubr.f32.gmra.mxu0 %v6894
        %v6896 = vpop.f32.mrf.mxu0
        %v6897 = vadd.f32 %v6818, %v6896
        %v6898 = vpop.f32.mrf.mxu0
        %6899 = vdwg.mxu0
        %6900 = vmatprep.subr.mxu0 0.0
        %6901 = vmatpush1.msra.mxu0 0.0
        %6902 = vmatprep.subr.mxu0 0.0
        %6903 = vmatpush1.msra.mxu0 0.0
        %6904 = vmatprep.subr.mxu0 0.0
        %6905 = vmatpush1.msra.mxu0 0.0
        %6906 = vmatprep.subr.mxu0 0.0
        %6907 = vmatpush1.msra.mxu0 0.0
        %6908 = vmatprep.subr.mxu0 0.0
        %6909 = vmatpush1.msra.mxu0 0.0
        %6910 = vmatprep.subr.mxu0 0.0
        %6911 = vmatpush1.msra.mxu0 0.0
        %6912 = vmatprep.subr.mxu0 0.0
        %6913 = vmatpush1.msra.mxu0 0.0
        %6914 = vmatprep.subr.mxu0 0.0
        %6915 = vmatpush1.msra.mxu0 0.0
        %6916 = vmatprep.subr.mxu0 0.0
        %6917 = vmatpush1.msra.mxu0 0.0
        %6918 = vmatprep.subr.mxu0 0.0
        %6919 = vmatpush1.msra.mxu0 0.0
        %6920 = vmatprep.subr.mxu0 0.0
        %6921 = vmatpush1.msra.mxu0 0.0
        %6922 = vmatprep.subr.mxu0 0.0
        %6923 = vmatpush1.msra.mxu0 0.0
        %6924 = vmatprep.subr.mxu0 0.0
        %6925 = vmatpush1.msra.mxu0 0.0
        %6926 = vmatprep.subr.mxu0 0.0
        %6927 = vmatpush1.msra.mxu0 0.0
        %6928 = vmatprep.subr.mxu0 0.0
        %v6929 = vand.u32 %v6391, 4294901760
        %6930 = vmatpush1.msra.mxu0 %v6929
        %6931 = vmatprep.subr.mxu0 0.0
        %v6932 = vand.u32 %v6390, 4294901760
        %6933 = vmatpush1.msra.mxu0 %v6932
        %6934 = vmatprep.subr.mxu0 0.0
        %6935 = vmatpush2.msra.mxu0 0.0
        %6936 = vmatprep.subr.mxu0 0.0
        %6937 = vmatpush2.msra.mxu0 0.0
        %6938 = vmatprep.subr.mxu0 0.0
        %6939 = vmatpush2.msra.mxu0 0.0
        %6940 = vmatprep.subr.mxu0 0.0
        %6941 = vmatpush2.msra.mxu0 0.0
        %6942 = vmatprep.subr.mxu0 0.0
        %6943 = vmatpush2.msra.mxu0 0.0
        %6944 = vmatprep.subr.mxu0 0.0
        %6945 = vmatpush2.msra.mxu0 0.0
        %6946 = vmatprep.subr.mxu0 0.0
        %6947 = vmatpush2.msra.mxu0 0.0
        %6948 = vmatprep.subr.mxu0 0.0
        %6949 = vmatpush2.msra.mxu0 0.0
        %6950 = vmatprep.subr.mxu0 0.0
        %6951 = vmatpush2.msra.mxu0 0.0
        %6952 = vmatprep.subr.mxu0 0.0
        %6953 = vmatpush2.msra.mxu0 0.0
        %6954 = vmatprep.subr.mxu0 0.0
        %6955 = vmatpush2.msra.mxu0 0.0
        %6956 = vmatprep.subr.mxu0 0.0
        %6957 = vmatpush2.msra.mxu0 0.0
        %6958 = vmatprep.subr.mxu0 0.0
        %6959 = vmatpush2.msra.mxu0 0.0
        %6960 = vmatprep.subr.mxu0 0.0
        %6961 = vmatpush2.msra.mxu0 0.0
        %6962 = vmatprep.subr.mxu0 0.0
        %6963 = vmatpush2.msra.mxu0 0.0
        %6964 = vmatprep.subr.mxu0 0.0
        %6965 = vmatpush2.msra.mxu0 0.0
        %6966 = vmatprep.mubr.f32.mxu0 0.0
        %v6967 = vand.u32 %v801, 4294901760
        %v6968 = vsub.f32 %v801, %v6967
        %v6969 = vand.u32 %v6968, 4294901760
        %v6970 = vsub.f32 %v6968, %v6969
        %v6971 = vand.u32 %v6970, 4294901760
        %6972 = vmatmul.mubr.f32.gmra.mxu0 %v6971
        %v6973 = vpop.f32.mrf.mxu0
        %v6974 = vadd.f32 %v6891, %v6973
        %v6975 = vpop.f32.mrf.mxu0
        %6976 = vmatprep.mubr.f32.mxu0 0.0
        %v6977 = vand.u32 %v804, 4294901760
        %v6978 = vsub.f32 %v804, %v6977
        %v6979 = vand.u32 %v6978, 4294901760
        %v6980 = vsub.f32 %v6978, %v6979
        %v6981 = vand.u32 %v6980, 4294901760
        %6982 = vmatmul.mubr.f32.gmra.mxu0 %v6981
        %v6983 = vpop.f32.mrf.mxu0
        %v6984 = vadd.f32 %v6897, %v6983
        %v6985 = vpop.f32.mrf.mxu0
        %6986 = vdwg.mxu0
        %6987 = vmatprep.subr.mxu0 0.0
        %6988 = vmatpush1.msra.mxu0 0.0
        %6989 = vmatprep.subr.mxu0 0.0
        %6990 = vmatpush1.msra.mxu0 0.0
        %6991 = vmatprep.subr.mxu0 0.0
        %6992 = vmatpush1.msra.mxu0 0.0
        %6993 = vmatprep.subr.mxu0 0.0
        %6994 = vmatpush1.msra.mxu0 0.0
        %6995 = vmatprep.subr.mxu0 0.0
        %6996 = vmatpush1.msra.mxu0 0.0
        %6997 = vmatprep.subr.mxu0 0.0
        %6998 = vmatpush1.msra.mxu0 0.0
        %6999 = vmatprep.subr.mxu0 0.0
        %7000 = vmatpush1.msra.mxu0 0.0
        %7001 = vmatprep.subr.mxu0 0.0
        %7002 = vmatpush1.msra.mxu0 0.0
        %7003 = vmatprep.subr.mxu0 0.0
        %7004 = vmatpush1.msra.mxu0 0.0
        %7005 = vmatprep.subr.mxu0 0.0
        %7006 = vmatpush1.msra.mxu0 0.0
        %7007 = vmatprep.subr.mxu0 0.0
        %7008 = vmatpush1.msra.mxu0 0.0
        %7009 = vmatprep.subr.mxu0 0.0
        %7010 = vmatpush1.msra.mxu0 0.0
        %7011 = vmatprep.subr.mxu0 0.0
        %7012 = vmatpush1.msra.mxu0 0.0
        %7013 = vmatprep.subr.mxu0 0.0
        %7014 = vmatpush1.msra.mxu0 0.0
        %7015 = vmatprep.subr.mxu0 0.0
        %v7016 = vand.u32 %v6391, 4294901760
        %v7017 = vsub.f32 %v6391, %v7016
        %v7018 = vand.u32 %v7017, 4294901760
        %v7019 = vsub.f32 %v7017, %v7018
        %v7020 = vand.u32 %v7019, 4294901760
        %7021 = vmatpush1.msra.mxu0 %v7020
        %7022 = vmatprep.subr.mxu0 0.0
        %v7023 = vand.u32 %v6390, 4294901760
        %v7024 = vsub.f32 %v6390, %v7023
        %v7025 = vand.u32 %v7024, 4294901760
        %v7026 = vsub.f32 %v7024, %v7025
        %v7027 = vand.u32 %v7026, 4294901760
        %7028 = vmatpush1.msra.mxu0 %v7027
        %7029 = vmatprep.subr.mxu0 0.0
        %7030 = vmatpush2.msra.mxu0 0.0
        %7031 = vmatprep.subr.mxu0 0.0
        %7032 = vmatpush2.msra.mxu0 0.0
        %7033 = vmatprep.subr.mxu0 0.0
        %7034 = vmatpush2.msra.mxu0 0.0
        %7035 = vmatprep.subr.mxu0 0.0
        %7036 = vmatpush2.msra.mxu0 0.0
        %7037 = vmatprep.subr.mxu0 0.0
        %7038 = vmatpush2.msra.mxu0 0.0
        %7039 = vmatprep.subr.mxu0 0.0
        %7040 = vmatpush2.msra.mxu0 0.0
        %7041 = vmatprep.subr.mxu0 0.0
        %7042 = vmatpush2.msra.mxu0 0.0
        %7043 = vmatprep.subr.mxu0 0.0
        %7044 = vmatpush2.msra.mxu0 0.0
        %7045 = vmatprep.subr.mxu0 0.0
        %7046 = vmatpush2.msra.mxu0 0.0
        %7047 = vmatprep.subr.mxu0 0.0
        %7048 = vmatpush2.msra.mxu0 0.0
        %7049 = vmatprep.subr.mxu0 0.0
        %7050 = vmatpush2.msra.mxu0 0.0
        %7051 = vmatprep.subr.mxu0 0.0
        %7052 = vmatpush2.msra.mxu0 0.0
        %7053 = vmatprep.subr.mxu0 0.0
        %7054 = vmatpush2.msra.mxu0 0.0
        %7055 = vmatprep.subr.mxu0 0.0
        %7056 = vmatpush2.msra.mxu0 0.0
        %7057 = vmatprep.subr.mxu0 0.0
        %7058 = vmatpush2.msra.mxu0 0.0
        %7059 = vmatprep.subr.mxu0 0.0
        %7060 = vmatpush2.msra.mxu0 0.0
        %7061 = vmatprep.mubr.f32.mxu0 0.0
        %v7062 = vand.u32 %v801, 4294901760
        %7063 = vmatmul.mubr.f32.gmra.mxu0 %v7062
        %v7064 = vpop.f32.mrf.mxu0
        %v7065 = vadd.f32 %v6974, %v7064
        %v7066 = vpop.f32.mrf.mxu0
        %7067 = vmatprep.mubr.f32.mxu0 0.0
        %v7068 = vand.u32 %v804, 4294901760
        %7069 = vmatmul.mubr.f32.gmra.mxu0 %v7068
        %v7070 = vpop.f32.mrf.mxu0
        %v7071 = vadd.f32 %v6984, %v7070
        %v7072 = vpop.f32.mrf.mxu0
        %7073 = vdwg.mxu0
        %7074 = vmatprep.subr.mxu0 0.0
        %7075 = vmatpush1.msra.mxu0 0.0
        %7076 = vmatprep.subr.mxu0 0.0
        %7077 = vmatpush1.msra.mxu0 0.0
        %7078 = vmatprep.subr.mxu0 0.0
        %7079 = vmatpush1.msra.mxu0 0.0
        %7080 = vmatprep.subr.mxu0 0.0
        %7081 = vmatpush1.msra.mxu0 0.0
        %7082 = vmatprep.subr.mxu0 0.0
        %7083 = vmatpush1.msra.mxu0 0.0
        %7084 = vmatprep.subr.mxu0 0.0
        %7085 = vmatpush1.msra.mxu0 0.0
        %7086 = vmatprep.subr.mxu0 0.0
        %7087 = vmatpush1.msra.mxu0 0.0
        %7088 = vmatprep.subr.mxu0 0.0
        %7089 = vmatpush1.msra.mxu0 0.0
        %7090 = vmatprep.subr.mxu0 0.0
        %7091 = vmatpush1.msra.mxu0 0.0
        %7092 = vmatprep.subr.mxu0 0.0
        %7093 = vmatpush1.msra.mxu0 0.0
        %7094 = vmatprep.subr.mxu0 0.0
        %7095 = vmatpush1.msra.mxu0 0.0
        %7096 = vmatprep.subr.mxu0 0.0
        %7097 = vmatpush1.msra.mxu0 0.0
        %7098 = vmatprep.subr.mxu0 0.0
        %7099 = vmatpush1.msra.mxu0 0.0
        %7100 = vmatprep.subr.mxu0 0.0
        %7101 = vmatpush1.msra.mxu0 0.0
        %7102 = vmatprep.subr.mxu0 0.0
        %v7103 = vand.u32 %v6391, 4294901760
        %v7104 = vsub.f32 %v6391, %v7103
        %7105 = vmatpush1.msra.mxu0 %v7104
        %7106 = vmatprep.subr.mxu0 0.0
        %v7107 = vand.u32 %v6390, 4294901760
        %v7108 = vsub.f32 %v6390, %v7107
        %7109 = vmatpush1.msra.mxu0 %v7108
        %7110 = vmatprep.subr.mxu0 0.0
        %7111 = vmatpush2.msra.mxu0 0.0
        %7112 = vmatprep.subr.mxu0 0.0
        %7113 = vmatpush2.msra.mxu0 0.0
        %7114 = vmatprep.subr.mxu0 0.0
        %7115 = vmatpush2.msra.mxu0 0.0
        %7116 = vmatprep.subr.mxu0 0.0
        %7117 = vmatpush2.msra.mxu0 0.0
        %7118 = vmatprep.subr.mxu0 0.0
        %7119 = vmatpush2.msra.mxu0 0.0
        %7120 = vmatprep.subr.mxu0 0.0
        %7121 = vmatpush2.msra.mxu0 0.0
        %7122 = vmatprep.subr.mxu0 0.0
        %7123 = vmatpush2.msra.mxu0 0.0
        %7124 = vmatprep.subr.mxu0 0.0
        %7125 = vmatpush2.msra.mxu0 0.0
        %7126 = vmatprep.subr.mxu0 0.0
        %7127 = vmatpush2.msra.mxu0 0.0
        %7128 = vmatprep.subr.mxu0 0.0
        %7129 = vmatpush2.msra.mxu0 0.0
        %7130 = vmatprep.subr.mxu0 0.0
        %7131 = vmatpush2.msra.mxu0 0.0
        %7132 = vmatprep.subr.mxu0 0.0
        %7133 = vmatpush2.msra.mxu0 0.0
        %7134 = vmatprep.subr.mxu0 0.0
        %7135 = vmatpush2.msra.mxu0 0.0
        %7136 = vmatprep.subr.mxu0 0.0
        %7137 = vmatpush2.msra.mxu0 0.0
        %7138 = vmatprep.subr.mxu0 0.0
        %7139 = vmatpush2.msra.mxu0 0.0
        %7140 = vmatprep.subr.mxu0 0.0
        %7141 = vmatpush2.msra.mxu0 0.0
        %7142 = vmatprep.mubr.f32.mxu0 0.0
        %v7143 = vand.u32 %v801, 4294901760
        %v7144 = vsub.f32 %v801, %v7143
        %7145 = vmatmul.mubr.f32.gmra.mxu0 %v7144
        %v7146 = vpop.f32.mrf.mxu0
        %v7147 = vadd.f32 %v7065, %v7146
        %v7148 = vpop.f32.mrf.mxu0
        %7149 = vmatprep.mubr.f32.mxu0 0.0
        %v7150 = vand.u32 %v804, 4294901760
        %v7151 = vsub.f32 %v804, %v7150
        %7152 = vmatmul.mubr.f32.gmra.mxu0 %v7151
        %v7153 = vpop.f32.mrf.mxu0
        %v7154 = vadd.f32 %v7071, %v7153
        %v7155 = vpop.f32.mrf.mxu0
        %7156 = vdwg.mxu0
        %7157 = vmatprep.subr.mxu0 0.0
        %7158 = vmatpush1.msra.mxu0 0.0
        %7159 = vmatprep.subr.mxu0 0.0
        %7160 = vmatpush1.msra.mxu0 0.0
        %7161 = vmatprep.subr.mxu0 0.0
        %7162 = vmatpush1.msra.mxu0 0.0
        %7163 = vmatprep.subr.mxu0 0.0
        %7164 = vmatpush1.msra.mxu0 0.0
        %7165 = vmatprep.subr.mxu0 0.0
        %7166 = vmatpush1.msra.mxu0 0.0
        %7167 = vmatprep.subr.mxu0 0.0
        %7168 = vmatpush1.msra.mxu0 0.0
        %7169 = vmatprep.subr.mxu0 0.0
        %7170 = vmatpush1.msra.mxu0 0.0
        %7171 = vmatprep.subr.mxu0 0.0
        %7172 = vmatpush1.msra.mxu0 0.0
        %7173 = vmatprep.subr.mxu0 0.0
        %7174 = vmatpush1.msra.mxu0 0.0
        %7175 = vmatprep.subr.mxu0 0.0
        %7176 = vmatpush1.msra.mxu0 0.0
        %7177 = vmatprep.subr.mxu0 0.0
        %7178 = vmatpush1.msra.mxu0 0.0
        %7179 = vmatprep.subr.mxu0 0.0
        %7180 = vmatpush1.msra.mxu0 0.0
        %7181 = vmatprep.subr.mxu0 0.0
        %7182 = vmatpush1.msra.mxu0 0.0
        %7183 = vmatprep.subr.mxu0 0.0
        %7184 = vmatpush1.msra.mxu0 0.0
        %7185 = vmatprep.subr.mxu0 0.0
        %v7186 = vand.u32 %v6391, 4294901760
        %7187 = vmatpush1.msra.mxu0 %v7186
        %7188 = vmatprep.subr.mxu0 0.0
        %v7189 = vand.u32 %v6390, 4294901760
        %7190 = vmatpush1.msra.mxu0 %v7189
        %7191 = vmatprep.subr.mxu0 0.0
        %7192 = vmatpush2.msra.mxu0 0.0
        %7193 = vmatprep.subr.mxu0 0.0
        %7194 = vmatpush2.msra.mxu0 0.0
        %7195 = vmatprep.subr.mxu0 0.0
        %7196 = vmatpush2.msra.mxu0 0.0
        %7197 = vmatprep.subr.mxu0 0.0
        %7198 = vmatpush2.msra.mxu0 0.0
        %7199 = vmatprep.subr.mxu0 0.0
        %7200 = vmatpush2.msra.mxu0 0.0
        %7201 = vmatprep.subr.mxu0 0.0
        %7202 = vmatpush2.msra.mxu0 0.0
        %7203 = vmatprep.subr.mxu0 0.0
        %7204 = vmatpush2.msra.mxu0 0.0
        %7205 = vmatprep.subr.mxu0 0.0
        %7206 = vmatpush2.msra.mxu0 0.0
        %7207 = vmatprep.subr.mxu0 0.0
        %7208 = vmatpush2.msra.mxu0 0.0
        %7209 = vmatprep.subr.mxu0 0.0
        %7210 = vmatpush2.msra.mxu0 0.0
        %7211 = vmatprep.subr.mxu0 0.0
        %7212 = vmatpush2.msra.mxu0 0.0
        %7213 = vmatprep.subr.mxu0 0.0
        %7214 = vmatpush2.msra.mxu0 0.0
        %7215 = vmatprep.subr.mxu0 0.0
        %7216 = vmatpush2.msra.mxu0 0.0
        %7217 = vmatprep.subr.mxu0 0.0
        %7218 = vmatpush2.msra.mxu0 0.0
        %7219 = vmatprep.subr.mxu0 0.0
        %7220 = vmatpush2.msra.mxu0 0.0
        %7221 = vmatprep.subr.mxu0 0.0
        %7222 = vmatpush2.msra.mxu0 0.0
        %7223 = vmatprep.mubr.f32.mxu0 0.0
        %v7224 = vand.u32 %v801, 4294901760
        %v7225 = vsub.f32 %v801, %v7224
        %v7226 = vand.u32 %v7225, 4294901760
        %7227 = vmatmul.mubr.f32.gmra.mxu0 %v7226
        %v7228 = vpop.f32.mrf.mxu0
        %v7229 = vadd.f32 %v7147, %v7228
        %v7230 = vpop.f32.mrf.mxu0
        %7231 = vmatprep.mubr.f32.mxu0 0.0
        %v7232 = vand.u32 %v804, 4294901760
        %v7233 = vsub.f32 %v804, %v7232
        %v7234 = vand.u32 %v7233, 4294901760
        %7235 = vmatmul.mubr.f32.gmra.mxu0 %v7234
        %v7236 = vpop.f32.mrf.mxu0
        %v7237 = vadd.f32 %v7154, %v7236
        %v7238 = vpop.f32.mrf.mxu0
        %7239 = vdwg.mxu0
        %7240 = vmatprep.subr.mxu0 0.0
        %7241 = vmatpush1.msra.mxu0 0.0
        %7242 = vmatprep.subr.mxu0 0.0
        %7243 = vmatpush1.msra.mxu0 0.0
        %7244 = vmatprep.subr.mxu0 0.0
        %7245 = vmatpush1.msra.mxu0 0.0
        %7246 = vmatprep.subr.mxu0 0.0
        %7247 = vmatpush1.msra.mxu0 0.0
        %7248 = vmatprep.subr.mxu0 0.0
        %7249 = vmatpush1.msra.mxu0 0.0
        %7250 = vmatprep.subr.mxu0 0.0
        %7251 = vmatpush1.msra.mxu0 0.0
        %7252 = vmatprep.subr.mxu0 0.0
        %7253 = vmatpush1.msra.mxu0 0.0
        %7254 = vmatprep.subr.mxu0 0.0
        %7255 = vmatpush1.msra.mxu0 0.0
        %7256 = vmatprep.subr.mxu0 0.0
        %7257 = vmatpush1.msra.mxu0 0.0
        %7258 = vmatprep.subr.mxu0 0.0
        %7259 = vmatpush1.msra.mxu0 0.0
        %7260 = vmatprep.subr.mxu0 0.0
        %7261 = vmatpush1.msra.mxu0 0.0
        %7262 = vmatprep.subr.mxu0 0.0
        %7263 = vmatpush1.msra.mxu0 0.0
        %7264 = vmatprep.subr.mxu0 0.0
        %7265 = vmatpush1.msra.mxu0 0.0
        %7266 = vmatprep.subr.mxu0 0.0
        %7267 = vmatpush1.msra.mxu0 0.0
        %7268 = vmatprep.subr.mxu0 0.0
        %v7269 = vand.u32 %v6391, 4294901760
        %v7270 = vsub.f32 %v6391, %v7269
        %v7271 = vand.u32 %v7270, 4294901760
        %7272 = vmatpush1.msra.mxu0 %v7271
        %7273 = vmatprep.subr.mxu0 0.0
        %v7274 = vand.u32 %v6390, 4294901760
        %v7275 = vsub.f32 %v6390, %v7274
        %v7276 = vand.u32 %v7275, 4294901760
        %7277 = vmatpush1.msra.mxu0 %v7276
        %7278 = vmatprep.subr.mxu0 0.0
        %7279 = vmatpush2.msra.mxu0 0.0
        %7280 = vmatprep.subr.mxu0 0.0
        %7281 = vmatpush2.msra.mxu0 0.0
        %7282 = vmatprep.subr.mxu0 0.0
        %7283 = vmatpush2.msra.mxu0 0.0
        %7284 = vmatprep.subr.mxu0 0.0
        %7285 = vmatpush2.msra.mxu0 0.0
        %7286 = vmatprep.subr.mxu0 0.0
        %7287 = vmatpush2.msra.mxu0 0.0
        %7288 = vmatprep.subr.mxu0 0.0
        %7289 = vmatpush2.msra.mxu0 0.0
        %7290 = vmatprep.subr.mxu0 0.0
        %7291 = vmatpush2.msra.mxu0 0.0
        %7292 = vmatprep.subr.mxu0 0.0
        %7293 = vmatpush2.msra.mxu0 0.0
        %7294 = vmatprep.subr.mxu0 0.0
        %7295 = vmatpush2.msra.mxu0 0.0
        %7296 = vmatprep.subr.mxu0 0.0
        %7297 = vmatpush2.msra.mxu0 0.0
        %7298 = vmatprep.subr.mxu0 0.0
        %7299 = vmatpush2.msra.mxu0 0.0
        %7300 = vmatprep.subr.mxu0 0.0
        %7301 = vmatpush2.msra.mxu0 0.0
        %7302 = vmatprep.subr.mxu0 0.0
        %7303 = vmatpush2.msra.mxu0 0.0
        %7304 = vmatprep.subr.mxu0 0.0
        %7305 = vmatpush2.msra.mxu0 0.0
        %7306 = vmatprep.subr.mxu0 0.0
        %7307 = vmatpush2.msra.mxu0 0.0
        %7308 = vmatprep.subr.mxu0 0.0
        %7309 = vmatpush2.msra.mxu0 0.0
        %7310 = vmatprep.mubr.f32.mxu0 0.0
        %v7311 = vand.u32 %v801, 4294901760
        %7312 = vmatmul.mubr.f32.gmra.mxu0 %v7311
        %v7313 = vpop.f32.mrf.mxu0
        %v7314 = vadd.f32 %v7229, %v7313
        %v7315 = vpop.f32.mrf.mxu0
        %7316 = vmatprep.mubr.f32.mxu0 0.0
        %v7317 = vand.u32 %v804, 4294901760
        %7318 = vmatmul.mubr.f32.gmra.mxu0 %v7317
        %v7319 = vpop.f32.mrf.mxu0
        %v7320 = vadd.f32 %v7237, %v7319
        %v7321 = vpop.f32.mrf.mxu0
        %7322 = vdwg.mxu0
        %7323 = vmatprep.subr.mxu0 0.0
        %7324 = vmatpush1.msra.mxu0 0.0
        %7325 = vmatprep.subr.mxu0 0.0
        %7326 = vmatpush1.msra.mxu0 0.0
        %7327 = vmatprep.subr.mxu0 0.0
        %7328 = vmatpush1.msra.mxu0 0.0
        %7329 = vmatprep.subr.mxu0 0.0
        %7330 = vmatpush1.msra.mxu0 0.0
        %7331 = vmatprep.subr.mxu0 0.0
        %7332 = vmatpush1.msra.mxu0 0.0
        %7333 = vmatprep.subr.mxu0 0.0
        %7334 = vmatpush1.msra.mxu0 0.0
        %7335 = vmatprep.subr.mxu0 0.0
        %7336 = vmatpush1.msra.mxu0 0.0
        %7337 = vmatprep.subr.mxu0 0.0
        %7338 = vmatpush1.msra.mxu0 0.0
        %7339 = vmatprep.subr.mxu0 0.0
        %7340 = vmatpush1.msra.mxu0 0.0
        %7341 = vmatprep.subr.mxu0 0.0
        %7342 = vmatpush1.msra.mxu0 0.0
        %7343 = vmatprep.subr.mxu0 0.0
        %7344 = vmatpush1.msra.mxu0 0.0
        %7345 = vmatprep.subr.mxu0 0.0
        %7346 = vmatpush1.msra.mxu0 0.0
        %7347 = vmatprep.subr.mxu0 0.0
        %7348 = vmatpush1.msra.mxu0 0.0
        %7349 = vmatprep.subr.mxu0 0.0
        %7350 = vmatpush1.msra.mxu0 0.0
        %7351 = vmatprep.subr.mxu0 0.0
        %v7352 = vand.u32 %v6391, 4294901760
        %7353 = vmatpush1.msra.mxu0 %v7352
        %7354 = vmatprep.subr.mxu0 0.0
        %v7355 = vand.u32 %v6390, 4294901760
        %7356 = vmatpush1.msra.mxu0 %v7355
        %7357 = vmatprep.subr.mxu0 0.0
        %7358 = vmatpush2.msra.mxu0 0.0
        %7359 = vmatprep.subr.mxu0 0.0
        %7360 = vmatpush2.msra.mxu0 0.0
        %7361 = vmatprep.subr.mxu0 0.0
        %7362 = vmatpush2.msra.mxu0 0.0
        %7363 = vmatprep.subr.mxu0 0.0
        %7364 = vmatpush2.msra.mxu0 0.0
        %7365 = vmatprep.subr.mxu0 0.0
        %7366 = vmatpush2.msra.mxu0 0.0
        %7367 = vmatprep.subr.mxu0 0.0
        %7368 = vmatpush2.msra.mxu0 0.0
        %7369 = vmatprep.subr.mxu0 0.0
        %7370 = vmatpush2.msra.mxu0 0.0
        %7371 = vmatprep.subr.mxu0 0.0
        %7372 = vmatpush2.msra.mxu0 0.0
        %7373 = vmatprep.subr.mxu0 0.0
        %7374 = vmatpush2.msra.mxu0 0.0
        %7375 = vmatprep.subr.mxu0 0.0
        %7376 = vmatpush2.msra.mxu0 0.0
        %7377 = vmatprep.subr.mxu0 0.0
        %7378 = vmatpush2.msra.mxu0 0.0
        %7379 = vmatprep.subr.mxu0 0.0
        %7380 = vmatpush2.msra.mxu0 0.0
        %7381 = vmatprep.subr.mxu0 0.0
        %7382 = vmatpush2.msra.mxu0 0.0
        %7383 = vmatprep.subr.mxu0 0.0
        %7384 = vmatpush2.msra.mxu0 0.0
        %7385 = vmatprep.subr.mxu0 0.0
        %7386 = vmatpush2.msra.mxu0 0.0
        %7387 = vmatprep.subr.mxu0 0.0
        %7388 = vmatpush2.msra.mxu0 0.0
        %7389 = vmatprep.mubr.f32.mxu0 0.0
        %v7390 = vand.u32 %v801, 4294901760
        %7391 = vmatmul.mubr.f32.gmra.mxu0 %v7390
        %v7392 = vpop.f32.mrf.mxu0
        %v7393 = vadd.f32 %v7314, %v7392
        %v7394 = vpop.f32.mrf.mxu0
        %7395 = vmatprep.mubr.f32.mxu0 0.0
        %v7396 = vand.u32 %v804, 4294901760
        %7397 = vmatmul.mubr.f32.gmra.mxu0 %v7396
        %v7398 = vpop.f32.mrf.mxu0
        %v7399 = vadd.f32 %v7320, %v7398
        %v7400 = vpop.f32.mrf.mxu0
        %7401 = vdwg.mxu0
        %7402 = vmatprep.subr.mxu0 0.0
        %7403 = vmatpush1.msra.mxu0 0.0
        %7404 = vmatprep.subr.mxu0 0.0
        %7405 = vmatpush1.msra.mxu0 0.0
        %7406 = vmatprep.subr.mxu0 0.0
        %7407 = vmatpush1.msra.mxu0 0.0
        %7408 = vmatprep.subr.mxu0 0.0
        %7409 = vmatpush1.msra.mxu0 0.0
        %7410 = vmatprep.subr.mxu0 0.0
        %7411 = vmatpush1.msra.mxu0 0.0
        %7412 = vmatprep.subr.mxu0 0.0
        %7413 = vmatpush1.msra.mxu0 0.0
        %7414 = vmatprep.subr.mxu0 0.0
        %7415 = vmatpush1.msra.mxu0 0.0
        %7416 = vmatprep.subr.mxu0 0.0
        %7417 = vmatpush1.msra.mxu0 0.0
        %7418 = vmatprep.subr.mxu0 0.0
        %7419 = vmatpush1.msra.mxu0 0.0
        %7420 = vmatprep.subr.mxu0 0.0
        %7421 = vmatpush1.msra.mxu0 0.0
        %7422 = vmatprep.subr.mxu0 0.0
        %7423 = vmatpush1.msra.mxu0 0.0
        %7424 = vmatprep.subr.mxu0 0.0
        %7425 = vmatpush1.msra.mxu0 0.0
        %7426 = vmatprep.subr.mxu0 0.0
        %7427 = vmatpush1.msra.mxu0 0.0
        %7428 = vmatprep.subr.mxu0 0.0
        %7429 = vmatpush1.msra.mxu0 0.0
        %7430 = vmatprep.subr.mxu0 0.0
        %v7431 = vand.u32 %v7399, 4294901760
        %7432 = vmatpush1.msra.mxu0 %v7431
        %7433 = vmatprep.subr.mxu0 0.0
        %v7434 = vand.u32 %v7393, 4294901760
        %7435 = vmatpush1.msra.mxu0 %v7434
        %7436 = vmatprep.subr.mxu0 0.0
        %7437 = vmatpush2.msra.mxu0 0.0
        %7438 = vmatprep.subr.mxu0 0.0
        %7439 = vmatpush2.msra.mxu0 0.0
        %7440 = vmatprep.subr.mxu0 0.0
        %7441 = vmatpush2.msra.mxu0 0.0
        %7442 = vmatprep.subr.mxu0 0.0
        %7443 = vmatpush2.msra.mxu0 0.0
        %7444 = vmatprep.subr.mxu0 0.0
        %7445 = vmatpush2.msra.mxu0 0.0
        %7446 = vmatprep.subr.mxu0 0.0
        %7447 = vmatpush2.msra.mxu0 0.0
        %7448 = vmatprep.subr.mxu0 0.0
        %7449 = vmatpush2.msra.mxu0 0.0
        %7450 = vmatprep.subr.mxu0 0.0
        %7451 = vmatpush2.msra.mxu0 0.0
        %7452 = vmatprep.subr.mxu0 0.0
        %7453 = vmatpush2.msra.mxu0 0.0
        %7454 = vmatprep.subr.mxu0 0.0
        %7455 = vmatpush2.msra.mxu0 0.0
        %7456 = vmatprep.subr.mxu0 0.0
        %7457 = vmatpush2.msra.mxu0 0.0
        %7458 = vmatprep.subr.mxu0 0.0
        %7459 = vmatpush2.msra.mxu0 0.0
        %7460 = vmatprep.subr.mxu0 0.0
        %7461 = vmatpush2.msra.mxu0 0.0
        %7462 = vmatprep.subr.mxu0 0.0
        %7463 = vmatpush2.msra.mxu0 0.0
        %7464 = vmatprep.subr.mxu0 0.0
        %7465 = vmatpush2.msra.mxu0 0.0
        %7466 = vmatprep.subr.mxu0 0.0
        %7467 = vmatpush2.msra.mxu0 0.0
        %7468 = vmatprep.mubr.f32.mxu0 0.0
        %v7469 = vand.u32 %v1311, 4294901760
        %v7470 = vsub.f32 %v1311, %v7469
        %v7471 = vand.u32 %v7470, 4294901760
        %v7472 = vsub.f32 %v7470, %v7471
        %v7473 = vand.u32 %v7472, 4294901760
        %7474 = vmatmul.mubr.f32.gmra.mxu0 %v7473
        %v7475 = vpop.f32.mrf.mxu0
        %v7476 = vadd.f32 0.0, %v7475
        %v7477 = vpop.f32.mrf.mxu0
        %7478 = vmatprep.mubr.f32.mxu0 0.0
        %v7479 = vand.u32 %v1314, 4294901760
        %v7480 = vsub.f32 %v1314, %v7479
        %v7481 = vand.u32 %v7480, 4294901760
        %v7482 = vsub.f32 %v7480, %v7481
        %v7483 = vand.u32 %v7482, 4294901760
        %7484 = vmatmul.mubr.f32.gmra.mxu0 %v7483
        %v7485 = vpop.f32.mrf.mxu0
        %v7486 = vadd.f32 0.0, %v7485
        %v7487 = vpop.f32.mrf.mxu0
        %7488 = vdwg.mxu0
        %7489 = vmatprep.subr.mxu0 0.0
        %7490 = vmatpush1.msra.mxu0 0.0
        %7491 = vmatprep.subr.mxu0 0.0
        %7492 = vmatpush1.msra.mxu0 0.0
        %7493 = vmatprep.subr.mxu0 0.0
        %7494 = vmatpush1.msra.mxu0 0.0
        %7495 = vmatprep.subr.mxu0 0.0
        %7496 = vmatpush1.msra.mxu0 0.0
        %7497 = vmatprep.subr.mxu0 0.0
        %7498 = vmatpush1.msra.mxu0 0.0
        %7499 = vmatprep.subr.mxu0 0.0
        %7500 = vmatpush1.msra.mxu0 0.0
        %7501 = vmatprep.subr.mxu0 0.0
        %7502 = vmatpush1.msra.mxu0 0.0
        %7503 = vmatprep.subr.mxu0 0.0
        %7504 = vmatpush1.msra.mxu0 0.0
        %7505 = vmatprep.subr.mxu0 0.0
        %7506 = vmatpush1.msra.mxu0 0.0
        %7507 = vmatprep.subr.mxu0 0.0
        %7508 = vmatpush1.msra.mxu0 0.0
        %7509 = vmatprep.subr.mxu0 0.0
        %7510 = vmatpush1.msra.mxu0 0.0
        %7511 = vmatprep.subr.mxu0 0.0
        %7512 = vmatpush1.msra.mxu0 0.0
        %7513 = vmatprep.subr.mxu0 0.0
        %7514 = vmatpush1.msra.mxu0 0.0
        %7515 = vmatprep.subr.mxu0 0.0
        %7516 = vmatpush1.msra.mxu0 0.0
        %7517 = vmatprep.subr.mxu0 0.0
        %v7518 = vand.u32 %v7399, 4294901760
        %v7519 = vsub.f32 %v7399, %v7518
        %v7520 = vand.u32 %v7519, 4294901760
        %v7521 = vsub.f32 %v7519, %v7520
        %v7522 = vand.u32 %v7521, 4294901760
        %7523 = vmatpush1.msra.mxu0 %v7522
        %7524 = vmatprep.subr.mxu0 0.0
        %v7525 = vand.u32 %v7393, 4294901760
        %v7526 = vsub.f32 %v7393, %v7525
        %v7527 = vand.u32 %v7526, 4294901760
        %v7528 = vsub.f32 %v7526, %v7527
        %v7529 = vand.u32 %v7528, 4294901760
        %7530 = vmatpush1.msra.mxu0 %v7529
        %7531 = vmatprep.subr.mxu0 0.0
        %7532 = vmatpush2.msra.mxu0 0.0
        %7533 = vmatprep.subr.mxu0 0.0
        %7534 = vmatpush2.msra.mxu0 0.0
        %7535 = vmatprep.subr.mxu0 0.0
        %7536 = vmatpush2.msra.mxu0 0.0
        %7537 = vmatprep.subr.mxu0 0.0
        %7538 = vmatpush2.msra.mxu0 0.0
        %7539 = vmatprep.subr.mxu0 0.0
        %7540 = vmatpush2.msra.mxu0 0.0
        %7541 = vmatprep.subr.mxu0 0.0
        %7542 = vmatpush2.msra.mxu0 0.0
        %7543 = vmatprep.subr.mxu0 0.0
        %7544 = vmatpush2.msra.mxu0 0.0
        %7545 = vmatprep.subr.mxu0 0.0
        %7546 = vmatpush2.msra.mxu0 0.0
        %7547 = vmatprep.subr.mxu0 0.0
        %7548 = vmatpush2.msra.mxu0 0.0
        %7549 = vmatprep.subr.mxu0 0.0
        %7550 = vmatpush2.msra.mxu0 0.0
        %7551 = vmatprep.subr.mxu0 0.0
        %7552 = vmatpush2.msra.mxu0 0.0
        %7553 = vmatprep.subr.mxu0 0.0
        %7554 = vmatpush2.msra.mxu0 0.0
        %7555 = vmatprep.subr.mxu0 0.0
        %7556 = vmatpush2.msra.mxu0 0.0
        %7557 = vmatprep.subr.mxu0 0.0
        %7558 = vmatpush2.msra.mxu0 0.0
        %7559 = vmatprep.subr.mxu0 0.0
        %7560 = vmatpush2.msra.mxu0 0.0
        %7561 = vmatprep.subr.mxu0 0.0
        %7562 = vmatpush2.msra.mxu0 0.0
        %7563 = vmatprep.mubr.f32.mxu0 0.0
        %v7564 = vand.u32 %v1311, 4294901760
        %7565 = vmatmul.mubr.f32.gmra.mxu0 %v7564
        %v7566 = vpop.f32.mrf.mxu0
        %v7567 = vadd.f32 %v7476, %v7566
        %v7568 = vpop.f32.mrf.mxu0
        %7569 = vmatprep.mubr.f32.mxu0 0.0
        %v7570 = vand.u32 %v1314, 4294901760
        %7571 = vmatmul.mubr.f32.gmra.mxu0 %v7570
        %v7572 = vpop.f32.mrf.mxu0
        %v7573 = vadd.f32 %v7486, %v7572
        %v7574 = vpop.f32.mrf.mxu0
        %7575 = vdwg.mxu0
        %7576 = vmatprep.subr.mxu0 0.0
        %7577 = vmatpush1.msra.mxu0 0.0
        %7578 = vmatprep.subr.mxu0 0.0
        %7579 = vmatpush1.msra.mxu0 0.0
        %7580 = vmatprep.subr.mxu0 0.0
        %7581 = vmatpush1.msra.mxu0 0.0
        %7582 = vmatprep.subr.mxu0 0.0
        %7583 = vmatpush1.msra.mxu0 0.0
        %7584 = vmatprep.subr.mxu0 0.0
        %7585 = vmatpush1.msra.mxu0 0.0
        %7586 = vmatprep.subr.mxu0 0.0
        %7587 = vmatpush1.msra.mxu0 0.0
        %7588 = vmatprep.subr.mxu0 0.0
        %7589 = vmatpush1.msra.mxu0 0.0
        %7590 = vmatprep.subr.mxu0 0.0
        %7591 = vmatpush1.msra.mxu0 0.0
        %7592 = vmatprep.subr.mxu0 0.0
        %7593 = vmatpush1.msra.mxu0 0.0
        %7594 = vmatprep.subr.mxu0 0.0
        %7595 = vmatpush1.msra.mxu0 0.0
        %7596 = vmatprep.subr.mxu0 0.0
        %7597 = vmatpush1.msra.mxu0 0.0
        %7598 = vmatprep.subr.mxu0 0.0
        %7599 = vmatpush1.msra.mxu0 0.0
        %7600 = vmatprep.subr.mxu0 0.0
        %7601 = vmatpush1.msra.mxu0 0.0
        %7602 = vmatprep.subr.mxu0 0.0
        %7603 = vmatpush1.msra.mxu0 0.0
        %7604 = vmatprep.subr.mxu0 0.0
        %v7605 = vand.u32 %v7399, 4294901760
        %v7606 = vsub.f32 %v7399, %v7605
        %7607 = vmatpush1.msra.mxu0 %v7606
        %7608 = vmatprep.subr.mxu0 0.0
        %v7609 = vand.u32 %v7393, 4294901760
        %v7610 = vsub.f32 %v7393, %v7609
        %7611 = vmatpush1.msra.mxu0 %v7610
        %7612 = vmatprep.subr.mxu0 0.0
        %7613 = vmatpush2.msra.mxu0 0.0
        %7614 = vmatprep.subr.mxu0 0.0
        %7615 = vmatpush2.msra.mxu0 0.0
        %7616 = vmatprep.subr.mxu0 0.0
        %7617 = vmatpush2.msra.mxu0 0.0
        %7618 = vmatprep.subr.mxu0 0.0
        %7619 = vmatpush2.msra.mxu0 0.0
        %7620 = vmatprep.subr.mxu0 0.0
        %7621 = vmatpush2.msra.mxu0 0.0
        %7622 = vmatprep.subr.mxu0 0.0
        %7623 = vmatpush2.msra.mxu0 0.0
        %7624 = vmatprep.subr.mxu0 0.0
        %7625 = vmatpush2.msra.mxu0 0.0
        %7626 = vmatprep.subr.mxu0 0.0
        %7627 = vmatpush2.msra.mxu0 0.0
        %7628 = vmatprep.subr.mxu0 0.0
        %7629 = vmatpush2.msra.mxu0 0.0
        %7630 = vmatprep.subr.mxu0 0.0
        %7631 = vmatpush2.msra.mxu0 0.0
        %7632 = vmatprep.subr.mxu0 0.0
        %7633 = vmatpush2.msra.mxu0 0.0
        %7634 = vmatprep.subr.mxu0 0.0
        %7635 = vmatpush2.msra.mxu0 0.0
        %7636 = vmatprep.subr.mxu0 0.0
        %7637 = vmatpush2.msra.mxu0 0.0
        %7638 = vmatprep.subr.mxu0 0.0
        %7639 = vmatpush2.msra.mxu0 0.0
        %7640 = vmatprep.subr.mxu0 0.0
        %7641 = vmatpush2.msra.mxu0 0.0
        %7642 = vmatprep.subr.mxu0 0.0
        %7643 = vmatpush2.msra.mxu0 0.0
        %7644 = vmatprep.mubr.f32.mxu0 0.0
        %v7645 = vand.u32 %v1311, 4294901760
        %v7646 = vsub.f32 %v1311, %v7645
        %7647 = vmatmul.mubr.f32.gmra.mxu0 %v7646
        %v7648 = vpop.f32.mrf.mxu0
        %v7649 = vadd.f32 %v7567, %v7648
        %v7650 = vpop.f32.mrf.mxu0
        %7651 = vmatprep.mubr.f32.mxu0 0.0
        %v7652 = vand.u32 %v1314, 4294901760
        %v7653 = vsub.f32 %v1314, %v7652
        %7654 = vmatmul.mubr.f32.gmra.mxu0 %v7653
        %v7655 = vpop.f32.mrf.mxu0
        %v7656 = vadd.f32 %v7573, %v7655
        %v7657 = vpop.f32.mrf.mxu0
        %7658 = vdwg.mxu0
        %7659 = vmatprep.subr.mxu0 0.0
        %7660 = vmatpush1.msra.mxu0 0.0
        %7661 = vmatprep.subr.mxu0 0.0
        %7662 = vmatpush1.msra.mxu0 0.0
        %7663 = vmatprep.subr.mxu0 0.0
        %7664 = vmatpush1.msra.mxu0 0.0
        %7665 = vmatprep.subr.mxu0 0.0
        %7666 = vmatpush1.msra.mxu0 0.0
        %7667 = vmatprep.subr.mxu0 0.0
        %7668 = vmatpush1.msra.mxu0 0.0
        %7669 = vmatprep.subr.mxu0 0.0
        %7670 = vmatpush1.msra.mxu0 0.0
        %7671 = vmatprep.subr.mxu0 0.0
        %7672 = vmatpush1.msra.mxu0 0.0
        %7673 = vmatprep.subr.mxu0 0.0
        %7674 = vmatpush1.msra.mxu0 0.0
        %7675 = vmatprep.subr.mxu0 0.0
        %7676 = vmatpush1.msra.mxu0 0.0
        %7677 = vmatprep.subr.mxu0 0.0
        %7678 = vmatpush1.msra.mxu0 0.0
        %7679 = vmatprep.subr.mxu0 0.0
        %7680 = vmatpush1.msra.mxu0 0.0
        %7681 = vmatprep.subr.mxu0 0.0
        %7682 = vmatpush1.msra.mxu0 0.0
        %7683 = vmatprep.subr.mxu0 0.0
        %7684 = vmatpush1.msra.mxu0 0.0
        %7685 = vmatprep.subr.mxu0 0.0
        %7686 = vmatpush1.msra.mxu0 0.0
        %7687 = vmatprep.subr.mxu0 0.0
        %v7688 = vand.u32 %v7399, 4294901760
        %7689 = vmatpush1.msra.mxu0 %v7688
        %7690 = vmatprep.subr.mxu0 0.0
        %v7691 = vand.u32 %v7393, 4294901760
        %7692 = vmatpush1.msra.mxu0 %v7691
        %7693 = vmatprep.subr.mxu0 0.0
        %7694 = vmatpush2.msra.mxu0 0.0
        %7695 = vmatprep.subr.mxu0 0.0
        %7696 = vmatpush2.msra.mxu0 0.0
        %7697 = vmatprep.subr.mxu0 0.0
        %7698 = vmatpush2.msra.mxu0 0.0
        %7699 = vmatprep.subr.mxu0 0.0
        %7700 = vmatpush2.msra.mxu0 0.0
        %7701 = vmatprep.subr.mxu0 0.0
        %7702 = vmatpush2.msra.mxu0 0.0
        %7703 = vmatprep.subr.mxu0 0.0
        %7704 = vmatpush2.msra.mxu0 0.0
        %7705 = vmatprep.subr.mxu0 0.0
        %7706 = vmatpush2.msra.mxu0 0.0
        %7707 = vmatprep.subr.mxu0 0.0
        %7708 = vmatpush2.msra.mxu0 0.0
        %7709 = vmatprep.subr.mxu0 0.0
        %7710 = vmatpush2.msra.mxu0 0.0
        %7711 = vmatprep.subr.mxu0 0.0
        %7712 = vmatpush2.msra.mxu0 0.0
        %7713 = vmatprep.subr.mxu0 0.0
        %7714 = vmatpush2.msra.mxu0 0.0
        %7715 = vmatprep.subr.mxu0 0.0
        %7716 = vmatpush2.msra.mxu0 0.0
        %7717 = vmatprep.subr.mxu0 0.0
        %7718 = vmatpush2.msra.mxu0 0.0
        %7719 = vmatprep.subr.mxu0 0.0
        %7720 = vmatpush2.msra.mxu0 0.0
        %7721 = vmatprep.subr.mxu0 0.0
        %7722 = vmatpush2.msra.mxu0 0.0
        %7723 = vmatprep.subr.mxu0 0.0
        %7724 = vmatpush2.msra.mxu0 0.0
        %7725 = vmatprep.mubr.f32.mxu0 0.0
        %v7726 = vand.u32 %v1311, 4294901760
        %v7727 = vsub.f32 %v1311, %v7726
        %v7728 = vand.u32 %v7727, 4294901760
        %7729 = vmatmul.mubr.f32.gmra.mxu0 %v7728
        %v7730 = vpop.f32.mrf.mxu0
        %v7731 = vadd.f32 %v7649, %v7730
        %v7732 = vpop.f32.mrf.mxu0
        %7733 = vmatprep.mubr.f32.mxu0 0.0
        %v7734 = vand.u32 %v1314, 4294901760
        %v7735 = vsub.f32 %v1314, %v7734
        %v7736 = vand.u32 %v7735, 4294901760
        %7737 = vmatmul.mubr.f32.gmra.mxu0 %v7736
        %v7738 = vpop.f32.mrf.mxu0
        %v7739 = vadd.f32 %v7656, %v7738
        %v7740 = vpop.f32.mrf.mxu0
        %7741 = vdwg.mxu0
        %7742 = vmatprep.subr.mxu0 0.0
        %7743 = vmatpush1.msra.mxu0 0.0
        %7744 = vmatprep.subr.mxu0 0.0
        %7745 = vmatpush1.msra.mxu0 0.0
        %7746 = vmatprep.subr.mxu0 0.0
        %7747 = vmatpush1.msra.mxu0 0.0
        %7748 = vmatprep.subr.mxu0 0.0
        %7749 = vmatpush1.msra.mxu0 0.0
        %7750 = vmatprep.subr.mxu0 0.0
        %7751 = vmatpush1.msra.mxu0 0.0
        %7752 = vmatprep.subr.mxu0 0.0
        %7753 = vmatpush1.msra.mxu0 0.0
        %7754 = vmatprep.subr.mxu0 0.0
        %7755 = vmatpush1.msra.mxu0 0.0
        %7756 = vmatprep.subr.mxu0 0.0
        %7757 = vmatpush1.msra.mxu0 0.0
        %7758 = vmatprep.subr.mxu0 0.0
        %7759 = vmatpush1.msra.mxu0 0.0
        %7760 = vmatprep.subr.mxu0 0.0
        %7761 = vmatpush1.msra.mxu0 0.0
        %7762 = vmatprep.subr.mxu0 0.0
        %7763 = vmatpush1.msra.mxu0 0.0
        %7764 = vmatprep.subr.mxu0 0.0
        %7765 = vmatpush1.msra.mxu0 0.0
        %7766 = vmatprep.subr.mxu0 0.0
        %7767 = vmatpush1.msra.mxu0 0.0
        %7768 = vmatprep.subr.mxu0 0.0
        %7769 = vmatpush1.msra.mxu0 0.0
        %7770 = vmatprep.subr.mxu0 0.0
        %v7771 = vand.u32 %v7399, 4294901760
        %v7772 = vsub.f32 %v7399, %v7771
        %v7773 = vand.u32 %v7772, 4294901760
        %7774 = vmatpush1.msra.mxu0 %v7773
        %7775 = vmatprep.subr.mxu0 0.0
        %v7776 = vand.u32 %v7393, 4294901760
        %v7777 = vsub.f32 %v7393, %v7776
        %v7778 = vand.u32 %v7777, 4294901760
        %7779 = vmatpush1.msra.mxu0 %v7778
        %7780 = vmatprep.subr.mxu0 0.0
        %7781 = vmatpush2.msra.mxu0 0.0
        %7782 = vmatprep.subr.mxu0 0.0
        %7783 = vmatpush2.msra.mxu0 0.0
        %7784 = vmatprep.subr.mxu0 0.0
        %7785 = vmatpush2.msra.mxu0 0.0
        %7786 = vmatprep.subr.mxu0 0.0
        %7787 = vmatpush2.msra.mxu0 0.0
        %7788 = vmatprep.subr.mxu0 0.0
        %7789 = vmatpush2.msra.mxu0 0.0
        %7790 = vmatprep.subr.mxu0 0.0
        %7791 = vmatpush2.msra.mxu0 0.0
        %7792 = vmatprep.subr.mxu0 0.0
        %7793 = vmatpush2.msra.mxu0 0.0
        %7794 = vmatprep.subr.mxu0 0.0
        %7795 = vmatpush2.msra.mxu0 0.0
        %7796 = vmatprep.subr.mxu0 0.0
        %7797 = vmatpush2.msra.mxu0 0.0
        %7798 = vmatprep.subr.mxu0 0.0
        %7799 = vmatpush2.msra.mxu0 0.0
        %7800 = vmatprep.subr.mxu0 0.0
        %7801 = vmatpush2.msra.mxu0 0.0
        %7802 = vmatprep.subr.mxu0 0.0
        %7803 = vmatpush2.msra.mxu0 0.0
        %7804 = vmatprep.subr.mxu0 0.0
        %7805 = vmatpush2.msra.mxu0 0.0
        %7806 = vmatprep.subr.mxu0 0.0
        %7807 = vmatpush2.msra.mxu0 0.0
        %7808 = vmatprep.subr.mxu0 0.0
        %7809 = vmatpush2.msra.mxu0 0.0
        %7810 = vmatprep.subr.mxu0 0.0
        %7811 = vmatpush2.msra.mxu0 0.0
        %7812 = vmatprep.mubr.f32.mxu0 0.0
        %v7813 = vand.u32 %v1311, 4294901760
        %7814 = vmatmul.mubr.f32.gmra.mxu0 %v7813
        %v7815 = vpop.f32.mrf.mxu0
        %v7816 = vadd.f32 %v7731, %v7815
        %v7817 = vpop.f32.mrf.mxu0
        %7818 = vmatprep.mubr.f32.mxu0 0.0
        %v7819 = vand.u32 %v1314, 4294901760
        %7820 = vmatmul.mubr.f32.gmra.mxu0 %v7819
        %v7821 = vpop.f32.mrf.mxu0
        %v7822 = vadd.f32 %v7739, %v7821
        %v7823 = vpop.f32.mrf.mxu0
        %7824 = vdwg.mxu0
        %7825 = vmatprep.subr.mxu0 0.0
        %7826 = vmatpush1.msra.mxu0 0.0
        %7827 = vmatprep.subr.mxu0 0.0
        %7828 = vmatpush1.msra.mxu0 0.0
        %7829 = vmatprep.subr.mxu0 0.0
        %7830 = vmatpush1.msra.mxu0 0.0
        %7831 = vmatprep.subr.mxu0 0.0
        %7832 = vmatpush1.msra.mxu0 0.0
        %7833 = vmatprep.subr.mxu0 0.0
        %7834 = vmatpush1.msra.mxu0 0.0
        %7835 = vmatprep.subr.mxu0 0.0
        %7836 = vmatpush1.msra.mxu0 0.0
        %7837 = vmatprep.subr.mxu0 0.0
        %7838 = vmatpush1.msra.mxu0 0.0
        %7839 = vmatprep.subr.mxu0 0.0
        %7840 = vmatpush1.msra.mxu0 0.0
        %7841 = vmatprep.subr.mxu0 0.0
        %7842 = vmatpush1.msra.mxu0 0.0
        %7843 = vmatprep.subr.mxu0 0.0
        %7844 = vmatpush1.msra.mxu0 0.0
        %7845 = vmatprep.subr.mxu0 0.0
        %7846 = vmatpush1.msra.mxu0 0.0
        %7847 = vmatprep.subr.mxu0 0.0
        %7848 = vmatpush1.msra.mxu0 0.0
        %7849 = vmatprep.subr.mxu0 0.0
        %7850 = vmatpush1.msra.mxu0 0.0
        %7851 = vmatprep.subr.mxu0 0.0
        %7852 = vmatpush1.msra.mxu0 0.0
        %7853 = vmatprep.subr.mxu0 0.0
        %v7854 = vand.u32 %v7399, 4294901760
        %7855 = vmatpush1.msra.mxu0 %v7854
        %7856 = vmatprep.subr.mxu0 0.0
        %v7857 = vand.u32 %v7393, 4294901760
        %7858 = vmatpush1.msra.mxu0 %v7857
        %7859 = vmatprep.subr.mxu0 0.0
        %7860 = vmatpush2.msra.mxu0 0.0
        %7861 = vmatprep.subr.mxu0 0.0
        %7862 = vmatpush2.msra.mxu0 0.0
        %7863 = vmatprep.subr.mxu0 0.0
        %7864 = vmatpush2.msra.mxu0 0.0
        %7865 = vmatprep.subr.mxu0 0.0
        %7866 = vmatpush2.msra.mxu0 0.0
        %7867 = vmatprep.subr.mxu0 0.0
        %7868 = vmatpush2.msra.mxu0 0.0
        %7869 = vmatprep.subr.mxu0 0.0
        %7870 = vmatpush2.msra.mxu0 0.0
        %7871 = vmatprep.subr.mxu0 0.0
        %7872 = vmatpush2.msra.mxu0 0.0
        %7873 = vmatprep.subr.mxu0 0.0
        %7874 = vmatpush2.msra.mxu0 0.0
        %7875 = vmatprep.subr.mxu0 0.0
        %7876 = vmatpush2.msra.mxu0 0.0
        %7877 = vmatprep.subr.mxu0 0.0
        %7878 = vmatpush2.msra.mxu0 0.0
        %7879 = vmatprep.subr.mxu0 0.0
        %7880 = vmatpush2.msra.mxu0 0.0
        %7881 = vmatprep.subr.mxu0 0.0
        %7882 = vmatpush2.msra.mxu0 0.0
        %7883 = vmatprep.subr.mxu0 0.0
        %7884 = vmatpush2.msra.mxu0 0.0
        %7885 = vmatprep.subr.mxu0 0.0
        %7886 = vmatpush2.msra.mxu0 0.0
        %7887 = vmatprep.subr.mxu0 0.0
        %7888 = vmatpush2.msra.mxu0 0.0
        %7889 = vmatprep.subr.mxu0 0.0
        %7890 = vmatpush2.msra.mxu0 0.0
        %7891 = vmatprep.mubr.f32.mxu0 0.0
        %v7892 = vand.u32 %v1311, 4294901760
        %7893 = vmatmul.mubr.f32.gmra.mxu0 %v7892
        %v7894 = vpop.f32.mrf.mxu0
        %v7895 = vadd.f32 %v7816, %v7894
        %v7896 = vpop.f32.mrf.mxu0
        %7897 = vmatprep.mubr.f32.mxu0 0.0
        %v7898 = vand.u32 %v1314, 4294901760
        %7899 = vmatmul.mubr.f32.gmra.mxu0 %v7898
        %v7900 = vpop.f32.mrf.mxu0
        %v7901 = vadd.f32 %v7822, %v7900
        %v7902 = vpop.f32.mrf.mxu0
        %7903 = vdwg.mxu0
        %v7905 = vsel %vm291, %v7895, 0
        %v7908 = vsel %vm291, %v7901, 0
        %7910 = vmatprep.subr.mxu0 0.0
        %7911 = vmatpush1.msra.mxu0 0.0
        %7912 = vmatprep.subr.mxu0 0.0
        %7913 = vmatpush1.msra.mxu0 0.0
        %7914 = vmatprep.subr.mxu0 0.0
        %7915 = vmatpush1.msra.mxu0 0.0
        %7916 = vmatprep.subr.mxu0 0.0
        %7917 = vmatpush1.msra.mxu0 0.0
        %7918 = vmatprep.subr.mxu0 0.0
        %7919 = vmatpush1.msra.mxu0 0.0
        %7920 = vmatprep.subr.mxu0 0.0
        %7921 = vmatpush1.msra.mxu0 0.0
        %7922 = vmatprep.subr.mxu0 0.0
        %7923 = vmatpush1.msra.mxu0 0.0
        %7924 = vmatprep.subr.mxu0 0.0
        %7925 = vmatpush1.msra.mxu0 0.0
        %7926 = vmatprep.subr.mxu0 0.0
        %7927 = vmatpush1.msra.mxu0 0.0
        %7928 = vmatprep.subr.mxu0 0.0
        %7929 = vmatpush1.msra.mxu0 0.0
        %7930 = vmatprep.subr.mxu0 0.0
        %7931 = vmatpush1.msra.mxu0 0.0
        %7932 = vmatprep.subr.mxu0 0.0
        %7933 = vmatpush1.msra.mxu0 0.0
        %7934 = vmatprep.subr.mxu0 0.0
        %7935 = vmatpush1.msra.mxu0 0.0
        %7936 = vmatprep.subr.mxu0 0.0
        %7937 = vmatpush1.msra.mxu0 0.0
        %7938 = vmatprep.subr.mxu0 0.0
        %v7939 = vand.u32 %v1819, 4294901760
        %7940 = vmatpush1.msra.mxu0 %v7939
        %7941 = vmatprep.subr.mxu0 0.0
        %v7942 = vand.u32 %v1818, 4294901760
        %7943 = vmatpush1.msra.mxu0 %v7942
        %7944 = vmatprep.subr.mxu0 0.0
        %7945 = vmatpush2.msra.mxu0 0.0
        %7946 = vmatprep.subr.mxu0 0.0
        %7947 = vmatpush2.msra.mxu0 0.0
        %7948 = vmatprep.subr.mxu0 0.0
        %7949 = vmatpush2.msra.mxu0 0.0
        %7950 = vmatprep.subr.mxu0 0.0
        %7951 = vmatpush2.msra.mxu0 0.0
        %7952 = vmatprep.subr.mxu0 0.0
        %7953 = vmatpush2.msra.mxu0 0.0
        %7954 = vmatprep.subr.mxu0 0.0
        %7955 = vmatpush2.msra.mxu0 0.0
        %7956 = vmatprep.subr.mxu0 0.0
        %7957 = vmatpush2.msra.mxu0 0.0
        %7958 = vmatprep.subr.mxu0 0.0
        %7959 = vmatpush2.msra.mxu0 0.0
        %7960 = vmatprep.subr.mxu0 0.0
        %7961 = vmatpush2.msra.mxu0 0.0
        %7962 = vmatprep.subr.mxu0 0.0
        %7963 = vmatpush2.msra.mxu0 0.0
        %7964 = vmatprep.subr.mxu0 0.0
        %7965 = vmatpush2.msra.mxu0 0.0
        %7966 = vmatprep.subr.mxu0 0.0
        %7967 = vmatpush2.msra.mxu0 0.0
        %7968 = vmatprep.subr.mxu0 0.0
        %7969 = vmatpush2.msra.mxu0 0.0
        %7970 = vmatprep.subr.mxu0 0.0
        %7971 = vmatpush2.msra.mxu0 0.0
        %7972 = vmatprep.subr.mxu0 0.0
        %7973 = vmatpush2.msra.mxu0 0.0
        %7974 = vmatprep.subr.mxu0 0.0
        %7975 = vmatpush2.msra.mxu0 0.0
        %7976 = vmatprep.mubr.f32.mxu0 0.0
        %v7977 = vand.u32 %v7905, 4294901760
        %v7978 = vsub.f32 %v7905, %v7977
        %v7979 = vand.u32 %v7978, 4294901760
        %v7980 = vsub.f32 %v7978, %v7979
        %v7981 = vand.u32 %v7980, 4294901760
        %7982 = vmatmul.mubr.f32.gmra.mxu0 %v7981
        %v7983 = vpop.f32.mrf.mxu0
        %v7984 = vadd.f32 0.0, %v7983
        %v7985 = vpop.f32.mrf.mxu0
        %7986 = vmatprep.mubr.f32.mxu0 0.0
        %v7987 = vand.u32 %v7908, 4294901760
        %v7988 = vsub.f32 %v7908, %v7987
        %v7989 = vand.u32 %v7988, 4294901760
        %v7990 = vsub.f32 %v7988, %v7989
        %v7991 = vand.u32 %v7990, 4294901760
        %7992 = vmatmul.mubr.f32.gmra.mxu0 %v7991
        %v7993 = vpop.f32.mrf.mxu0
        %v7994 = vadd.f32 0.0, %v7993
        %v7995 = vpop.f32.mrf.mxu0
        %7996 = vdwg.mxu0
        %7997 = vmatprep.subr.mxu0 0.0
        %7998 = vmatpush1.msra.mxu0 0.0
        %7999 = vmatprep.subr.mxu0 0.0
        %8000 = vmatpush1.msra.mxu0 0.0
        %8001 = vmatprep.subr.mxu0 0.0
        %8002 = vmatpush1.msra.mxu0 0.0
        %8003 = vmatprep.subr.mxu0 0.0
        %8004 = vmatpush1.msra.mxu0 0.0
        %8005 = vmatprep.subr.mxu0 0.0
        %8006 = vmatpush1.msra.mxu0 0.0
        %8007 = vmatprep.subr.mxu0 0.0
        %8008 = vmatpush1.msra.mxu0 0.0
        %8009 = vmatprep.subr.mxu0 0.0
        %8010 = vmatpush1.msra.mxu0 0.0
        %8011 = vmatprep.subr.mxu0 0.0
        %8012 = vmatpush1.msra.mxu0 0.0
        %8013 = vmatprep.subr.mxu0 0.0
        %8014 = vmatpush1.msra.mxu0 0.0
        %8015 = vmatprep.subr.mxu0 0.0
        %8016 = vmatpush1.msra.mxu0 0.0
        %8017 = vmatprep.subr.mxu0 0.0
        %8018 = vmatpush1.msra.mxu0 0.0
        %8019 = vmatprep.subr.mxu0 0.0
        %8020 = vmatpush1.msra.mxu0 0.0
        %8021 = vmatprep.subr.mxu0 0.0
        %8022 = vmatpush1.msra.mxu0 0.0
        %8023 = vmatprep.subr.mxu0 0.0
        %8024 = vmatpush1.msra.mxu0 0.0
        %8025 = vmatprep.subr.mxu0 0.0
        %v8026 = vand.u32 %v1819, 4294901760
        %v8027 = vsub.f32 %v1819, %v8026
        %v8028 = vand.u32 %v8027, 4294901760
        %v8029 = vsub.f32 %v8027, %v8028
        %v8030 = vand.u32 %v8029, 4294901760
        %8031 = vmatpush1.msra.mxu0 %v8030
        %8032 = vmatprep.subr.mxu0 0.0
        %v8033 = vand.u32 %v1818, 4294901760
        %v8034 = vsub.f32 %v1818, %v8033
        %v8035 = vand.u32 %v8034, 4294901760
        %v8036 = vsub.f32 %v8034, %v8035
        %v8037 = vand.u32 %v8036, 4294901760
        %8038 = vmatpush1.msra.mxu0 %v8037
        %8039 = vmatprep.subr.mxu0 0.0
        %8040 = vmatpush2.msra.mxu0 0.0
        %8041 = vmatprep.subr.mxu0 0.0
        %8042 = vmatpush2.msra.mxu0 0.0
        %8043 = vmatprep.subr.mxu0 0.0
        %8044 = vmatpush2.msra.mxu0 0.0
        %8045 = vmatprep.subr.mxu0 0.0
        %8046 = vmatpush2.msra.mxu0 0.0
        %8047 = vmatprep.subr.mxu0 0.0
        %8048 = vmatpush2.msra.mxu0 0.0
        %8049 = vmatprep.subr.mxu0 0.0
        %8050 = vmatpush2.msra.mxu0 0.0
        %8051 = vmatprep.subr.mxu0 0.0
        %8052 = vmatpush2.msra.mxu0 0.0
        %8053 = vmatprep.subr.mxu0 0.0
        %8054 = vmatpush2.msra.mxu0 0.0
        %8055 = vmatprep.subr.mxu0 0.0
        %8056 = vmatpush2.msra.mxu0 0.0
        %8057 = vmatprep.subr.mxu0 0.0
        %8058 = vmatpush2.msra.mxu0 0.0
        %8059 = vmatprep.subr.mxu0 0.0
        %8060 = vmatpush2.msra.mxu0 0.0
        %8061 = vmatprep.subr.mxu0 0.0
        %8062 = vmatpush2.msra.mxu0 0.0
        %8063 = vmatprep.subr.mxu0 0.0
        %8064 = vmatpush2.msra.mxu0 0.0
        %8065 = vmatprep.subr.mxu0 0.0
        %8066 = vmatpush2.msra.mxu0 0.0
        %8067 = vmatprep.subr.mxu0 0.0
        %8068 = vmatpush2.msra.mxu0 0.0
        %8069 = vmatprep.subr.mxu0 0.0
        %8070 = vmatpush2.msra.mxu0 0.0
        %8071 = vmatprep.mubr.f32.mxu0 0.0
        %v8072 = vand.u32 %v7905, 4294901760
        %8073 = vmatmul.mubr.f32.gmra.mxu0 %v8072
        %v8074 = vpop.f32.mrf.mxu0
        %v8075 = vadd.f32 %v7984, %v8074
        %v8076 = vpop.f32.mrf.mxu0
        %8077 = vmatprep.mubr.f32.mxu0 0.0
        %v8078 = vand.u32 %v7908, 4294901760
        %8079 = vmatmul.mubr.f32.gmra.mxu0 %v8078
        %v8080 = vpop.f32.mrf.mxu0
        %v8081 = vadd.f32 %v7994, %v8080
        %v8082 = vpop.f32.mrf.mxu0
        %8083 = vdwg.mxu0
        %8084 = vmatprep.subr.mxu0 0.0
        %8085 = vmatpush1.msra.mxu0 0.0
        %8086 = vmatprep.subr.mxu0 0.0
        %8087 = vmatpush1.msra.mxu0 0.0
        %8088 = vmatprep.subr.mxu0 0.0
        %8089 = vmatpush1.msra.mxu0 0.0
        %8090 = vmatprep.subr.mxu0 0.0
        %8091 = vmatpush1.msra.mxu0 0.0
        %8092 = vmatprep.subr.mxu0 0.0
        %8093 = vmatpush1.msra.mxu0 0.0
        %8094 = vmatprep.subr.mxu0 0.0
        %8095 = vmatpush1.msra.mxu0 0.0
        %8096 = vmatprep.subr.mxu0 0.0
        %8097 = vmatpush1.msra.mxu0 0.0
        %8098 = vmatprep.subr.mxu0 0.0
        %8099 = vmatpush1.msra.mxu0 0.0
        %8100 = vmatprep.subr.mxu0 0.0
        %8101 = vmatpush1.msra.mxu0 0.0
        %8102 = vmatprep.subr.mxu0 0.0
        %8103 = vmatpush1.msra.mxu0 0.0
        %8104 = vmatprep.subr.mxu0 0.0
        %8105 = vmatpush1.msra.mxu0 0.0
        %8106 = vmatprep.subr.mxu0 0.0
        %8107 = vmatpush1.msra.mxu0 0.0
        %8108 = vmatprep.subr.mxu0 0.0
        %8109 = vmatpush1.msra.mxu0 0.0
        %8110 = vmatprep.subr.mxu0 0.0
        %8111 = vmatpush1.msra.mxu0 0.0
        %8112 = vmatprep.subr.mxu0 0.0
        %v8113 = vand.u32 %v1819, 4294901760
        %v8114 = vsub.f32 %v1819, %v8113
        %8115 = vmatpush1.msra.mxu0 %v8114
        %8116 = vmatprep.subr.mxu0 0.0
        %v8117 = vand.u32 %v1818, 4294901760
        %v8118 = vsub.f32 %v1818, %v8117
        %8119 = vmatpush1.msra.mxu0 %v8118
        %8120 = vmatprep.subr.mxu0 0.0
        %8121 = vmatpush2.msra.mxu0 0.0
        %8122 = vmatprep.subr.mxu0 0.0
        %8123 = vmatpush2.msra.mxu0 0.0
        %8124 = vmatprep.subr.mxu0 0.0
        %8125 = vmatpush2.msra.mxu0 0.0
        %8126 = vmatprep.subr.mxu0 0.0
        %8127 = vmatpush2.msra.mxu0 0.0
        %8128 = vmatprep.subr.mxu0 0.0
        %8129 = vmatpush2.msra.mxu0 0.0
        %8130 = vmatprep.subr.mxu0 0.0
        %8131 = vmatpush2.msra.mxu0 0.0
        %8132 = vmatprep.subr.mxu0 0.0
        %8133 = vmatpush2.msra.mxu0 0.0
        %8134 = vmatprep.subr.mxu0 0.0
        %8135 = vmatpush2.msra.mxu0 0.0
        %8136 = vmatprep.subr.mxu0 0.0
        %8137 = vmatpush2.msra.mxu0 0.0
        %8138 = vmatprep.subr.mxu0 0.0
        %8139 = vmatpush2.msra.mxu0 0.0
        %8140 = vmatprep.subr.mxu0 0.0
        %8141 = vmatpush2.msra.mxu0 0.0
        %8142 = vmatprep.subr.mxu0 0.0
        %8143 = vmatpush2.msra.mxu0 0.0
        %8144 = vmatprep.subr.mxu0 0.0
        %8145 = vmatpush2.msra.mxu0 0.0
        %8146 = vmatprep.subr.mxu0 0.0
        %8147 = vmatpush2.msra.mxu0 0.0
        %8148 = vmatprep.subr.mxu0 0.0
        %8149 = vmatpush2.msra.mxu0 0.0
        %8150 = vmatprep.subr.mxu0 0.0
        %8151 = vmatpush2.msra.mxu0 0.0
        %8152 = vmatprep.mubr.f32.mxu0 0.0
        %v8153 = vand.u32 %v7905, 4294901760
        %v8154 = vsub.f32 %v7905, %v8153
        %8155 = vmatmul.mubr.f32.gmra.mxu0 %v8154
        %v8156 = vpop.f32.mrf.mxu0
        %v8157 = vadd.f32 %v8075, %v8156
        %v8158 = vpop.f32.mrf.mxu0
        %8159 = vmatprep.mubr.f32.mxu0 0.0
        %v8160 = vand.u32 %v7908, 4294901760
        %v8161 = vsub.f32 %v7908, %v8160
        %8162 = vmatmul.mubr.f32.gmra.mxu0 %v8161
        %v8163 = vpop.f32.mrf.mxu0
        %v8164 = vadd.f32 %v8081, %v8163
        %v8165 = vpop.f32.mrf.mxu0
        %8166 = vdwg.mxu0
        %8167 = vmatprep.subr.mxu0 0.0
        %8168 = vmatpush1.msra.mxu0 0.0
        %8169 = vmatprep.subr.mxu0 0.0
        %8170 = vmatpush1.msra.mxu0 0.0
        %8171 = vmatprep.subr.mxu0 0.0
        %8172 = vmatpush1.msra.mxu0 0.0
        %8173 = vmatprep.subr.mxu0 0.0
        %8174 = vmatpush1.msra.mxu0 0.0
        %8175 = vmatprep.subr.mxu0 0.0
        %8176 = vmatpush1.msra.mxu0 0.0
        %8177 = vmatprep.subr.mxu0 0.0
        %8178 = vmatpush1.msra.mxu0 0.0
        %8179 = vmatprep.subr.mxu0 0.0
        %8180 = vmatpush1.msra.mxu0 0.0
        %8181 = vmatprep.subr.mxu0 0.0
        %8182 = vmatpush1.msra.mxu0 0.0
        %8183 = vmatprep.subr.mxu0 0.0
        %8184 = vmatpush1.msra.mxu0 0.0
        %8185 = vmatprep.subr.mxu0 0.0
        %8186 = vmatpush1.msra.mxu0 0.0
        %8187 = vmatprep.subr.mxu0 0.0
        %8188 = vmatpush1.msra.mxu0 0.0
        %8189 = vmatprep.subr.mxu0 0.0
        %8190 = vmatpush1.msra.mxu0 0.0
        %8191 = vmatprep.subr.mxu0 0.0
        %8192 = vmatpush1.msra.mxu0 0.0
        %8193 = vmatprep.subr.mxu0 0.0
        %8194 = vmatpush1.msra.mxu0 0.0
        %8195 = vmatprep.subr.mxu0 0.0
        %v8196 = vand.u32 %v1819, 4294901760
        %8197 = vmatpush1.msra.mxu0 %v8196
        %8198 = vmatprep.subr.mxu0 0.0
        %v8199 = vand.u32 %v1818, 4294901760
        %8200 = vmatpush1.msra.mxu0 %v8199
        %8201 = vmatprep.subr.mxu0 0.0
        %8202 = vmatpush2.msra.mxu0 0.0
        %8203 = vmatprep.subr.mxu0 0.0
        %8204 = vmatpush2.msra.mxu0 0.0
        %8205 = vmatprep.subr.mxu0 0.0
        %8206 = vmatpush2.msra.mxu0 0.0
        %8207 = vmatprep.subr.mxu0 0.0
        %8208 = vmatpush2.msra.mxu0 0.0
        %8209 = vmatprep.subr.mxu0 0.0
        %8210 = vmatpush2.msra.mxu0 0.0
        %8211 = vmatprep.subr.mxu0 0.0
        %8212 = vmatpush2.msra.mxu0 0.0
        %8213 = vmatprep.subr.mxu0 0.0
        %8214 = vmatpush2.msra.mxu0 0.0
        %8215 = vmatprep.subr.mxu0 0.0
        %8216 = vmatpush2.msra.mxu0 0.0
        %8217 = vmatprep.subr.mxu0 0.0
        %8218 = vmatpush2.msra.mxu0 0.0
        %8219 = vmatprep.subr.mxu0 0.0
        %8220 = vmatpush2.msra.mxu0 0.0
        %8221 = vmatprep.subr.mxu0 0.0
        %8222 = vmatpush2.msra.mxu0 0.0
        %8223 = vmatprep.subr.mxu0 0.0
        %8224 = vmatpush2.msra.mxu0 0.0
        %8225 = vmatprep.subr.mxu0 0.0
        %8226 = vmatpush2.msra.mxu0 0.0
        %8227 = vmatprep.subr.mxu0 0.0
        %8228 = vmatpush2.msra.mxu0 0.0
        %8229 = vmatprep.subr.mxu0 0.0
        %8230 = vmatpush2.msra.mxu0 0.0
        %8231 = vmatprep.subr.mxu0 0.0
        %8232 = vmatpush2.msra.mxu0 0.0
        %8233 = vmatprep.mubr.f32.mxu0 0.0
        %v8234 = vand.u32 %v7905, 4294901760
        %v8235 = vsub.f32 %v7905, %v8234
        %v8236 = vand.u32 %v8235, 4294901760
        %8237 = vmatmul.mubr.f32.gmra.mxu0 %v8236
        %v8238 = vpop.f32.mrf.mxu0
        %v8239 = vadd.f32 %v8157, %v8238
        %v8240 = vpop.f32.mrf.mxu0
        %8241 = vmatprep.mubr.f32.mxu0 0.0
        %v8242 = vand.u32 %v7908, 4294901760
        %v8243 = vsub.f32 %v7908, %v8242
        %v8244 = vand.u32 %v8243, 4294901760
        %8245 = vmatmul.mubr.f32.gmra.mxu0 %v8244
        %v8246 = vpop.f32.mrf.mxu0
        %v8247 = vadd.f32 %v8164, %v8246
        %v8248 = vpop.f32.mrf.mxu0
        %8249 = vdwg.mxu0
        %8250 = vmatprep.subr.mxu0 0.0
        %8251 = vmatpush1.msra.mxu0 0.0
        %8252 = vmatprep.subr.mxu0 0.0
        %8253 = vmatpush1.msra.mxu0 0.0
        %8254 = vmatprep.subr.mxu0 0.0
        %8255 = vmatpush1.msra.mxu0 0.0
        %8256 = vmatprep.subr.mxu0 0.0
        %8257 = vmatpush1.msra.mxu0 0.0
        %8258 = vmatprep.subr.mxu0 0.0
        %8259 = vmatpush1.msra.mxu0 0.0
        %8260 = vmatprep.subr.mxu0 0.0
        %8261 = vmatpush1.msra.mxu0 0.0
        %8262 = vmatprep.subr.mxu0 0.0
        %8263 = vmatpush1.msra.mxu0 0.0
        %8264 = vmatprep.subr.mxu0 0.0
        %8265 = vmatpush1.msra.mxu0 0.0
        %8266 = vmatprep.subr.mxu0 0.0
        %8267 = vmatpush1.msra.mxu0 0.0
        %8268 = vmatprep.subr.mxu0 0.0
        %8269 = vmatpush1.msra.mxu0 0.0
        %8270 = vmatprep.subr.mxu0 0.0
        %8271 = vmatpush1.msra.mxu0 0.0
        %8272 = vmatprep.subr.mxu0 0.0
        %8273 = vmatpush1.msra.mxu0 0.0
        %8274 = vmatprep.subr.mxu0 0.0
        %8275 = vmatpush1.msra.mxu0 0.0
        %8276 = vmatprep.subr.mxu0 0.0
        %8277 = vmatpush1.msra.mxu0 0.0
        %8278 = vmatprep.subr.mxu0 0.0
        %v8279 = vand.u32 %v1819, 4294901760
        %v8280 = vsub.f32 %v1819, %v8279
        %v8281 = vand.u32 %v8280, 4294901760
        %8282 = vmatpush1.msra.mxu0 %v8281
        %8283 = vmatprep.subr.mxu0 0.0
        %v8284 = vand.u32 %v1818, 4294901760
        %v8285 = vsub.f32 %v1818, %v8284
        %v8286 = vand.u32 %v8285, 4294901760
        %8287 = vmatpush1.msra.mxu0 %v8286
        %8288 = vmatprep.subr.mxu0 0.0
        %8289 = vmatpush2.msra.mxu0 0.0
        %8290 = vmatprep.subr.mxu0 0.0
        %8291 = vmatpush2.msra.mxu0 0.0
        %8292 = vmatprep.subr.mxu0 0.0
        %8293 = vmatpush2.msra.mxu0 0.0
        %8294 = vmatprep.subr.mxu0 0.0
        %8295 = vmatpush2.msra.mxu0 0.0
        %8296 = vmatprep.subr.mxu0 0.0
        %8297 = vmatpush2.msra.mxu0 0.0
        %8298 = vmatprep.subr.mxu0 0.0
        %8299 = vmatpush2.msra.mxu0 0.0
        %8300 = vmatprep.subr.mxu0 0.0
        %8301 = vmatpush2.msra.mxu0 0.0
        %8302 = vmatprep.subr.mxu0 0.0
        %8303 = vmatpush2.msra.mxu0 0.0
        %8304 = vmatprep.subr.mxu0 0.0
        %8305 = vmatpush2.msra.mxu0 0.0
        %8306 = vmatprep.subr.mxu0 0.0
        %8307 = vmatpush2.msra.mxu0 0.0
        %8308 = vmatprep.subr.mxu0 0.0
        %8309 = vmatpush2.msra.mxu0 0.0
        %8310 = vmatprep.subr.mxu0 0.0
        %8311 = vmatpush2.msra.mxu0 0.0
        %8312 = vmatprep.subr.mxu0 0.0
        %8313 = vmatpush2.msra.mxu0 0.0
        %8314 = vmatprep.subr.mxu0 0.0
        %8315 = vmatpush2.msra.mxu0 0.0
        %8316 = vmatprep.subr.mxu0 0.0
        %8317 = vmatpush2.msra.mxu0 0.0
        %8318 = vmatprep.subr.mxu0 0.0
        %8319 = vmatpush2.msra.mxu0 0.0
        %8320 = vmatprep.mubr.f32.mxu0 0.0
        %v8321 = vand.u32 %v7905, 4294901760
        %8322 = vmatmul.mubr.f32.gmra.mxu0 %v8321
        %v8323 = vpop.f32.mrf.mxu0
        %v8324 = vadd.f32 %v8239, %v8323
        %v8325 = vpop.f32.mrf.mxu0
        %8326 = vmatprep.mubr.f32.mxu0 0.0
        %v8327 = vand.u32 %v7908, 4294901760
        %8328 = vmatmul.mubr.f32.gmra.mxu0 %v8327
        %v8329 = vpop.f32.mrf.mxu0
        %v8330 = vadd.f32 %v8247, %v8329
        %v8331 = vpop.f32.mrf.mxu0
        %8332 = vdwg.mxu0
        %8333 = vmatprep.subr.mxu0 0.0
        %8334 = vmatpush1.msra.mxu0 0.0
        %8335 = vmatprep.subr.mxu0 0.0
        %8336 = vmatpush1.msra.mxu0 0.0
        %8337 = vmatprep.subr.mxu0 0.0
        %8338 = vmatpush1.msra.mxu0 0.0
        %8339 = vmatprep.subr.mxu0 0.0
        %8340 = vmatpush1.msra.mxu0 0.0
        %8341 = vmatprep.subr.mxu0 0.0
        %8342 = vmatpush1.msra.mxu0 0.0
        %8343 = vmatprep.subr.mxu0 0.0
        %8344 = vmatpush1.msra.mxu0 0.0
        %8345 = vmatprep.subr.mxu0 0.0
        %8346 = vmatpush1.msra.mxu0 0.0
        %8347 = vmatprep.subr.mxu0 0.0
        %8348 = vmatpush1.msra.mxu0 0.0
        %8349 = vmatprep.subr.mxu0 0.0
        %8350 = vmatpush1.msra.mxu0 0.0
        %8351 = vmatprep.subr.mxu0 0.0
        %8352 = vmatpush1.msra.mxu0 0.0
        %8353 = vmatprep.subr.mxu0 0.0
        %8354 = vmatpush1.msra.mxu0 0.0
        %8355 = vmatprep.subr.mxu0 0.0
        %8356 = vmatpush1.msra.mxu0 0.0
        %8357 = vmatprep.subr.mxu0 0.0
        %8358 = vmatpush1.msra.mxu0 0.0
        %8359 = vmatprep.subr.mxu0 0.0
        %8360 = vmatpush1.msra.mxu0 0.0
        %8361 = vmatprep.subr.mxu0 0.0
        %v8362 = vand.u32 %v1819, 4294901760
        %8363 = vmatpush1.msra.mxu0 %v8362
        %8364 = vmatprep.subr.mxu0 0.0
        %v8365 = vand.u32 %v1818, 4294901760
        %8366 = vmatpush1.msra.mxu0 %v8365
        %8367 = vmatprep.subr.mxu0 0.0
        %8368 = vmatpush2.msra.mxu0 0.0
        %8369 = vmatprep.subr.mxu0 0.0
        %8370 = vmatpush2.msra.mxu0 0.0
        %8371 = vmatprep.subr.mxu0 0.0
        %8372 = vmatpush2.msra.mxu0 0.0
        %8373 = vmatprep.subr.mxu0 0.0
        %8374 = vmatpush2.msra.mxu0 0.0
        %8375 = vmatprep.subr.mxu0 0.0
        %8376 = vmatpush2.msra.mxu0 0.0
        %8377 = vmatprep.subr.mxu0 0.0
        %8378 = vmatpush2.msra.mxu0 0.0
        %8379 = vmatprep.subr.mxu0 0.0
        %8380 = vmatpush2.msra.mxu0 0.0
        %8381 = vmatprep.subr.mxu0 0.0
        %8382 = vmatpush2.msra.mxu0 0.0
        %8383 = vmatprep.subr.mxu0 0.0
        %8384 = vmatpush2.msra.mxu0 0.0
        %8385 = vmatprep.subr.mxu0 0.0
        %8386 = vmatpush2.msra.mxu0 0.0
        %8387 = vmatprep.subr.mxu0 0.0
        %8388 = vmatpush2.msra.mxu0 0.0
        %8389 = vmatprep.subr.mxu0 0.0
        %8390 = vmatpush2.msra.mxu0 0.0
        %8391 = vmatprep.subr.mxu0 0.0
        %8392 = vmatpush2.msra.mxu0 0.0
        %8393 = vmatprep.subr.mxu0 0.0
        %8394 = vmatpush2.msra.mxu0 0.0
        %8395 = vmatprep.subr.mxu0 0.0
        %8396 = vmatpush2.msra.mxu0 0.0
        %8397 = vmatprep.subr.mxu0 0.0
        %8398 = vmatpush2.msra.mxu0 0.0
        %8399 = vmatprep.mubr.f32.mxu0 0.0
        %v8400 = vand.u32 %v7905, 4294901760
        %8401 = vmatmul.mubr.f32.gmra.mxu0 %v8400
        %v8402 = vpop.f32.mrf.mxu0
        %v8403 = vadd.f32 %v8324, %v8402
        %v8404 = vpop.f32.mrf.mxu0
        %8405 = vmatprep.mubr.f32.mxu0 0.0
        %v8406 = vand.u32 %v7908, 4294901760
        %8407 = vmatmul.mubr.f32.gmra.mxu0 %v8406
        %v8408 = vpop.f32.mrf.mxu0
        %v8409 = vadd.f32 %v8330, %v8408
        %v8410 = vpop.f32.mrf.mxu0
        %8411 = vdwg.mxu0
        %v8412 = vmul.f32 %v8403, 0.9071118
        %v8413 = vmul.f32 %v8409, 0.9071118
        %v8414 = vmul.f32 %v7393, 0.9071118
        %v8415 = vmul.f32 %v7399, 0.9071118
        %v8416 = vadd.f32 %v8412, %v8414
        %v8417 = vadd.f32 %v8413, %v8415
        %v8418 = vsub.f32 %v6390, %v8416
        %v8419 = vsub.f32 %v6391, %v8417
        %v8420 = vsel %vm291, %v8418, inf
        %v8421 = vsel %vm291, %v8419, inf
        %v8422 = vmin.f32 %v8420, %v8421
        %8423 = vmin.xlane.f32.xlu0 %v8422
        %v8424 = vpop.xlane.xlu0 %8423
        %v8425 = vrot.slane %v8424, 4
        %v8426 = vmin.f32 %v8424, %v8425
        %v8427 = vrot.slane %v8426, 2
        %v8428 = vmin.f32 %v8426, %v8427
        %v8429 = vrot.slane %v8428, 1
        %v8430 = vmin.f32 %v8428, %v8429
        %s8431 = vtos %v8430
        %v8432 = vsel %vm291, %v8418, -inf
        %v8433 = vsel %vm291, %v8419, -inf
        %v8434 = vmax.f32 %v8432, %v8433
        %8435 = vmax.xlane.f32.xlu0 %v8434
        %v8436 = vpop.xlane.xlu0 %8435
        %v8437 = vrot.slane %v8436, 4
        %v8438 = vmax.f32 %v8436, %v8437
        %v8439 = vrot.slane %v8438, 2
        %v8440 = vmax.f32 %v8438, %v8439
        %v8441 = vrot.slane %v8440, 1
        %v8442 = vmax.f32 %v8440, %v8441
        %s8443 = vtos %v8442
        %v8444 = vstv %s8431
        %v8445 = vsub.f32 %v8418, %v8444
        %v8446 = vsub.f32 %v8419, %v8444
        %s8447 = ssub.f32 %s8443, %s8431
        %v8448 = vstv %s8447
        %v8449 = vrcp.pop %v8448
        %s8450 = vtos %v8449
        %v8451 = vstv %s8450
        %v8452 = vmul.f32 %v8445, %v8451
        %v8453 = vmul.f32 %v8446, %v8451
        %8454 = vst.msk [vmem:[#allocation2] sm:$0xff] %vm291, %v8452
        %8455 = vst.msk [vmem:[#allocation2 + $0x8] sm:$0xff] %vm291, %v8453
        %8456 = vst.msk [vmem:[%s275] sm:$0xff] %vm291, %v8452
        %8457 = vst.msk [vmem:[%s275 + $0x8] sm:$0xff] %vm291, %v8453
        %s8458 = sand.u32 %s135, 1
        %s8459 = scalar_lea.sflag [#allocation5], %s8458
        %s8460 = sand.u32 %s135, 1
        %s8461 = smul.addr %s8460, 16
        %s8462 = scalar_lea.vmem [#allocation12], %s8461
        // Predicated region
        $region65: #{run.1} parent=39 // pred_check
          %p8463 = pneg %p145
        $region66: #{run.1} parent=39 // pred_check_branch
          %8465 = sbr.rel (%p8463) target = $region68
        $region67: #{run.1} parent=39 // pred_region
          %s8467 = ssub.s32 256, 256
          %8468 = vsyncadd %s8459, %s8467
          %s8469 = smul.addr %s22, 2
          %s8470 = smul.addr %s8469, 128
          %s8471 = scalar_lea.hbm %s5, %s8470
          %s8472 = sshll.u32 %s8462, 4
          %s8473 = int_to_ptr.vmem [resolvable:$true] %s8472
          %8478 = dma.vmem_to_hbm [thread:$0]  %s8473, 256, %s8471, %s8459, 128, 128, 8
        $region68: #{run.1} parent=39 // pred_fallthru
          _
      $region40: #{run.1} parent=5 // pred_fallthru
        _
      %p8479 = scmp.le.s32.totalorder 2, %s17
      // Predicated region
      $region69: #{run.1} parent=5 // pred_check
        %p8480 = pneg %p8479
      $region70: #{run.1} parent=5 // pred_check_branch
        %8482 = sbr.rel (%p8480) target = $region72
      $region71: #{run.1} parent=5 // pred_region
        %s8483 = ssub.s32 %s17, 2
        // Predicated region
        $region73: #{run.1} parent=71 // pred_check
          %p8484 = pneg %p151
        $region74: #{run.1} parent=71 // pred_check_branch
          %8486 = sbr.rel (%p8484) target = $region76
        $region75: #{run.1} parent=71 // pred_region
          %s8487 = sand.u32 %s136, 1
          %s8488 = scalar_lea.sflag [#allocation5], %s8487
          %s8489 = sand.u32 %s136, 1
          %s8490 = smul.addr %s8489, 16
          %s8491 = scalar_lea.vmem [#allocation12], %s8490
          %8492 = dma.done %s8488, 256
        $region76: #{run.1} parent=71 // pred_fallthru
          _
      $region72: #{run.1} parent=5 // pred_fallthru
        _
    $region6: #{run.1} parent=1 // loop_footer
      %s21 = sadd.s32 1, %s17
    $region7: #{run.1} parent=1 // loop_footer_branch
      %16 = sbr.rel target = $region3
    $region8: #{run.1} parent=1 // loop_exit
      _
    %8493 = vsyncpa [#allocation4], 1
    %s8494 = scalar_lea.sflag [#allocation4], 1
    %8495 = vsyncpa %s8494, 1
    %8496 = vsyncpa [#allocation7], 1
    %8497 = vsyncpa [#allocation10], 1
    %8498 = vsyncpa [#allocation5], 1
    %s8499 = scalar_lea.sflag [#allocation5], 1
    %8500 = vsyncpa %s8499, 1

</llo_original>
